<compile_context>
chip_gen: v5e
topology: v5e:2x2
jax: 0.10.0
libtpu: 0.0.40
codegen_flags: <defaults>
</compile_context>

<pallas_src>
import numpy as np
import jax
import jax.numpy as jnp
from jax.experimental import pallas as pl
from jax.experimental.pallas import tpu as pltpu

BN_EPS = 1e-5
LANE = 128


def _round_up(x, m):
    return (x + m - 1) // m * m


def _shift_matrices(h, w):
    """Nine (H*W, H*W) one-hot gather matrices: ReflectionPad2d(1) + 3x3 conv taps.

    shifted = act @ G[k] gives shifted[r, y*W+x] = act[r, reflect(y+dy)*W + reflect(x+dx)]
    with k = (dy+1)*3 + (dx+1), matching a reflect-padded 3x3 convolution tap.
    """
    hw = h * w
    idx = np.arange(hw)
    yy, xx = idx // w, idx % w
    mats = np.zeros((9, hw, hw), np.float32)
    k = 0
    for dy in (-1, 0, 1):
        for dx in (-1, 0, 1):
            ry = np.abs(yy + dy)
            ry = np.where(ry >= h, 2 * (h - 1) - ry, ry)
            rx = np.abs(xx + dx)
            rx = np.where(rx >= w, 2 * (w - 1) - rx, rx)
            mats[k, ry * w + rx, idx] = 1.0
            k += 1
    return jnp.asarray(mats)


# ----------------------------------------------------------------------------
# Fused kernel: one grid step == the whole network, both branches, all samples.
# Activation layout: rows = c*(2N) + b*N + n  (channel-major), lanes = H*W.
# ----------------------------------------------------------------------------
def _siamese_kernel(x_ref, g_ref,
                    m1_ref, bn1_ref, B1_ref,
                    m2_ref, bn2_ref, B2_ref,
                    m3_ref, bn3_ref, B3_ref,
                    w1_ref, b1_ref, w2_ref, b2_ref, w3_ref, b3_ref,
                    out_ref):
    hw = x_ref.shape[-1]
    r = x_ref.shape[0]            # 2 * N  (both branches stacked, input has 1 channel)
    n = r // 2                    # samples per branch == BN batch of each forward_once
    inv_cnt = 1.0 / float(n * hw)

    def conv_relu_bn(act, m_ref, bn_ref, B_ref):
        # act: (Cin*2N, HW).  m_ref: (9, Cout*2N, Cin*2N) = kron(W_tap, I_{2N}).
        r_out = m_ref.shape[1]
        acc = jnp.zeros((r_out, hw), jnp.float32)
        for k in range(9):
            shifted = jnp.dot(act, g_ref[k], preferred_element_type=jnp.float32)
            acc = acc + jnp.dot(m_ref[k], shifted, preferred_element_type=jnp.float32)
        # conv bias (pre-broadcast per row) + ReLU
        y = jnp.maximum(acc + bn_ref[0], 0.0)
        # BatchNorm2d with batch statistics of each branch's forward_once call:
        # B_ref is block-diagonal over (channel, branch) groups of N rows.
        gsum = jnp.dot(B_ref[...], y, preferred_element_type=jnp.float32)
        gsum2 = jnp.dot(B_ref[...], y * y, preferred_element_type=jnp.float32)
        mean = jnp.sum(gsum, axis=1, keepdims=True) * inv_cnt
        ex2 = jnp.sum(gsum2, axis=1, keepdims=True) * inv_cnt
        var = ex2 - mean * mean                      # biased variance
        scale = bn_ref[1] * jax.lax.rsqrt(var + BN_EPS)
        shift = bn_ref[2] - mean * scale
        return y * scale + shift

    a = conv_relu_bn(x_ref[...], m1_ref, bn1_ref, B1_ref)
    a = conv_relu_bn(a, m2_ref, bn2_ref, B2_ref)
    a = conv_relu_bn(a, m3_ref, bn3_ref, B3_ref)

    # PyTorch channel-major view(N, C*H*W): static sublane slices + 256-lane-aligned
    # lane concat -> (2N, C3*HW), matching W1's natural (C3*HW, F1) row order.
    c3 = a.shape[0] // r
    flat = jnp.concatenate([a[c * r:(c + 1) * r, :] for c in range(c3)], axis=1)
    h1 = jnp.maximum(
        jnp.dot(flat, w1_ref[...], preferred_element_type=jnp.float32) + b1_ref[...], 0.0)
    h2 = jnp.maximum(
        jnp.dot(h1, w2_ref[...], preferred_element_type=jnp.float32) + b2_ref[...], 0.0)
    out_ref[...] = (jnp.dot(h2, w3_ref[...], preferred_element_type=jnp.float32)
                    + b3_ref[...])


# ----------------------------------------------------------------------------
# Host-side packing of PyTorch-layout params into kernel-friendly VMEM layouts.
# ----------------------------------------------------------------------------
def _prepare_params(p, n, hw):
    r = 2 * n
    eye_r = jnp.eye(r, dtype=jnp.float32)

    def mix_taps(w):      # (Cout, Cin, 3, 3) -> (9, Cout*r, Cin*r), tap k = kh*3+kw
        cout, cin = w.shape[0], w.shape[1]
        taps = jnp.transpose(w, (2, 3, 0, 1)).reshape(9, cout, cin)
        return jnp.stack([jnp.kron(taps[k], eye_r) for k in range(9)], axis=0)

    def per_row(v):       # per-channel (C,) -> per-row (C*r, 1)
        return jnp.repeat(v, r)[:, None]

    def bn_pack(b, g, be):
        return jnp.stack([per_row(b), per_row(g), per_row(be)], axis=0)   # (3, C*r, 1)

    def group_mat(c):     # (C*r, C*r): 1 iff two rows share (channel, branch)
        return jnp.asarray(np.kron(np.eye(2 * c, dtype=np.float32),
                                   np.ones((n, n), dtype=np.float32)))

    c1, c2, c3 = p["w_c1"].shape[0], p["w_c2"].shape[0], p["w_c3"].shape[0]
    f1, fo = p["b_f1"].shape[0], p["b_f3"].shape[0]
    f1p, fop = _round_up(f1, LANE), _round_up(fo, LANE)        # 500->512, 5->128

    kp = dict(
        m1=mix_taps(p["w_c1"]), bn1=bn_pack(p["b_c1"], p["g_1"], p["be_1"]), B1=group_mat(c1),
        m2=mix_taps(p["w_c2"]), bn2=bn_pack(p["b_c2"], p["g_2"], p["be_2"]), B2=group_mat(c2),
        m3=mix_taps(p["w_c3"]), bn3=bn_pack(p["b_c3"], p["g_3"], p["be_3"]), B3=group_mat(c3),
        w1=jnp.pad(p["w_f1"], ((0, 0), (0, f1p - f1))),
        b1=jnp.pad(p["b_f1"], (0, f1p - f1))[None, :],
        w2=jnp.pad(p["w_f2"], ((0, f1p - f1), (0, f1p - f1))),
        b2=jnp.pad(p["b_f2"], (0, f1p - f1))[None, :],
        w3=jnp.pad(p["w_f3"], ((0, f1p - f1), (0, fop - fo))),
        b3=jnp.pad(p["b_f3"], (0, fop - fo))[None, :],
    )
    return kp, fop


@jax.jit
def siamese_forward(params, x1, x2):
    n, cin, h, w = x1.shape
    assert cin == 1
    hw = h * w
    r = 2 * n
    fo = params["b_f3"].shape[0]

    g = _shift_matrices(h, w)                                    # (9, HW, HW) constant
    kp, fop = _prepare_params(params, n, hw)
    x = jnp.concatenate([x1, x2], axis=0).reshape(r, hw)         # rows = b*N + n

    ins = [x, g,
           kp["m1"], kp["bn1"], kp["B1"],
           kp["m2"], kp["bn2"], kp["B2"],
           kp["m3"], kp["bn3"], kp["B3"],
           kp["w1"], kp["b1"], kp["w2"], kp["b2"], kp["w3"], kp["b3"]]

    def full(a):
        shp = a.shape
        return pl.BlockSpec(shp, lambda i, _s=shp: (0,) * len(_s))

    out = pl.pallas_call(
        _siamese_kernel,
        out_shape=jax.ShapeDtypeStruct((r, fop), jnp.float32),
        grid_spec=pltpu.PrefetchScalarGridSpec(
            num_scalar_prefetch=0,
            grid=(1,),                                           # whole net, one step
            in_specs=[full(a) for a in ins],
            out_specs=pl.BlockSpec((r, fop), lambda i: (0, 0)),
        ),
        compiler_params=pltpu.CompilerParams(
            dimension_semantics=("arbitrary",),
            vmem_limit_bytes=40 * 1024 * 1024,
        ),
    )(*ins)

    out = out[:, :fo].reshape(2, n, fo)                          # drop zero padding
    return out[0], out[1]


# ----------------------------------------------------------------------------
# Deterministic parameters + pure-JAX reference (training-mode BN semantics).
# ----------------------------------------------------------------------------
def init_params(key, h, w):
    ks = jax.random.split(key, 13)
    k_in = 8 * h * w
    f1, fo = 500, 5
    return {
        "w_c1": jax.random.normal(ks[0], (4, 1, 3, 3), jnp.float32) * 0.2,
        "b_c1": jax.random.normal(ks[1], (4,), jnp.float32) * 0.05,
        "g_1": 1.0 + 0.1 * jax.random.normal(ks[9], (4,), jnp.float32),
        "be_1": 0.1 * jax.random.normal(ks[10], (4,), jnp.float32),
        "w_c2": jax.random.normal(ks[2], (8, 4, 3, 3), jnp.float32) * 0.15,
        "b_c2": jax.random.normal(ks[3], (8,), jnp.float32) * 0.05,
        "g_2": 1.0 + 0.1 * jax.random.normal(ks[11], (8,), jnp.float32),
        "be_2": 0.1 * jax.random.normal(ks[12], (8,), jnp.float32),
        "w_c3": jax.random.normal(ks[4], (8, 8, 3, 3), jnp.float32) * 0.1,
        "b_c3": jax.random.normal(ks[5], (8,), jnp.float32) * 0.05,
        "g_3": jnp.ones((8,), jnp.float32), "be_3": jnp.zeros((8,), jnp.float32),
        "w_f1": jax.random.normal(ks[6], (k_in, f1), jnp.float32) / jnp.sqrt(float(k_in)),
        "b_f1": jnp.zeros((f1,), jnp.float32),
        "w_f2": jax.random.normal(ks[7], (f1, f1), jnp.float32) / jnp.sqrt(float(f1)),
        "b_f2": jnp.zeros((f1,), jnp.float32),
        "w_f3": jax.random.normal(ks[8], (f1, fo), jnp.float32) / jnp.sqrt(float(f1)),
        "b_f3": jnp.zeros((fo,), jnp.float32),
    }


@jax.jit
def _reference_forward_once(p, x):
    hp = jax.lax.Precision.HIGHEST

    def conv_block(x, w, b, gamma, beta):
        xp = jnp.pad(x, ((0, 0), (0, 0), (1, 1), (1, 1)), mode="reflect")
        y = jax.lax.conv_general_dilated(
            xp, w, (1, 1), "VALID",
            dimension_numbers=("NCHW", "OIHW", "NCHW"), precision=hp)
        y = jnp.maximum(y + b[None, :, None, None], 0.0)
        mean = jnp.mean(y, axis=(0, 2, 3), keepdims=True)
        var = jnp.mean((y - mean) ** 2, axis=(0, 2, 3), keepdims=True)
        y = (y - mean) * jax.lax.rsqrt(var + BN_EPS)
        return y * gamma[None, :, None, None] + beta[None, :, None, None]

    h = conv_block(x, p["w_c1"], p["b_c1"], p["g_1"], p["be_1"])
    h = conv_block(h, p["w_c2"], p["b_c2"], p["g_2"], p["be_2"])
    h = conv_block(h, p["w_c3"], p["b_c3"], p["g_3"], p["be_3"])
    h = h.reshape(h.shape[0], -1)
    h = jnp.maximum(jnp.dot(h, p["w_f1"], precision=hp) + p["b_f1"], 0.0)
    h = jnp.maximum(jnp.dot(h, p["w_f2"], precision=hp) + p["b_f2"], 0.0)
    return jnp.dot(h, p["w_f3"], precision=hp) + p["b_f3"]


if __name__ == "__main__":
    N, H, W = 2, 16, 16
    key = jax.random.PRNGKey(0)
    k_p, k_x1, k_x2 = jax.random.split(key, 3)
    params = init_params(k_p, H, W)
    x1 = jax.random.normal(k_x1, (N, 1, H, W), jnp.float32)
    x2 = jax.random.normal(k_x2, (N, 1, H, W), jnp.float32)

    out1, out2 = siamese_forward(params, x1, x2)
    jax.block_until_ready((out1, out2))
    assert out1.shape == (N, 5) and out2.shape == (N, 5)
    assert out1.dtype == jnp.float32 and out2.dtype == jnp.float32

    # pure-JAX reference check (same params, same per-branch batch-stat BN)
    r1 = _reference_forward_once(params, x1)
    r2 = _reference_forward_once(params, x2)
    err = max(float(jnp.max(jnp.abs(out1 - r1))), float(jnp.max(jnp.abs(out2 - r2))))
    assert err < 5e-2, f"kernel/reference mismatch: max abs err {err}"
    print("KERNEL_OK")
</pallas_src>

<mosaic_0001>
module attributes {stable_mosaic.version = 11 : i64} {
  func.func @_siamese_kernel(%arg0: i32, %arg1: memref<4x256xf32, #tpu.memory_space<vmem>>, %arg2: memref<9x256x256xf32, #tpu.memory_space<vmem>>, %arg3: memref<9x16x4xf32, #tpu.memory_space<vmem>>, %arg4: memref<3x16x1xf32, #tpu.memory_space<vmem>>, %arg5: memref<16x16xf32, #tpu.memory_space<vmem>>, %arg6: memref<9x32x16xf32, #tpu.memory_space<vmem>>, %arg7: memref<3x32x1xf32, #tpu.memory_space<vmem>>, %arg8: memref<32x32xf32, #tpu.memory_space<vmem>>, %arg9: memref<9x32x32xf32, #tpu.memory_space<vmem>>, %arg10: memref<3x32x1xf32, #tpu.memory_space<vmem>>, %arg11: memref<32x32xf32, #tpu.memory_space<vmem>>, %arg12: memref<2048x512xf32, #tpu.memory_space<vmem>>, %arg13: memref<1x512xf32, #tpu.memory_space<vmem>>, %arg14: memref<512x512xf32, #tpu.memory_space<vmem>>, %arg15: memref<1x512xf32, #tpu.memory_space<vmem>>, %arg16: memref<512x128xf32, #tpu.memory_space<vmem>>, %arg17: memref<1x128xf32, #tpu.memory_space<vmem>>, %arg18: memref<4x128xf32, #tpu.memory_space<vmem>>) attributes {dimension_semantics = [#tpu.dimension_semantics<arbitrary>], iteration_bounds = array<i64: 1>, scalar_prefetch = 0 : i64, scratch_operands = 0 : i64, tpu.core_type = #tpu.core_type<tc>, window_params = [{pipeline_mode = #tpu.pipeline_mode<synchronous>, transform_indices = @transform_0, window_bounds = array<i64: 4, 256>}, {pipeline_mode = #tpu.pipeline_mode<synchronous>, transform_indices = @transform_1, window_bounds = array<i64: 9, 256, 256>}, {pipeline_mode = #tpu.pipeline_mode<synchronous>, transform_indices = @transform_2, window_bounds = array<i64: 9, 16, 4>}, {pipeline_mode = #tpu.pipeline_mode<synchronous>, transform_indices = @transform_3, window_bounds = array<i64: 3, 16, 1>}, {pipeline_mode = #tpu.pipeline_mode<synchronous>, transform_indices = @transform_4, window_bounds = array<i64: 16, 16>}, {pipeline_mode = #tpu.pipeline_mode<synchronous>, transform_indices = @transform_5, window_bounds = array<i64: 9, 32, 16>}, {pipeline_mode = #tpu.pipeline_mode<synchronous>, transform_indices = @transform_6, window_bounds = array<i64: 3, 32, 1>}, {pipeline_mode = #tpu.pipeline_mode<synchronous>, transform_indices = @transform_7, window_bounds = array<i64: 32, 32>}, {pipeline_mode = #tpu.pipeline_mode<synchronous>, transform_indices = @transform_8, window_bounds = array<i64: 9, 32, 32>}, {pipeline_mode = #tpu.pipeline_mode<synchronous>, transform_indices = @transform_9, window_bounds = array<i64: 3, 32, 1>}, {pipeline_mode = #tpu.pipeline_mode<synchronous>, transform_indices = @transform_10, window_bounds = array<i64: 32, 32>}, {pipeline_mode = #tpu.pipeline_mode<synchronous>, transform_indices = @transform_11, window_bounds = array<i64: 2048, 512>}, {pipeline_mode = #tpu.pipeline_mode<synchronous>, transform_indices = @transform_12, window_bounds = array<i64: 1, 512>}, {pipeline_mode = #tpu.pipeline_mode<synchronous>, transform_indices = @transform_13, window_bounds = array<i64: 512, 512>}, {pipeline_mode = #tpu.pipeline_mode<synchronous>, transform_indices = @transform_14, window_bounds = array<i64: 1, 512>}, {pipeline_mode = #tpu.pipeline_mode<synchronous>, transform_indices = @transform_15, window_bounds = array<i64: 512, 128>}, {pipeline_mode = #tpu.pipeline_mode<synchronous>, transform_indices = @transform_16, window_bounds = array<i64: 1, 128>}, {pipeline_mode = #tpu.pipeline_mode<synchronous>, transform_indices = @transform_17, window_bounds = array<i64: 4, 128>}]} {
    %c0 = arith.constant 0 : index
    %c0_0 = arith.constant 0 : index
    %0 = vector.load %arg1[%c0, %c0_0] : memref<4x256xf32, #tpu.memory_space<vmem>>, vector<4x256xf32>
    %cst = arith.constant 0.000000e+00 : f32
    %1 = vector.broadcast %cst : f32 to vector<16x256xf32>
    %c0_1 = arith.constant 0 : index
    %c0_2 = arith.constant 0 : index
    %c0_3 = arith.constant 0 : index
    %2 = vector.load %arg2[%c0_1, %c0_2, %c0_3] : memref<9x256x256xf32, #tpu.memory_space<vmem>>, vector<1x256x256xf32>
    %3 = vector.shape_cast %2 : vector<1x256x256xf32> to vector<256x256xf32>
    %cst_4 = arith.constant dense<0.000000e+00> : vector<4x256xf32>
    %4 = tpu.matmul %0, %3, %cst_4 {dimension_numbers = #tpu.dot_dimension_numbers<[1], [0], [0], [1], [0, 0, 1, 1], [], []>} : vector<4x256xf32>, vector<256x256xf32>, vector<4x256xf32> -> vector<4x256xf32>
    %c0_5 = arith.constant 0 : index
    %c0_6 = arith.constant 0 : index
    %c0_7 = arith.constant 0 : index
    %5 = vector.load %arg3[%c0_5, %c0_6, %c0_7] : memref<9x16x4xf32, #tpu.memory_space<vmem>>, vector<1x16x4xf32>
    %6 = vector.shape_cast %5 : vector<1x16x4xf32> to vector<16x4xf32>
    %cst_8 = arith.constant dense<0.000000e+00> : vector<16x256xf32>
    %7 = tpu.matmul %6, %4, %cst_8 {dimension_numbers = #tpu.dot_dimension_numbers<[1], [0], [0], [1], [0, 0, 1, 1], [], []>} : vector<16x4xf32>, vector<4x256xf32>, vector<16x256xf32> -> vector<16x256xf32>
    %8 = arith.addf %1, %7 : vector<16x256xf32>
    %c1 = arith.constant 1 : index
    %c0_9 = arith.constant 0 : index
    %c0_10 = arith.constant 0 : index
    %9 = vector.load %arg2[%c1, %c0_9, %c0_10] : memref<9x256x256xf32, #tpu.memory_space<vmem>>, vector<1x256x256xf32>
    %10 = vector.shape_cast %9 : vector<1x256x256xf32> to vector<256x256xf32>
    %cst_11 = arith.constant dense<0.000000e+00> : vector<4x256xf32>
    %11 = tpu.matmul %0, %10, %cst_11 {dimension_numbers = #tpu.dot_dimension_numbers<[1], [0], [0], [1], [0, 0, 1, 1], [], []>} : vector<4x256xf32>, vector<256x256xf32>, vector<4x256xf32> -> vector<4x256xf32>
    %c1_12 = arith.constant 1 : index
    %c0_13 = arith.constant 0 : index
    %c0_14 = arith.constant 0 : index
    %12 = vector.load %arg3[%c1_12, %c0_13, %c0_14] : memref<9x16x4xf32, #tpu.memory_space<vmem>>, vector<1x16x4xf32>
    %13 = vector.shape_cast %12 : vector<1x16x4xf32> to vector<16x4xf32>
    %cst_15 = arith.constant dense<0.000000e+00> : vector<16x256xf32>
    %14 = tpu.matmul %13, %11, %cst_15 {dimension_numbers = #tpu.dot_dimension_numbers<[1], [0], [0], [1], [0, 0, 1, 1], [], []>} : vector<16x4xf32>, vector<4x256xf32>, vector<16x256xf32> -> vector<16x256xf32>
    %15 = arith.addf %8, %14 : vector<16x256xf32>
    %c2 = arith.constant 2 : index
    %c0_16 = arith.constant 0 : index
    %c0_17 = arith.constant 0 : index
    %16 = vector.load %arg2[%c2, %c0_16, %c0_17] : memref<9x256x256xf32, #tpu.memory_space<vmem>>, vector<1x256x256xf32>
    %17 = vector.shape_cast %16 : vector<1x256x256xf32> to vector<256x256xf32>
    %cst_18 = arith.constant dense<0.000000e+00> : vector<4x256xf32>
    %18 = tpu.matmul %0, %17, %cst_18 {dimension_numbers = #tpu.dot_dimension_numbers<[1], [0], [0], [1], [0, 0, 1, 1], [], []>} : vector<4x256xf32>, vector<256x256xf32>, vector<4x256xf32> -> vector<4x256xf32>
    %c2_19 = arith.constant 2 : index
    %c0_20 = arith.constant 0 : index
    %c0_21 = arith.constant 0 : index
    %19 = vector.load %arg3[%c2_19, %c0_20, %c0_21] : memref<9x16x4xf32, #tpu.memory_space<vmem>>, vector<1x16x4xf32>
    %20 = vector.shape_cast %19 : vector<1x16x4xf32> to vector<16x4xf32>
    %cst_22 = arith.constant dense<0.000000e+00> : vector<16x256xf32>
    %21 = tpu.matmul %20, %18, %cst_22 {dimension_numbers = #tpu.dot_dimension_numbers<[1], [0], [0], [1], [0, 0, 1, 1], [], []>} : vector<16x4xf32>, vector<4x256xf32>, vector<16x256xf32> -> vector<16x256xf32>
    %22 = arith.addf %15, %21 : vector<16x256xf32>
    %c3 = arith.constant 3 : index
    %c0_23 = arith.constant 0 : index
    %c0_24 = arith.constant 0 : index
    %23 = vector.load %arg2[%c3, %c0_23, %c0_24] : memref<9x256x256xf32, #tpu.memory_space<vmem>>, vector<1x256x256xf32>
    %24 = vector.shape_cast %23 : vector<1x256x256xf32> to vector<256x256xf32>
    %cst_25 = arith.constant dense<0.000000e+00> : vector<4x256xf32>
    %25 = tpu.matmul %0, %24, %cst_25 {dimension_numbers = #tpu.dot_dimension_numbers<[1], [0], [0], [1], [0, 0, 1, 1], [], []>} : vector<4x256xf32>, vector<256x256xf32>, vector<4x256xf32> -> vector<4x256xf32>
    %c3_26 = arith.constant 3 : index
    %c0_27 = arith.constant 0 : index
    %c0_28 = arith.constant 0 : index
    %26 = vector.load %arg3[%c3_26, %c0_27, %c0_28] : memref<9x16x4xf32, #tpu.memory_space<vmem>>, vector<1x16x4xf32>
    %27 = vector.shape_cast %26 : vector<1x16x4xf32> to vector<16x4xf32>
    %cst_29 = arith.constant dense<0.000000e+00> : vector<16x256xf32>
    %28 = tpu.matmul %27, %25, %cst_29 {dimension_numbers = #tpu.dot_dimension_numbers<[1], [0], [0], [1], [0, 0, 1, 1], [], []>} : vector<16x4xf32>, vector<4x256xf32>, vector<16x256xf32> -> vector<16x256xf32>
    %29 = arith.addf %22, %28 : vector<16x256xf32>
    %c4 = arith.constant 4 : index
    %c0_30 = arith.constant 0 : index
    %c0_31 = arith.constant 0 : index
    %30 = vector.load %arg2[%c4, %c0_30, %c0_31] : memref<9x256x256xf32, #tpu.memory_space<vmem>>, vector<1x256x256xf32>
    %31 = vector.shape_cast %30 : vector<1x256x256xf32> to vector<256x256xf32>
    %cst_32 = arith.constant dense<0.000000e+00> : vector<4x256xf32>
    %32 = tpu.matmul %0, %31, %cst_32 {dimension_numbers = #tpu.dot_dimension_numbers<[1], [0], [0], [1], [0, 0, 1, 1], [], []>} : vector<4x256xf32>, vector<256x256xf32>, vector<4x256xf32> -> vector<4x256xf32>
    %c4_33 = arith.constant 4 : index
    %c0_34 = arith.constant 0 : index
    %c0_35 = arith.constant 0 : index
    %33 = vector.load %arg3[%c4_33, %c0_34, %c0_35] : memref<9x16x4xf32, #tpu.memory_space<vmem>>, vector<1x16x4xf32>
    %34 = vector.shape_cast %33 : vector<1x16x4xf32> to vector<16x4xf32>
    %cst_36 = arith.constant dense<0.000000e+00> : vector<16x256xf32>
    %35 = tpu.matmul %34, %32, %cst_36 {dimension_numbers = #tpu.dot_dimension_numbers<[1], [0], [0], [1], [0, 0, 1, 1], [], []>} : vector<16x4xf32>, vector<4x256xf32>, vector<16x256xf32> -> vector<16x256xf32>
    %36 = arith.addf %29, %35 : vector<16x256xf32>
    %c5 = arith.constant 5 : index
    %c0_37 = arith.constant 0 : index
    %c0_38 = arith.constant 0 : index
    %37 = vector.load %arg2[%c5, %c0_37, %c0_38] : memref<9x256x256xf32, #tpu.memory_space<vmem>>, vector<1x256x256xf32>
    %38 = vector.shape_cast %37 : vector<1x256x256xf32> to vector<256x256xf32>
    %cst_39 = arith.constant dense<0.000000e+00> : vector<4x256xf32>
    %39 = tpu.matmul %0, %38, %cst_39 {dimension_numbers = #tpu.dot_dimension_numbers<[1], [0], [0], [1], [0, 0, 1, 1], [], []>} : vector<4x256xf32>, vector<256x256xf32>, vector<4x256xf32> -> vector<4x256xf32>
    %c5_40 = arith.constant 5 : index
    %c0_41 = arith.constant 0 : index
    %c0_42 = arith.constant 0 : index
    %40 = vector.load %arg3[%c5_40, %c0_41, %c0_42] : memref<9x16x4xf32, #tpu.memory_space<vmem>>, vector<1x16x4xf32>
    %41 = vector.shape_cast %40 : vector<1x16x4xf32> to vector<16x4xf32>
    %cst_43 = arith.constant dense<0.000000e+00> : vector<16x256xf32>
    %42 = tpu.matmul %41, %39, %cst_43 {dimension_numbers = #tpu.dot_dimension_numbers<[1], [0], [0], [1], [0, 0, 1, 1], [], []>} : vector<16x4xf32>, vector<4x256xf32>, vector<16x256xf32> -> vector<16x256xf32>
    %43 = arith.addf %36, %42 : vector<16x256xf32>
    %c6 = arith.constant 6 : index
    %c0_44 = arith.constant 0 : index
    %c0_45 = arith.constant 0 : index
    %44 = vector.load %arg2[%c6, %c0_44, %c0_45] : memref<9x256x256xf32, #tpu.memory_space<vmem>>, vector<1x256x256xf32>
    %45 = vector.shape_cast %44 : vector<1x256x256xf32> to vector<256x256xf32>
    %cst_46 = arith.constant dense<0.000000e+00> : vector<4x256xf32>
    %46 = tpu.matmul %0, %45, %cst_46 {dimension_numbers = #tpu.dot_dimension_numbers<[1], [0], [0], [1], [0, 0, 1, 1], [], []>} : vector<4x256xf32>, vector<256x256xf32>, vector<4x256xf32> -> vector<4x256xf32>
    %c6_47 = arith.constant 6 : index
    %c0_48 = arith.constant 0 : index
    %c0_49 = arith.constant 0 : index
    %47 = vector.load %arg3[%c6_47, %c0_48, %c0_49] : memref<9x16x4xf32, #tpu.memory_space<vmem>>, vector<1x16x4xf32>
    %48 = vector.shape_cast %47 : vector<1x16x4xf32> to vector<16x4xf32>
    %cst_50 = arith.constant dense<0.000000e+00> : vector<16x256xf32>
    %49 = tpu.matmul %48, %46, %cst_50 {dimension_numbers = #tpu.dot_dimension_numbers<[1], [0], [0], [1], [0, 0, 1, 1], [], []>} : vector<16x4xf32>, vector<4x256xf32>, vector<16x256xf32> -> vector<16x256xf32>
    %50 = arith.addf %43, %49 : vector<16x256xf32>
    %c7 = arith.constant 7 : index
    %c0_51 = arith.constant 0 : index
    %c0_52 = arith.constant 0 : index
    %51 = vector.load %arg2[%c7, %c0_51, %c0_52] : memref<9x256x256xf32, #tpu.memory_space<vmem>>, vector<1x256x256xf32>
    %52 = vector.shape_cast %51 : vector<1x256x256xf32> to vector<256x256xf32>
    %cst_53 = arith.constant dense<0.000000e+00> : vector<4x256xf32>
    %53 = tpu.matmul %0, %52, %cst_53 {dimension_numbers = #tpu.dot_dimension_numbers<[1], [0], [0], [1], [0, 0, 1, 1], [], []>} : vector<4x256xf32>, vector<256x256xf32>, vector<4x256xf32> -> vector<4x256xf32>
    %c7_54 = arith.constant 7 : index
    %c0_55 = arith.constant 0 : index
    %c0_56 = arith.constant 0 : index
    %54 = vector.load %arg3[%c7_54, %c0_55, %c0_56] : memref<9x16x4xf32, #tpu.memory_space<vmem>>, vector<1x16x4xf32>
    %55 = vector.shape_cast %54 : vector<1x16x4xf32> to vector<16x4xf32>
    %cst_57 = arith.constant dense<0.000000e+00> : vector<16x256xf32>
    %56 = tpu.matmul %55, %53, %cst_57 {dimension_numbers = #tpu.dot_dimension_numbers<[1], [0], [0], [1], [0, 0, 1, 1], [], []>} : vector<16x4xf32>, vector<4x256xf32>, vector<16x256xf32> -> vector<16x256xf32>
    %57 = arith.addf %50, %56 : vector<16x256xf32>
    %c8 = arith.constant 8 : index
    %c0_58 = arith.constant 0 : index
    %c0_59 = arith.constant 0 : index
    %58 = vector.load %arg2[%c8, %c0_58, %c0_59] : memref<9x256x256xf32, #tpu.memory_space<vmem>>, vector<1x256x256xf32>
    %59 = vector.shape_cast %58 : vector<1x256x256xf32> to vector<256x256xf32>
    %cst_60 = arith.constant dense<0.000000e+00> : vector<4x256xf32>
    %60 = tpu.matmul %0, %59, %cst_60 {dimension_numbers = #tpu.dot_dimension_numbers<[1], [0], [0], [1], [0, 0, 1, 1], [], []>} : vector<4x256xf32>, vector<256x256xf32>, vector<4x256xf32> -> vector<4x256xf32>
    %c8_61 = arith.constant 8 : index
    %c0_62 = arith.constant 0 : index
    %c0_63 = arith.constant 0 : index
    %61 = vector.load %arg3[%c8_61, %c0_62, %c0_63] : memref<9x16x4xf32, #tpu.memory_space<vmem>>, vector<1x16x4xf32>
    %62 = vector.shape_cast %61 : vector<1x16x4xf32> to vector<16x4xf32>
    %cst_64 = arith.constant dense<0.000000e+00> : vector<16x256xf32>
    %63 = tpu.matmul %62, %60, %cst_64 {dimension_numbers = #tpu.dot_dimension_numbers<[1], [0], [0], [1], [0, 0, 1, 1], [], []>} : vector<16x4xf32>, vector<4x256xf32>, vector<16x256xf32> -> vector<16x256xf32>
    %64 = arith.addf %57, %63 : vector<16x256xf32>
    %c0_65 = arith.constant 0 : index
    %c0_66 = arith.constant 0 : index
    %c0_67 = arith.constant 0 : index
    %65 = vector.load %arg4[%c0_65, %c0_66, %c0_67] : memref<3x16x1xf32, #tpu.memory_space<vmem>>, vector<1x16x1xf32>
    %66 = vector.shape_cast %65 : vector<1x16x1xf32> to vector<16x1xf32>
    %67 = vector.broadcast %66 : vector<16x1xf32> to vector<16x256xf32>
    %68 = arith.addf %64, %67 : vector<16x256xf32>
    %cst_68 = arith.constant 0.000000e+00 : f32
    %69 = vector.broadcast %cst_68 : f32 to vector<16x256xf32>
    %70 = arith.maximumf %68, %69 : vector<16x256xf32>
    %c0_69 = arith.constant 0 : index
    %c0_70 = arith.constant 0 : index
    %71 = vector.load %arg5[%c0_69, %c0_70] : memref<16x16xf32, #tpu.memory_space<vmem>>, vector<16x16xf32>
    %cst_71 = arith.constant dense<0.000000e+00> : vector<16x256xf32>
    %72 = tpu.matmul %71, %70, %cst_71 {dimension_numbers = #tpu.dot_dimension_numbers<[1], [0], [0], [1], [0, 0, 1, 1], [], []>} : vector<16x16xf32>, vector<16x256xf32>, vector<16x256xf32> -> vector<16x256xf32>
    %c0_72 = arith.constant 0 : index
    %c0_73 = arith.constant 0 : index
    %73 = vector.load %arg5[%c0_72, %c0_73] : memref<16x16xf32, #tpu.memory_space<vmem>>, vector<16x16xf32>
    %74 = arith.mulf %70, %70 : vector<16x256xf32>
    %cst_74 = arith.constant dense<0.000000e+00> : vector<16x256xf32>
    %75 = tpu.matmul %73, %74, %cst_74 {dimension_numbers = #tpu.dot_dimension_numbers<[1], [0], [0], [1], [0, 0, 1, 1], [], []>} : vector<16x16xf32>, vector<16x256xf32>, vector<16x256xf32> -> vector<16x256xf32>
    %cst_75 = arith.constant dense<0.000000e+00> : vector<16xf32>
    %76 = vector.multi_reduction <add>, %72, %cst_75 [1] : vector<16x256xf32> to vector<16xf32>
    %77 = vector.shape_cast %76 : vector<16xf32> to vector<16x1xf32>
    %cst_76 = arith.constant 0.001953125 : f32
    %78 = vector.broadcast %cst_76 : f32 to vector<16x1xf32>
    %79 = arith.mulf %77, %78 : vector<16x1xf32>
    %cst_77 = arith.constant dense<0.000000e+00> : vector<16xf32>
    %80 = vector.multi_reduction <add>, %75, %cst_77 [1] : vector<16x256xf32> to vector<16xf32>
    %81 = vector.shape_cast %80 : vector<16xf32> to vector<16x1xf32>
    %cst_78 = arith.constant 0.001953125 : f32
    %82 = vector.broadcast %cst_78 : f32 to vector<16x1xf32>
    %83 = arith.mulf %81, %82 : vector<16x1xf32>
    %84 = arith.mulf %79, %79 : vector<16x1xf32>
    %85 = arith.subf %83, %84 : vector<16x1xf32>
    %c1_79 = arith.constant 1 : index
    %c0_80 = arith.constant 0 : index
    %c0_81 = arith.constant 0 : index
    %86 = vector.load %arg4[%c1_79, %c0_80, %c0_81] : memref<3x16x1xf32, #tpu.memory_space<vmem>>, vector<1x16x1xf32>
    %87 = vector.shape_cast %86 : vector<1x16x1xf32> to vector<16x1xf32>
    %cst_82 = arith.constant 9.99999974E-6 : f32
    %88 = vector.broadcast %cst_82 : f32 to vector<16x1xf32>
    %89 = arith.addf %85, %88 : vector<16x1xf32>
    %90 = math.rsqrt %89 : vector<16x1xf32>
    %91 = arith.mulf %87, %90 : vector<16x1xf32>
    %c2_83 = arith.constant 2 : index
    %c0_84 = arith.constant 0 : index
    %c0_85 = arith.constant 0 : index
    %92 = vector.load %arg4[%c2_83, %c0_84, %c0_85] : memref<3x16x1xf32, #tpu.memory_space<vmem>>, vector<1x16x1xf32>
    %93 = vector.shape_cast %92 : vector<1x16x1xf32> to vector<16x1xf32>
    %94 = arith.mulf %79, %91 : vector<16x1xf32>
    %95 = arith.subf %93, %94 : vector<16x1xf32>
    %96 = vector.broadcast %91 : vector<16x1xf32> to vector<16x256xf32>
    %97 = arith.mulf %70, %96 : vector<16x256xf32>
    %98 = vector.broadcast %95 : vector<16x1xf32> to vector<16x256xf32>
    %99 = arith.addf %97, %98 : vector<16x256xf32>
    %cst_86 = arith.constant 0.000000e+00 : f32
    %100 = vector.broadcast %cst_86 : f32 to vector<32x256xf32>
    %c0_87 = arith.constant 0 : index
    %c0_88 = arith.constant 0 : index
    %c0_89 = arith.constant 0 : index
    %101 = vector.load %arg2[%c0_87, %c0_88, %c0_89] : memref<9x256x256xf32, #tpu.memory_space<vmem>>, vector<1x256x256xf32>
    %102 = vector.shape_cast %101 : vector<1x256x256xf32> to vector<256x256xf32>
    %cst_90 = arith.constant dense<0.000000e+00> : vector<16x256xf32>
    %103 = tpu.matmul %99, %102, %cst_90 {dimension_numbers = #tpu.dot_dimension_numbers<[1], [0], [0], [1], [0, 0, 1, 1], [], []>} : vector<16x256xf32>, vector<256x256xf32>, vector<16x256xf32> -> vector<16x256xf32>
    %c0_91 = arith.constant 0 : index
    %c0_92 = arith.constant 0 : index
    %c0_93 = arith.constant 0 : index
    %104 = vector.load %arg6[%c0_91, %c0_92, %c0_93] : memref<9x32x16xf32, #tpu.memory_space<vmem>>, vector<1x32x16xf32>
    %105 = vector.shape_cast %104 : vector<1x32x16xf32> to vector<32x16xf32>
    %cst_94 = arith.constant dense<0.000000e+00> : vector<32x256xf32>
    %106 = tpu.matmul %105, %103, %cst_94 {dimension_numbers = #tpu.dot_dimension_numbers<[1], [0], [0], [1], [0, 0, 1, 1], [], []>} : vector<32x16xf32>, vector<16x256xf32>, vector<32x256xf32> -> vector<32x256xf32>
    %107 = arith.addf %100, %106 : vector<32x256xf32>
    %c1_95 = arith.constant 1 : index
    %c0_96 = arith.constant 0 : index
    %c0_97 = arith.constant 0 : index
    %108 = vector.load %arg2[%c1_95, %c0_96, %c0_97] : memref<9x256x256xf32, #tpu.memory_space<vmem>>, vector<1x256x256xf32>
    %109 = vector.shape_cast %108 : vector<1x256x256xf32> to vector<256x256xf32>
    %cst_98 = arith.constant dense<0.000000e+00> : vector<16x256xf32>
    %110 = tpu.matmul %99, %109, %cst_98 {dimension_numbers = #tpu.dot_dimension_numbers<[1], [0], [0], [1], [0, 0, 1, 1], [], []>} : vector<16x256xf32>, vector<256x256xf32>, vector<16x256xf32> -> vector<16x256xf32>
    %c1_99 = arith.constant 1 : index
    %c0_100 = arith.constant 0 : index
    %c0_101 = arith.constant 0 : index
    %111 = vector.load %arg6[%c1_99, %c0_100, %c0_101] : memref<9x32x16xf32, #tpu.memory_space<vmem>>, vector<1x32x16xf32>
    %112 = vector.shape_cast %111 : vector<1x32x16xf32> to vector<32x16xf32>
    %cst_102 = arith.constant dense<0.000000e+00> : vector<32x256xf32>
    %113 = tpu.matmul %112, %110, %cst_102 {dimension_numbers = #tpu.dot_dimension_numbers<[1], [0], [0], [1], [0, 0, 1, 1], [], []>} : vector<32x16xf32>, vector<16x256xf32>, vector<32x256xf32> -> vector<32x256xf32>
    %114 = arith.addf %107, %113 : vector<32x256xf32>
    %c2_103 = arith.constant 2 : index
    %c0_104 = arith.constant 0 : index
    %c0_105 = arith.constant 0 : index
    %115 = vector.load %arg2[%c2_103, %c0_104, %c0_105] : memref<9x256x256xf32, #tpu.memory_space<vmem>>, vector<1x256x256xf32>
    %116 = vector.shape_cast %115 : vector<1x256x256xf32> to vector<256x256xf32>
    %cst_106 = arith.constant dense<0.000000e+00> : vector<16x256xf32>
    %117 = tpu.matmul %99, %116, %cst_106 {dimension_numbers = #tpu.dot_dimension_numbers<[1], [0], [0], [1], [0, 0, 1, 1], [], []>} : vector<16x256xf32>, vector<256x256xf32>, vector<16x256xf32> -> vector<16x256xf32>
    %c2_107 = arith.constant 2 : index
    %c0_108 = arith.constant 0 : index
    %c0_109 = arith.constant 0 : index
    %118 = vector.load %arg6[%c2_107, %c0_108, %c0_109] : memref<9x32x16xf32, #tpu.memory_space<vmem>>, vector<1x32x16xf32>
    %119 = vector.shape_cast %118 : vector<1x32x16xf32> to vector<32x16xf32>
    %cst_110 = arith.constant dense<0.000000e+00> : vector<32x256xf32>
    %120 = tpu.matmul %119, %117, %cst_110 {dimension_numbers = #tpu.dot_dimension_numbers<[1], [0], [0], [1], [0, 0, 1, 1], [], []>} : vector<32x16xf32>, vector<16x256xf32>, vector<32x256xf32> -> vector<32x256xf32>
    %121 = arith.addf %114, %120 : vector<32x256xf32>
    %c3_111 = arith.constant 3 : index
    %c0_112 = arith.constant 0 : index
    %c0_113 = arith.constant 0 : index
    %122 = vector.load %arg2[%c3_111, %c0_112, %c0_113] : memref<9x256x256xf32, #tpu.memory_space<vmem>>, vector<1x256x256xf32>
    %123 = vector.shape_cast %122 : vector<1x256x256xf32> to vector<256x256xf32>
    %cst_114 = arith.constant dense<0.000000e+00> : vector<16x256xf32>
    %124 = tpu.matmul %99, %123, %cst_114 {dimension_numbers = #tpu.dot_dimension_numbers<[1], [0], [0], [1], [0, 0, 1, 1], [], []>} : vector<16x256xf32>, vector<256x256xf32>, vector<16x256xf32> -> vector<16x256xf32>
    %c3_115 = arith.constant 3 : index
    %c0_116 = arith.constant 0 : index
    %c0_117 = arith.constant 0 : index
    %125 = vector.load %arg6[%c3_115, %c0_116, %c0_117] : memref<9x32x16xf32, #tpu.memory_space<vmem>>, vector<1x32x16xf32>
    %126 = vector.shape_cast %125 : vector<1x32x16xf32> to vector<32x16xf32>
    %cst_118 = arith.constant dense<0.000000e+00> : vector<32x256xf32>
    %127 = tpu.matmul %126, %124, %cst_118 {dimension_numbers = #tpu.dot_dimension_numbers<[1], [0], [0], [1], [0, 0, 1, 1], [], []>} : vector<32x16xf32>, vector<16x256xf32>, vector<32x256xf32> -> vector<32x256xf32>
    %128 = arith.addf %121, %127 : vector<32x256xf32>
    %c4_119 = arith.constant 4 : index
    %c0_120 = arith.constant 0 : index
    %c0_121 = arith.constant 0 : index
    %129 = vector.load %arg2[%c4_119, %c0_120, %c0_121] : memref<9x256x256xf32, #tpu.memory_space<vmem>>, vector<1x256x256xf32>
    %130 = vector.shape_cast %129 : vector<1x256x256xf32> to vector<256x256xf32>
    %cst_122 = arith.constant dense<0.000000e+00> : vector<16x256xf32>
    %131 = tpu.matmul %99, %130, %cst_122 {dimension_numbers = #tpu.dot_dimension_numbers<[1], [0], [0], [1], [0, 0, 1, 1], [], []>} : vector<16x256xf32>, vector<256x256xf32>, vector<16x256xf32> -> vector<16x256xf32>
    %c4_123 = arith.constant 4 : index
    %c0_124 = arith.constant 0 : index
    %c0_125 = arith.constant 0 : index
    %132 = vector.load %arg6[%c4_123, %c0_124, %c0_125] : memref<9x32x16xf32, #tpu.memory_space<vmem>>, vector<1x32x16xf32>
    %133 = vector.shape_cast %132 : vector<1x32x16xf32> to vector<32x16xf32>
    %cst_126 = arith.constant dense<0.000000e+00> : vector<32x256xf32>
    %134 = tpu.matmul %133, %131, %cst_126 {dimension_numbers = #tpu.dot_dimension_numbers<[1], [0], [0], [1], [0, 0, 1, 1], [], []>} : vector<32x16xf32>, vector<16x256xf32>, vector<32x256xf32> -> vector<32x256xf32>
    %135 = arith.addf %128, %134 : vector<32x256xf32>
    %c5_127 = arith.constant 5 : index
    %c0_128 = arith.constant 0 : index
    %c0_129 = arith.constant 0 : index
    %136 = vector.load %arg2[%c5_127, %c0_128, %c0_129] : memref<9x256x256xf32, #tpu.memory_space<vmem>>, vector<1x256x256xf32>
    %137 = vector.shape_cast %136 : vector<1x256x256xf32> to vector<256x256xf32>
    %cst_130 = arith.constant dense<0.000000e+00> : vector<16x256xf32>
    %138 = tpu.matmul %99, %137, %cst_130 {dimension_numbers = #tpu.dot_dimension_numbers<[1], [0], [0], [1], [0, 0, 1, 1], [], []>} : vector<16x256xf32>, vector<256x256xf32>, vector<16x256xf32> -> vector<16x256xf32>
    %c5_131 = arith.constant 5 : index
    %c0_132 = arith.constant 0 : index
    %c0_133 = arith.constant 0 : index
    %139 = vector.load %arg6[%c5_131, %c0_132, %c0_133] : memref<9x32x16xf32, #tpu.memory_space<vmem>>, vector<1x32x16xf32>
    %140 = vector.shape_cast %139 : vector<1x32x16xf32> to vector<32x16xf32>
    %cst_134 = arith.constant dense<0.000000e+00> : vector<32x256xf32>
    %141 = tpu.matmul %140, %138, %cst_134 {dimension_numbers = #tpu.dot_dimension_numbers<[1], [0], [0], [1], [0, 0, 1, 1], [], []>} : vector<32x16xf32>, vector<16x256xf32>, vector<32x256xf32> -> vector<32x256xf32>
    %142 = arith.addf %135, %141 : vector<32x256xf32>
    %c6_135 = arith.constant 6 : index
    %c0_136 = arith.constant 0 : index
    %c0_137 = arith.constant 0 : index
    %143 = vector.load %arg2[%c6_135, %c0_136, %c0_137] : memref<9x256x256xf32, #tpu.memory_space<vmem>>, vector<1x256x256xf32>
    %144 = vector.shape_cast %143 : vector<1x256x256xf32> to vector<256x256xf32>
    %cst_138 = arith.constant dense<0.000000e+00> : vector<16x256xf32>
    %145 = tpu.matmul %99, %144, %cst_138 {dimension_numbers = #tpu.dot_dimension_numbers<[1], [0], [0], [1], [0, 0, 1, 1], [], []>} : vector<16x256xf32>, vector<256x256xf32>, vector<16x256xf32> -> vector<16x256xf32>
    %c6_139 = arith.constant 6 : index
    %c0_140 = arith.constant 0 : index
    %c0_141 = arith.constant 0 : index
    %146 = vector.load %arg6[%c6_139, %c0_140, %c0_141] : memref<9x32x16xf32, #tpu.memory_space<vmem>>, vector<1x32x16xf32>
    %147 = vector.shape_cast %146 : vector<1x32x16xf32> to vector<32x16xf32>
    %cst_142 = arith.constant dense<0.000000e+00> : vector<32x256xf32>
    %148 = tpu.matmul %147, %145, %cst_142 {dimension_numbers = #tpu.dot_dimension_numbers<[1], [0], [0], [1], [0, 0, 1, 1], [], []>} : vector<32x16xf32>, vector<16x256xf32>, vector<32x256xf32> -> vector<32x256xf32>
    %149 = arith.addf %142, %148 : vector<32x256xf32>
    %c7_143 = arith.constant 7 : index
    %c0_144 = arith.constant 0 : index
    %c0_145 = arith.constant 0 : index
    %150 = vector.load %arg2[%c7_143, %c0_144, %c0_145] : memref<9x256x256xf32, #tpu.memory_space<vmem>>, vector<1x256x256xf32>
    %151 = vector.shape_cast %150 : vector<1x256x256xf32> to vector<256x256xf32>
    %cst_146 = arith.constant dense<0.000000e+00> : vector<16x256xf32>
    %152 = tpu.matmul %99, %151, %cst_146 {dimension_numbers = #tpu.dot_dimension_numbers<[1], [0], [0], [1], [0, 0, 1, 1], [], []>} : vector<16x256xf32>, vector<256x256xf32>, vector<16x256xf32> -> vector<16x256xf32>
    %c7_147 = arith.constant 7 : index
    %c0_148 = arith.constant 0 : index
    %c0_149 = arith.constant 0 : index
    %153 = vector.load %arg6[%c7_147, %c0_148, %c0_149] : memref<9x32x16xf32, #tpu.memory_space<vmem>>, vector<1x32x16xf32>
    %154 = vector.shape_cast %153 : vector<1x32x16xf32> to vector<32x16xf32>
    %cst_150 = arith.constant dense<0.000000e+00> : vector<32x256xf32>
    %155 = tpu.matmul %154, %152, %cst_150 {dimension_numbers = #tpu.dot_dimension_numbers<[1], [0], [0], [1], [0, 0, 1, 1], [], []>} : vector<32x16xf32>, vector<16x256xf32>, vector<32x256xf32> -> vector<32x256xf32>
    %156 = arith.addf %149, %155 : vector<32x256xf32>
    %c8_151 = arith.constant 8 : index
    %c0_152 = arith.constant 0 : index
    %c0_153 = arith.constant 0 : index
    %157 = vector.load %arg2[%c8_151, %c0_152, %c0_153] : memref<9x256x256xf32, #tpu.memory_space<vmem>>, vector<1x256x256xf32>
    %158 = vector.shape_cast %157 : vector<1x256x256xf32> to vector<256x256xf32>
    %cst_154 = arith.constant dense<0.000000e+00> : vector<16x256xf32>
    %159 = tpu.matmul %99, %158, %cst_154 {dimension_numbers = #tpu.dot_dimension_numbers<[1], [0], [0], [1], [0, 0, 1, 1], [], []>} : vector<16x256xf32>, vector<256x256xf32>, vector<16x256xf32> -> vector<16x256xf32>
    %c8_155 = arith.constant 8 : index
    %c0_156 = arith.constant 0 : index
    %c0_157 = arith.constant 0 : index
    %160 = vector.load %arg6[%c8_155, %c0_156, %c0_157] : memref<9x32x16xf32, #tpu.memory_space<vmem>>, vector<1x32x16xf32>
    %161 = vector.shape_cast %160 : vector<1x32x16xf32> to vector<32x16xf32>
    %cst_158 = arith.constant dense<0.000000e+00> : vector<32x256xf32>
    %162 = tpu.matmul %161, %159, %cst_158 {dimension_numbers = #tpu.dot_dimension_numbers<[1], [0], [0], [1], [0, 0, 1, 1], [], []>} : vector<32x16xf32>, vector<16x256xf32>, vector<32x256xf32> -> vector<32x256xf32>
    %163 = arith.addf %156, %162 : vector<32x256xf32>
    %c0_159 = arith.constant 0 : index
    %c0_160 = arith.constant 0 : index
    %c0_161 = arith.constant 0 : index
    %164 = vector.load %arg7[%c0_159, %c0_160, %c0_161] : memref<3x32x1xf32, #tpu.memory_space<vmem>>, vector<1x32x1xf32>
    %165 = vector.shape_cast %164 : vector<1x32x1xf32> to vector<32x1xf32>
    %166 = vector.broadcast %165 : vector<32x1xf32> to vector<32x256xf32>
    %167 = arith.addf %163, %166 : vector<32x256xf32>
    %cst_162 = arith.constant 0.000000e+00 : f32
    %168 = vector.broadcast %cst_162 : f32 to vector<32x256xf32>
    %169 = arith.maximumf %167, %168 : vector<32x256xf32>
    %c0_163 = arith.constant 0 : index
    %c0_164 = arith.constant 0 : index
    %170 = vector.load %arg8[%c0_163, %c0_164] : memref<32x32xf32, #tpu.memory_space<vmem>>, vector<32x32xf32>
    %cst_165 = arith.constant dense<0.000000e+00> : vector<32x256xf32>
    %171 = tpu.matmul %170, %169, %cst_165 {dimension_numbers = #tpu.dot_dimension_numbers<[1], [0], [0], [1], [0, 0, 1, 1], [], []>} : vector<32x32xf32>, vector<32x256xf32>, vector<32x256xf32> -> vector<32x256xf32>
    %c0_166 = arith.constant 0 : index
    %c0_167 = arith.constant 0 : index
    %172 = vector.load %arg8[%c0_166, %c0_167] : memref<32x32xf32, #tpu.memory_space<vmem>>, vector<32x32xf32>
    %173 = arith.mulf %169, %169 : vector<32x256xf32>
    %cst_168 = arith.constant dense<0.000000e+00> : vector<32x256xf32>
    %174 = tpu.matmul %172, %173, %cst_168 {dimension_numbers = #tpu.dot_dimension_numbers<[1], [0], [0], [1], [0, 0, 1, 1], [], []>} : vector<32x32xf32>, vector<32x256xf32>, vector<32x256xf32> -> vector<32x256xf32>
    %cst_169 = arith.constant dense<0.000000e+00> : vector<32xf32>
    %175 = vector.multi_reduction <add>, %171, %cst_169 [1] : vector<32x256xf32> to vector<32xf32>
    %176 = vector.shape_cast %175 : vector<32xf32> to vector<32x1xf32>
    %cst_170 = arith.constant 0.001953125 : f32
    %177 = vector.broadcast %cst_170 : f32 to vector<32x1xf32>
    %178 = arith.mulf %176, %177 : vector<32x1xf32>
    %cst_171 = arith.constant dense<0.000000e+00> : vector<32xf32>
    %179 = vector.multi_reduction <add>, %174, %cst_171 [1] : vector<32x256xf32> to vector<32xf32>
    %180 = vector.shape_cast %179 : vector<32xf32> to vector<32x1xf32>
    %cst_172 = arith.constant 0.001953125 : f32
    %181 = vector.broadcast %cst_172 : f32 to vector<32x1xf32>
    %182 = arith.mulf %180, %181 : vector<32x1xf32>
    %183 = arith.mulf %178, %178 : vector<32x1xf32>
    %184 = arith.subf %182, %183 : vector<32x1xf32>
    %c1_173 = arith.constant 1 : index
    %c0_174 = arith.constant 0 : index
    %c0_175 = arith.constant 0 : index
    %185 = vector.load %arg7[%c1_173, %c0_174, %c0_175] : memref<3x32x1xf32, #tpu.memory_space<vmem>>, vector<1x32x1xf32>
    %186 = vector.shape_cast %185 : vector<1x32x1xf32> to vector<32x1xf32>
    %cst_176 = arith.constant 9.99999974E-6 : f32
    %187 = vector.broadcast %cst_176 : f32 to vector<32x1xf32>
    %188 = arith.addf %184, %187 : vector<32x1xf32>
    %189 = math.rsqrt %188 : vector<32x1xf32>
    %190 = arith.mulf %186, %189 : vector<32x1xf32>
    %c2_177 = arith.constant 2 : index
    %c0_178 = arith.constant 0 : index
    %c0_179 = arith.constant 0 : index
    %191 = vector.load %arg7[%c2_177, %c0_178, %c0_179] : memref<3x32x1xf32, #tpu.memory_space<vmem>>, vector<1x32x1xf32>
    %192 = vector.shape_cast %191 : vector<1x32x1xf32> to vector<32x1xf32>
    %193 = arith.mulf %178, %190 : vector<32x1xf32>
    %194 = arith.subf %192, %193 : vector<32x1xf32>
    %195 = vector.broadcast %190 : vector<32x1xf32> to vector<32x256xf32>
    %196 = arith.mulf %169, %195 : vector<32x256xf32>
    %197 = vector.broadcast %194 : vector<32x1xf32> to vector<32x256xf32>
    %198 = arith.addf %196, %197 : vector<32x256xf32>
    %cst_180 = arith.constant 0.000000e+00 : f32
    %199 = vector.broadcast %cst_180 : f32 to vector<32x256xf32>
    %c0_181 = arith.constant 0 : index
    %c0_182 = arith.constant 0 : index
    %c0_183 = arith.constant 0 : index
    %200 = vector.load %arg2[%c0_181, %c0_182, %c0_183] : memref<9x256x256xf32, #tpu.memory_space<vmem>>, vector<1x256x256xf32>
    %201 = vector.shape_cast %200 : vector<1x256x256xf32> to vector<256x256xf32>
    %cst_184 = arith.constant dense<0.000000e+00> : vector<32x256xf32>
    %202 = tpu.matmul %198, %201, %cst_184 {dimension_numbers = #tpu.dot_dimension_numbers<[1], [0], [0], [1], [0, 0, 1, 1], [], []>} : vector<32x256xf32>, vector<256x256xf32>, vector<32x256xf32> -> vector<32x256xf32>
    %c0_185 = arith.constant 0 : index
    %c0_186 = arith.constant 0 : index
    %c0_187 = arith.constant 0 : index
    %203 = vector.load %arg9[%c0_185, %c0_186, %c0_187] : memref<9x32x32xf32, #tpu.memory_space<vmem>>, vector<1x32x32xf32>
    %204 = vector.shape_cast %203 : vector<1x32x32xf32> to vector<32x32xf32>
    %cst_188 = arith.constant dense<0.000000e+00> : vector<32x256xf32>
    %205 = tpu.matmul %204, %202, %cst_188 {dimension_numbers = #tpu.dot_dimension_numbers<[1], [0], [0], [1], [0, 0, 1, 1], [], []>} : vector<32x32xf32>, vector<32x256xf32>, vector<32x256xf32> -> vector<32x256xf32>
    %206 = arith.addf %199, %205 : vector<32x256xf32>
    %c1_189 = arith.constant 1 : index
    %c0_190 = arith.constant 0 : index
    %c0_191 = arith.constant 0 : index
    %207 = vector.load %arg2[%c1_189, %c0_190, %c0_191] : memref<9x256x256xf32, #tpu.memory_space<vmem>>, vector<1x256x256xf32>
    %208 = vector.shape_cast %207 : vector<1x256x256xf32> to vector<256x256xf32>
    %cst_192 = arith.constant dense<0.000000e+00> : vector<32x256xf32>
    %209 = tpu.matmul %198, %208, %cst_192 {dimension_numbers = #tpu.dot_dimension_numbers<[1], [0], [0], [1], [0, 0, 1, 1], [], []>} : vector<32x256xf32>, vector<256x256xf32>, vector<32x256xf32> -> vector<32x256xf32>
    %c1_193 = arith.constant 1 : index
    %c0_194 = arith.constant 0 : index
    %c0_195 = arith.constant 0 : index
    %210 = vector.load %arg9[%c1_193, %c0_194, %c0_195] : memref<9x32x32xf32, #tpu.memory_space<vmem>>, vector<1x32x32xf32>
    %211 = vector.shape_cast %210 : vector<1x32x32xf32> to vector<32x32xf32>
    %cst_196 = arith.constant dense<0.000000e+00> : vector<32x256xf32>
    %212 = tpu.matmul %211, %209, %cst_196 {dimension_numbers = #tpu.dot_dimension_numbers<[1], [0], [0], [1], [0, 0, 1, 1], [], []>} : vector<32x32xf32>, vector<32x256xf32>, vector<32x256xf32> -> vector<32x256xf32>
    %213 = arith.addf %206, %212 : vector<32x256xf32>
    %c2_197 = arith.constant 2 : index
    %c0_198 = arith.constant 0 : index
    %c0_199 = arith.constant 0 : index
    %214 = vector.load %arg2[%c2_197, %c0_198, %c0_199] : memref<9x256x256xf32, #tpu.memory_space<vmem>>, vector<1x256x256xf32>
    %215 = vector.shape_cast %214 : vector<1x256x256xf32> to vector<256x256xf32>
    %cst_200 = arith.constant dense<0.000000e+00> : vector<32x256xf32>
    %216 = tpu.matmul %198, %215, %cst_200 {dimension_numbers = #tpu.dot_dimension_numbers<[1], [0], [0], [1], [0, 0, 1, 1], [], []>} : vector<32x256xf32>, vector<256x256xf32>, vector<32x256xf32> -> vector<32x256xf32>
    %c2_201 = arith.constant 2 : index
    %c0_202 = arith.constant 0 : index
    %c0_203 = arith.constant 0 : index
    %217 = vector.load %arg9[%c2_201, %c0_202, %c0_203] : memref<9x32x32xf32, #tpu.memory_space<vmem>>, vector<1x32x32xf32>
    %218 = vector.shape_cast %217 : vector<1x32x32xf32> to vector<32x32xf32>
    %cst_204 = arith.constant dense<0.000000e+00> : vector<32x256xf32>
    %219 = tpu.matmul %218, %216, %cst_204 {dimension_numbers = #tpu.dot_dimension_numbers<[1], [0], [0], [1], [0, 0, 1, 1], [], []>} : vector<32x32xf32>, vector<32x256xf32>, vector<32x256xf32> -> vector<32x256xf32>
    %220 = arith.addf %213, %219 : vector<32x256xf32>
    %c3_205 = arith.constant 3 : index
    %c0_206 = arith.constant 0 : index
    %c0_207 = arith.constant 0 : index
    %221 = vector.load %arg2[%c3_205, %c0_206, %c0_207] : memref<9x256x256xf32, #tpu.memory_space<vmem>>, vector<1x256x256xf32>
    %222 = vector.shape_cast %221 : vector<1x256x256xf32> to vector<256x256xf32>
    %cst_208 = arith.constant dense<0.000000e+00> : vector<32x256xf32>
    %223 = tpu.matmul %198, %222, %cst_208 {dimension_numbers = #tpu.dot_dimension_numbers<[1], [0], [0], [1], [0, 0, 1, 1], [], []>} : vector<32x256xf32>, vector<256x256xf32>, vector<32x256xf32> -> vector<32x256xf32>
    %c3_209 = arith.constant 3 : index
    %c0_210 = arith.constant 0 : index
    %c0_211 = arith.constant 0 : index
    %224 = vector.load %arg9[%c3_209, %c0_210, %c0_211] : memref<9x32x32xf32, #tpu.memory_space<vmem>>, vector<1x32x32xf32>
    %225 = vector.shape_cast %224 : vector<1x32x32xf32> to vector<32x32xf32>
    %cst_212 = arith.constant dense<0.000000e+00> : vector<32x256xf32>
    %226 = tpu.matmul %225, %223, %cst_212 {dimension_numbers = #tpu.dot_dimension_numbers<[1], [0], [0], [1], [0, 0, 1, 1], [], []>} : vector<32x32xf32>, vector<32x256xf32>, vector<32x256xf32> -> vector<32x256xf32>
    %227 = arith.addf %220, %226 : vector<32x256xf32>
    %c4_213 = arith.constant 4 : index
    %c0_214 = arith.constant 0 : index
    %c0_215 = arith.constant 0 : index
    %228 = vector.load %arg2[%c4_213, %c0_214, %c0_215] : memref<9x256x256xf32, #tpu.memory_space<vmem>>, vector<1x256x256xf32>
    %229 = vector.shape_cast %228 : vector<1x256x256xf32> to vector<256x256xf32>
    %cst_216 = arith.constant dense<0.000000e+00> : vector<32x256xf32>
    %230 = tpu.matmul %198, %229, %cst_216 {dimension_numbers = #tpu.dot_dimension_numbers<[1], [0], [0], [1], [0, 0, 1, 1], [], []>} : vector<32x256xf32>, vector<256x256xf32>, vector<32x256xf32> -> vector<32x256xf32>
    %c4_217 = arith.constant 4 : index
    %c0_218 = arith.constant 0 : index
    %c0_219 = arith.constant 0 : index
    %231 = vector.load %arg9[%c4_217, %c0_218, %c0_219] : memref<9x32x32xf32, #tpu.memory_space<vmem>>, vector<1x32x32xf32>
    %232 = vector.shape_cast %231 : vector<1x32x32xf32> to vector<32x32xf32>
    %cst_220 = arith.constant dense<0.000000e+00> : vector<32x256xf32>
    %233 = tpu.matmul %232, %230, %cst_220 {dimension_numbers = #tpu.dot_dimension_numbers<[1], [0], [0], [1], [0, 0, 1, 1], [], []>} : vector<32x32xf32>, vector<32x256xf32>, vector<32x256xf32> -> vector<32x256xf32>
    %234 = arith.addf %227, %233 : vector<32x256xf32>
    %c5_221 = arith.constant 5 : index
    %c0_222 = arith.constant 0 : index
    %c0_223 = arith.constant 0 : index
    %235 = vector.load %arg2[%c5_221, %c0_222, %c0_223] : memref<9x256x256xf32, #tpu.memory_space<vmem>>, vector<1x256x256xf32>
    %236 = vector.shape_cast %235 : vector<1x256x256xf32> to vector<256x256xf32>
    %cst_224 = arith.constant dense<0.000000e+00> : vector<32x256xf32>
    %237 = tpu.matmul %198, %236, %cst_224 {dimension_numbers = #tpu.dot_dimension_numbers<[1], [0], [0], [1], [0, 0, 1, 1], [], []>} : vector<32x256xf32>, vector<256x256xf32>, vector<32x256xf32> -> vector<32x256xf32>
    %c5_225 = arith.constant 5 : index
    %c0_226 = arith.constant 0 : index
    %c0_227 = arith.constant 0 : index
    %238 = vector.load %arg9[%c5_225, %c0_226, %c0_227] : memref<9x32x32xf32, #tpu.memory_space<vmem>>, vector<1x32x32xf32>
    %239 = vector.shape_cast %238 : vector<1x32x32xf32> to vector<32x32xf32>
    %cst_228 = arith.constant dense<0.000000e+00> : vector<32x256xf32>
    %240 = tpu.matmul %239, %237, %cst_228 {dimension_numbers = #tpu.dot_dimension_numbers<[1], [0], [0], [1], [0, 0, 1, 1], [], []>} : vector<32x32xf32>, vector<32x256xf32>, vector<32x256xf32> -> vector<32x256xf32>
    %241 = arith.addf %234, %240 : vector<32x256xf32>
    %c6_229 = arith.constant 6 : index
    %c0_230 = arith.constant 0 : index
    %c0_231 = arith.constant 0 : index
    %242 = vector.load %arg2[%c6_229, %c0_230, %c0_231] : memref<9x256x256xf32, #tpu.memory_space<vmem>>, vector<1x256x256xf32>
    %243 = vector.shape_cast %242 : vector<1x256x256xf32> to vector<256x256xf32>
    %cst_232 = arith.constant dense<0.000000e+00> : vector<32x256xf32>
    %244 = tpu.matmul %198, %243, %cst_232 {dimension_numbers = #tpu.dot_dimension_numbers<[1], [0], [0], [1], [0, 0, 1, 1], [], []>} : vector<32x256xf32>, vector<256x256xf32>, vector<32x256xf32> -> vector<32x256xf32>
    %c6_233 = arith.constant 6 : index
    %c0_234 = arith.constant 0 : index
    %c0_235 = arith.constant 0 : index
    %245 = vector.load %arg9[%c6_233, %c0_234, %c0_235] : memref<9x32x32xf32, #tpu.memory_space<vmem>>, vector<1x32x32xf32>
    %246 = vector.shape_cast %245 : vector<1x32x32xf32> to vector<32x32xf32>
    %cst_236 = arith.constant dense<0.000000e+00> : vector<32x256xf32>
    %247 = tpu.matmul %246, %244, %cst_236 {dimension_numbers = #tpu.dot_dimension_numbers<[1], [0], [0], [1], [0, 0, 1, 1], [], []>} : vector<32x32xf32>, vector<32x256xf32>, vector<32x256xf32> -> vector<32x256xf32>
    %248 = arith.addf %241, %247 : vector<32x256xf32>
    %c7_237 = arith.constant 7 : index
    %c0_238 = arith.constant 0 : index
    %c0_239 = arith.constant 0 : index
    %249 = vector.load %arg2[%c7_237, %c0_238, %c0_239] : memref<9x256x256xf32, #tpu.memory_space<vmem>>, vector<1x256x256xf32>
    %250 = vector.shape_cast %249 : vector<1x256x256xf32> to vector<256x256xf32>
    %cst_240 = arith.constant dense<0.000000e+00> : vector<32x256xf32>
    %251 = tpu.matmul %198, %250, %cst_240 {dimension_numbers = #tpu.dot_dimension_numbers<[1], [0], [0], [1], [0, 0, 1, 1], [], []>} : vector<32x256xf32>, vector<256x256xf32>, vector<32x256xf32> -> vector<32x256xf32>
    %c7_241 = arith.constant 7 : index
    %c0_242 = arith.constant 0 : index
    %c0_243 = arith.constant 0 : index
    %252 = vector.load %arg9[%c7_241, %c0_242, %c0_243] : memref<9x32x32xf32, #tpu.memory_space<vmem>>, vector<1x32x32xf32>
    %253 = vector.shape_cast %252 : vector<1x32x32xf32> to vector<32x32xf32>
    %cst_244 = arith.constant dense<0.000000e+00> : vector<32x256xf32>
    %254 = tpu.matmul %253, %251, %cst_244 {dimension_numbers = #tpu.dot_dimension_numbers<[1], [0], [0], [1], [0, 0, 1, 1], [], []>} : vector<32x32xf32>, vector<32x256xf32>, vector<32x256xf32> -> vector<32x256xf32>
    %255 = arith.addf %248, %254 : vector<32x256xf32>
    %c8_245 = arith.constant 8 : index
    %c0_246 = arith.constant 0 : index
    %c0_247 = arith.constant 0 : index
    %256 = vector.load %arg2[%c8_245, %c0_246, %c0_247] : memref<9x256x256xf32, #tpu.memory_space<vmem>>, vector<1x256x256xf32>
    %257 = vector.shape_cast %256 : vector<1x256x256xf32> to vector<256x256xf32>
    %cst_248 = arith.constant dense<0.000000e+00> : vector<32x256xf32>
    %258 = tpu.matmul %198, %257, %cst_248 {dimension_numbers = #tpu.dot_dimension_numbers<[1], [0], [0], [1], [0, 0, 1, 1], [], []>} : vector<32x256xf32>, vector<256x256xf32>, vector<32x256xf32> -> vector<32x256xf32>
    %c8_249 = arith.constant 8 : index
    %c0_250 = arith.constant 0 : index
    %c0_251 = arith.constant 0 : index
    %259 = vector.load %arg9[%c8_249, %c0_250, %c0_251] : memref<9x32x32xf32, #tpu.memory_space<vmem>>, vector<1x32x32xf32>
    %260 = vector.shape_cast %259 : vector<1x32x32xf32> to vector<32x32xf32>
    %cst_252 = arith.constant dense<0.000000e+00> : vector<32x256xf32>
    %261 = tpu.matmul %260, %258, %cst_252 {dimension_numbers = #tpu.dot_dimension_numbers<[1], [0], [0], [1], [0, 0, 1, 1], [], []>} : vector<32x32xf32>, vector<32x256xf32>, vector<32x256xf32> -> vector<32x256xf32>
    %262 = arith.addf %255, %261 : vector<32x256xf32>
    %c0_253 = arith.constant 0 : index
    %c0_254 = arith.constant 0 : index
    %c0_255 = arith.constant 0 : index
    %263 = vector.load %arg10[%c0_253, %c0_254, %c0_255] : memref<3x32x1xf32, #tpu.memory_space<vmem>>, vector<1x32x1xf32>
    %264 = vector.shape_cast %263 : vector<1x32x1xf32> to vector<32x1xf32>
    %265 = vector.broadcast %264 : vector<32x1xf32> to vector<32x256xf32>
    %266 = arith.addf %262, %265 : vector<32x256xf32>
    %cst_256 = arith.constant 0.000000e+00 : f32
    %267 = vector.broadcast %cst_256 : f32 to vector<32x256xf32>
    %268 = arith.maximumf %266, %267 : vector<32x256xf32>
    %c0_257 = arith.constant 0 : index
    %c0_258 = arith.constant 0 : index
    %269 = vector.load %arg11[%c0_257, %c0_258] : memref<32x32xf32, #tpu.memory_space<vmem>>, vector<32x32xf32>
    %cst_259 = arith.constant dense<0.000000e+00> : vector<32x256xf32>
    %270 = tpu.matmul %269, %268, %cst_259 {dimension_numbers = #tpu.dot_dimension_numbers<[1], [0], [0], [1], [0, 0, 1, 1], [], []>} : vector<32x32xf32>, vector<32x256xf32>, vector<32x256xf32> -> vector<32x256xf32>
    %c0_260 = arith.constant 0 : index
    %c0_261 = arith.constant 0 : index
    %271 = vector.load %arg11[%c0_260, %c0_261] : memref<32x32xf32, #tpu.memory_space<vmem>>, vector<32x32xf32>
    %272 = arith.mulf %268, %268 : vector<32x256xf32>
    %cst_262 = arith.constant dense<0.000000e+00> : vector<32x256xf32>
    %273 = tpu.matmul %271, %272, %cst_262 {dimension_numbers = #tpu.dot_dimension_numbers<[1], [0], [0], [1], [0, 0, 1, 1], [], []>} : vector<32x32xf32>, vector<32x256xf32>, vector<32x256xf32> -> vector<32x256xf32>
    %cst_263 = arith.constant dense<0.000000e+00> : vector<32xf32>
    %274 = vector.multi_reduction <add>, %270, %cst_263 [1] : vector<32x256xf32> to vector<32xf32>
    %275 = vector.shape_cast %274 : vector<32xf32> to vector<32x1xf32>
    %cst_264 = arith.constant 0.001953125 : f32
    %276 = vector.broadcast %cst_264 : f32 to vector<32x1xf32>
    %277 = arith.mulf %275, %276 : vector<32x1xf32>
    %cst_265 = arith.constant dense<0.000000e+00> : vector<32xf32>
    %278 = vector.multi_reduction <add>, %273, %cst_265 [1] : vector<32x256xf32> to vector<32xf32>
    %279 = vector.shape_cast %278 : vector<32xf32> to vector<32x1xf32>
    %cst_266 = arith.constant 0.001953125 : f32
    %280 = vector.broadcast %cst_266 : f32 to vector<32x1xf32>
    %281 = arith.mulf %279, %280 : vector<32x1xf32>
    %282 = arith.mulf %277, %277 : vector<32x1xf32>
    %283 = arith.subf %281, %282 : vector<32x1xf32>
    %c1_267 = arith.constant 1 : index
    %c0_268 = arith.constant 0 : index
    %c0_269 = arith.constant 0 : index
    %284 = vector.load %arg10[%c1_267, %c0_268, %c0_269] : memref<3x32x1xf32, #tpu.memory_space<vmem>>, vector<1x32x1xf32>
    %285 = vector.shape_cast %284 : vector<1x32x1xf32> to vector<32x1xf32>
    %cst_270 = arith.constant 9.99999974E-6 : f32
    %286 = vector.broadcast %cst_270 : f32 to vector<32x1xf32>
    %287 = arith.addf %283, %286 : vector<32x1xf32>
    %288 = math.rsqrt %287 : vector<32x1xf32>
    %289 = arith.mulf %285, %288 : vector<32x1xf32>
    %c2_271 = arith.constant 2 : index
    %c0_272 = arith.constant 0 : index
    %c0_273 = arith.constant 0 : index
    %290 = vector.load %arg10[%c2_271, %c0_272, %c0_273] : memref<3x32x1xf32, #tpu.memory_space<vmem>>, vector<1x32x1xf32>
    %291 = vector.shape_cast %290 : vector<1x32x1xf32> to vector<32x1xf32>
    %292 = arith.mulf %277, %289 : vector<32x1xf32>
    %293 = arith.subf %291, %292 : vector<32x1xf32>
    %294 = vector.broadcast %289 : vector<32x1xf32> to vector<32x256xf32>
    %295 = arith.mulf %268, %294 : vector<32x256xf32>
    %296 = vector.broadcast %293 : vector<32x1xf32> to vector<32x256xf32>
    %297 = arith.addf %295, %296 : vector<32x256xf32>
    %298 = vector.extract_strided_slice %297 {offsets = [0, 0], sizes = [4, 256], strides = [1, 1]} : vector<32x256xf32> to vector<4x256xf32>
    %299 = vector.extract_strided_slice %297 {offsets = [4, 0], sizes = [4, 256], strides = [1, 1]} : vector<32x256xf32> to vector<4x256xf32>
    %300 = vector.extract_strided_slice %297 {offsets = [8, 0], sizes = [4, 256], strides = [1, 1]} : vector<32x256xf32> to vector<4x256xf32>
    %301 = vector.extract_strided_slice %297 {offsets = [12, 0], sizes = [4, 256], strides = [1, 1]} : vector<32x256xf32> to vector<4x256xf32>
    %302 = vector.extract_strided_slice %297 {offsets = [16, 0], sizes = [4, 256], strides = [1, 1]} : vector<32x256xf32> to vector<4x256xf32>
    %303 = vector.extract_strided_slice %297 {offsets = [20, 0], sizes = [4, 256], strides = [1, 1]} : vector<32x256xf32> to vector<4x256xf32>
    %304 = vector.extract_strided_slice %297 {offsets = [24, 0], sizes = [4, 256], strides = [1, 1]} : vector<32x256xf32> to vector<4x256xf32>
    %305 = vector.extract_strided_slice %297 {offsets = [28, 0], sizes = [4, 256], strides = [1, 1]} : vector<32x256xf32> to vector<4x256xf32>
    %306 = tpu.concatenate %298, %299, %300, %301, %302, %303, %304, %305 in 1 : vector<4x256xf32>, vector<4x256xf32>, vector<4x256xf32>, vector<4x256xf32>, vector<4x256xf32>, vector<4x256xf32>, vector<4x256xf32>, vector<4x256xf32> -> vector<4x2048xf32>
    %c0_274 = arith.constant 0 : index
    %c0_275 = arith.constant 0 : index
    %307 = vector.load %arg12[%c0_274, %c0_275] : memref<2048x512xf32, #tpu.memory_space<vmem>>, vector<2048x512xf32>
    %cst_276 = arith.constant dense<0.000000e+00> : vector<4x512xf32>
    %308 = tpu.matmul %306, %307, %cst_276 {dimension_numbers = #tpu.dot_dimension_numbers<[1], [0], [0], [1], [0, 0, 1, 1], [], []>} : vector<4x2048xf32>, vector<2048x512xf32>, vector<4x512xf32> -> vector<4x512xf32>
    %c0_277 = arith.constant 0 : index
    %c0_278 = arith.constant 0 : index
    %309 = vector.load %arg13[%c0_277, %c0_278] : memref<1x512xf32, #tpu.memory_space<vmem>>, vector<1x512xf32>
    %310 = vector.broadcast %309 : vector<1x512xf32> to vector<4x512xf32>
    %311 = arith.addf %308, %310 : vector<4x512xf32>
    %cst_279 = arith.constant 0.000000e+00 : f32
    %312 = vector.broadcast %cst_279 : f32 to vector<4x512xf32>
    %313 = arith.maximumf %311, %312 : vector<4x512xf32>
    %c0_280 = arith.constant 0 : index
    %c0_281 = arith.constant 0 : index
    %314 = vector.load %arg14[%c0_280, %c0_281] : memref<512x512xf32, #tpu.memory_space<vmem>>, vector<512x512xf32>
    %cst_282 = arith.constant dense<0.000000e+00> : vector<4x512xf32>
    %315 = tpu.matmul %313, %314, %cst_282 {dimension_numbers = #tpu.dot_dimension_numbers<[1], [0], [0], [1], [0, 0, 1, 1], [], []>} : vector<4x512xf32>, vector<512x512xf32>, vector<4x512xf32> -> vector<4x512xf32>
    %c0_283 = arith.constant 0 : index
    %c0_284 = arith.constant 0 : index
    %316 = vector.load %arg15[%c0_283, %c0_284] : memref<1x512xf32, #tpu.memory_space<vmem>>, vector<1x512xf32>
    %317 = vector.broadcast %316 : vector<1x512xf32> to vector<4x512xf32>
    %318 = arith.addf %315, %317 : vector<4x512xf32>
    %cst_285 = arith.constant 0.000000e+00 : f32
    %319 = vector.broadcast %cst_285 : f32 to vector<4x512xf32>
    %320 = arith.maximumf %318, %319 : vector<4x512xf32>
    %c0_286 = arith.constant 0 : index
    %c0_287 = arith.constant 0 : index
    %321 = vector.load %arg16[%c0_286, %c0_287] : memref<512x128xf32, #tpu.memory_space<vmem>>, vector<512x128xf32>
    %cst_288 = arith.constant dense<0.000000e+00> : vector<4x128xf32>
    %322 = tpu.matmul %320, %321, %cst_288 {dimension_numbers = #tpu.dot_dimension_numbers<[1], [0], [0], [1], [0, 0, 1, 1], [], []>} : vector<4x512xf32>, vector<512x128xf32>, vector<4x128xf32> -> vector<4x128xf32>
    %c0_289 = arith.constant 0 : index
    %c0_290 = arith.constant 0 : index
    %323 = vector.load %arg17[%c0_289, %c0_290] : memref<1x128xf32, #tpu.memory_space<vmem>>, vector<1x128xf32>
    %324 = vector.broadcast %323 : vector<1x128xf32> to vector<4x128xf32>
    %325 = arith.addf %322, %324 : vector<4x128xf32>
    %c0_291 = arith.constant 0 : index
    %c0_292 = arith.constant 0 : index
    %326 = vector.load %arg18[%c0_291, %c0_292] : memref<4x128xf32, #tpu.memory_space<vmem>>, vector<4x128xf32>
    tpu.vector_store %arg18[%c0_291, %c0_292], %325 {strides = array<i32>} : memref<4x128xf32, #tpu.memory_space<vmem>>, vector<4x128xf32>,
    return
  }
  func.func @transform_0(%arg0: i32) -> (i32, i32) {
    %c0_i32 = arith.constant 0 : i32
    %c0_i32_0 = arith.constant 0 : i32
    %c0_i32_1 = arith.constant 0 : i32
    return %c0_i32, %c0_i32_0 : i32, i32
  }
  func.func @transform_1(%arg0: i32) -> (i32, i32, i32) {
    %c0_i32 = arith.constant 0 : i32
    %c0_i32_0 = arith.constant 0 : i32
    %c0_i32_1 = arith.constant 0 : i32
    %c0_i32_2 = arith.constant 0 : i32
    return %c0_i32, %c0_i32_0, %c0_i32_1 : i32, i32, i32
  }
  func.func @transform_2(%arg0: i32) -> (i32, i32, i32) {
    %c0_i32 = arith.constant 0 : i32
    %c0_i32_0 = arith.constant 0 : i32
    %c0_i32_1 = arith.constant 0 : i32
    %c0_i32_2 = arith.constant 0 : i32
    return %c0_i32, %c0_i32_0, %c0_i32_1 : i32, i32, i32
  }
  func.func @transform_3(%arg0: i32) -> (i32, i32, i32) {
    %c0_i32 = arith.constant 0 : i32
    %c0_i32_0 = arith.constant 0 : i32
    %c0_i32_1 = arith.constant 0 : i32
    %c0_i32_2 = arith.constant 0 : i32
    return %c0_i32, %c0_i32_0, %c0_i32_1 : i32, i32, i32
  }
  func.func @transform_4(%arg0: i32) -> (i32, i32) {
    %c0_i32 = arith.constant 0 : i32
    %c0_i32_0 = arith.constant 0 : i32
    %c0_i32_1 = arith.constant 0 : i32
    return %c0_i32, %c0_i32_0 : i32, i32
  }
  func.func @transform_5(%arg0: i32) -> (i32, i32, i32) {
    %c0_i32 = arith.constant 0 : i32
    %c0_i32_0 = arith.constant 0 : i32
    %c0_i32_1 = arith.constant 0 : i32
    %c0_i32_2 = arith.constant 0 : i32
    return %c0_i32, %c0_i32_0, %c0_i32_1 : i32, i32, i32
  }
  func.func @transform_6(%arg0: i32) -> (i32, i32, i32) {
    %c0_i32 = arith.constant 0 : i32
    %c0_i32_0 = arith.constant 0 : i32
    %c0_i32_1 = arith.constant 0 : i32
    %c0_i32_2 = arith.constant 0 : i32
    return %c0_i32, %c0_i32_0, %c0_i32_1 : i32, i32, i32
  }
  func.func @transform_7(%arg0: i32) -> (i32, i32) {
    %c0_i32 = arith.constant 0 : i32
    %c0_i32_0 = arith.constant 0 : i32
    %c0_i32_1 = arith.constant 0 : i32
    return %c0_i32, %c0_i32_0 : i32, i32
  }
  func.func @transform_8(%arg0: i32) -> (i32, i32, i32) {
    %c0_i32 = arith.constant 0 : i32
    %c0_i32_0 = arith.constant 0 : i32
    %c0_i32_1 = arith.constant 0 : i32
    %c0_i32_2 = arith.constant 0 : i32
    return %c0_i32, %c0_i32_0, %c0_i32_1 : i32, i32, i32
  }
  func.func @transform_9(%arg0: i32) -> (i32, i32, i32) {
    %c0_i32 = arith.constant 0 : i32
    %c0_i32_0 = arith.constant 0 : i32
    %c0_i32_1 = arith.constant 0 : i32
    %c0_i32_2 = arith.constant 0 : i32
    return %c0_i32, %c0_i32_0, %c0_i32_1 : i32, i32, i32
  }
  func.func @transform_10(%arg0: i32) -> (i32, i32) {
    %c0_i32 = arith.constant 0 : i32
    %c0_i32_0 = arith.constant 0 : i32
    %c0_i32_1 = arith.constant 0 : i32
    return %c0_i32, %c0_i32_0 : i32, i32
  }
  func.func @transform_11(%arg0: i32) -> (i32, i32) {
    %c0_i32 = arith.constant 0 : i32
    %c0_i32_0 = arith.constant 0 : i32
    %c0_i32_1 = arith.constant 0 : i32
    return %c0_i32, %c0_i32_0 : i32, i32
  }
  func.func @transform_12(%arg0: i32) -> (i32, i32) {
    %c0_i32 = arith.constant 0 : i32
    %c0_i32_0 = arith.constant 0 : i32
    %c0_i32_1 = arith.constant 0 : i32
    return %c0_i32, %c0_i32_0 : i32, i32
  }
  func.func @transform_13(%arg0: i32) -> (i32, i32) {
    %c0_i32 = arith.constant 0 : i32
    %c0_i32_0 = arith.constant 0 : i32
    %c0_i32_1 = arith.constant 0 : i32
    return %c0_i32, %c0_i32_0 : i32, i32
  }
  func.func @transform_14(%arg0: i32) -> (i32, i32) {
    %c0_i32 = arith.constant 0 : i32
    %c0_i32_0 = arith.constant 0 : i32
    %c0_i32_1 = arith.constant 0 : i32
    return %c0_i32, %c0_i32_0 : i32, i32
  }
  func.func @transform_15(%arg0: i32) -> (i32, i32) {
    %c0_i32 = arith.constant 0 : i32
    %c0_i32_0 = arith.constant 0 : i32
    %c0_i32_1 = arith.constant 0 : i32
    return %c0_i32, %c0_i32_0 : i32, i32
  }
  func.func @transform_16(%arg0: i32) -> (i32, i32) {
    %c0_i32 = arith.constant 0 : i32
    %c0_i32_0 = arith.constant 0 : i32
    %c0_i32_1 = arith.constant 0 : i32
    return %c0_i32, %c0_i32_0 : i32, i32
  }
  func.func @transform_17(%arg0: i32) -> (i32, i32) {
    %c0_i32 = arith.constant 0 : i32
    %c0_i32_0 = arith.constant 0 : i32
    %c0_i32_1 = arith.constant 0 : i32
    return %c0_i32, %c0_i32_0 : i32, i32
  }
}

</mosaic_0001>

<llo_original>
// kernel: siamese_forward.1
$region0: #{siamese_forward.1}
  #allocation0 [shape = 'u32[]', space=smem, size = 0x4, offset = 0x4, fixed_abs, tag = 'smem constant byte address 0x4 - core index']
  #allocation1 [shape = 'u32[72,128]{1,0:T(1,128)}', space=vmem, size = 0x9000, scoped, tag = 'internal scratch']
  %s0 = inlined_call_operand.vmem [shape: f32[4,256], index: 0, kind: input, shape index: {}]
  %s1 = inlined_call_operand.vmem [shape: f32[9,256,256], index: 1, kind: input, shape index: {}]
  %s2 = inlined_call_operand.vmem [shape: f32[9,16,4], index: 2, kind: input, shape index: {}]
  %s3 = inlined_call_operand.vmem [shape: f32[3,16,1], index: 3, kind: input, shape index: {}]
  %s4 = inlined_call_operand.vmem [shape: f32[16,16], index: 4, kind: input, shape index: {}]
  %s5 = inlined_call_operand.vmem [shape: f32[9,32,16], index: 5, kind: input, shape index: {}]
  %s6 = inlined_call_operand.vmem [shape: f32[3,32,1], index: 6, kind: input, shape index: {}]
  %s7 = inlined_call_operand.vmem [shape: f32[32,32], index: 7, kind: input, shape index: {}, may-alias: {7,10}]
  %s8 = inlined_call_operand.vmem [shape: f32[9,32,32], index: 8, kind: input, shape index: {}]
  %s9 = inlined_call_operand.vmem [shape: f32[3,32,1], index: 9, kind: input, shape index: {}]
  %s10 = inlined_call_operand.vmem [shape: f32[32,32], index: 10, kind: input, shape index: {}, may-alias: {7,10}]
  %s11 = inlined_call_operand.vmem [shape: f32[2048,512], index: 11, kind: input, shape index: {}]
  %s12 = inlined_call_operand.vmem [shape: f32[1,512], index: 12, kind: input, shape index: {}]
  %s13 = inlined_call_operand.vmem [shape: f32[512,512], index: 13, kind: input, shape index: {}]
  %s14 = inlined_call_operand.vmem [shape: f32[1,512], index: 14, kind: input, shape index: {}]
  %s15 = inlined_call_operand.vmem [shape: f32[512,128], index: 15, kind: input, shape index: {}]
  %s16 = inlined_call_operand.vmem [shape: f32[1,128], index: 16, kind: input, shape index: {}]
  %s17 = inlined_call_operand.vmem [shape: f32[4,128], index: 17, kind: output, shape index: {}]
  %s18 = sld [smem:[#allocation0]]
  $region78: #{siamese_forward.1} parent=0
    _
  %s20 = ssub.s32 1, %s18
  %s21 = scalar_select 0, %s20, %s18
  // Predicated region
  $region2: #{siamese_forward.1} parent=0 // pred_check
    _
  $region3: #{siamese_forward.1} parent=0 // pred_check_branch
    %23 = sbr.rel (0) target = $region5
  $region4: #{siamese_forward.1} parent=0 // pred_region
    _
  $region5: #{siamese_forward.1} parent=0 // pred_fallthru
    _
  // Predicated region
  $region6: #{siamese_forward.1} parent=0 // pred_check
    _
  $region7: #{siamese_forward.1} parent=0 // pred_check_branch
    %25 = sbr.rel (0) target = $region9
  $region8: #{siamese_forward.1} parent=0 // pred_region
    _
  $region9: #{siamese_forward.1} parent=0 // pred_fallthru
    _
  // Predicated region
  $region10: #{siamese_forward.1} parent=0 // pred_check
    _
  $region11: #{siamese_forward.1} parent=0 // pred_check_branch
    %27 = sbr.rel (0) target = $region13
  $region12: #{siamese_forward.1} parent=0 // pred_region
    _
  $region13: #{siamese_forward.1} parent=0 // pred_fallthru
    _
  // Predicated region
  $region14: #{siamese_forward.1} parent=0 // pred_check
    _
  $region15: #{siamese_forward.1} parent=0 // pred_check_branch
    %29 = sbr.rel (0) target = $region17
  $region16: #{siamese_forward.1} parent=0 // pred_region
    _
  $region17: #{siamese_forward.1} parent=0 // pred_fallthru
    _
  // Predicated region
  $region18: #{siamese_forward.1} parent=0 // pred_check
    _
  $region19: #{siamese_forward.1} parent=0 // pred_check_branch
    %31 = sbr.rel (0) target = $region21
  $region20: #{siamese_forward.1} parent=0 // pred_region
    _
  $region21: #{siamese_forward.1} parent=0 // pred_fallthru
    _
  // Predicated region
  $region22: #{siamese_forward.1} parent=0 // pred_check
    _
  $region23: #{siamese_forward.1} parent=0 // pred_check_branch
    %33 = sbr.rel (0) target = $region25
  $region24: #{siamese_forward.1} parent=0 // pred_region
    _
  $region25: #{siamese_forward.1} parent=0 // pred_fallthru
    _
  // Predicated region
  $region26: #{siamese_forward.1} parent=0 // pred_check
    _
  $region27: #{siamese_forward.1} parent=0 // pred_check_branch
    %35 = sbr.rel (0) target = $region29
  $region28: #{siamese_forward.1} parent=0 // pred_region
    _
  $region29: #{siamese_forward.1} parent=0 // pred_fallthru
    _
  // Predicated region
  $region30: #{siamese_forward.1} parent=0 // pred_check
    _
  $region31: #{siamese_forward.1} parent=0 // pred_check_branch
    %37 = sbr.rel (0) target = $region33
  $region32: #{siamese_forward.1} parent=0 // pred_region
    _
  $region33: #{siamese_forward.1} parent=0 // pred_fallthru
    _
  // Predicated region
  $region34: #{siamese_forward.1} parent=0 // pred_check
    _
  $region35: #{siamese_forward.1} parent=0 // pred_check_branch
    %39 = sbr.rel (0) target = $region37
  $region36: #{siamese_forward.1} parent=0 // pred_region
    _
  $region37: #{siamese_forward.1} parent=0 // pred_fallthru
    _
  // Predicated region
  $region38: #{siamese_forward.1} parent=0 // pred_check
    _
  $region39: #{siamese_forward.1} parent=0 // pred_check_branch
    %41 = sbr.rel (0) target = $region41
  $region40: #{siamese_forward.1} parent=0 // pred_region
    _
  $region41: #{siamese_forward.1} parent=0 // pred_fallthru
    _
  // Predicated region
  $region42: #{siamese_forward.1} parent=0 // pred_check
    _
  $region43: #{siamese_forward.1} parent=0 // pred_check_branch
    %43 = sbr.rel (0) target = $region45
  $region44: #{siamese_forward.1} parent=0 // pred_region
    _
  $region45: #{siamese_forward.1} parent=0 // pred_fallthru
    _
  // Predicated region
  $region46: #{siamese_forward.1} parent=0 // pred_check
    _
  $region47: #{siamese_forward.1} parent=0 // pred_check_branch
    %45 = sbr.rel (0) target = $region49
  $region48: #{siamese_forward.1} parent=0 // pred_region
    _
  $region49: #{siamese_forward.1} parent=0 // pred_fallthru
    _
  // Predicated region
  $region50: #{siamese_forward.1} parent=0 // pred_check
    _
  $region51: #{siamese_forward.1} parent=0 // pred_check_branch
    %47 = sbr.rel (0) target = $region53
  $region52: #{siamese_forward.1} parent=0 // pred_region
    _
  $region53: #{siamese_forward.1} parent=0 // pred_fallthru
    _
  // Predicated region
  $region54: #{siamese_forward.1} parent=0 // pred_check
    _
  $region55: #{siamese_forward.1} parent=0 // pred_check_branch
    %49 = sbr.rel (0) target = $region57
  $region56: #{siamese_forward.1} parent=0 // pred_region
    _
  $region57: #{siamese_forward.1} parent=0 // pred_fallthru
    _
  // Predicated region
  $region58: #{siamese_forward.1} parent=0 // pred_check
    _
  $region59: #{siamese_forward.1} parent=0 // pred_check_branch
    %51 = sbr.rel (0) target = $region61
  $region60: #{siamese_forward.1} parent=0 // pred_region
    _
  $region61: #{siamese_forward.1} parent=0 // pred_fallthru
    _
  // Predicated region
  $region62: #{siamese_forward.1} parent=0 // pred_check
    _
  $region63: #{siamese_forward.1} parent=0 // pred_check_branch
    %53 = sbr.rel (0) target = $region65
  $region64: #{siamese_forward.1} parent=0 // pred_region
    _
  $region65: #{siamese_forward.1} parent=0 // pred_fallthru
    _
  // Predicated region
  $region66: #{siamese_forward.1} parent=0 // pred_check
    _
  $region67: #{siamese_forward.1} parent=0 // pred_check_branch
    %55 = sbr.rel (0) target = $region69
  $region68: #{siamese_forward.1} parent=0 // pred_region
    _
  $region69: #{siamese_forward.1} parent=0 // pred_fallthru
    _
  %v56 = vld [vmem:[%s0] sm:$0xff]
  %v57 = vld [vmem:[%s1] sm:$0xff]
  %v58 = vld [vmem:[%s1 + $0x8] sm:$0xff]
  %v59 = vld [vmem:[%s1 + $0x10] sm:$0xff]
  %v60 = vld [vmem:[%s1 + $0x18] sm:$0xff]
  %v61 = vld [vmem:[%s1 + $0x20] sm:$0xff]
  %v62 = vld [vmem:[%s1 + $0x28] sm:$0xff]
  %v63 = vld [vmem:[%s1 + $0x30] sm:$0xff]
  %v64 = vld [vmem:[%s1 + $0x38] sm:$0xff]
  %v65 = vld [vmem:[%s1 + $0x40] sm:$0xff]
  %v66 = vld [vmem:[%s1 + $0x48] sm:$0xff]
  %v67 = vld [vmem:[%s1 + $0x50] sm:$0xff]
  %v68 = vld [vmem:[%s1 + $0x58] sm:$0xff]
  %v69 = vld [vmem:[%s1 + $0x60] sm:$0xff]
  %v70 = vld [vmem:[%s1 + $0x68] sm:$0xff]
  %v71 = vld [vmem:[%s1 + $0x70] sm:$0xff]
  %v72 = vld [vmem:[%s1 + $0x78] sm:$0xff]
  %v73 = vld [vmem:[%s1 + $0x80] sm:$0xff]
  %v74 = vld [vmem:[%s1 + $0x88] sm:$0xff]
  %v75 = vld [vmem:[%s1 + $0x90] sm:$0xff]
  %v76 = vld [vmem:[%s1 + $0x98] sm:$0xff]
  %v77 = vld [vmem:[%s1 + $0xa0] sm:$0xff]
  %v78 = vld [vmem:[%s1 + $0xa8] sm:$0xff]
  %v79 = vld [vmem:[%s1 + $0xb0] sm:$0xff]
  %v80 = vld [vmem:[%s1 + $0xb8] sm:$0xff]
  %v81 = vld [vmem:[%s1 + $0xc0] sm:$0xff]
  %v82 = vld [vmem:[%s1 + $0xc8] sm:$0xff]
  %v83 = vld [vmem:[%s1 + $0xd0] sm:$0xff]
  %v84 = vld [vmem:[%s1 + $0xd8] sm:$0xff]
  %v85 = vld [vmem:[%s1 + $0xe0] sm:$0xff]
  %v86 = vld [vmem:[%s1 + $0xe8] sm:$0xff]
  %v87 = vld [vmem:[%s1 + $0xf0] sm:$0xff]
  %v88 = vld [vmem:[%s1 + $0xf8] sm:$0xff]
  %v89 = vld [vmem:[%s1 + $0x100] sm:$0xff]
  %v90 = vld [vmem:[%s1 + $0x108] sm:$0xff]
  %v91 = vld [vmem:[%s1 + $0x110] sm:$0xff]
  %v92 = vld [vmem:[%s1 + $0x118] sm:$0xff]
  %v93 = vld [vmem:[%s1 + $0x120] sm:$0xff]
  %v94 = vld [vmem:[%s1 + $0x128] sm:$0xff]
  %v95 = vld [vmem:[%s1 + $0x130] sm:$0xff]
  %v96 = vld [vmem:[%s1 + $0x138] sm:$0xff]
  %v97 = vld [vmem:[%s1 + $0x140] sm:$0xff]
  %v98 = vld [vmem:[%s1 + $0x148] sm:$0xff]
  %v99 = vld [vmem:[%s1 + $0x150] sm:$0xff]
  %v100 = vld [vmem:[%s1 + $0x158] sm:$0xff]
  %v101 = vld [vmem:[%s1 + $0x160] sm:$0xff]
  %v102 = vld [vmem:[%s1 + $0x168] sm:$0xff]
  %v103 = vld [vmem:[%s1 + $0x170] sm:$0xff]
  %v104 = vld [vmem:[%s1 + $0x178] sm:$0xff]
  %v105 = vld [vmem:[%s1 + $0x180] sm:$0xff]
  %v106 = vld [vmem:[%s1 + $0x188] sm:$0xff]
  %v107 = vld [vmem:[%s1 + $0x190] sm:$0xff]
  %v108 = vld [vmem:[%s1 + $0x198] sm:$0xff]
  %v109 = vld [vmem:[%s1 + $0x1a0] sm:$0xff]
  %v110 = vld [vmem:[%s1 + $0x1a8] sm:$0xff]
  %v111 = vld [vmem:[%s1 + $0x1b0] sm:$0xff]
  %v112 = vld [vmem:[%s1 + $0x1b8] sm:$0xff]
  %v113 = vld [vmem:[%s1 + $0x1c0] sm:$0xff]
  %v114 = vld [vmem:[%s1 + $0x1c8] sm:$0xff]
  %v115 = vld [vmem:[%s1 + $0x1d0] sm:$0xff]
  %v116 = vld [vmem:[%s1 + $0x1d8] sm:$0xff]
  %v117 = vld [vmem:[%s1 + $0x1e0] sm:$0xff]
  %v118 = vld [vmem:[%s1 + $0x1e8] sm:$0xff]
  %v119 = vld [vmem:[%s1 + $0x1f0] sm:$0xff]
  %v120 = vld [vmem:[%s1 + $0x1f8] sm:$0xff]
  %122 = vst [vmem:[#allocation1] ss:$2 sm:$0xff] %v56
  %v123 = vld.sshfl [vmem:[#allocation1] sm:$0xff pattern:$0x75316420]
  %v124 = vld.sshfl [vmem:[#allocation1 + $0x8] sm:$0xff pattern:$0x75316420]
  %127 = vmatpush.msra.mxu0 %v87
  %128 = vmatpush.msra.mxu0 %v85
  %129 = vmatpush.msra.mxu0 %v83
  %130 = vmatpush.msra.mxu0 %v81
  %131 = vmatpush.msra.mxu0 %v79
  %132 = vmatpush.msra.mxu0 %v77
  %133 = vmatpush.msra.mxu0 %v75
  %134 = vmatpush.msra.mxu0 %v73
  %135 = vmatpush.msra.mxu0 %v71
  %136 = vmatpush.msra.mxu0 %v69
  %137 = vmatpush.msra.mxu0 %v67
  %138 = vmatpush.msra.mxu0 %v65
  %139 = vmatpush.msra.mxu0 %v63
  %140 = vmatpush.msra.mxu0 %v61
  %141 = vmatpush.msra.mxu0 %v59
  %142 = vmatpush.msra.mxu0 %v57
  %143 = vmatmul.f32.gmra.mxu0 %v123
  %v144 = vpop.f32.mrf.mxu0
  %v145 = vadd.f32 0.0, %v144
  %146 = vdwg.mxu0
  %147 = vmatpush.msra.mxu0 %v119
  %148 = vmatpush.msra.mxu0 %v117
  %149 = vmatpush.msra.mxu0 %v115
  %150 = vmatpush.msra.mxu0 %v113
  %151 = vmatpush.msra.mxu0 %v111
  %152 = vmatpush.msra.mxu0 %v109
  %153 = vmatpush.msra.mxu0 %v107
  %154 = vmatpush.msra.mxu0 %v105
  %155 = vmatpush.msra.mxu0 %v103
  %156 = vmatpush.msra.mxu0 %v101
  %157 = vmatpush.msra.mxu0 %v99
  %158 = vmatpush.msra.mxu0 %v97
  %159 = vmatpush.msra.mxu0 %v95
  %160 = vmatpush.msra.mxu0 %v93
  %161 = vmatpush.msra.mxu0 %v91
  %162 = vmatpush.msra.mxu0 %v89
  %163 = vmatmul.f32.gmra.mxu0 %v124
  %v164 = vpop.f32.mrf.mxu0
  %v165 = vadd.f32 %v145, %v164
  %166 = vdwg.mxu0
  %167 = vmatpush.msra.mxu0 %v88
  %168 = vmatpush.msra.mxu0 %v86
  %169 = vmatpush.msra.mxu0 %v84
  %170 = vmatpush.msra.mxu0 %v82
  %171 = vmatpush.msra.mxu0 %v80
  %172 = vmatpush.msra.mxu0 %v78
  %173 = vmatpush.msra.mxu0 %v76
  %174 = vmatpush.msra.mxu0 %v74
  %175 = vmatpush.msra.mxu0 %v72
  %176 = vmatpush.msra.mxu0 %v70
  %177 = vmatpush.msra.mxu0 %v68
  %178 = vmatpush.msra.mxu0 %v66
  %179 = vmatpush.msra.mxu0 %v64
  %180 = vmatpush.msra.mxu0 %v62
  %181 = vmatpush.msra.mxu0 %v60
  %182 = vmatpush.msra.mxu0 %v58
  %183 = vmatmul.f32.gmra.mxu0 %v123
  %v184 = vpop.f32.mrf.mxu0
  %v185 = vadd.f32 0.0, %v184
  %186 = vdwg.mxu0
  %187 = vmatpush.msra.mxu0 %v120
  %188 = vmatpush.msra.mxu0 %v118
  %189 = vmatpush.msra.mxu0 %v116
  %190 = vmatpush.msra.mxu0 %v114
  %191 = vmatpush.msra.mxu0 %v112
  %192 = vmatpush.msra.mxu0 %v110
  %193 = vmatpush.msra.mxu0 %v108
  %194 = vmatpush.msra.mxu0 %v106
  %195 = vmatpush.msra.mxu0 %v104
  %196 = vmatpush.msra.mxu0 %v102
  %197 = vmatpush.msra.mxu0 %v100
  %198 = vmatpush.msra.mxu0 %v98
  %199 = vmatpush.msra.mxu0 %v96
  %200 = vmatpush.msra.mxu0 %v94
  %201 = vmatpush.msra.mxu0 %v92
  %202 = vmatpush.msra.mxu0 %v90
  %203 = vmatmul.f32.gmra.mxu0 %v124
  %v204 = vpop.f32.mrf.mxu0
  %v205 = vadd.f32 %v185, %v204
  %206 = vdwg.mxu0
  %v207 = vld [vmem:[%s2] sm:$0xff]
  %v208 = vld [vmem:[%s2 + $0x8] sm:$0xff]
  %s209 = scalar_lea.vmem %s1, 512
  %v210 = vld [vmem:[%s209] sm:$0xff]
  %v211 = vld [vmem:[%s209 + $0x8] sm:$0xff]
  %v212 = vld [vmem:[%s209 + $0x10] sm:$0xff]
  %v213 = vld [vmem:[%s209 + $0x18] sm:$0xff]
  %v214 = vld [vmem:[%s209 + $0x20] sm:$0xff]
  %v215 = vld [vmem:[%s209 + $0x28] sm:$0xff]
  %v216 = vld [vmem:[%s209 + $0x30] sm:$0xff]
  %v217 = vld [vmem:[%s209 + $0x38] sm:$0xff]
  %v218 = vld [vmem:[%s209 + $0x40] sm:$0xff]
  %v219 = vld [vmem:[%s209 + $0x48] sm:$0xff]
  %v220 = vld [vmem:[%s209 + $0x50] sm:$0xff]
  %v221 = vld [vmem:[%s209 + $0x58] sm:$0xff]
  %v222 = vld [vmem:[%s209 + $0x60] sm:$0xff]
  %v223 = vld [vmem:[%s209 + $0x68] sm:$0xff]
  %v224 = vld [vmem:[%s209 + $0x70] sm:$0xff]
  %v225 = vld [vmem:[%s209 + $0x78] sm:$0xff]
  %v226 = vld [vmem:[%s209 + $0x80] sm:$0xff]
  %v227 = vld [vmem:[%s209 + $0x88] sm:$0xff]
  %v228 = vld [vmem:[%s209 + $0x90] sm:$0xff]
  %v229 = vld [vmem:[%s209 + $0x98] sm:$0xff]
  %v230 = vld [vmem:[%s209 + $0xa0] sm:$0xff]
  %v231 = vld [vmem:[%s209 + $0xa8] sm:$0xff]
  %v232 = vld [vmem:[%s209 + $0xb0] sm:$0xff]
  %v233 = vld [vmem:[%s209 + $0xb8] sm:$0xff]
  %v234 = vld [vmem:[%s209 + $0xc0] sm:$0xff]
  %v235 = vld [vmem:[%s209 + $0xc8] sm:$0xff]
  %v236 = vld [vmem:[%s209 + $0xd0] sm:$0xff]
  %v237 = vld [vmem:[%s209 + $0xd8] sm:$0xff]
  %v238 = vld [vmem:[%s209 + $0xe0] sm:$0xff]
  %v239 = vld [vmem:[%s209 + $0xe8] sm:$0xff]
  %v240 = vld [vmem:[%s209 + $0xf0] sm:$0xff]
  %v241 = vld [vmem:[%s209 + $0xf8] sm:$0xff]
  %v242 = vld [vmem:[%s209 + $0x100] sm:$0xff]
  %v243 = vld [vmem:[%s209 + $0x108] sm:$0xff]
  %v244 = vld [vmem:[%s209 + $0x110] sm:$0xff]
  %v245 = vld [vmem:[%s209 + $0x118] sm:$0xff]
  %v246 = vld [vmem:[%s209 + $0x120] sm:$0xff]
  %v247 = vld [vmem:[%s209 + $0x128] sm:$0xff]
  %v248 = vld [vmem:[%s209 + $0x130] sm:$0xff]
  %v249 = vld [vmem:[%s209 + $0x138] sm:$0xff]
  %v250 = vld [vmem:[%s209 + $0x140] sm:$0xff]
  %v251 = vld [vmem:[%s209 + $0x148] sm:$0xff]
  %v252 = vld [vmem:[%s209 + $0x150] sm:$0xff]
  %v253 = vld [vmem:[%s209 + $0x158] sm:$0xff]
  %v254 = vld [vmem:[%s209 + $0x160] sm:$0xff]
  %v255 = vld [vmem:[%s209 + $0x168] sm:$0xff]
  %v256 = vld [vmem:[%s209 + $0x170] sm:$0xff]
  %v257 = vld [vmem:[%s209 + $0x178] sm:$0xff]
  %v258 = vld [vmem:[%s209 + $0x180] sm:$0xff]
  %v259 = vld [vmem:[%s209 + $0x188] sm:$0xff]
  %v260 = vld [vmem:[%s209 + $0x190] sm:$0xff]
  %v261 = vld [vmem:[%s209 + $0x198] sm:$0xff]
  %v262 = vld [vmem:[%s209 + $0x1a0] sm:$0xff]
  %v263 = vld [vmem:[%s209 + $0x1a8] sm:$0xff]
  %v264 = vld [vmem:[%s209 + $0x1b0] sm:$0xff]
  %v265 = vld [vmem:[%s209 + $0x1b8] sm:$0xff]
  %v266 = vld [vmem:[%s209 + $0x1c0] sm:$0xff]
  %v267 = vld [vmem:[%s209 + $0x1c8] sm:$0xff]
  %v268 = vld [vmem:[%s209 + $0x1d0] sm:$0xff]
  %v269 = vld [vmem:[%s209 + $0x1d8] sm:$0xff]
  %v270 = vld [vmem:[%s209 + $0x1e0] sm:$0xff]
  %v271 = vld [vmem:[%s209 + $0x1e8] sm:$0xff]
  %v272 = vld [vmem:[%s209 + $0x1f0] sm:$0xff]
  %v273 = vld [vmem:[%s209 + $0x1f8] sm:$0xff]
  %274 = vst [vmem:[#allocation1] ss:$2 sm:$0xff] %v56
  %v275 = vld.sshfl [vmem:[#allocation1] sm:$0xff pattern:$0x75316420]
  %v276 = vld.sshfl [vmem:[#allocation1 + $0x8] sm:$0xff pattern:$0x75316420]
  %279 = vmatpush.msra.mxu0 %v240
  %280 = vmatpush.msra.mxu0 %v238
  %281 = vmatpush.msra.mxu0 %v236
  %282 = vmatpush.msra.mxu0 %v234
  %283 = vmatpush.msra.mxu0 %v232
  %284 = vmatpush.msra.mxu0 %v230
  %285 = vmatpush.msra.mxu0 %v228
  %286 = vmatpush.msra.mxu0 %v226
  %287 = vmatpush.msra.mxu0 %v224
  %288 = vmatpush.msra.mxu0 %v222
  %289 = vmatpush.msra.mxu0 %v220
  %290 = vmatpush.msra.mxu0 %v218
  %291 = vmatpush.msra.mxu0 %v216
  %292 = vmatpush.msra.mxu0 %v214
  %293 = vmatpush.msra.mxu0 %v212
  %294 = vmatpush.msra.mxu0 %v210
  %295 = vmatmul.f32.gmra.mxu0 %v275
  %v296 = vpop.f32.mrf.mxu0
  %v297 = vadd.f32 0.0, %v296
  %298 = vdwg.mxu0
  %299 = vmatpush.msra.mxu0 %v272
  %300 = vmatpush.msra.mxu0 %v270
  %301 = vmatpush.msra.mxu0 %v268
  %302 = vmatpush.msra.mxu0 %v266
  %303 = vmatpush.msra.mxu0 %v264
  %304 = vmatpush.msra.mxu0 %v262
  %305 = vmatpush.msra.mxu0 %v260
  %306 = vmatpush.msra.mxu0 %v258
  %307 = vmatpush.msra.mxu0 %v256
  %308 = vmatpush.msra.mxu0 %v254
  %309 = vmatpush.msra.mxu0 %v252
  %310 = vmatpush.msra.mxu0 %v250
  %311 = vmatpush.msra.mxu0 %v248
  %312 = vmatpush.msra.mxu0 %v246
  %313 = vmatpush.msra.mxu0 %v244
  %314 = vmatpush.msra.mxu0 %v242
  %315 = vmatmul.f32.gmra.mxu0 %v276
  %v316 = vpop.f32.mrf.mxu0
  %v317 = vadd.f32 %v297, %v316
  %318 = vdwg.mxu0
  %319 = vmatpush.msra.mxu0 %v241
  %320 = vmatpush.msra.mxu0 %v239
  %321 = vmatpush.msra.mxu0 %v237
  %322 = vmatpush.msra.mxu0 %v235
  %323 = vmatpush.msra.mxu0 %v233
  %324 = vmatpush.msra.mxu0 %v231
  %325 = vmatpush.msra.mxu0 %v229
  %326 = vmatpush.msra.mxu0 %v227
  %327 = vmatpush.msra.mxu0 %v225
  %328 = vmatpush.msra.mxu0 %v223
  %329 = vmatpush.msra.mxu0 %v221
  %330 = vmatpush.msra.mxu0 %v219
  %331 = vmatpush.msra.mxu0 %v217
  %332 = vmatpush.msra.mxu0 %v215
  %333 = vmatpush.msra.mxu0 %v213
  %334 = vmatpush.msra.mxu0 %v211
  %335 = vmatmul.f32.gmra.mxu0 %v275
  %v336 = vpop.f32.mrf.mxu0
  %v337 = vadd.f32 0.0, %v336
  %338 = vdwg.mxu0
  %339 = vmatpush.msra.mxu0 %v273
  %340 = vmatpush.msra.mxu0 %v271
  %341 = vmatpush.msra.mxu0 %v269
  %342 = vmatpush.msra.mxu0 %v267
  %343 = vmatpush.msra.mxu0 %v265
  %344 = vmatpush.msra.mxu0 %v263
  %345 = vmatpush.msra.mxu0 %v261
  %346 = vmatpush.msra.mxu0 %v259
  %347 = vmatpush.msra.mxu0 %v257
  %348 = vmatpush.msra.mxu0 %v255
  %349 = vmatpush.msra.mxu0 %v253
  %350 = vmatpush.msra.mxu0 %v251
  %351 = vmatpush.msra.mxu0 %v249
  %352 = vmatpush.msra.mxu0 %v247
  %353 = vmatpush.msra.mxu0 %v245
  %354 = vmatpush.msra.mxu0 %v243
  %355 = vmatmul.f32.gmra.mxu0 %v276
  %v356 = vpop.f32.mrf.mxu0
  %v357 = vadd.f32 %v337, %v356
  %358 = vdwg.mxu0
  %s359 = scalar_lea.vmem %s2, 16
  %v360 = vld [vmem:[%s359] sm:$0xff]
  %v361 = vld [vmem:[%s359 + $0x8] sm:$0xff]
  %vm362 = vcmask 31744
  %v364 = vsel %vm362, %v360, 0
  %v367 = vsel %vm362, %v361, 0
  %vm369 = vcmask 1043456
  %v371 = vsel %vm369, %v317, 0
  %v374 = vsel %vm369, %v357, 0
  %376 = vmatpush.msra.mxu0 0.0
  %377 = vmatpush.msra.mxu0 0.0
  %378 = vmatpush.msra.mxu0 0.0
  %379 = vmatpush.msra.mxu0 0.0
  %380 = vmatpush.msra.mxu0 0.0
  %381 = vmatpush.msra.mxu0 0.0
  %382 = vmatpush.msra.mxu0 0.0
  %383 = vmatpush.msra.mxu0 0.0
  %384 = vmatpush.msra.mxu0 0.0
  %385 = vmatpush.msra.mxu0 0.0
  %386 = vmatpush.msra.mxu0 0.0
  %387 = vmatpush.msra.mxu0 0.0
  %388 = vmatpush.msra.mxu0 0.0
  %389 = vmatpush.msra.mxu0 0.0
  %390 = vmatpush.msra.mxu0 0.0
  %391 = vmatpush.msra.mxu0 %v371
  %392 = vmatmul.f32.gmra.mxu0 %v364
  %v393 = vpop.f32.mrf.mxu0
  %v394 = vadd.f32 0.0, %v393
  %395 = vmatmul.f32.gmra.mxu0 %v367
  %v396 = vpop.f32.mrf.mxu0
  %v397 = vadd.f32 0.0, %v396
  %398 = vdwg.mxu0
  %399 = vmatpush.msra.mxu0 0.0
  %400 = vmatpush.msra.mxu0 0.0
  %401 = vmatpush.msra.mxu0 0.0
  %402 = vmatpush.msra.mxu0 0.0
  %403 = vmatpush.msra.mxu0 0.0
  %404 = vmatpush.msra.mxu0 0.0
  %405 = vmatpush.msra.mxu0 0.0
  %406 = vmatpush.msra.mxu0 0.0
  %407 = vmatpush.msra.mxu0 0.0
  %408 = vmatpush.msra.mxu0 0.0
  %409 = vmatpush.msra.mxu0 0.0
  %410 = vmatpush.msra.mxu0 0.0
  %411 = vmatpush.msra.mxu0 0.0
  %412 = vmatpush.msra.mxu0 0.0
  %413 = vmatpush.msra.mxu0 0.0
  %414 = vmatpush.msra.mxu0 %v374
  %415 = vmatmul.f32.gmra.mxu0 %v364
  %v416 = vpop.f32.mrf.mxu0
  %v417 = vadd.f32 0.0, %v416
  %418 = vmatmul.f32.gmra.mxu0 %v367
  %v419 = vpop.f32.mrf.mxu0
  %v420 = vadd.f32 0.0, %v419
  %421 = vdwg.mxu0
  %v423 = vsel %vm362, %v207, 0
  %v426 = vsel %vm362, %v208, 0
  %v429 = vsel %vm369, %v165, 0
  %v432 = vsel %vm369, %v205, 0
  %434 = vmatpush.msra.mxu0 0.0
  %435 = vmatpush.msra.mxu0 0.0
  %436 = vmatpush.msra.mxu0 0.0
  %437 = vmatpush.msra.mxu0 0.0
  %438 = vmatpush.msra.mxu0 0.0
  %439 = vmatpush.msra.mxu0 0.0
  %440 = vmatpush.msra.mxu0 0.0
  %441 = vmatpush.msra.mxu0 0.0
  %442 = vmatpush.msra.mxu0 0.0
  %443 = vmatpush.msra.mxu0 0.0
  %444 = vmatpush.msra.mxu0 0.0
  %445 = vmatpush.msra.mxu0 0.0
  %446 = vmatpush.msra.mxu0 0.0
  %447 = vmatpush.msra.mxu0 0.0
  %448 = vmatpush.msra.mxu0 0.0
  %449 = vmatpush.msra.mxu0 %v429
  %450 = vmatmul.f32.gmra.mxu0 %v423
  %v451 = vpop.f32.mrf.mxu0
  %v452 = vadd.f32 %v394, %v451
  %453 = vmatmul.f32.gmra.mxu0 %v426
  %v454 = vpop.f32.mrf.mxu0
  %v455 = vadd.f32 %v397, %v454
  %456 = vdwg.mxu0
  %457 = vmatpush.msra.mxu0 0.0
  %458 = vmatpush.msra.mxu0 0.0
  %459 = vmatpush.msra.mxu0 0.0
  %460 = vmatpush.msra.mxu0 0.0
  %461 = vmatpush.msra.mxu0 0.0
  %462 = vmatpush.msra.mxu0 0.0
  %463 = vmatpush.msra.mxu0 0.0
  %464 = vmatpush.msra.mxu0 0.0
  %465 = vmatpush.msra.mxu0 0.0
  %466 = vmatpush.msra.mxu0 0.0
  %467 = vmatpush.msra.mxu0 0.0
  %468 = vmatpush.msra.mxu0 0.0
  %469 = vmatpush.msra.mxu0 0.0
  %470 = vmatpush.msra.mxu0 0.0
  %471 = vmatpush.msra.mxu0 0.0
  %472 = vmatpush.msra.mxu0 %v432
  %473 = vmatmul.f32.gmra.mxu0 %v423
  %v474 = vpop.f32.mrf.mxu0
  %v475 = vadd.f32 %v417, %v474
  %476 = vmatmul.f32.gmra.mxu0 %v426
  %v477 = vpop.f32.mrf.mxu0
  %v478 = vadd.f32 %v420, %v477
  %479 = vdwg.mxu0
  %s480 = scalar_lea.vmem %s1, 1024
  %v481 = vld [vmem:[%s480] sm:$0xff]
  %v482 = vld [vmem:[%s480 + $0x8] sm:$0xff]
  %v483 = vld [vmem:[%s480 + $0x10] sm:$0xff]
  %v484 = vld [vmem:[%s480 + $0x18] sm:$0xff]
  %v485 = vld [vmem:[%s480 + $0x20] sm:$0xff]
  %v486 = vld [vmem:[%s480 + $0x28] sm:$0xff]
  %v487 = vld [vmem:[%s480 + $0x30] sm:$0xff]
  %v488 = vld [vmem:[%s480 + $0x38] sm:$0xff]
  %v489 = vld [vmem:[%s480 + $0x40] sm:$0xff]
  %v490 = vld [vmem:[%s480 + $0x48] sm:$0xff]
  %v491 = vld [vmem:[%s480 + $0x50] sm:$0xff]
  %v492 = vld [vmem:[%s480 + $0x58] sm:$0xff]
  %v493 = vld [vmem:[%s480 + $0x60] sm:$0xff]
  %v494 = vld [vmem:[%s480 + $0x68] sm:$0xff]
  %v495 = vld [vmem:[%s480 + $0x70] sm:$0xff]
  %v496 = vld [vmem:[%s480 + $0x78] sm:$0xff]
  %v497 = vld [vmem:[%s480 + $0x80] sm:$0xff]
  %v498 = vld [vmem:[%s480 + $0x88] sm:$0xff]
  %v499 = vld [vmem:[%s480 + $0x90] sm:$0xff]
  %v500 = vld [vmem:[%s480 + $0x98] sm:$0xff]
  %v501 = vld [vmem:[%s480 + $0xa0] sm:$0xff]
  %v502 = vld [vmem:[%s480 + $0xa8] sm:$0xff]
  %v503 = vld [vmem:[%s480 + $0xb0] sm:$0xff]
  %v504 = vld [vmem:[%s480 + $0xb8] sm:$0xff]
  %v505 = vld [vmem:[%s480 + $0xc0] sm:$0xff]
  %v506 = vld [vmem:[%s480 + $0xc8] sm:$0xff]
  %v507 = vld [vmem:[%s480 + $0xd0] sm:$0xff]
  %v508 = vld [vmem:[%s480 + $0xd8] sm:$0xff]
  %v509 = vld [vmem:[%s480 + $0xe0] sm:$0xff]
  %v510 = vld [vmem:[%s480 + $0xe8] sm:$0xff]
  %v511 = vld [vmem:[%s480 + $0xf0] sm:$0xff]
  %v512 = vld [vmem:[%s480 + $0xf8] sm:$0xff]
  %v513 = vld [vmem:[%s480 + $0x100] sm:$0xff]
  %v514 = vld [vmem:[%s480 + $0x108] sm:$0xff]
  %v515 = vld [vmem:[%s480 + $0x110] sm:$0xff]
  %v516 = vld [vmem:[%s480 + $0x118] sm:$0xff]
  %v517 = vld [vmem:[%s480 + $0x120] sm:$0xff]
  %v518 = vld [vmem:[%s480 + $0x128] sm:$0xff]
  %v519 = vld [vmem:[%s480 + $0x130] sm:$0xff]
  %v520 = vld [vmem:[%s480 + $0x138] sm:$0xff]
  %v521 = vld [vmem:[%s480 + $0x140] sm:$0xff]
  %v522 = vld [vmem:[%s480 + $0x148] sm:$0xff]
  %v523 = vld [vmem:[%s480 + $0x150] sm:$0xff]
  %v524 = vld [vmem:[%s480 + $0x158] sm:$0xff]
  %v525 = vld [vmem:[%s480 + $0x160] sm:$0xff]
  %v526 = vld [vmem:[%s480 + $0x168] sm:$0xff]
  %v527 = vld [vmem:[%s480 + $0x170] sm:$0xff]
  %v528 = vld [vmem:[%s480 + $0x178] sm:$0xff]
  %v529 = vld [vmem:[%s480 + $0x180] sm:$0xff]
  %v530 = vld [vmem:[%s480 + $0x188] sm:$0xff]
  %v531 = vld [vmem:[%s480 + $0x190] sm:$0xff]
  %v532 = vld [vmem:[%s480 + $0x198] sm:$0xff]
  %v533 = vld [vmem:[%s480 + $0x1a0] sm:$0xff]
  %v534 = vld [vmem:[%s480 + $0x1a8] sm:$0xff]
  %v535 = vld [vmem:[%s480 + $0x1b0] sm:$0xff]
  %v536 = vld [vmem:[%s480 + $0x1b8] sm:$0xff]
  %v537 = vld [vmem:[%s480 + $0x1c0] sm:$0xff]
  %v538 = vld [vmem:[%s480 + $0x1c8] sm:$0xff]
  %v539 = vld [vmem:[%s480 + $0x1d0] sm:$0xff]
  %v540 = vld [vmem:[%s480 + $0x1d8] sm:$0xff]
  %v541 = vld [vmem:[%s480 + $0x1e0] sm:$0xff]
  %v542 = vld [vmem:[%s480 + $0x1e8] sm:$0xff]
  %v543 = vld [vmem:[%s480 + $0x1f0] sm:$0xff]
  %v544 = vld [vmem:[%s480 + $0x1f8] sm:$0xff]
  %545 = vst [vmem:[#allocation1] ss:$2 sm:$0xff] %v56
  %v546 = vld.sshfl [vmem:[#allocation1] sm:$0xff pattern:$0x75316420]
  %v547 = vld.sshfl [vmem:[#allocation1 + $0x8] sm:$0xff pattern:$0x75316420]
  %550 = vmatpush.msra.mxu0 %v511
  %551 = vmatpush.msra.mxu0 %v509
  %552 = vmatpush.msra.mxu0 %v507
  %553 = vmatpush.msra.mxu0 %v505
  %554 = vmatpush.msra.mxu0 %v503
  %555 = vmatpush.msra.mxu0 %v501
  %556 = vmatpush.msra.mxu0 %v499
  %557 = vmatpush.msra.mxu0 %v497
  %558 = vmatpush.msra.mxu0 %v495
  %559 = vmatpush.msra.mxu0 %v493
  %560 = vmatpush.msra.mxu0 %v491
  %561 = vmatpush.msra.mxu0 %v489
  %562 = vmatpush.msra.mxu0 %v487
  %563 = vmatpush.msra.mxu0 %v485
  %564 = vmatpush.msra.mxu0 %v483
  %565 = vmatpush.msra.mxu0 %v481
  %566 = vmatmul.f32.gmra.mxu0 %v546
  %v567 = vpop.f32.mrf.mxu0
  %v568 = vadd.f32 0.0, %v567
  %569 = vdwg.mxu0
  %570 = vmatpush.msra.mxu0 %v543
  %571 = vmatpush.msra.mxu0 %v541
  %572 = vmatpush.msra.mxu0 %v539
  %573 = vmatpush.msra.mxu0 %v537
  %574 = vmatpush.msra.mxu0 %v535
  %575 = vmatpush.msra.mxu0 %v533
  %576 = vmatpush.msra.mxu0 %v531
  %577 = vmatpush.msra.mxu0 %v529
  %578 = vmatpush.msra.mxu0 %v527
  %579 = vmatpush.msra.mxu0 %v525
  %580 = vmatpush.msra.mxu0 %v523
  %581 = vmatpush.msra.mxu0 %v521
  %582 = vmatpush.msra.mxu0 %v519
  %583 = vmatpush.msra.mxu0 %v517
  %584 = vmatpush.msra.mxu0 %v515
  %585 = vmatpush.msra.mxu0 %v513
  %586 = vmatmul.f32.gmra.mxu0 %v547
  %v587 = vpop.f32.mrf.mxu0
  %v588 = vadd.f32 %v568, %v587
  %589 = vdwg.mxu0
  %590 = vmatpush.msra.mxu0 %v512
  %591 = vmatpush.msra.mxu0 %v510
  %592 = vmatpush.msra.mxu0 %v508
  %593 = vmatpush.msra.mxu0 %v506
  %594 = vmatpush.msra.mxu0 %v504
  %595 = vmatpush.msra.mxu0 %v502
  %596 = vmatpush.msra.mxu0 %v500
  %597 = vmatpush.msra.mxu0 %v498
  %598 = vmatpush.msra.mxu0 %v496
  %599 = vmatpush.msra.mxu0 %v494
  %600 = vmatpush.msra.mxu0 %v492
  %601 = vmatpush.msra.mxu0 %v490
  %602 = vmatpush.msra.mxu0 %v488
  %603 = vmatpush.msra.mxu0 %v486
  %604 = vmatpush.msra.mxu0 %v484
  %605 = vmatpush.msra.mxu0 %v482
  %606 = vmatmul.f32.gmra.mxu0 %v546
  %v607 = vpop.f32.mrf.mxu0
  %v608 = vadd.f32 0.0, %v607
  %609 = vdwg.mxu0
  %610 = vmatpush.msra.mxu0 %v544
  %611 = vmatpush.msra.mxu0 %v542
  %612 = vmatpush.msra.mxu0 %v540
  %613 = vmatpush.msra.mxu0 %v538
  %614 = vmatpush.msra.mxu0 %v536
  %615 = vmatpush.msra.mxu0 %v534
  %616 = vmatpush.msra.mxu0 %v532
  %617 = vmatpush.msra.mxu0 %v530
  %618 = vmatpush.msra.mxu0 %v528
  %619 = vmatpush.msra.mxu0 %v526
  %620 = vmatpush.msra.mxu0 %v524
  %621 = vmatpush.msra.mxu0 %v522
  %622 = vmatpush.msra.mxu0 %v520
  %623 = vmatpush.msra.mxu0 %v518
  %624 = vmatpush.msra.mxu0 %v516
  %625 = vmatpush.msra.mxu0 %v514
  %626 = vmatmul.f32.gmra.mxu0 %v547
  %v627 = vpop.f32.mrf.mxu0
  %v628 = vadd.f32 %v608, %v627
  %629 = vdwg.mxu0
  %s630 = scalar_lea.vmem %s2, 32
  %v631 = vld [vmem:[%s630] sm:$0xff]
  %v632 = vld [vmem:[%s630 + $0x8] sm:$0xff]
  %v634 = vsel %vm362, %v631, 0
  %v637 = vsel %vm362, %v632, 0
  %v640 = vsel %vm369, %v588, 0
  %v643 = vsel %vm369, %v628, 0
  %645 = vmatpush.msra.mxu0 0.0
  %646 = vmatpush.msra.mxu0 0.0
  %647 = vmatpush.msra.mxu0 0.0
  %648 = vmatpush.msra.mxu0 0.0
  %649 = vmatpush.msra.mxu0 0.0
  %650 = vmatpush.msra.mxu0 0.0
  %651 = vmatpush.msra.mxu0 0.0
  %652 = vmatpush.msra.mxu0 0.0
  %653 = vmatpush.msra.mxu0 0.0
  %654 = vmatpush.msra.mxu0 0.0
  %655 = vmatpush.msra.mxu0 0.0
  %656 = vmatpush.msra.mxu0 0.0
  %657 = vmatpush.msra.mxu0 0.0
  %658 = vmatpush.msra.mxu0 0.0
  %659 = vmatpush.msra.mxu0 0.0
  %660 = vmatpush.msra.mxu0 %v640
  %661 = vmatmul.f32.gmra.mxu0 %v634
  %v662 = vpop.f32.mrf.mxu0
  %v663 = vadd.f32 0.0, %v662
  %664 = vmatmul.f32.gmra.mxu0 %v637
  %v665 = vpop.f32.mrf.mxu0
  %v666 = vadd.f32 0.0, %v665
  %667 = vdwg.mxu0
  %668 = vmatpush.msra.mxu0 0.0
  %669 = vmatpush.msra.mxu0 0.0
  %670 = vmatpush.msra.mxu0 0.0
  %671 = vmatpush.msra.mxu0 0.0
  %672 = vmatpush.msra.mxu0 0.0
  %673 = vmatpush.msra.mxu0 0.0
  %674 = vmatpush.msra.mxu0 0.0
  %675 = vmatpush.msra.mxu0 0.0
  %676 = vmatpush.msra.mxu0 0.0
  %677 = vmatpush.msra.mxu0 0.0
  %678 = vmatpush.msra.mxu0 0.0
  %679 = vmatpush.msra.mxu0 0.0
  %680 = vmatpush.msra.mxu0 0.0
  %681 = vmatpush.msra.mxu0 0.0
  %682 = vmatpush.msra.mxu0 0.0
  %683 = vmatpush.msra.mxu0 %v643
  %684 = vmatmul.f32.gmra.mxu0 %v634
  %v685 = vpop.f32.mrf.mxu0
  %v686 = vadd.f32 0.0, %v685
  %687 = vmatmul.f32.gmra.mxu0 %v637
  %v688 = vpop.f32.mrf.mxu0
  %v689 = vadd.f32 0.0, %v688
  %690 = vdwg.mxu0
  %v691 = vadd.f32 %v452, %v663
  %v692 = vadd.f32 %v475, %v686
  %v693 = vadd.f32 %v455, %v666
  %v694 = vadd.f32 %v478, %v689
  %s695 = scalar_lea.vmem %s1, 1536
  %v696 = vld [vmem:[%s695] sm:$0xff]
  %v697 = vld [vmem:[%s695 + $0x8] sm:$0xff]
  %v698 = vld [vmem:[%s695 + $0x10] sm:$0xff]
  %v699 = vld [vmem:[%s695 + $0x18] sm:$0xff]
  %v700 = vld [vmem:[%s695 + $0x20] sm:$0xff]
  %v701 = vld [vmem:[%s695 + $0x28] sm:$0xff]
  %v702 = vld [vmem:[%s695 + $0x30] sm:$0xff]
  %v703 = vld [vmem:[%s695 + $0x38] sm:$0xff]
  %v704 = vld [vmem:[%s695 + $0x40] sm:$0xff]
  %v705 = vld [vmem:[%s695 + $0x48] sm:$0xff]
  %v706 = vld [vmem:[%s695 + $0x50] sm:$0xff]
  %v707 = vld [vmem:[%s695 + $0x58] sm:$0xff]
  %v708 = vld [vmem:[%s695 + $0x60] sm:$0xff]
  %v709 = vld [vmem:[%s695 + $0x68] sm:$0xff]
  %v710 = vld [vmem:[%s695 + $0x70] sm:$0xff]
  %v711 = vld [vmem:[%s695 + $0x78] sm:$0xff]
  %v712 = vld [vmem:[%s695 + $0x80] sm:$0xff]
  %v713 = vld [vmem:[%s695 + $0x88] sm:$0xff]
  %v714 = vld [vmem:[%s695 + $0x90] sm:$0xff]
  %v715 = vld [vmem:[%s695 + $0x98] sm:$0xff]
  %v716 = vld [vmem:[%s695 + $0xa0] sm:$0xff]
  %v717 = vld [vmem:[%s695 + $0xa8] sm:$0xff]
  %v718 = vld [vmem:[%s695 + $0xb0] sm:$0xff]
  %v719 = vld [vmem:[%s695 + $0xb8] sm:$0xff]
  %v720 = vld [vmem:[%s695 + $0xc0] sm:$0xff]
  %v721 = vld [vmem:[%s695 + $0xc8] sm:$0xff]
  %v722 = vld [vmem:[%s695 + $0xd0] sm:$0xff]
  %v723 = vld [vmem:[%s695 + $0xd8] sm:$0xff]
  %v724 = vld [vmem:[%s695 + $0xe0] sm:$0xff]
  %v725 = vld [vmem:[%s695 + $0xe8] sm:$0xff]
  %v726 = vld [vmem:[%s695 + $0xf0] sm:$0xff]
  %v727 = vld [vmem:[%s695 + $0xf8] sm:$0xff]
  %v728 = vld [vmem:[%s695 + $0x100] sm:$0xff]
  %v729 = vld [vmem:[%s695 + $0x108] sm:$0xff]
  %v730 = vld [vmem:[%s695 + $0x110] sm:$0xff]
  %v731 = vld [vmem:[%s695 + $0x118] sm:$0xff]
  %v732 = vld [vmem:[%s695 + $0x120] sm:$0xff]
  %v733 = vld [vmem:[%s695 + $0x128] sm:$0xff]
  %v734 = vld [vmem:[%s695 + $0x130] sm:$0xff]
  %v735 = vld [vmem:[%s695 + $0x138] sm:$0xff]
  %v736 = vld [vmem:[%s695 + $0x140] sm:$0xff]
  %v737 = vld [vmem:[%s695 + $0x148] sm:$0xff]
  %v738 = vld [vmem:[%s695 + $0x150] sm:$0xff]
  %v739 = vld [vmem:[%s695 + $0x158] sm:$0xff]
  %v740 = vld [vmem:[%s695 + $0x160] sm:$0xff]
  %v741 = vld [vmem:[%s695 + $0x168] sm:$0xff]
  %v742 = vld [vmem:[%s695 + $0x170] sm:$0xff]
  %v743 = vld [vmem:[%s695 + $0x178] sm:$0xff]
  %v744 = vld [vmem:[%s695 + $0x180] sm:$0xff]
  %v745 = vld [vmem:[%s695 + $0x188] sm:$0xff]
  %v746 = vld [vmem:[%s695 + $0x190] sm:$0xff]
  %v747 = vld [vmem:[%s695 + $0x198] sm:$0xff]
  %v748 = vld [vmem:[%s695 + $0x1a0] sm:$0xff]
  %v749 = vld [vmem:[%s695 + $0x1a8] sm:$0xff]
  %v750 = vld [vmem:[%s695 + $0x1b0] sm:$0xff]
  %v751 = vld [vmem:[%s695 + $0x1b8] sm:$0xff]
  %v752 = vld [vmem:[%s695 + $0x1c0] sm:$0xff]
  %v753 = vld [vmem:[%s695 + $0x1c8] sm:$0xff]
  %v754 = vld [vmem:[%s695 + $0x1d0] sm:$0xff]
  %v755 = vld [vmem:[%s695 + $0x1d8] sm:$0xff]
  %v756 = vld [vmem:[%s695 + $0x1e0] sm:$0xff]
  %v757 = vld [vmem:[%s695 + $0x1e8] sm:$0xff]
  %v758 = vld [vmem:[%s695 + $0x1f0] sm:$0xff]
  %v759 = vld [vmem:[%s695 + $0x1f8] sm:$0xff]
  %760 = vst [vmem:[#allocation1] ss:$2 sm:$0xff] %v56
  %v761 = vld.sshfl [vmem:[#allocation1] sm:$0xff pattern:$0x75316420]
  %v762 = vld.sshfl [vmem:[#allocation1 + $0x8] sm:$0xff pattern:$0x75316420]
  %765 = vmatpush.msra.mxu0 %v726
  %766 = vmatpush.msra.mxu0 %v724
  %767 = vmatpush.msra.mxu0 %v722
  %768 = vmatpush.msra.mxu0 %v720
  %769 = vmatpush.msra.mxu0 %v718
  %770 = vmatpush.msra.mxu0 %v716
  %771 = vmatpush.msra.mxu0 %v714
  %772 = vmatpush.msra.mxu0 %v712
  %773 = vmatpush.msra.mxu0 %v710
  %774 = vmatpush.msra.mxu0 %v708
  %775 = vmatpush.msra.mxu0 %v706
  %776 = vmatpush.msra.mxu0 %v704
  %777 = vmatpush.msra.mxu0 %v702
  %778 = vmatpush.msra.mxu0 %v700
  %779 = vmatpush.msra.mxu0 %v698
  %780 = vmatpush.msra.mxu0 %v696
  %781 = vmatmul.f32.gmra.mxu0 %v761
  %v782 = vpop.f32.mrf.mxu0
  %v783 = vadd.f32 0.0, %v782
  %784 = vdwg.mxu0
  %785 = vmatpush.msra.mxu0 %v758
  %786 = vmatpush.msra.mxu0 %v756
  %787 = vmatpush.msra.mxu0 %v754
  %788 = vmatpush.msra.mxu0 %v752
  %789 = vmatpush.msra.mxu0 %v750
  %790 = vmatpush.msra.mxu0 %v748
  %791 = vmatpush.msra.mxu0 %v746
  %792 = vmatpush.msra.mxu0 %v744
  %793 = vmatpush.msra.mxu0 %v742
  %794 = vmatpush.msra.mxu0 %v740
  %795 = vmatpush.msra.mxu0 %v738
  %796 = vmatpush.msra.mxu0 %v736
  %797 = vmatpush.msra.mxu0 %v734
  %798 = vmatpush.msra.mxu0 %v732
  %799 = vmatpush.msra.mxu0 %v730
  %800 = vmatpush.msra.mxu0 %v728
  %801 = vmatmul.f32.gmra.mxu0 %v762
  %v802 = vpop.f32.mrf.mxu0
  %v803 = vadd.f32 %v783, %v802
  %804 = vdwg.mxu0
  %805 = vmatpush.msra.mxu0 %v727
  %806 = vmatpush.msra.mxu0 %v725
  %807 = vmatpush.msra.mxu0 %v723
  %808 = vmatpush.msra.mxu0 %v721
  %809 = vmatpush.msra.mxu0 %v719
  %810 = vmatpush.msra.mxu0 %v717
  %811 = vmatpush.msra.mxu0 %v715
  %812 = vmatpush.msra.mxu0 %v713
  %813 = vmatpush.msra.mxu0 %v711
  %814 = vmatpush.msra.mxu0 %v709
  %815 = vmatpush.msra.mxu0 %v707
  %816 = vmatpush.msra.mxu0 %v705
  %817 = vmatpush.msra.mxu0 %v703
  %818 = vmatpush.msra.mxu0 %v701
  %819 = vmatpush.msra.mxu0 %v699
  %820 = vmatpush.msra.mxu0 %v697
  %821 = vmatmul.f32.gmra.mxu0 %v761
  %v822 = vpop.f32.mrf.mxu0
  %v823 = vadd.f32 0.0, %v822
  %824 = vdwg.mxu0
  %825 = vmatpush.msra.mxu0 %v759
  %826 = vmatpush.msra.mxu0 %v757
  %827 = vmatpush.msra.mxu0 %v755
  %828 = vmatpush.msra.mxu0 %v753
  %829 = vmatpush.msra.mxu0 %v751
  %830 = vmatpush.msra.mxu0 %v749
  %831 = vmatpush.msra.mxu0 %v747
  %832 = vmatpush.msra.mxu0 %v745
  %833 = vmatpush.msra.mxu0 %v743
  %834 = vmatpush.msra.mxu0 %v741
  %835 = vmatpush.msra.mxu0 %v739
  %836 = vmatpush.msra.mxu0 %v737
  %837 = vmatpush.msra.mxu0 %v735
  %838 = vmatpush.msra.mxu0 %v733
  %839 = vmatpush.msra.mxu0 %v731
  %840 = vmatpush.msra.mxu0 %v729
  %841 = vmatmul.f32.gmra.mxu0 %v762
  %v842 = vpop.f32.mrf.mxu0
  %v843 = vadd.f32 %v823, %v842
  %844 = vdwg.mxu0
  %s845 = scalar_lea.vmem %s2, 48
  %v846 = vld [vmem:[%s845] sm:$0xff]
  %v847 = vld [vmem:[%s845 + $0x8] sm:$0xff]
  %v849 = vsel %vm362, %v846, 0
  %v852 = vsel %vm362, %v847, 0
  %v855 = vsel %vm369, %v803, 0
  %v858 = vsel %vm369, %v843, 0
  %860 = vmatpush.msra.mxu0 0.0
  %861 = vmatpush.msra.mxu0 0.0
  %862 = vmatpush.msra.mxu0 0.0
  %863 = vmatpush.msra.mxu0 0.0
  %864 = vmatpush.msra.mxu0 0.0
  %865 = vmatpush.msra.mxu0 0.0
  %866 = vmatpush.msra.mxu0 0.0
  %867 = vmatpush.msra.mxu0 0.0
  %868 = vmatpush.msra.mxu0 0.0
  %869 = vmatpush.msra.mxu0 0.0
  %870 = vmatpush.msra.mxu0 0.0
  %871 = vmatpush.msra.mxu0 0.0
  %872 = vmatpush.msra.mxu0 0.0
  %873 = vmatpush.msra.mxu0 0.0
  %874 = vmatpush.msra.mxu0 0.0
  %875 = vmatpush.msra.mxu0 %v855
  %876 = vmatmul.f32.gmra.mxu0 %v849
  %v877 = vpop.f32.mrf.mxu0
  %v878 = vadd.f32 0.0, %v877
  %879 = vmatmul.f32.gmra.mxu0 %v852
  %v880 = vpop.f32.mrf.mxu0
  %v881 = vadd.f32 0.0, %v880
  %882 = vdwg.mxu0
  %883 = vmatpush.msra.mxu0 0.0
  %884 = vmatpush.msra.mxu0 0.0
  %885 = vmatpush.msra.mxu0 0.0
  %886 = vmatpush.msra.mxu0 0.0
  %887 = vmatpush.msra.mxu0 0.0
  %888 = vmatpush.msra.mxu0 0.0
  %889 = vmatpush.msra.mxu0 0.0
  %890 = vmatpush.msra.mxu0 0.0
  %891 = vmatpush.msra.mxu0 0.0
  %892 = vmatpush.msra.mxu0 0.0
  %893 = vmatpush.msra.mxu0 0.0
  %894 = vmatpush.msra.mxu0 0.0
  %895 = vmatpush.msra.mxu0 0.0
  %896 = vmatpush.msra.mxu0 0.0
  %897 = vmatpush.msra.mxu0 0.0
  %898 = vmatpush.msra.mxu0 %v858
  %899 = vmatmul.f32.gmra.mxu0 %v849
  %v900 = vpop.f32.mrf.mxu0
  %v901 = vadd.f32 0.0, %v900
  %902 = vmatmul.f32.gmra.mxu0 %v852
  %v903 = vpop.f32.mrf.mxu0
  %v904 = vadd.f32 0.0, %v903
  %905 = vdwg.mxu0
  %v906 = vadd.f32 %v691, %v878
  %v907 = vadd.f32 %v692, %v901
  %v908 = vadd.f32 %v693, %v881
  %v909 = vadd.f32 %v694, %v904
  %s910 = scalar_lea.vmem %s1, 2048
  %v911 = vld [vmem:[%s910] sm:$0xff]
  %v912 = vld [vmem:[%s910 + $0x8] sm:$0xff]
  %v913 = vld [vmem:[%s910 + $0x10] sm:$0xff]
  %v914 = vld [vmem:[%s910 + $0x18] sm:$0xff]
  %v915 = vld [vmem:[%s910 + $0x20] sm:$0xff]
  %v916 = vld [vmem:[%s910 + $0x28] sm:$0xff]
  %v917 = vld [vmem:[%s910 + $0x30] sm:$0xff]
  %v918 = vld [vmem:[%s910 + $0x38] sm:$0xff]
  %v919 = vld [vmem:[%s910 + $0x40] sm:$0xff]
  %v920 = vld [vmem:[%s910 + $0x48] sm:$0xff]
  %v921 = vld [vmem:[%s910 + $0x50] sm:$0xff]
  %v922 = vld [vmem:[%s910 + $0x58] sm:$0xff]
  %v923 = vld [vmem:[%s910 + $0x60] sm:$0xff]
  %v924 = vld [vmem:[%s910 + $0x68] sm:$0xff]
  %v925 = vld [vmem:[%s910 + $0x70] sm:$0xff]
  %v926 = vld [vmem:[%s910 + $0x78] sm:$0xff]
  %v927 = vld [vmem:[%s910 + $0x80] sm:$0xff]
  %v928 = vld [vmem:[%s910 + $0x88] sm:$0xff]
  %v929 = vld [vmem:[%s910 + $0x90] sm:$0xff]
  %v930 = vld [vmem:[%s910 + $0x98] sm:$0xff]
  %v931 = vld [vmem:[%s910 + $0xa0] sm:$0xff]
  %v932 = vld [vmem:[%s910 + $0xa8] sm:$0xff]
  %v933 = vld [vmem:[%s910 + $0xb0] sm:$0xff]
  %v934 = vld [vmem:[%s910 + $0xb8] sm:$0xff]
  %v935 = vld [vmem:[%s910 + $0xc0] sm:$0xff]
  %v936 = vld [vmem:[%s910 + $0xc8] sm:$0xff]
  %v937 = vld [vmem:[%s910 + $0xd0] sm:$0xff]
  %v938 = vld [vmem:[%s910 + $0xd8] sm:$0xff]
  %v939 = vld [vmem:[%s910 + $0xe0] sm:$0xff]
  %v940 = vld [vmem:[%s910 + $0xe8] sm:$0xff]
  %v941 = vld [vmem:[%s910 + $0xf0] sm:$0xff]
  %v942 = vld [vmem:[%s910 + $0xf8] sm:$0xff]
  %v943 = vld [vmem:[%s910 + $0x100] sm:$0xff]
  %v944 = vld [vmem:[%s910 + $0x108] sm:$0xff]
  %v945 = vld [vmem:[%s910 + $0x110] sm:$0xff]
  %v946 = vld [vmem:[%s910 + $0x118] sm:$0xff]
  %v947 = vld [vmem:[%s910 + $0x120] sm:$0xff]
  %v948 = vld [vmem:[%s910 + $0x128] sm:$0xff]
  %v949 = vld [vmem:[%s910 + $0x130] sm:$0xff]
  %v950 = vld [vmem:[%s910 + $0x138] sm:$0xff]
  %v951 = vld [vmem:[%s910 + $0x140] sm:$0xff]
  %v952 = vld [vmem:[%s910 + $0x148] sm:$0xff]
  %v953 = vld [vmem:[%s910 + $0x150] sm:$0xff]
  %v954 = vld [vmem:[%s910 + $0x158] sm:$0xff]
  %v955 = vld [vmem:[%s910 + $0x160] sm:$0xff]
  %v956 = vld [vmem:[%s910 + $0x168] sm:$0xff]
  %v957 = vld [vmem:[%s910 + $0x170] sm:$0xff]
  %v958 = vld [vmem:[%s910 + $0x178] sm:$0xff]
  %v959 = vld [vmem:[%s910 + $0x180] sm:$0xff]
  %v960 = vld [vmem:[%s910 + $0x188] sm:$0xff]
  %v961 = vld [vmem:[%s910 + $0x190] sm:$0xff]
  %v962 = vld [vmem:[%s910 + $0x198] sm:$0xff]
  %v963 = vld [vmem:[%s910 + $0x1a0] sm:$0xff]
  %v964 = vld [vmem:[%s910 + $0x1a8] sm:$0xff]
  %v965 = vld [vmem:[%s910 + $0x1b0] sm:$0xff]
  %v966 = vld [vmem:[%s910 + $0x1b8] sm:$0xff]
  %v967 = vld [vmem:[%s910 + $0x1c0] sm:$0xff]
  %v968 = vld [vmem:[%s910 + $0x1c8] sm:$0xff]
  %v969 = vld [vmem:[%s910 + $0x1d0] sm:$0xff]
  %v970 = vld [vmem:[%s910 + $0x1d8] sm:$0xff]
  %v971 = vld [vmem:[%s910 + $0x1e0] sm:$0xff]
  %v972 = vld [vmem:[%s910 + $0x1e8] sm:$0xff]
  %v973 = vld [vmem:[%s910 + $0x1f0] sm:$0xff]
  %v974 = vld [vmem:[%s910 + $0x1f8] sm:$0xff]
  %975 = vst [vmem:[#allocation1] ss:$2 sm:$0xff] %v56
  %v976 = vld.sshfl [vmem:[#allocation1] sm:$0xff pattern:$0x75316420]
  %v977 = vld.sshfl [vmem:[#allocation1 + $0x8] sm:$0xff pattern:$0x75316420]
  %980 = vmatpush.msra.mxu0 %v941
  %981 = vmatpush.msra.mxu0 %v939
  %982 = vmatpush.msra.mxu0 %v937
  %983 = vmatpush.msra.mxu0 %v935
  %984 = vmatpush.msra.mxu0 %v933
  %985 = vmatpush.msra.mxu0 %v931
  %986 = vmatpush.msra.mxu0 %v929
  %987 = vmatpush.msra.mxu0 %v927
  %988 = vmatpush.msra.mxu0 %v925
  %989 = vmatpush.msra.mxu0 %v923
  %990 = vmatpush.msra.mxu0 %v921
  %991 = vmatpush.msra.mxu0 %v919
  %992 = vmatpush.msra.mxu0 %v917
  %993 = vmatpush.msra.mxu0 %v915
  %994 = vmatpush.msra.mxu0 %v913
  %995 = vmatpush.msra.mxu0 %v911
  %996 = vmatmul.f32.gmra.mxu0 %v976
  %v997 = vpop.f32.mrf.mxu0
  %v998 = vadd.f32 0.0, %v997
  %999 = vdwg.mxu0
  %1000 = vmatpush.msra.mxu0 %v973
  %1001 = vmatpush.msra.mxu0 %v971
  %1002 = vmatpush.msra.mxu0 %v969
  %1003 = vmatpush.msra.mxu0 %v967
  %1004 = vmatpush.msra.mxu0 %v965
  %1005 = vmatpush.msra.mxu0 %v963
  %1006 = vmatpush.msra.mxu0 %v961
  %1007 = vmatpush.msra.mxu0 %v959
  %1008 = vmatpush.msra.mxu0 %v957
  %1009 = vmatpush.msra.mxu0 %v955
  %1010 = vmatpush.msra.mxu0 %v953
  %1011 = vmatpush.msra.mxu0 %v951
  %1012 = vmatpush.msra.mxu0 %v949
  %1013 = vmatpush.msra.mxu0 %v947
  %1014 = vmatpush.msra.mxu0 %v945
  %1015 = vmatpush.msra.mxu0 %v943
  %1016 = vmatmul.f32.gmra.mxu0 %v977
  %v1017 = vpop.f32.mrf.mxu0
  %v1018 = vadd.f32 %v998, %v1017
  %1019 = vdwg.mxu0
  %1020 = vmatpush.msra.mxu0 %v942
  %1021 = vmatpush.msra.mxu0 %v940
  %1022 = vmatpush.msra.mxu0 %v938
  %1023 = vmatpush.msra.mxu0 %v936
  %1024 = vmatpush.msra.mxu0 %v934
  %1025 = vmatpush.msra.mxu0 %v932
  %1026 = vmatpush.msra.mxu0 %v930
  %1027 = vmatpush.msra.mxu0 %v928
  %1028 = vmatpush.msra.mxu0 %v926
  %1029 = vmatpush.msra.mxu0 %v924
  %1030 = vmatpush.msra.mxu0 %v922
  %1031 = vmatpush.msra.mxu0 %v920
  %1032 = vmatpush.msra.mxu0 %v918
  %1033 = vmatpush.msra.mxu0 %v916
  %1034 = vmatpush.msra.mxu0 %v914
  %1035 = vmatpush.msra.mxu0 %v912
  %1036 = vmatmul.f32.gmra.mxu0 %v976
  %v1037 = vpop.f32.mrf.mxu0
  %v1038 = vadd.f32 0.0, %v1037
  %1039 = vdwg.mxu0
  %1040 = vmatpush.msra.mxu0 %v974
  %1041 = vmatpush.msra.mxu0 %v972
  %1042 = vmatpush.msra.mxu0 %v970
  %1043 = vmatpush.msra.mxu0 %v968
  %1044 = vmatpush.msra.mxu0 %v966
  %1045 = vmatpush.msra.mxu0 %v964
  %1046 = vmatpush.msra.mxu0 %v962
  %1047 = vmatpush.msra.mxu0 %v960
  %1048 = vmatpush.msra.mxu0 %v958
  %1049 = vmatpush.msra.mxu0 %v956
  %1050 = vmatpush.msra.mxu0 %v954
  %1051 = vmatpush.msra.mxu0 %v952
  %1052 = vmatpush.msra.mxu0 %v950
  %1053 = vmatpush.msra.mxu0 %v948
  %1054 = vmatpush.msra.mxu0 %v946
  %1055 = vmatpush.msra.mxu0 %v944
  %1056 = vmatmul.f32.gmra.mxu0 %v977
  %v1057 = vpop.f32.mrf.mxu0
  %v1058 = vadd.f32 %v1038, %v1057
  %1059 = vdwg.mxu0
  %s1060 = scalar_lea.vmem %s2, 64
  %v1061 = vld [vmem:[%s1060] sm:$0xff]
  %v1062 = vld [vmem:[%s1060 + $0x8] sm:$0xff]
  %v1064 = vsel %vm362, %v1061, 0
  %v1067 = vsel %vm362, %v1062, 0
  %v1070 = vsel %vm369, %v1018, 0
  %v1073 = vsel %vm369, %v1058, 0
  %1075 = vmatpush.msra.mxu0 0.0
  %1076 = vmatpush.msra.mxu0 0.0
  %1077 = vmatpush.msra.mxu0 0.0
  %1078 = vmatpush.msra.mxu0 0.0
  %1079 = vmatpush.msra.mxu0 0.0
  %1080 = vmatpush.msra.mxu0 0.0
  %1081 = vmatpush.msra.mxu0 0.0
  %1082 = vmatpush.msra.mxu0 0.0
  %1083 = vmatpush.msra.mxu0 0.0
  %1084 = vmatpush.msra.mxu0 0.0
  %1085 = vmatpush.msra.mxu0 0.0
  %1086 = vmatpush.msra.mxu0 0.0
  %1087 = vmatpush.msra.mxu0 0.0
  %1088 = vmatpush.msra.mxu0 0.0
  %1089 = vmatpush.msra.mxu0 0.0
  %1090 = vmatpush.msra.mxu0 %v1070
  %1091 = vmatmul.f32.gmra.mxu0 %v1064
  %v1092 = vpop.f32.mrf.mxu0
  %v1093 = vadd.f32 0.0, %v1092
  %1094 = vmatmul.f32.gmra.mxu0 %v1067
  %v1095 = vpop.f32.mrf.mxu0
  %v1096 = vadd.f32 0.0, %v1095
  %1097 = vdwg.mxu0
  %1098 = vmatpush.msra.mxu0 0.0
  %1099 = vmatpush.msra.mxu0 0.0
  %1100 = vmatpush.msra.mxu0 0.0
  %1101 = vmatpush.msra.mxu0 0.0
  %1102 = vmatpush.msra.mxu0 0.0
  %1103 = vmatpush.msra.mxu0 0.0
  %1104 = vmatpush.msra.mxu0 0.0
  %1105 = vmatpush.msra.mxu0 0.0
  %1106 = vmatpush.msra.mxu0 0.0
  %1107 = vmatpush.msra.mxu0 0.0
  %1108 = vmatpush.msra.mxu0 0.0
  %1109 = vmatpush.msra.mxu0 0.0
  %1110 = vmatpush.msra.mxu0 0.0
  %1111 = vmatpush.msra.mxu0 0.0
  %1112 = vmatpush.msra.mxu0 0.0
  %1113 = vmatpush.msra.mxu0 %v1073
  %1114 = vmatmul.f32.gmra.mxu0 %v1064
  %v1115 = vpop.f32.mrf.mxu0
  %v1116 = vadd.f32 0.0, %v1115
  %1117 = vmatmul.f32.gmra.mxu0 %v1067
  %v1118 = vpop.f32.mrf.mxu0
  %v1119 = vadd.f32 0.0, %v1118
  %1120 = vdwg.mxu0
  %v1121 = vadd.f32 %v906, %v1093
  %v1122 = vadd.f32 %v907, %v1116
  %v1123 = vadd.f32 %v908, %v1096
  %v1124 = vadd.f32 %v909, %v1119
  %s1125 = scalar_lea.vmem %s1, 2560
  %v1126 = vld [vmem:[%s1125] sm:$0xff]
  %v1127 = vld [vmem:[%s1125 + $0x8] sm:$0xff]
  %v1128 = vld [vmem:[%s1125 + $0x10] sm:$0xff]
  %v1129 = vld [vmem:[%s1125 + $0x18] sm:$0xff]
  %v1130 = vld [vmem:[%s1125 + $0x20] sm:$0xff]
  %v1131 = vld [vmem:[%s1125 + $0x28] sm:$0xff]
  %v1132 = vld [vmem:[%s1125 + $0x30] sm:$0xff]
  %v1133 = vld [vmem:[%s1125 + $0x38] sm:$0xff]
  %v1134 = vld [vmem:[%s1125 + $0x40] sm:$0xff]
  %v1135 = vld [vmem:[%s1125 + $0x48] sm:$0xff]
  %v1136 = vld [vmem:[%s1125 + $0x50] sm:$0xff]
  %v1137 = vld [vmem:[%s1125 + $0x58] sm:$0xff]
  %v1138 = vld [vmem:[%s1125 + $0x60] sm:$0xff]
  %v1139 = vld [vmem:[%s1125 + $0x68] sm:$0xff]
  %v1140 = vld [vmem:[%s1125 + $0x70] sm:$0xff]
  %v1141 = vld [vmem:[%s1125 + $0x78] sm:$0xff]
  %v1142 = vld [vmem:[%s1125 + $0x80] sm:$0xff]
  %v1143 = vld [vmem:[%s1125 + $0x88] sm:$0xff]
  %v1144 = vld [vmem:[%s1125 + $0x90] sm:$0xff]
  %v1145 = vld [vmem:[%s1125 + $0x98] sm:$0xff]
  %v1146 = vld [vmem:[%s1125 + $0xa0] sm:$0xff]
  %v1147 = vld [vmem:[%s1125 + $0xa8] sm:$0xff]
  %v1148 = vld [vmem:[%s1125 + $0xb0] sm:$0xff]
  %v1149 = vld [vmem:[%s1125 + $0xb8] sm:$0xff]
  %v1150 = vld [vmem:[%s1125 + $0xc0] sm:$0xff]
  %v1151 = vld [vmem:[%s1125 + $0xc8] sm:$0xff]
  %v1152 = vld [vmem:[%s1125 + $0xd0] sm:$0xff]
  %v1153 = vld [vmem:[%s1125 + $0xd8] sm:$0xff]
  %v1154 = vld [vmem:[%s1125 + $0xe0] sm:$0xff]
  %v1155 = vld [vmem:[%s1125 + $0xe8] sm:$0xff]
  %v1156 = vld [vmem:[%s1125 + $0xf0] sm:$0xff]
  %v1157 = vld [vmem:[%s1125 + $0xf8] sm:$0xff]
  %v1158 = vld [vmem:[%s1125 + $0x100] sm:$0xff]
  %v1159 = vld [vmem:[%s1125 + $0x108] sm:$0xff]
  %v1160 = vld [vmem:[%s1125 + $0x110] sm:$0xff]
  %v1161 = vld [vmem:[%s1125 + $0x118] sm:$0xff]
  %v1162 = vld [vmem:[%s1125 + $0x120] sm:$0xff]
  %v1163 = vld [vmem:[%s1125 + $0x128] sm:$0xff]
  %v1164 = vld [vmem:[%s1125 + $0x130] sm:$0xff]
  %v1165 = vld [vmem:[%s1125 + $0x138] sm:$0xff]
  %v1166 = vld [vmem:[%s1125 + $0x140] sm:$0xff]
  %v1167 = vld [vmem:[%s1125 + $0x148] sm:$0xff]
  %v1168 = vld [vmem:[%s1125 + $0x150] sm:$0xff]
  %v1169 = vld [vmem:[%s1125 + $0x158] sm:$0xff]
  %v1170 = vld [vmem:[%s1125 + $0x160] sm:$0xff]
  %v1171 = vld [vmem:[%s1125 + $0x168] sm:$0xff]
  %v1172 = vld [vmem:[%s1125 + $0x170] sm:$0xff]
  %v1173 = vld [vmem:[%s1125 + $0x178] sm:$0xff]
  %v1174 = vld [vmem:[%s1125 + $0x180] sm:$0xff]
  %v1175 = vld [vmem:[%s1125 + $0x188] sm:$0xff]
  %v1176 = vld [vmem:[%s1125 + $0x190] sm:$0xff]
  %v1177 = vld [vmem:[%s1125 + $0x198] sm:$0xff]
  %v1178 = vld [vmem:[%s1125 + $0x1a0] sm:$0xff]
  %v1179 = vld [vmem:[%s1125 + $0x1a8] sm:$0xff]
  %v1180 = vld [vmem:[%s1125 + $0x1b0] sm:$0xff]
  %v1181 = vld [vmem:[%s1125 + $0x1b8] sm:$0xff]
  %v1182 = vld [vmem:[%s1125 + $0x1c0] sm:$0xff]
  %v1183 = vld [vmem:[%s1125 + $0x1c8] sm:$0xff]
  %v1184 = vld [vmem:[%s1125 + $0x1d0] sm:$0xff]
  %v1185 = vld [vmem:[%s1125 + $0x1d8] sm:$0xff]
  %v1186 = vld [vmem:[%s1125 + $0x1e0] sm:$0xff]
  %v1187 = vld [vmem:[%s1125 + $0x1e8] sm:$0xff]
  %v1188 = vld [vmem:[%s1125 + $0x1f0] sm:$0xff]
  %v1189 = vld [vmem:[%s1125 + $0x1f8] sm:$0xff]
  %1190 = vst [vmem:[#allocation1] ss:$2 sm:$0xff] %v56
  %v1191 = vld.sshfl [vmem:[#allocation1] sm:$0xff pattern:$0x75316420]
  %v1192 = vld.sshfl [vmem:[#allocation1 + $0x8] sm:$0xff pattern:$0x75316420]
  %1195 = vmatpush.msra.mxu0 %v1156
  %1196 = vmatpush.msra.mxu0 %v1154
  %1197 = vmatpush.msra.mxu0 %v1152
  %1198 = vmatpush.msra.mxu0 %v1150
  %1199 = vmatpush.msra.mxu0 %v1148
  %1200 = vmatpush.msra.mxu0 %v1146
  %1201 = vmatpush.msra.mxu0 %v1144
  %1202 = vmatpush.msra.mxu0 %v1142
  %1203 = vmatpush.msra.mxu0 %v1140
  %1204 = vmatpush.msra.mxu0 %v1138
  %1205 = vmatpush.msra.mxu0 %v1136
  %1206 = vmatpush.msra.mxu0 %v1134
  %1207 = vmatpush.msra.mxu0 %v1132
  %1208 = vmatpush.msra.mxu0 %v1130
  %1209 = vmatpush.msra.mxu0 %v1128
  %1210 = vmatpush.msra.mxu0 %v1126
  %1211 = vmatmul.f32.gmra.mxu0 %v1191
  %v1212 = vpop.f32.mrf.mxu0
  %v1213 = vadd.f32 0.0, %v1212
  %1214 = vdwg.mxu0
  %1215 = vmatpush.msra.mxu0 %v1188
  %1216 = vmatpush.msra.mxu0 %v1186
  %1217 = vmatpush.msra.mxu0 %v1184
  %1218 = vmatpush.msra.mxu0 %v1182
  %1219 = vmatpush.msra.mxu0 %v1180
  %1220 = vmatpush.msra.mxu0 %v1178
  %1221 = vmatpush.msra.mxu0 %v1176
  %1222 = vmatpush.msra.mxu0 %v1174
  %1223 = vmatpush.msra.mxu0 %v1172
  %1224 = vmatpush.msra.mxu0 %v1170
  %1225 = vmatpush.msra.mxu0 %v1168
  %1226 = vmatpush.msra.mxu0 %v1166
  %1227 = vmatpush.msra.mxu0 %v1164
  %1228 = vmatpush.msra.mxu0 %v1162
  %1229 = vmatpush.msra.mxu0 %v1160
  %1230 = vmatpush.msra.mxu0 %v1158
  %1231 = vmatmul.f32.gmra.mxu0 %v1192
  %v1232 = vpop.f32.mrf.mxu0
  %v1233 = vadd.f32 %v1213, %v1232
  %1234 = vdwg.mxu0
  %1235 = vmatpush.msra.mxu0 %v1157
  %1236 = vmatpush.msra.mxu0 %v1155
  %1237 = vmatpush.msra.mxu0 %v1153
  %1238 = vmatpush.msra.mxu0 %v1151
  %1239 = vmatpush.msra.mxu0 %v1149
  %1240 = vmatpush.msra.mxu0 %v1147
  %1241 = vmatpush.msra.mxu0 %v1145
  %1242 = vmatpush.msra.mxu0 %v1143
  %1243 = vmatpush.msra.mxu0 %v1141
  %1244 = vmatpush.msra.mxu0 %v1139
  %1245 = vmatpush.msra.mxu0 %v1137
  %1246 = vmatpush.msra.mxu0 %v1135
  %1247 = vmatpush.msra.mxu0 %v1133
  %1248 = vmatpush.msra.mxu0 %v1131
  %1249 = vmatpush.msra.mxu0 %v1129
  %1250 = vmatpush.msra.mxu0 %v1127
  %1251 = vmatmul.f32.gmra.mxu0 %v1191
  %v1252 = vpop.f32.mrf.mxu0
  %v1253 = vadd.f32 0.0, %v1252
  %1254 = vdwg.mxu0
  %1255 = vmatpush.msra.mxu0 %v1189
  %1256 = vmatpush.msra.mxu0 %v1187
  %1257 = vmatpush.msra.mxu0 %v1185
  %1258 = vmatpush.msra.mxu0 %v1183
  %1259 = vmatpush.msra.mxu0 %v1181
  %1260 = vmatpush.msra.mxu0 %v1179
  %1261 = vmatpush.msra.mxu0 %v1177
  %1262 = vmatpush.msra.mxu0 %v1175
  %1263 = vmatpush.msra.mxu0 %v1173
  %1264 = vmatpush.msra.mxu0 %v1171
  %1265 = vmatpush.msra.mxu0 %v1169
  %1266 = vmatpush.msra.mxu0 %v1167
  %1267 = vmatpush.msra.mxu0 %v1165
  %1268 = vmatpush.msra.mxu0 %v1163
  %1269 = vmatpush.msra.mxu0 %v1161
  %1270 = vmatpush.msra.mxu0 %v1159
  %1271 = vmatmul.f32.gmra.mxu0 %v1192
  %v1272 = vpop.f32.mrf.mxu0
  %v1273 = vadd.f32 %v1253, %v1272
  %1274 = vdwg.mxu0
  %s1275 = scalar_lea.vmem %s2, 80
  %v1276 = vld [vmem:[%s1275] sm:$0xff]
  %v1277 = vld [vmem:[%s1275 + $0x8] sm:$0xff]
  %v1279 = vsel %vm362, %v1276, 0
  %v1282 = vsel %vm362, %v1277, 0
  %v1285 = vsel %vm369, %v1233, 0
  %v1288 = vsel %vm369, %v1273, 0
  %1290 = vmatpush.msra.mxu0 0.0
  %1291 = vmatpush.msra.mxu0 0.0
  %1292 = vmatpush.msra.mxu0 0.0
  %1293 = vmatpush.msra.mxu0 0.0
  %1294 = vmatpush.msra.mxu0 0.0
  %1295 = vmatpush.msra.mxu0 0.0
  %1296 = vmatpush.msra.mxu0 0.0
  %1297 = vmatpush.msra.mxu0 0.0
  %1298 = vmatpush.msra.mxu0 0.0
  %1299 = vmatpush.msra.mxu0 0.0
  %1300 = vmatpush.msra.mxu0 0.0
  %1301 = vmatpush.msra.mxu0 0.0
  %1302 = vmatpush.msra.mxu0 0.0
  %1303 = vmatpush.msra.mxu0 0.0
  %1304 = vmatpush.msra.mxu0 0.0
  %1305 = vmatpush.msra.mxu0 %v1285
  %1306 = vmatmul.f32.gmra.mxu0 %v1279
  %v1307 = vpop.f32.mrf.mxu0
  %v1308 = vadd.f32 0.0, %v1307
  %1309 = vmatmul.f32.gmra.mxu0 %v1282
  %v1310 = vpop.f32.mrf.mxu0
  %v1311 = vadd.f32 0.0, %v1310
  %1312 = vdwg.mxu0
  %1313 = vmatpush.msra.mxu0 0.0
  %1314 = vmatpush.msra.mxu0 0.0
  %1315 = vmatpush.msra.mxu0 0.0
  %1316 = vmatpush.msra.mxu0 0.0
  %1317 = vmatpush.msra.mxu0 0.0
  %1318 = vmatpush.msra.mxu0 0.0
  %1319 = vmatpush.msra.mxu0 0.0
  %1320 = vmatpush.msra.mxu0 0.0
  %1321 = vmatpush.msra.mxu0 0.0
  %1322 = vmatpush.msra.mxu0 0.0
  %1323 = vmatpush.msra.mxu0 0.0
  %1324 = vmatpush.msra.mxu0 0.0
  %1325 = vmatpush.msra.mxu0 0.0
  %1326 = vmatpush.msra.mxu0 0.0
  %1327 = vmatpush.msra.mxu0 0.0
  %1328 = vmatpush.msra.mxu0 %v1288
  %1329 = vmatmul.f32.gmra.mxu0 %v1279
  %v1330 = vpop.f32.mrf.mxu0
  %v1331 = vadd.f32 0.0, %v1330
  %1332 = vmatmul.f32.gmra.mxu0 %v1282
  %v1333 = vpop.f32.mrf.mxu0
  %v1334 = vadd.f32 0.0, %v1333
  %1335 = vdwg.mxu0
  %v1336 = vadd.f32 %v1121, %v1308
  %v1337 = vadd.f32 %v1122, %v1331
  %v1338 = vadd.f32 %v1123, %v1311
  %v1339 = vadd.f32 %v1124, %v1334
  %s1340 = scalar_lea.vmem %s1, 3072
  %v1341 = vld [vmem:[%s1340] sm:$0xff]
  %v1342 = vld [vmem:[%s1340 + $0x8] sm:$0xff]
  %v1343 = vld [vmem:[%s1340 + $0x10] sm:$0xff]
  %v1344 = vld [vmem:[%s1340 + $0x18] sm:$0xff]
  %v1345 = vld [vmem:[%s1340 + $0x20] sm:$0xff]
  %v1346 = vld [vmem:[%s1340 + $0x28] sm:$0xff]
  %v1347 = vld [vmem:[%s1340 + $0x30] sm:$0xff]
  %v1348 = vld [vmem:[%s1340 + $0x38] sm:$0xff]
  %v1349 = vld [vmem:[%s1340 + $0x40] sm:$0xff]
  %v1350 = vld [vmem:[%s1340 + $0x48] sm:$0xff]
  %v1351 = vld [vmem:[%s1340 + $0x50] sm:$0xff]
  %v1352 = vld [vmem:[%s1340 + $0x58] sm:$0xff]
  %v1353 = vld [vmem:[%s1340 + $0x60] sm:$0xff]
  %v1354 = vld [vmem:[%s1340 + $0x68] sm:$0xff]
  %v1355 = vld [vmem:[%s1340 + $0x70] sm:$0xff]
  %v1356 = vld [vmem:[%s1340 + $0x78] sm:$0xff]
  %v1357 = vld [vmem:[%s1340 + $0x80] sm:$0xff]
  %v1358 = vld [vmem:[%s1340 + $0x88] sm:$0xff]
  %v1359 = vld [vmem:[%s1340 + $0x90] sm:$0xff]
  %v1360 = vld [vmem:[%s1340 + $0x98] sm:$0xff]
  %v1361 = vld [vmem:[%s1340 + $0xa0] sm:$0xff]
  %v1362 = vld [vmem:[%s1340 + $0xa8] sm:$0xff]
  %v1363 = vld [vmem:[%s1340 + $0xb0] sm:$0xff]
  %v1364 = vld [vmem:[%s1340 + $0xb8] sm:$0xff]
  %v1365 = vld [vmem:[%s1340 + $0xc0] sm:$0xff]
  %v1366 = vld [vmem:[%s1340 + $0xc8] sm:$0xff]
  %v1367 = vld [vmem:[%s1340 + $0xd0] sm:$0xff]
  %v1368 = vld [vmem:[%s1340 + $0xd8] sm:$0xff]
  %v1369 = vld [vmem:[%s1340 + $0xe0] sm:$0xff]
  %v1370 = vld [vmem:[%s1340 + $0xe8] sm:$0xff]
  %v1371 = vld [vmem:[%s1340 + $0xf0] sm:$0xff]
  %v1372 = vld [vmem:[%s1340 + $0xf8] sm:$0xff]
  %v1373 = vld [vmem:[%s1340 + $0x100] sm:$0xff]
  %v1374 = vld [vmem:[%s1340 + $0x108] sm:$0xff]
  %v1375 = vld [vmem:[%s1340 + $0x110] sm:$0xff]
  %v1376 = vld [vmem:[%s1340 + $0x118] sm:$0xff]
  %v1377 = vld [vmem:[%s1340 + $0x120] sm:$0xff]
  %v1378 = vld [vmem:[%s1340 + $0x128] sm:$0xff]
  %v1379 = vld [vmem:[%s1340 + $0x130] sm:$0xff]
  %v1380 = vld [vmem:[%s1340 + $0x138] sm:$0xff]
  %v1381 = vld [vmem:[%s1340 + $0x140] sm:$0xff]
  %v1382 = vld [vmem:[%s1340 + $0x148] sm:$0xff]
  %v1383 = vld [vmem:[%s1340 + $0x150] sm:$0xff]
  %v1384 = vld [vmem:[%s1340 + $0x158] sm:$0xff]
  %v1385 = vld [vmem:[%s1340 + $0x160] sm:$0xff]
  %v1386 = vld [vmem:[%s1340 + $0x168] sm:$0xff]
  %v1387 = vld [vmem:[%s1340 + $0x170] sm:$0xff]
  %v1388 = vld [vmem:[%s1340 + $0x178] sm:$0xff]
  %v1389 = vld [vmem:[%s1340 + $0x180] sm:$0xff]
  %v1390 = vld [vmem:[%s1340 + $0x188] sm:$0xff]
  %v1391 = vld [vmem:[%s1340 + $0x190] sm:$0xff]
  %v1392 = vld [vmem:[%s1340 + $0x198] sm:$0xff]
  %v1393 = vld [vmem:[%s1340 + $0x1a0] sm:$0xff]
  %v1394 = vld [vmem:[%s1340 + $0x1a8] sm:$0xff]
  %v1395 = vld [vmem:[%s1340 + $0x1b0] sm:$0xff]
  %v1396 = vld [vmem:[%s1340 + $0x1b8] sm:$0xff]
  %v1397 = vld [vmem:[%s1340 + $0x1c0] sm:$0xff]
  %v1398 = vld [vmem:[%s1340 + $0x1c8] sm:$0xff]
  %v1399 = vld [vmem:[%s1340 + $0x1d0] sm:$0xff]
  %v1400 = vld [vmem:[%s1340 + $0x1d8] sm:$0xff]
  %v1401 = vld [vmem:[%s1340 + $0x1e0] sm:$0xff]
  %v1402 = vld [vmem:[%s1340 + $0x1e8] sm:$0xff]
  %v1403 = vld [vmem:[%s1340 + $0x1f0] sm:$0xff]
  %v1404 = vld [vmem:[%s1340 + $0x1f8] sm:$0xff]
  %1405 = vst [vmem:[#allocation1] ss:$2 sm:$0xff] %v56
  %v1406 = vld.sshfl [vmem:[#allocation1] sm:$0xff pattern:$0x75316420]
  %v1407 = vld.sshfl [vmem:[#allocation1 + $0x8] sm:$0xff pattern:$0x75316420]
  %1410 = vmatpush.msra.mxu0 %v1371
  %1411 = vmatpush.msra.mxu0 %v1369
  %1412 = vmatpush.msra.mxu0 %v1367
  %1413 = vmatpush.msra.mxu0 %v1365
  %1414 = vmatpush.msra.mxu0 %v1363
  %1415 = vmatpush.msra.mxu0 %v1361
  %1416 = vmatpush.msra.mxu0 %v1359
  %1417 = vmatpush.msra.mxu0 %v1357
  %1418 = vmatpush.msra.mxu0 %v1355
  %1419 = vmatpush.msra.mxu0 %v1353
  %1420 = vmatpush.msra.mxu0 %v1351
  %1421 = vmatpush.msra.mxu0 %v1349
  %1422 = vmatpush.msra.mxu0 %v1347
  %1423 = vmatpush.msra.mxu0 %v1345
  %1424 = vmatpush.msra.mxu0 %v1343
  %1425 = vmatpush.msra.mxu0 %v1341
  %1426 = vmatmul.f32.gmra.mxu0 %v1406
  %v1427 = vpop.f32.mrf.mxu0
  %v1428 = vadd.f32 0.0, %v1427
  %1429 = vdwg.mxu0
  %1430 = vmatpush.msra.mxu0 %v1403
  %1431 = vmatpush.msra.mxu0 %v1401
  %1432 = vmatpush.msra.mxu0 %v1399
  %1433 = vmatpush.msra.mxu0 %v1397
  %1434 = vmatpush.msra.mxu0 %v1395
  %1435 = vmatpush.msra.mxu0 %v1393
  %1436 = vmatpush.msra.mxu0 %v1391
  %1437 = vmatpush.msra.mxu0 %v1389
  %1438 = vmatpush.msra.mxu0 %v1387
  %1439 = vmatpush.msra.mxu0 %v1385
  %1440 = vmatpush.msra.mxu0 %v1383
  %1441 = vmatpush.msra.mxu0 %v1381
  %1442 = vmatpush.msra.mxu0 %v1379
  %1443 = vmatpush.msra.mxu0 %v1377
  %1444 = vmatpush.msra.mxu0 %v1375
  %1445 = vmatpush.msra.mxu0 %v1373
  %1446 = vmatmul.f32.gmra.mxu0 %v1407
  %v1447 = vpop.f32.mrf.mxu0
  %v1448 = vadd.f32 %v1428, %v1447
  %1449 = vdwg.mxu0
  %1450 = vmatpush.msra.mxu0 %v1372
  %1451 = vmatpush.msra.mxu0 %v1370
  %1452 = vmatpush.msra.mxu0 %v1368
  %1453 = vmatpush.msra.mxu0 %v1366
  %1454 = vmatpush.msra.mxu0 %v1364
  %1455 = vmatpush.msra.mxu0 %v1362
  %1456 = vmatpush.msra.mxu0 %v1360
  %1457 = vmatpush.msra.mxu0 %v1358
  %1458 = vmatpush.msra.mxu0 %v1356
  %1459 = vmatpush.msra.mxu0 %v1354
  %1460 = vmatpush.msra.mxu0 %v1352
  %1461 = vmatpush.msra.mxu0 %v1350
  %1462 = vmatpush.msra.mxu0 %v1348
  %1463 = vmatpush.msra.mxu0 %v1346
  %1464 = vmatpush.msra.mxu0 %v1344
  %1465 = vmatpush.msra.mxu0 %v1342
  %1466 = vmatmul.f32.gmra.mxu0 %v1406
  %v1467 = vpop.f32.mrf.mxu0
  %v1468 = vadd.f32 0.0, %v1467
  %1469 = vdwg.mxu0
  %1470 = vmatpush.msra.mxu0 %v1404
  %1471 = vmatpush.msra.mxu0 %v1402
  %1472 = vmatpush.msra.mxu0 %v1400
  %1473 = vmatpush.msra.mxu0 %v1398
  %1474 = vmatpush.msra.mxu0 %v1396
  %1475 = vmatpush.msra.mxu0 %v1394
  %1476 = vmatpush.msra.mxu0 %v1392
  %1477 = vmatpush.msra.mxu0 %v1390
  %1478 = vmatpush.msra.mxu0 %v1388
  %1479 = vmatpush.msra.mxu0 %v1386
  %1480 = vmatpush.msra.mxu0 %v1384
  %1481 = vmatpush.msra.mxu0 %v1382
  %1482 = vmatpush.msra.mxu0 %v1380
  %1483 = vmatpush.msra.mxu0 %v1378
  %1484 = vmatpush.msra.mxu0 %v1376
  %1485 = vmatpush.msra.mxu0 %v1374
  %1486 = vmatmul.f32.gmra.mxu0 %v1407
  %v1487 = vpop.f32.mrf.mxu0
  %v1488 = vadd.f32 %v1468, %v1487
  %1489 = vdwg.mxu0
  %s1490 = scalar_lea.vmem %s2, 96
  %v1491 = vld [vmem:[%s1490] sm:$0xff]
  %v1492 = vld [vmem:[%s1490 + $0x8] sm:$0xff]
  %v1494 = vsel %vm362, %v1491, 0
  %v1497 = vsel %vm362, %v1492, 0
  %v1500 = vsel %vm369, %v1448, 0
  %v1503 = vsel %vm369, %v1488, 0
  %1505 = vmatpush.msra.mxu0 0.0
  %1506 = vmatpush.msra.mxu0 0.0
  %1507 = vmatpush.msra.mxu0 0.0
  %1508 = vmatpush.msra.mxu0 0.0
  %1509 = vmatpush.msra.mxu0 0.0
  %1510 = vmatpush.msra.mxu0 0.0
  %1511 = vmatpush.msra.mxu0 0.0
  %1512 = vmatpush.msra.mxu0 0.0
  %1513 = vmatpush.msra.mxu0 0.0
  %1514 = vmatpush.msra.mxu0 0.0
  %1515 = vmatpush.msra.mxu0 0.0
  %1516 = vmatpush.msra.mxu0 0.0
  %1517 = vmatpush.msra.mxu0 0.0
  %1518 = vmatpush.msra.mxu0 0.0
  %1519 = vmatpush.msra.mxu0 0.0
  %1520 = vmatpush.msra.mxu0 %v1500
  %1521 = vmatmul.f32.gmra.mxu0 %v1494
  %v1522 = vpop.f32.mrf.mxu0
  %v1523 = vadd.f32 0.0, %v1522
  %1524 = vmatmul.f32.gmra.mxu0 %v1497
  %v1525 = vpop.f32.mrf.mxu0
  %v1526 = vadd.f32 0.0, %v1525
  %1527 = vdwg.mxu0
  %1528 = vmatpush.msra.mxu0 0.0
  %1529 = vmatpush.msra.mxu0 0.0
  %1530 = vmatpush.msra.mxu0 0.0
  %1531 = vmatpush.msra.mxu0 0.0
  %1532 = vmatpush.msra.mxu0 0.0
  %1533 = vmatpush.msra.mxu0 0.0
  %1534 = vmatpush.msra.mxu0 0.0
  %1535 = vmatpush.msra.mxu0 0.0
  %1536 = vmatpush.msra.mxu0 0.0
  %1537 = vmatpush.msra.mxu0 0.0
  %1538 = vmatpush.msra.mxu0 0.0
  %1539 = vmatpush.msra.mxu0 0.0
  %1540 = vmatpush.msra.mxu0 0.0
  %1541 = vmatpush.msra.mxu0 0.0
  %1542 = vmatpush.msra.mxu0 0.0
  %1543 = vmatpush.msra.mxu0 %v1503
  %1544 = vmatmul.f32.gmra.mxu0 %v1494
  %v1545 = vpop.f32.mrf.mxu0
  %v1546 = vadd.f32 0.0, %v1545
  %1547 = vmatmul.f32.gmra.mxu0 %v1497
  %v1548 = vpop.f32.mrf.mxu0
  %v1549 = vadd.f32 0.0, %v1548
  %1550 = vdwg.mxu0
  %v1551 = vadd.f32 %v1336, %v1523
  %v1552 = vadd.f32 %v1337, %v1546
  %v1553 = vadd.f32 %v1338, %v1526
  %v1554 = vadd.f32 %v1339, %v1549
  %s1555 = scalar_lea.vmem %s1, 3584
  %v1556 = vld [vmem:[%s1555] sm:$0xff]
  %v1557 = vld [vmem:[%s1555 + $0x8] sm:$0xff]
  %v1558 = vld [vmem:[%s1555 + $0x10] sm:$0xff]
  %v1559 = vld [vmem:[%s1555 + $0x18] sm:$0xff]
  %v1560 = vld [vmem:[%s1555 + $0x20] sm:$0xff]
  %v1561 = vld [vmem:[%s1555 + $0x28] sm:$0xff]
  %v1562 = vld [vmem:[%s1555 + $0x30] sm:$0xff]
  %v1563 = vld [vmem:[%s1555 + $0x38] sm:$0xff]
  %v1564 = vld [vmem:[%s1555 + $0x40] sm:$0xff]
  %v1565 = vld [vmem:[%s1555 + $0x48] sm:$0xff]
  %v1566 = vld [vmem:[%s1555 + $0x50] sm:$0xff]
  %v1567 = vld [vmem:[%s1555 + $0x58] sm:$0xff]
  %v1568 = vld [vmem:[%s1555 + $0x60] sm:$0xff]
  %v1569 = vld [vmem:[%s1555 + $0x68] sm:$0xff]
  %v1570 = vld [vmem:[%s1555 + $0x70] sm:$0xff]
  %v1571 = vld [vmem:[%s1555 + $0x78] sm:$0xff]
  %v1572 = vld [vmem:[%s1555 + $0x80] sm:$0xff]
  %v1573 = vld [vmem:[%s1555 + $0x88] sm:$0xff]
  %v1574 = vld [vmem:[%s1555 + $0x90] sm:$0xff]
  %v1575 = vld [vmem:[%s1555 + $0x98] sm:$0xff]
  %v1576 = vld [vmem:[%s1555 + $0xa0] sm:$0xff]
  %v1577 = vld [vmem:[%s1555 + $0xa8] sm:$0xff]
  %v1578 = vld [vmem:[%s1555 + $0xb0] sm:$0xff]
  %v1579 = vld [vmem:[%s1555 + $0xb8] sm:$0xff]
  %v1580 = vld [vmem:[%s1555 + $0xc0] sm:$0xff]
  %v1581 = vld [vmem:[%s1555 + $0xc8] sm:$0xff]
  %v1582 = vld [vmem:[%s1555 + $0xd0] sm:$0xff]
  %v1583 = vld [vmem:[%s1555 + $0xd8] sm:$0xff]
  %v1584 = vld [vmem:[%s1555 + $0xe0] sm:$0xff]
  %v1585 = vld [vmem:[%s1555 + $0xe8] sm:$0xff]
  %v1586 = vld [vmem:[%s1555 + $0xf0] sm:$0xff]
  %v1587 = vld [vmem:[%s1555 + $0xf8] sm:$0xff]
  %v1588 = vld [vmem:[%s1555 + $0x100] sm:$0xff]
  %v1589 = vld [vmem:[%s1555 + $0x108] sm:$0xff]
  %v1590 = vld [vmem:[%s1555 + $0x110] sm:$0xff]
  %v1591 = vld [vmem:[%s1555 + $0x118] sm:$0xff]
  %v1592 = vld [vmem:[%s1555 + $0x120] sm:$0xff]
  %v1593 = vld [vmem:[%s1555 + $0x128] sm:$0xff]
  %v1594 = vld [vmem:[%s1555 + $0x130] sm:$0xff]
  %v1595 = vld [vmem:[%s1555 + $0x138] sm:$0xff]
  %v1596 = vld [vmem:[%s1555 + $0x140] sm:$0xff]
  %v1597 = vld [vmem:[%s1555 + $0x148] sm:$0xff]
  %v1598 = vld [vmem:[%s1555 + $0x150] sm:$0xff]
  %v1599 = vld [vmem:[%s1555 + $0x158] sm:$0xff]
  %v1600 = vld [vmem:[%s1555 + $0x160] sm:$0xff]
  %v1601 = vld [vmem:[%s1555 + $0x168] sm:$0xff]
  %v1602 = vld [vmem:[%s1555 + $0x170] sm:$0xff]
  %v1603 = vld [vmem:[%s1555 + $0x178] sm:$0xff]
  %v1604 = vld [vmem:[%s1555 + $0x180] sm:$0xff]
  %v1605 = vld [vmem:[%s1555 + $0x188] sm:$0xff]
  %v1606 = vld [vmem:[%s1555 + $0x190] sm:$0xff]
  %v1607 = vld [vmem:[%s1555 + $0x198] sm:$0xff]
  %v1608 = vld [vmem:[%s1555 + $0x1a0] sm:$0xff]
  %v1609 = vld [vmem:[%s1555 + $0x1a8] sm:$0xff]
  %v1610 = vld [vmem:[%s1555 + $0x1b0] sm:$0xff]
  %v1611 = vld [vmem:[%s1555 + $0x1b8] sm:$0xff]
  %v1612 = vld [vmem:[%s1555 + $0x1c0] sm:$0xff]
  %v1613 = vld [vmem:[%s1555 + $0x1c8] sm:$0xff]
  %v1614 = vld [vmem:[%s1555 + $0x1d0] sm:$0xff]
  %v1615 = vld [vmem:[%s1555 + $0x1d8] sm:$0xff]
  %v1616 = vld [vmem:[%s1555 + $0x1e0] sm:$0xff]
  %v1617 = vld [vmem:[%s1555 + $0x1e8] sm:$0xff]
  %v1618 = vld [vmem:[%s1555 + $0x1f0] sm:$0xff]
  %v1619 = vld [vmem:[%s1555 + $0x1f8] sm:$0xff]
  %1620 = vst [vmem:[#allocation1] ss:$2 sm:$0xff] %v56
  %v1621 = vld.sshfl [vmem:[#allocation1] sm:$0xff pattern:$0x75316420]
  %v1622 = vld.sshfl [vmem:[#allocation1 + $0x8] sm:$0xff pattern:$0x75316420]
  %1625 = vmatpush.msra.mxu0 %v1586
  %1626 = vmatpush.msra.mxu0 %v1584
  %1627 = vmatpush.msra.mxu0 %v1582
  %1628 = vmatpush.msra.mxu0 %v1580
  %1629 = vmatpush.msra.mxu0 %v1578
  %1630 = vmatpush.msra.mxu0 %v1576
  %1631 = vmatpush.msra.mxu0 %v1574
  %1632 = vmatpush.msra.mxu0 %v1572
  %1633 = vmatpush.msra.mxu0 %v1570
  %1634 = vmatpush.msra.mxu0 %v1568
  %1635 = vmatpush.msra.mxu0 %v1566
  %1636 = vmatpush.msra.mxu0 %v1564
  %1637 = vmatpush.msra.mxu0 %v1562
  %1638 = vmatpush.msra.mxu0 %v1560
  %1639 = vmatpush.msra.mxu0 %v1558
  %1640 = vmatpush.msra.mxu0 %v1556
  %1641 = vmatmul.f32.gmra.mxu0 %v1621
  %v1642 = vpop.f32.mrf.mxu0
  %v1643 = vadd.f32 0.0, %v1642
  %1644 = vdwg.mxu0
  %1645 = vmatpush.msra.mxu0 %v1618
  %1646 = vmatpush.msra.mxu0 %v1616
  %1647 = vmatpush.msra.mxu0 %v1614
  %1648 = vmatpush.msra.mxu0 %v1612
  %1649 = vmatpush.msra.mxu0 %v1610
  %1650 = vmatpush.msra.mxu0 %v1608
  %1651 = vmatpush.msra.mxu0 %v1606
  %1652 = vmatpush.msra.mxu0 %v1604
  %1653 = vmatpush.msra.mxu0 %v1602
  %1654 = vmatpush.msra.mxu0 %v1600
  %1655 = vmatpush.msra.mxu0 %v1598
  %1656 = vmatpush.msra.mxu0 %v1596
  %1657 = vmatpush.msra.mxu0 %v1594
  %1658 = vmatpush.msra.mxu0 %v1592
  %1659 = vmatpush.msra.mxu0 %v1590
  %1660 = vmatpush.msra.mxu0 %v1588
  %1661 = vmatmul.f32.gmra.mxu0 %v1622
  %v1662 = vpop.f32.mrf.mxu0
  %v1663 = vadd.f32 %v1643, %v1662
  %1664 = vdwg.mxu0
  %1665 = vmatpush.msra.mxu0 %v1587
  %1666 = vmatpush.msra.mxu0 %v1585
  %1667 = vmatpush.msra.mxu0 %v1583
  %1668 = vmatpush.msra.mxu0 %v1581
  %1669 = vmatpush.msra.mxu0 %v1579
  %1670 = vmatpush.msra.mxu0 %v1577
  %1671 = vmatpush.msra.mxu0 %v1575
  %1672 = vmatpush.msra.mxu0 %v1573
  %1673 = vmatpush.msra.mxu0 %v1571
  %1674 = vmatpush.msra.mxu0 %v1569
  %1675 = vmatpush.msra.mxu0 %v1567
  %1676 = vmatpush.msra.mxu0 %v1565
  %1677 = vmatpush.msra.mxu0 %v1563
  %1678 = vmatpush.msra.mxu0 %v1561
  %1679 = vmatpush.msra.mxu0 %v1559
  %1680 = vmatpush.msra.mxu0 %v1557
  %1681 = vmatmul.f32.gmra.mxu0 %v1621
  %v1682 = vpop.f32.mrf.mxu0
  %v1683 = vadd.f32 0.0, %v1682
  %1684 = vdwg.mxu0
  %1685 = vmatpush.msra.mxu0 %v1619
  %1686 = vmatpush.msra.mxu0 %v1617
  %1687 = vmatpush.msra.mxu0 %v1615
  %1688 = vmatpush.msra.mxu0 %v1613
  %1689 = vmatpush.msra.mxu0 %v1611
  %1690 = vmatpush.msra.mxu0 %v1609
  %1691 = vmatpush.msra.mxu0 %v1607
  %1692 = vmatpush.msra.mxu0 %v1605
  %1693 = vmatpush.msra.mxu0 %v1603
  %1694 = vmatpush.msra.mxu0 %v1601
  %1695 = vmatpush.msra.mxu0 %v1599
  %1696 = vmatpush.msra.mxu0 %v1597
  %1697 = vmatpush.msra.mxu0 %v1595
  %1698 = vmatpush.msra.mxu0 %v1593
  %1699 = vmatpush.msra.mxu0 %v1591
  %1700 = vmatpush.msra.mxu0 %v1589
  %1701 = vmatmul.f32.gmra.mxu0 %v1622
  %v1702 = vpop.f32.mrf.mxu0
  %v1703 = vadd.f32 %v1683, %v1702
  %1704 = vdwg.mxu0
  %s1705 = scalar_lea.vmem %s2, 112
  %v1706 = vld [vmem:[%s1705] sm:$0xff]
  %v1707 = vld [vmem:[%s1705 + $0x8] sm:$0xff]
  %v1709 = vsel %vm362, %v1706, 0
  %v1712 = vsel %vm362, %v1707, 0
  %v1715 = vsel %vm369, %v1663, 0
  %v1718 = vsel %vm369, %v1703, 0
  %1720 = vmatpush.msra.mxu0 0.0
  %1721 = vmatpush.msra.mxu0 0.0
  %1722 = vmatpush.msra.mxu0 0.0
  %1723 = vmatpush.msra.mxu0 0.0
  %1724 = vmatpush.msra.mxu0 0.0
  %1725 = vmatpush.msra.mxu0 0.0
  %1726 = vmatpush.msra.mxu0 0.0
  %1727 = vmatpush.msra.mxu0 0.0
  %1728 = vmatpush.msra.mxu0 0.0
  %1729 = vmatpush.msra.mxu0 0.0
  %1730 = vmatpush.msra.mxu0 0.0
  %1731 = vmatpush.msra.mxu0 0.0
  %1732 = vmatpush.msra.mxu0 0.0
  %1733 = vmatpush.msra.mxu0 0.0
  %1734 = vmatpush.msra.mxu0 0.0
  %1735 = vmatpush.msra.mxu0 %v1715
  %1736 = vmatmul.f32.gmra.mxu0 %v1709
  %v1737 = vpop.f32.mrf.mxu0
  %v1738 = vadd.f32 0.0, %v1737
  %1739 = vmatmul.f32.gmra.mxu0 %v1712
  %v1740 = vpop.f32.mrf.mxu0
  %v1741 = vadd.f32 0.0, %v1740
  %1742 = vdwg.mxu0
  %1743 = vmatpush.msra.mxu0 0.0
  %1744 = vmatpush.msra.mxu0 0.0
  %1745 = vmatpush.msra.mxu0 0.0
  %1746 = vmatpush.msra.mxu0 0.0
  %1747 = vmatpush.msra.mxu0 0.0
  %1748 = vmatpush.msra.mxu0 0.0
  %1749 = vmatpush.msra.mxu0 0.0
  %1750 = vmatpush.msra.mxu0 0.0
  %1751 = vmatpush.msra.mxu0 0.0
  %1752 = vmatpush.msra.mxu0 0.0
  %1753 = vmatpush.msra.mxu0 0.0
  %1754 = vmatpush.msra.mxu0 0.0
  %1755 = vmatpush.msra.mxu0 0.0
  %1756 = vmatpush.msra.mxu0 0.0
  %1757 = vmatpush.msra.mxu0 0.0
  %1758 = vmatpush.msra.mxu0 %v1718
  %1759 = vmatmul.f32.gmra.mxu0 %v1709
  %v1760 = vpop.f32.mrf.mxu0
  %v1761 = vadd.f32 0.0, %v1760
  %1762 = vmatmul.f32.gmra.mxu0 %v1712
  %v1763 = vpop.f32.mrf.mxu0
  %v1764 = vadd.f32 0.0, %v1763
  %1765 = vdwg.mxu0
  %v1766 = vadd.f32 %v1551, %v1738
  %v1767 = vadd.f32 %v1552, %v1761
  %v1768 = vadd.f32 %v1553, %v1741
  %v1769 = vadd.f32 %v1554, %v1764
  %s1770 = scalar_lea.vmem %s1, 4096
  %v1771 = vld [vmem:[%s1770] sm:$0xff]
  %v1772 = vld [vmem:[%s1770 + $0x8] sm:$0xff]
  %v1773 = vld [vmem:[%s1770 + $0x10] sm:$0xff]
  %v1774 = vld [vmem:[%s1770 + $0x18] sm:$0xff]
  %v1775 = vld [vmem:[%s1770 + $0x20] sm:$0xff]
  %v1776 = vld [vmem:[%s1770 + $0x28] sm:$0xff]
  %v1777 = vld [vmem:[%s1770 + $0x30] sm:$0xff]
  %v1778 = vld [vmem:[%s1770 + $0x38] sm:$0xff]
  %v1779 = vld [vmem:[%s1770 + $0x40] sm:$0xff]
  %v1780 = vld [vmem:[%s1770 + $0x48] sm:$0xff]
  %v1781 = vld [vmem:[%s1770 + $0x50] sm:$0xff]
  %v1782 = vld [vmem:[%s1770 + $0x58] sm:$0xff]
  %v1783 = vld [vmem:[%s1770 + $0x60] sm:$0xff]
  %v1784 = vld [vmem:[%s1770 + $0x68] sm:$0xff]
  %v1785 = vld [vmem:[%s1770 + $0x70] sm:$0xff]
  %v1786 = vld [vmem:[%s1770 + $0x78] sm:$0xff]
  %v1787 = vld [vmem:[%s1770 + $0x80] sm:$0xff]
  %v1788 = vld [vmem:[%s1770 + $0x88] sm:$0xff]
  %v1789 = vld [vmem:[%s1770 + $0x90] sm:$0xff]
  %v1790 = vld [vmem:[%s1770 + $0x98] sm:$0xff]
  %v1791 = vld [vmem:[%s1770 + $0xa0] sm:$0xff]
  %v1792 = vld [vmem:[%s1770 + $0xa8] sm:$0xff]
  %v1793 = vld [vmem:[%s1770 + $0xb0] sm:$0xff]
  %v1794 = vld [vmem:[%s1770 + $0xb8] sm:$0xff]
  %v1795 = vld [vmem:[%s1770 + $0xc0] sm:$0xff]
  %v1796 = vld [vmem:[%s1770 + $0xc8] sm:$0xff]
  %v1797 = vld [vmem:[%s1770 + $0xd0] sm:$0xff]
  %v1798 = vld [vmem:[%s1770 + $0xd8] sm:$0xff]
  %v1799 = vld [vmem:[%s1770 + $0xe0] sm:$0xff]
  %v1800 = vld [vmem:[%s1770 + $0xe8] sm:$0xff]
  %v1801 = vld [vmem:[%s1770 + $0xf0] sm:$0xff]
  %v1802 = vld [vmem:[%s1770 + $0xf8] sm:$0xff]
  %v1803 = vld [vmem:[%s1770 + $0x100] sm:$0xff]
  %v1804 = vld [vmem:[%s1770 + $0x108] sm:$0xff]
  %v1805 = vld [vmem:[%s1770 + $0x110] sm:$0xff]
  %v1806 = vld [vmem:[%s1770 + $0x118] sm:$0xff]
  %v1807 = vld [vmem:[%s1770 + $0x120] sm:$0xff]
  %v1808 = vld [vmem:[%s1770 + $0x128] sm:$0xff]
  %v1809 = vld [vmem:[%s1770 + $0x130] sm:$0xff]
  %v1810 = vld [vmem:[%s1770 + $0x138] sm:$0xff]
  %v1811 = vld [vmem:[%s1770 + $0x140] sm:$0xff]
  %v1812 = vld [vmem:[%s1770 + $0x148] sm:$0xff]
  %v1813 = vld [vmem:[%s1770 + $0x150] sm:$0xff]
  %v1814 = vld [vmem:[%s1770 + $0x158] sm:$0xff]
  %v1815 = vld [vmem:[%s1770 + $0x160] sm:$0xff]
  %v1816 = vld [vmem:[%s1770 + $0x168] sm:$0xff]
  %v1817 = vld [vmem:[%s1770 + $0x170] sm:$0xff]
  %v1818 = vld [vmem:[%s1770 + $0x178] sm:$0xff]
  %v1819 = vld [vmem:[%s1770 + $0x180] sm:$0xff]
  %v1820 = vld [vmem:[%s1770 + $0x188] sm:$0xff]
  %v1821 = vld [vmem:[%s1770 + $0x190] sm:$0xff]
  %v1822 = vld [vmem:[%s1770 + $0x198] sm:$0xff]
  %v1823 = vld [vmem:[%s1770 + $0x1a0] sm:$0xff]
  %v1824 = vld [vmem:[%s1770 + $0x1a8] sm:$0xff]
  %v1825 = vld [vmem:[%s1770 + $0x1b0] sm:$0xff]
  %v1826 = vld [vmem:[%s1770 + $0x1b8] sm:$0xff]
  %v1827 = vld [vmem:[%s1770 + $0x1c0] sm:$0xff]
  %v1828 = vld [vmem:[%s1770 + $0x1c8] sm:$0xff]
  %v1829 = vld [vmem:[%s1770 + $0x1d0] sm:$0xff]
  %v1830 = vld [vmem:[%s1770 + $0x1d8] sm:$0xff]
  %v1831 = vld [vmem:[%s1770 + $0x1e0] sm:$0xff]
  %v1832 = vld [vmem:[%s1770 + $0x1e8] sm:$0xff]
  %v1833 = vld [vmem:[%s1770 + $0x1f0] sm:$0xff]
  %v1834 = vld [vmem:[%s1770 + $0x1f8] sm:$0xff]
  %1835 = vst [vmem:[#allocation1] ss:$2 sm:$0xff] %v56
  %v1836 = vld.sshfl [vmem:[#allocation1] sm:$0xff pattern:$0x75316420]
  %v1837 = vld.sshfl [vmem:[#allocation1 + $0x8] sm:$0xff pattern:$0x75316420]
  %1840 = vmatpush.msra.mxu0 %v1801
  %1841 = vmatpush.msra.mxu0 %v1799
  %1842 = vmatpush.msra.mxu0 %v1797
  %1843 = vmatpush.msra.mxu0 %v1795
  %1844 = vmatpush.msra.mxu0 %v1793
  %1845 = vmatpush.msra.mxu0 %v1791
  %1846 = vmatpush.msra.mxu0 %v1789
  %1847 = vmatpush.msra.mxu0 %v1787
  %1848 = vmatpush.msra.mxu0 %v1785
  %1849 = vmatpush.msra.mxu0 %v1783
  %1850 = vmatpush.msra.mxu0 %v1781
  %1851 = vmatpush.msra.mxu0 %v1779
  %1852 = vmatpush.msra.mxu0 %v1777
  %1853 = vmatpush.msra.mxu0 %v1775
  %1854 = vmatpush.msra.mxu0 %v1773
  %1855 = vmatpush.msra.mxu0 %v1771
  %1856 = vmatmul.f32.gmra.mxu0 %v1836
  %v1857 = vpop.f32.mrf.mxu0
  %v1858 = vadd.f32 0.0, %v1857
  %1859 = vdwg.mxu0
  %1860 = vmatpush.msra.mxu0 %v1833
  %1861 = vmatpush.msra.mxu0 %v1831
  %1862 = vmatpush.msra.mxu0 %v1829
  %1863 = vmatpush.msra.mxu0 %v1827
  %1864 = vmatpush.msra.mxu0 %v1825
  %1865 = vmatpush.msra.mxu0 %v1823
  %1866 = vmatpush.msra.mxu0 %v1821
  %1867 = vmatpush.msra.mxu0 %v1819
  %1868 = vmatpush.msra.mxu0 %v1817
  %1869 = vmatpush.msra.mxu0 %v1815
  %1870 = vmatpush.msra.mxu0 %v1813
  %1871 = vmatpush.msra.mxu0 %v1811
  %1872 = vmatpush.msra.mxu0 %v1809
  %1873 = vmatpush.msra.mxu0 %v1807
  %1874 = vmatpush.msra.mxu0 %v1805
  %1875 = vmatpush.msra.mxu0 %v1803
  %1876 = vmatmul.f32.gmra.mxu0 %v1837
  %v1877 = vpop.f32.mrf.mxu0
  %v1878 = vadd.f32 %v1858, %v1877
  %1879 = vdwg.mxu0
  %1880 = vmatpush.msra.mxu0 %v1802
  %1881 = vmatpush.msra.mxu0 %v1800
  %1882 = vmatpush.msra.mxu0 %v1798
  %1883 = vmatpush.msra.mxu0 %v1796
  %1884 = vmatpush.msra.mxu0 %v1794
  %1885 = vmatpush.msra.mxu0 %v1792
  %1886 = vmatpush.msra.mxu0 %v1790
  %1887 = vmatpush.msra.mxu0 %v1788
  %1888 = vmatpush.msra.mxu0 %v1786
  %1889 = vmatpush.msra.mxu0 %v1784
  %1890 = vmatpush.msra.mxu0 %v1782
  %1891 = vmatpush.msra.mxu0 %v1780
  %1892 = vmatpush.msra.mxu0 %v1778
  %1893 = vmatpush.msra.mxu0 %v1776
  %1894 = vmatpush.msra.mxu0 %v1774
  %1895 = vmatpush.msra.mxu0 %v1772
  %1896 = vmatmul.f32.gmra.mxu0 %v1836
  %v1897 = vpop.f32.mrf.mxu0
  %v1898 = vadd.f32 0.0, %v1897
  %1899 = vdwg.mxu0
  %1900 = vmatpush.msra.mxu0 %v1834
  %1901 = vmatpush.msra.mxu0 %v1832
  %1902 = vmatpush.msra.mxu0 %v1830
  %1903 = vmatpush.msra.mxu0 %v1828
  %1904 = vmatpush.msra.mxu0 %v1826
  %1905 = vmatpush.msra.mxu0 %v1824
  %1906 = vmatpush.msra.mxu0 %v1822
  %1907 = vmatpush.msra.mxu0 %v1820
  %1908 = vmatpush.msra.mxu0 %v1818
  %1909 = vmatpush.msra.mxu0 %v1816
  %1910 = vmatpush.msra.mxu0 %v1814
  %1911 = vmatpush.msra.mxu0 %v1812
  %1912 = vmatpush.msra.mxu0 %v1810
  %1913 = vmatpush.msra.mxu0 %v1808
  %1914 = vmatpush.msra.mxu0 %v1806
  %1915 = vmatpush.msra.mxu0 %v1804
  %1916 = vmatmul.f32.gmra.mxu0 %v1837
  %v1917 = vpop.f32.mrf.mxu0
  %v1918 = vadd.f32 %v1898, %v1917
  %1919 = vdwg.mxu0
  %s1920 = scalar_lea.vmem %s2, 128
  %v1921 = vld [vmem:[%s1920] sm:$0xff]
  %v1922 = vld [vmem:[%s1920 + $0x8] sm:$0xff]
  %v1924 = vsel %vm362, %v1921, 0
  %v1927 = vsel %vm362, %v1922, 0
  %v1930 = vsel %vm369, %v1878, 0
  %v1933 = vsel %vm369, %v1918, 0
  %1935 = vmatpush.msra.mxu0 0.0
  %1936 = vmatpush.msra.mxu0 0.0
  %1937 = vmatpush.msra.mxu0 0.0
  %1938 = vmatpush.msra.mxu0 0.0
  %1939 = vmatpush.msra.mxu0 0.0
  %1940 = vmatpush.msra.mxu0 0.0
  %1941 = vmatpush.msra.mxu0 0.0
  %1942 = vmatpush.msra.mxu0 0.0
  %1943 = vmatpush.msra.mxu0 0.0
  %1944 = vmatpush.msra.mxu0 0.0
  %1945 = vmatpush.msra.mxu0 0.0
  %1946 = vmatpush.msra.mxu0 0.0
  %1947 = vmatpush.msra.mxu0 0.0
  %1948 = vmatpush.msra.mxu0 0.0
  %1949 = vmatpush.msra.mxu0 0.0
  %1950 = vmatpush.msra.mxu0 %v1930
  %1951 = vmatmul.f32.gmra.mxu0 %v1924
  %v1952 = vpop.f32.mrf.mxu0
  %v1953 = vadd.f32 0.0, %v1952
  %1954 = vmatmul.f32.gmra.mxu0 %v1927
  %v1955 = vpop.f32.mrf.mxu0
  %v1956 = vadd.f32 0.0, %v1955
  %1957 = vdwg.mxu0
  %1958 = vmatpush.msra.mxu0 0.0
  %1959 = vmatpush.msra.mxu0 0.0
  %1960 = vmatpush.msra.mxu0 0.0
  %1961 = vmatpush.msra.mxu0 0.0
  %1962 = vmatpush.msra.mxu0 0.0
  %1963 = vmatpush.msra.mxu0 0.0
  %1964 = vmatpush.msra.mxu0 0.0
  %1965 = vmatpush.msra.mxu0 0.0
  %1966 = vmatpush.msra.mxu0 0.0
  %1967 = vmatpush.msra.mxu0 0.0
  %1968 = vmatpush.msra.mxu0 0.0
  %1969 = vmatpush.msra.mxu0 0.0
  %1970 = vmatpush.msra.mxu0 0.0
  %1971 = vmatpush.msra.mxu0 0.0
  %1972 = vmatpush.msra.mxu0 0.0
  %1973 = vmatpush.msra.mxu0 %v1933
  %1974 = vmatmul.f32.gmra.mxu0 %v1924
  %v1975 = vpop.f32.mrf.mxu0
  %v1976 = vadd.f32 0.0, %v1975
  %1977 = vmatmul.f32.gmra.mxu0 %v1927
  %v1978 = vpop.f32.mrf.mxu0
  %v1979 = vadd.f32 0.0, %v1978
  %1980 = vdwg.mxu0
  %v1981 = vadd.f32 %v1766, %v1953
  %v1982 = vadd.f32 %v1767, %v1976
  %v1983 = vadd.f32 %v1768, %v1956
  %v1984 = vadd.f32 %v1769, %v1979
  %v1985 = vld [vmem:[%s3] sm:$0xff]
  %v1986 = vld [vmem:[%s3 + $0x8] sm:$0xff]
  %1988 = vset.pattern.permute.xlu0 0
  %1989 = vperm.xlu0 %1988, %v1985
  %v1990 = vpop.permute.xlu0 %1989
  %1993 = vset.pattern.permute.xlu0 0
  %1994 = vperm.xlu0 %1993, %v1986
  %v1995 = vpop.permute.xlu0 %1994
  %v1997 = vadd.f32 %v1981, %v1990
  %v1998 = vadd.f32 %v1982, %v1990
  %v1999 = vadd.f32 %v1983, %v1995
  %v2000 = vadd.f32 %v1984, %v1995
  %v2001 = vmax.f32 %v1997, 0.0
  %v2002 = vmax.f32 %v1998, 0.0
  %v2003 = vmax.f32 %v1999, 0.0
  %v2004 = vmax.f32 %v2000, 0.0
  %v2005 = vld [vmem:[%s4] sm:$0xff]
  %v2006 = vld [vmem:[%s4 + $0x8] sm:$0xff]
  %vm2007 = vcmask 130048
  %v2009 = vsel %vm2007, %v2005, 0
  %v2012 = vsel %vm2007, %v2006, 0
  %2014 = vmatpush.msra.mxu0 0.0
  %2015 = vmatpush.msra.mxu0 0.0
  %2016 = vmatpush.msra.mxu0 0.0
  %2017 = vmatpush.msra.mxu0 0.0
  %2018 = vmatpush.msra.mxu0 0.0
  %2019 = vmatpush.msra.mxu0 0.0
  %2020 = vmatpush.msra.mxu0 0.0
  %2021 = vmatpush.msra.mxu0 0.0
  %2022 = vmatpush.msra.mxu0 0.0
  %2023 = vmatpush.msra.mxu0 0.0
  %2024 = vmatpush.msra.mxu0 0.0
  %2025 = vmatpush.msra.mxu0 0.0
  %2026 = vmatpush.msra.mxu0 0.0
  %2027 = vmatpush.msra.mxu0 0.0
  %2028 = vmatpush.msra.mxu0 %v2003
  %2029 = vmatpush.msra.mxu0 %v2001
  %2030 = vmatmul.f32.gmra.mxu0 %v2009
  %v2031 = vpop.f32.mrf.mxu0
  %v2032 = vadd.f32 0.0, %v2031
  %2033 = vmatmul.f32.gmra.mxu0 %v2012
  %v2034 = vpop.f32.mrf.mxu0
  %v2035 = vadd.f32 0.0, %v2034
  %2036 = vdwg.mxu0
  %2037 = vmatpush.msra.mxu0 0.0
  %2038 = vmatpush.msra.mxu0 0.0
  %2039 = vmatpush.msra.mxu0 0.0
  %2040 = vmatpush.msra.mxu0 0.0
  %2041 = vmatpush.msra.mxu0 0.0
  %2042 = vmatpush.msra.mxu0 0.0
  %2043 = vmatpush.msra.mxu0 0.0
  %2044 = vmatpush.msra.mxu0 0.0
  %2045 = vmatpush.msra.mxu0 0.0
  %2046 = vmatpush.msra.mxu0 0.0
  %2047 = vmatpush.msra.mxu0 0.0
  %2048 = vmatpush.msra.mxu0 0.0
  %2049 = vmatpush.msra.mxu0 0.0
  %2050 = vmatpush.msra.mxu0 0.0
  %2051 = vmatpush.msra.mxu0 %v2004
  %2052 = vmatpush.msra.mxu0 %v2002
  %2053 = vmatmul.f32.gmra.mxu0 %v2009
  %v2054 = vpop.f32.mrf.mxu0
  %v2055 = vadd.f32 0.0, %v2054
  %2056 = vmatmul.f32.gmra.mxu0 %v2012
  %v2057 = vpop.f32.mrf.mxu0
  %v2058 = vadd.f32 0.0, %v2057
  %2059 = vdwg.mxu0
  %v2060 = vmul.f32 %v2001, %v2001
  %v2061 = vmul.f32 %v2002, %v2002
  %v2062 = vmul.f32 %v2003, %v2003
  %v2063 = vmul.f32 %v2004, %v2004
  %2064 = vmatpush.msra.mxu0 0.0
  %2065 = vmatpush.msra.mxu0 0.0
  %2066 = vmatpush.msra.mxu0 0.0
  %2067 = vmatpush.msra.mxu0 0.0
  %2068 = vmatpush.msra.mxu0 0.0
  %2069 = vmatpush.msra.mxu0 0.0
  %2070 = vmatpush.msra.mxu0 0.0
  %2071 = vmatpush.msra.mxu0 0.0
  %2072 = vmatpush.msra.mxu0 0.0
  %2073 = vmatpush.msra.mxu0 0.0
  %2074 = vmatpush.msra.mxu0 0.0
  %2075 = vmatpush.msra.mxu0 0.0
  %2076 = vmatpush.msra.mxu0 0.0
  %2077 = vmatpush.msra.mxu0 0.0
  %2078 = vmatpush.msra.mxu0 %v2062
  %2079 = vmatpush.msra.mxu0 %v2060
  %2080 = vmatmul.f32.gmra.mxu0 %v2009
  %v2081 = vpop.f32.mrf.mxu0
  %v2082 = vadd.f32 0.0, %v2081
  %2083 = vmatmul.f32.gmra.mxu0 %v2012
  %v2084 = vpop.f32.mrf.mxu0
  %v2085 = vadd.f32 0.0, %v2084
  %2086 = vdwg.mxu0
  %2087 = vmatpush.msra.mxu0 0.0
  %2088 = vmatpush.msra.mxu0 0.0
  %2089 = vmatpush.msra.mxu0 0.0
  %2090 = vmatpush.msra.mxu0 0.0
  %2091 = vmatpush.msra.mxu0 0.0
  %2092 = vmatpush.msra.mxu0 0.0
  %2093 = vmatpush.msra.mxu0 0.0
  %2094 = vmatpush.msra.mxu0 0.0
  %2095 = vmatpush.msra.mxu0 0.0
  %2096 = vmatpush.msra.mxu0 0.0
  %2097 = vmatpush.msra.mxu0 0.0
  %2098 = vmatpush.msra.mxu0 0.0
  %2099 = vmatpush.msra.mxu0 0.0
  %2100 = vmatpush.msra.mxu0 0.0
  %2101 = vmatpush.msra.mxu0 %v2063
  %2102 = vmatpush.msra.mxu0 %v2061
  %2103 = vmatmul.f32.gmra.mxu0 %v2009
  %v2104 = vpop.f32.mrf.mxu0
  %v2105 = vadd.f32 0.0, %v2104
  %2106 = vmatmul.f32.gmra.mxu0 %v2012
  %v2107 = vpop.f32.mrf.mxu0
  %v2108 = vadd.f32 0.0, %v2107
  %2109 = vdwg.mxu0
  %v2110 = vadd.f32 %v2032, %v2055
  %2111 = vadd.xlane.f32.xlu0 %v2110
  %v2112 = vpop.xlane.xlu0 %2111
  %v2113 = vadd.f32 %v2035, %v2058
  %2114 = vadd.xlane.f32.xlu0 %v2113
  %v2115 = vpop.xlane.xlu0 %2114
  %v2116 = vmul.f32 %v2112, 0.001953125
  %v2117 = vmul.f32 %v2115, 0.001953125
  %v2118 = vadd.f32 %v2082, %v2105
  %2119 = vadd.xlane.f32.xlu0 %v2118
  %v2120 = vpop.xlane.xlu0 %2119
  %v2121 = vadd.f32 %v2085, %v2108
  %2122 = vadd.xlane.f32.xlu0 %v2121
  %v2123 = vpop.xlane.xlu0 %2122
  %v2124 = vmul.f32 %v2120, 0.001953125
  %v2125 = vmul.f32 %v2123, 0.001953125
  %v2126 = vmul.f32 %v2116, %v2116
  %v2127 = vmul.f32 %v2117, %v2117
  %v2128 = vsub.f32 %v2124, %v2126
  %v2129 = vsub.f32 %v2125, %v2127
  %s2130 = scalar_lea.vmem %s3, 16
  %v2131 = vld [vmem:[%s2130] sm:$0xff]
  %v2132 = vld [vmem:[%s2130 + $0x8] sm:$0xff]
  %v2133 = vadd.f32 %v2128, 1e-05
  %v2134 = vadd.f32 %v2129, 1e-05
  %v2135 = vrsqrt.pop %v2133
  %v2136 = vmul.f32 %v2135, %v2133
  %v2137 = vmul.f32 %v2136, %v2135
  %v2138 = vmul.f32 0.5, %v2137
  %v2139 = vsub.f32 1.5, %v2138
  %v2140 = vmul.f32 %v2135, %v2139
  %vm2141 = vweird.f32 %v2133
  %vm2142 = vweird.f32 %v2135
  %vm2143 = vmor %vm2141, %vm2142
  %v2144 = vsel %vm2143, %v2135, %v2140
  %v2145 = vrsqrt.pop %v2134
  %v2146 = vmul.f32 %v2145, %v2134
  %v2147 = vmul.f32 %v2146, %v2145
  %v2148 = vmul.f32 0.5, %v2147
  %v2149 = vsub.f32 1.5, %v2148
  %v2150 = vmul.f32 %v2145, %v2149
  %vm2151 = vweird.f32 %v2134
  %vm2152 = vweird.f32 %v2145
  %vm2153 = vmor %vm2151, %vm2152
  %v2154 = vsel %vm2153, %v2145, %v2150
  %v2155 = vmul.f32 %v2131, %v2144
  %v2156 = vmul.f32 %v2132, %v2154
  %s2157 = scalar_lea.vmem %s3, 32
  %v2158 = vld [vmem:[%s2157] sm:$0xff]
  %v2159 = vld [vmem:[%s2157 + $0x8] sm:$0xff]
  %v2160 = vmul.f32 %v2116, %v2155
  %v2161 = vmul.f32 %v2117, %v2156
  %v2162 = vsub.f32 %v2158, %v2160
  %v2163 = vsub.f32 %v2159, %v2161
  %2165 = vset.pattern.permute.xlu0 0
  %2166 = vperm.xlu0 %2165, %v2155
  %v2167 = vpop.permute.xlu0 %2166
  %2170 = vset.pattern.permute.xlu0 0
  %2171 = vperm.xlu0 %2170, %v2156
  %v2172 = vpop.permute.xlu0 %2171
  %v2174 = vmul.f32 %v2001, %v2167
  %v2175 = vmul.f32 %v2002, %v2167
  %v2176 = vmul.f32 %v2003, %v2172
  %v2177 = vmul.f32 %v2004, %v2172
  %2179 = vset.pattern.permute.xlu0 0
  %2180 = vperm.xlu0 %2179, %v2162
  %v2181 = vpop.permute.xlu0 %2180
  %2184 = vset.pattern.permute.xlu0 0
  %2185 = vperm.xlu0 %2184, %v2163
  %v2186 = vpop.permute.xlu0 %2185
  %v2188 = vadd.f32 %v2174, %v2181
  %v2189 = vadd.f32 %v2175, %v2181
  %v2190 = vadd.f32 %v2176, %v2186
  %v2191 = vadd.f32 %v2177, %v2186
  %2192 = vmatpush.msra.mxu0 %v87
  %2193 = vmatpush.msra.mxu0 %v85
  %2194 = vmatpush.msra.mxu0 %v83
  %2195 = vmatpush.msra.mxu0 %v81
  %2196 = vmatpush.msra.mxu0 %v79
  %2197 = vmatpush.msra.mxu0 %v77
  %2198 = vmatpush.msra.mxu0 %v75
  %2199 = vmatpush.msra.mxu0 %v73
  %2200 = vmatpush.msra.mxu0 %v71
  %2201 = vmatpush.msra.mxu0 %v69
  %2202 = vmatpush.msra.mxu0 %v67
  %2203 = vmatpush.msra.mxu0 %v65
  %2204 = vmatpush.msra.mxu0 %v63
  %2205 = vmatpush.msra.mxu0 %v61
  %2206 = vmatpush.msra.mxu0 %v59
  %2207 = vmatpush.msra.mxu0 %v57
  %2208 = vmatmul.f32.gmra.mxu0 %v2188
  %v2209 = vpop.f32.mrf.mxu0
  %v2210 = vadd.f32 0.0, %v2209
  %2211 = vmatmul.f32.gmra.mxu0 %v2190
  %v2212 = vpop.f32.mrf.mxu0
  %v2213 = vadd.f32 0.0, %v2212
  %2214 = vdwg.mxu0
  %2215 = vmatpush.msra.mxu0 %v119
  %2216 = vmatpush.msra.mxu0 %v117
  %2217 = vmatpush.msra.mxu0 %v115
  %2218 = vmatpush.msra.mxu0 %v113
  %2219 = vmatpush.msra.mxu0 %v111
  %2220 = vmatpush.msra.mxu0 %v109
  %2221 = vmatpush.msra.mxu0 %v107
  %2222 = vmatpush.msra.mxu0 %v105
  %2223 = vmatpush.msra.mxu0 %v103
  %2224 = vmatpush.msra.mxu0 %v101
  %2225 = vmatpush.msra.mxu0 %v99
  %2226 = vmatpush.msra.mxu0 %v97
  %2227 = vmatpush.msra.mxu0 %v95
  %2228 = vmatpush.msra.mxu0 %v93
  %2229 = vmatpush.msra.mxu0 %v91
  %2230 = vmatpush.msra.mxu0 %v89
  %2231 = vmatmul.f32.gmra.mxu0 %v2189
  %v2232 = vpop.f32.mrf.mxu0
  %v2233 = vadd.f32 %v2210, %v2232
  %2234 = vmatmul.f32.gmra.mxu0 %v2191
  %v2235 = vpop.f32.mrf.mxu0
  %v2236 = vadd.f32 %v2213, %v2235
  %2237 = vdwg.mxu0
  %2238 = vmatpush.msra.mxu0 %v88
  %2239 = vmatpush.msra.mxu0 %v86
  %2240 = vmatpush.msra.mxu0 %v84
  %2241 = vmatpush.msra.mxu0 %v82
  %2242 = vmatpush.msra.mxu0 %v80
  %2243 = vmatpush.msra.mxu0 %v78
  %2244 = vmatpush.msra.mxu0 %v76
  %2245 = vmatpush.msra.mxu0 %v74
  %2246 = vmatpush.msra.mxu0 %v72
  %2247 = vmatpush.msra.mxu0 %v70
  %2248 = vmatpush.msra.mxu0 %v68
  %2249 = vmatpush.msra.mxu0 %v66
  %2250 = vmatpush.msra.mxu0 %v64
  %2251 = vmatpush.msra.mxu0 %v62
  %2252 = vmatpush.msra.mxu0 %v60
  %2253 = vmatpush.msra.mxu0 %v58
  %2254 = vmatmul.f32.gmra.mxu0 %v2188
  %v2255 = vpop.f32.mrf.mxu0
  %v2256 = vadd.f32 0.0, %v2255
  %2257 = vmatmul.f32.gmra.mxu0 %v2190
  %v2258 = vpop.f32.mrf.mxu0
  %v2259 = vadd.f32 0.0, %v2258
  %2260 = vdwg.mxu0
  %2261 = vmatpush.msra.mxu0 %v120
  %2262 = vmatpush.msra.mxu0 %v118
  %2263 = vmatpush.msra.mxu0 %v116
  %2264 = vmatpush.msra.mxu0 %v114
  %2265 = vmatpush.msra.mxu0 %v112
  %2266 = vmatpush.msra.mxu0 %v110
  %2267 = vmatpush.msra.mxu0 %v108
  %2268 = vmatpush.msra.mxu0 %v106
  %2269 = vmatpush.msra.mxu0 %v104
  %2270 = vmatpush.msra.mxu0 %v102
  %2271 = vmatpush.msra.mxu0 %v100
  %2272 = vmatpush.msra.mxu0 %v98
  %2273 = vmatpush.msra.mxu0 %v96
  %2274 = vmatpush.msra.mxu0 %v94
  %2275 = vmatpush.msra.mxu0 %v92
  %2276 = vmatpush.msra.mxu0 %v90
  %2277 = vmatmul.f32.gmra.mxu0 %v2189
  %v2278 = vpop.f32.mrf.mxu0
  %v2279 = vadd.f32 %v2256, %v2278
  %2280 = vmatmul.f32.gmra.mxu0 %v2191
  %v2281 = vpop.f32.mrf.mxu0
  %v2282 = vadd.f32 %v2259, %v2281
  %2283 = vdwg.mxu0
  %v2284 = vld [vmem:[%s5] sm:$0xff]
  %v2285 = vld [vmem:[%s5 + $0x8] sm:$0xff]
  %v2286 = vld [vmem:[%s5 + $0x10] sm:$0xff]
  %v2287 = vld [vmem:[%s5 + $0x18] sm:$0xff]
  %2288 = vmatpush.msra.mxu0 %v240
  %2289 = vmatpush.msra.mxu0 %v238
  %2290 = vmatpush.msra.mxu0 %v236
  %2291 = vmatpush.msra.mxu0 %v234
  %2292 = vmatpush.msra.mxu0 %v232
  %2293 = vmatpush.msra.mxu0 %v230
  %2294 = vmatpush.msra.mxu0 %v228
  %2295 = vmatpush.msra.mxu0 %v226
  %2296 = vmatpush.msra.mxu0 %v224
  %2297 = vmatpush.msra.mxu0 %v222
  %2298 = vmatpush.msra.mxu0 %v220
  %2299 = vmatpush.msra.mxu0 %v218
  %2300 = vmatpush.msra.mxu0 %v216
  %2301 = vmatpush.msra.mxu0 %v214
  %2302 = vmatpush.msra.mxu0 %v212
  %2303 = vmatpush.msra.mxu0 %v210
  %2304 = vmatmul.f32.gmra.mxu0 %v2188
  %v2305 = vpop.f32.mrf.mxu0
  %v2306 = vadd.f32 0.0, %v2305
  %2307 = vmatmul.f32.gmra.mxu0 %v2190
  %v2308 = vpop.f32.mrf.mxu0
  %v2309 = vadd.f32 0.0, %v2308
  %2310 = vdwg.mxu0
  %2311 = vmatpush.msra.mxu0 %v272
  %2312 = vmatpush.msra.mxu0 %v270
  %2313 = vmatpush.msra.mxu0 %v268
  %2314 = vmatpush.msra.mxu0 %v266
  %2315 = vmatpush.msra.mxu0 %v264
  %2316 = vmatpush.msra.mxu0 %v262
  %2317 = vmatpush.msra.mxu0 %v260
  %2318 = vmatpush.msra.mxu0 %v258
  %2319 = vmatpush.msra.mxu0 %v256
  %2320 = vmatpush.msra.mxu0 %v254
  %2321 = vmatpush.msra.mxu0 %v252
  %2322 = vmatpush.msra.mxu0 %v250
  %2323 = vmatpush.msra.mxu0 %v248
  %2324 = vmatpush.msra.mxu0 %v246
  %2325 = vmatpush.msra.mxu0 %v244
  %2326 = vmatpush.msra.mxu0 %v242
  %2327 = vmatmul.f32.gmra.mxu0 %v2189
  %v2328 = vpop.f32.mrf.mxu0
  %v2329 = vadd.f32 %v2306, %v2328
  %2330 = vmatmul.f32.gmra.mxu0 %v2191
  %v2331 = vpop.f32.mrf.mxu0
  %v2332 = vadd.f32 %v2309, %v2331
  %2333 = vdwg.mxu0
  %2334 = vmatpush.msra.mxu0 %v241
  %2335 = vmatpush.msra.mxu0 %v239
  %2336 = vmatpush.msra.mxu0 %v237
  %2337 = vmatpush.msra.mxu0 %v235
  %2338 = vmatpush.msra.mxu0 %v233
  %2339 = vmatpush.msra.mxu0 %v231
  %2340 = vmatpush.msra.mxu0 %v229
  %2341 = vmatpush.msra.mxu0 %v227
  %2342 = vmatpush.msra.mxu0 %v225
  %2343 = vmatpush.msra.mxu0 %v223
  %2344 = vmatpush.msra.mxu0 %v221
  %2345 = vmatpush.msra.mxu0 %v219
  %2346 = vmatpush.msra.mxu0 %v217
  %2347 = vmatpush.msra.mxu0 %v215
  %2348 = vmatpush.msra.mxu0 %v213
  %2349 = vmatpush.msra.mxu0 %v211
  %2350 = vmatmul.f32.gmra.mxu0 %v2188
  %v2351 = vpop.f32.mrf.mxu0
  %v2352 = vadd.f32 0.0, %v2351
  %2353 = vmatmul.f32.gmra.mxu0 %v2190
  %v2354 = vpop.f32.mrf.mxu0
  %v2355 = vadd.f32 0.0, %v2354
  %2356 = vdwg.mxu0
  %2357 = vmatpush.msra.mxu0 %v273
  %2358 = vmatpush.msra.mxu0 %v271
  %2359 = vmatpush.msra.mxu0 %v269
  %2360 = vmatpush.msra.mxu0 %v267
  %2361 = vmatpush.msra.mxu0 %v265
  %2362 = vmatpush.msra.mxu0 %v263
  %2363 = vmatpush.msra.mxu0 %v261
  %2364 = vmatpush.msra.mxu0 %v259
  %2365 = vmatpush.msra.mxu0 %v257
  %2366 = vmatpush.msra.mxu0 %v255
  %2367 = vmatpush.msra.mxu0 %v253
  %2368 = vmatpush.msra.mxu0 %v251
  %2369 = vmatpush.msra.mxu0 %v249
  %2370 = vmatpush.msra.mxu0 %v247
  %2371 = vmatpush.msra.mxu0 %v245
  %2372 = vmatpush.msra.mxu0 %v243
  %2373 = vmatmul.f32.gmra.mxu0 %v2189
  %v2374 = vpop.f32.mrf.mxu0
  %v2375 = vadd.f32 %v2352, %v2374
  %2376 = vmatmul.f32.gmra.mxu0 %v2191
  %v2377 = vpop.f32.mrf.mxu0
  %v2378 = vadd.f32 %v2355, %v2377
  %2379 = vdwg.mxu0
  %s2380 = scalar_lea.vmem %s5, 32
  %v2381 = vld [vmem:[%s2380] sm:$0xff]
  %v2382 = vld [vmem:[%s2380 + $0x8] sm:$0xff]
  %v2383 = vld [vmem:[%s2380 + $0x10] sm:$0xff]
  %v2384 = vld [vmem:[%s2380 + $0x18] sm:$0xff]
  %v2386 = vsel %vm2007, %v2381, 0
  %v2389 = vsel %vm2007, %v2382, 0
  %v2392 = vsel %vm2007, %v2383, 0
  %v2395 = vsel %vm2007, %v2384, 0
  %2397 = vmatpush.msra.mxu0 0.0
  %2398 = vmatpush.msra.mxu0 0.0
  %2399 = vmatpush.msra.mxu0 0.0
  %2400 = vmatpush.msra.mxu0 0.0
  %2401 = vmatpush.msra.mxu0 0.0
  %2402 = vmatpush.msra.mxu0 0.0
  %2403 = vmatpush.msra.mxu0 0.0
  %2404 = vmatpush.msra.mxu0 0.0
  %2405 = vmatpush.msra.mxu0 0.0
  %2406 = vmatpush.msra.mxu0 0.0
  %2407 = vmatpush.msra.mxu0 0.0
  %2408 = vmatpush.msra.mxu0 0.0
  %2409 = vmatpush.msra.mxu0 0.0
  %2410 = vmatpush.msra.mxu0 0.0
  %2411 = vmatpush.msra.mxu0 %v2332
  %2412 = vmatpush.msra.mxu0 %v2329
  %2413 = vmatmul.f32.gmra.mxu0 %v2386
  %v2414 = vpop.f32.mrf.mxu0
  %v2415 = vadd.f32 0.0, %v2414
  %2416 = vmatmul.f32.gmra.mxu0 %v2389
  %v2417 = vpop.f32.mrf.mxu0
  %v2418 = vadd.f32 0.0, %v2417
  %2419 = vmatmul.f32.gmra.mxu0 %v2392
  %v2420 = vpop.f32.mrf.mxu0
  %v2421 = vadd.f32 0.0, %v2420
  %2422 = vmatmul.f32.gmra.mxu0 %v2395
  %v2423 = vpop.f32.mrf.mxu0
  %v2424 = vadd.f32 0.0, %v2423
  %2425 = vdwg.mxu0
  %2426 = vmatpush.msra.mxu0 0.0
  %2427 = vmatpush.msra.mxu0 0.0
  %2428 = vmatpush.msra.mxu0 0.0
  %2429 = vmatpush.msra.mxu0 0.0
  %2430 = vmatpush.msra.mxu0 0.0
  %2431 = vmatpush.msra.mxu0 0.0
  %2432 = vmatpush.msra.mxu0 0.0
  %2433 = vmatpush.msra.mxu0 0.0
  %2434 = vmatpush.msra.mxu0 0.0
  %2435 = vmatpush.msra.mxu0 0.0
  %2436 = vmatpush.msra.mxu0 0.0
  %2437 = vmatpush.msra.mxu0 0.0
  %2438 = vmatpush.msra.mxu0 0.0
  %2439 = vmatpush.msra.mxu0 0.0
  %2440 = vmatpush.msra.mxu0 %v2378
  %2441 = vmatpush.msra.mxu0 %v2375
  %2442 = vmatmul.f32.gmra.mxu0 %v2386
  %v2443 = vpop.f32.mrf.mxu0
  %v2444 = vadd.f32 0.0, %v2443
  %2445 = vmatmul.f32.gmra.mxu0 %v2389
  %v2446 = vpop.f32.mrf.mxu0
  %v2447 = vadd.f32 0.0, %v2446
  %2448 = vmatmul.f32.gmra.mxu0 %v2392
  %v2449 = vpop.f32.mrf.mxu0
  %v2450 = vadd.f32 0.0, %v2449
  %2451 = vmatmul.f32.gmra.mxu0 %v2395
  %v2452 = vpop.f32.mrf.mxu0
  %v2453 = vadd.f32 0.0, %v2452
  %2454 = vdwg.mxu0
  %v2456 = vsel %vm2007, %v2284, 0
  %v2459 = vsel %vm2007, %v2285, 0
  %v2462 = vsel %vm2007, %v2286, 0
  %v2465 = vsel %vm2007, %v2287, 0
  %2467 = vmatpush.msra.mxu0 0.0
  %2468 = vmatpush.msra.mxu0 0.0
  %2469 = vmatpush.msra.mxu0 0.0
  %2470 = vmatpush.msra.mxu0 0.0
  %2471 = vmatpush.msra.mxu0 0.0
  %2472 = vmatpush.msra.mxu0 0.0
  %2473 = vmatpush.msra.mxu0 0.0
  %2474 = vmatpush.msra.mxu0 0.0
  %2475 = vmatpush.msra.mxu0 0.0
  %2476 = vmatpush.msra.mxu0 0.0
  %2477 = vmatpush.msra.mxu0 0.0
  %2478 = vmatpush.msra.mxu0 0.0
  %2479 = vmatpush.msra.mxu0 0.0
  %2480 = vmatpush.msra.mxu0 0.0
  %2481 = vmatpush.msra.mxu0 %v2236
  %2482 = vmatpush.msra.mxu0 %v2233
  %2483 = vmatmul.f32.gmra.mxu0 %v2456
  %v2484 = vpop.f32.mrf.mxu0
  %v2485 = vadd.f32 %v2415, %v2484
  %2486 = vmatmul.f32.gmra.mxu0 %v2459
  %v2487 = vpop.f32.mrf.mxu0
  %v2488 = vadd.f32 %v2418, %v2487
  %2489 = vmatmul.f32.gmra.mxu0 %v2462
  %v2490 = vpop.f32.mrf.mxu0
  %v2491 = vadd.f32 %v2421, %v2490
  %2492 = vmatmul.f32.gmra.mxu0 %v2465
  %v2493 = vpop.f32.mrf.mxu0
  %v2494 = vadd.f32 %v2424, %v2493
  %2495 = vdwg.mxu0
  %2496 = vmatpush.msra.mxu0 0.0
  %2497 = vmatpush.msra.mxu0 0.0
  %2498 = vmatpush.msra.mxu0 0.0
  %2499 = vmatpush.msra.mxu0 0.0
  %2500 = vmatpush.msra.mxu0 0.0
  %2501 = vmatpush.msra.mxu0 0.0
  %2502 = vmatpush.msra.mxu0 0.0
  %2503 = vmatpush.msra.mxu0 0.0
  %2504 = vmatpush.msra.mxu0 0.0
  %2505 = vmatpush.msra.mxu0 0.0
  %2506 = vmatpush.msra.mxu0 0.0
  %2507 = vmatpush.msra.mxu0 0.0
  %2508 = vmatpush.msra.mxu0 0.0
  %2509 = vmatpush.msra.mxu0 0.0
  %2510 = vmatpush.msra.mxu0 %v2282
  %2511 = vmatpush.msra.mxu0 %v2279
  %2512 = vmatmul.f32.gmra.mxu0 %v2456
  %v2513 = vpop.f32.mrf.mxu0
  %v2514 = vadd.f32 %v2444, %v2513
  %2515 = vmatmul.f32.gmra.mxu0 %v2459
  %v2516 = vpop.f32.mrf.mxu0
  %v2517 = vadd.f32 %v2447, %v2516
  %2518 = vmatmul.f32.gmra.mxu0 %v2462
  %v2519 = vpop.f32.mrf.mxu0
  %v2520 = vadd.f32 %v2450, %v2519
  %2521 = vmatmul.f32.gmra.mxu0 %v2465
  %v2522 = vpop.f32.mrf.mxu0
  %v2523 = vadd.f32 %v2453, %v2522
  %2524 = vdwg.mxu0
  %2525 = vmatpush.msra.mxu0 %v511
  %2526 = vmatpush.msra.mxu0 %v509
  %2527 = vmatpush.msra.mxu0 %v507
  %2528 = vmatpush.msra.mxu0 %v505
  %2529 = vmatpush.msra.mxu0 %v503
  %2530 = vmatpush.msra.mxu0 %v501
  %2531 = vmatpush.msra.mxu0 %v499
  %2532 = vmatpush.msra.mxu0 %v497
  %2533 = vmatpush.msra.mxu0 %v495
  %2534 = vmatpush.msra.mxu0 %v493
  %2535 = vmatpush.msra.mxu0 %v491
  %2536 = vmatpush.msra.mxu0 %v489
  %2537 = vmatpush.msra.mxu0 %v487
  %2538 = vmatpush.msra.mxu0 %v485
  %2539 = vmatpush.msra.mxu0 %v483
  %2540 = vmatpush.msra.mxu0 %v481
  %2541 = vmatmul.f32.gmra.mxu0 %v2188
  %v2542 = vpop.f32.mrf.mxu0
  %v2543 = vadd.f32 0.0, %v2542
  %2544 = vmatmul.f32.gmra.mxu0 %v2190
  %v2545 = vpop.f32.mrf.mxu0
  %v2546 = vadd.f32 0.0, %v2545
  %2547 = vdwg.mxu0
  %2548 = vmatpush.msra.mxu0 %v543
  %2549 = vmatpush.msra.mxu0 %v541
  %2550 = vmatpush.msra.mxu0 %v539
  %2551 = vmatpush.msra.mxu0 %v537
  %2552 = vmatpush.msra.mxu0 %v535
  %2553 = vmatpush.msra.mxu0 %v533
  %2554 = vmatpush.msra.mxu0 %v531
  %2555 = vmatpush.msra.mxu0 %v529
  %2556 = vmatpush.msra.mxu0 %v527
  %2557 = vmatpush.msra.mxu0 %v525
  %2558 = vmatpush.msra.mxu0 %v523
  %2559 = vmatpush.msra.mxu0 %v521
  %2560 = vmatpush.msra.mxu0 %v519
  %2561 = vmatpush.msra.mxu0 %v517
  %2562 = vmatpush.msra.mxu0 %v515
  %2563 = vmatpush.msra.mxu0 %v513
  %2564 = vmatmul.f32.gmra.mxu0 %v2189
  %v2565 = vpop.f32.mrf.mxu0
  %v2566 = vadd.f32 %v2543, %v2565
  %2567 = vmatmul.f32.gmra.mxu0 %v2191
  %v2568 = vpop.f32.mrf.mxu0
  %v2569 = vadd.f32 %v2546, %v2568
  %2570 = vdwg.mxu0
  %2571 = vmatpush.msra.mxu0 %v512
  %2572 = vmatpush.msra.mxu0 %v510
  %2573 = vmatpush.msra.mxu0 %v508
  %2574 = vmatpush.msra.mxu0 %v506
  %2575 = vmatpush.msra.mxu0 %v504
  %2576 = vmatpush.msra.mxu0 %v502
  %2577 = vmatpush.msra.mxu0 %v500
  %2578 = vmatpush.msra.mxu0 %v498
  %2579 = vmatpush.msra.mxu0 %v496
  %2580 = vmatpush.msra.mxu0 %v494
  %2581 = vmatpush.msra.mxu0 %v492
  %2582 = vmatpush.msra.mxu0 %v490
  %2583 = vmatpush.msra.mxu0 %v488
  %2584 = vmatpush.msra.mxu0 %v486
  %2585 = vmatpush.msra.mxu0 %v484
  %2586 = vmatpush.msra.mxu0 %v482
  %2587 = vmatmul.f32.gmra.mxu0 %v2188
  %v2588 = vpop.f32.mrf.mxu0
  %v2589 = vadd.f32 0.0, %v2588
  %2590 = vmatmul.f32.gmra.mxu0 %v2190
  %v2591 = vpop.f32.mrf.mxu0
  %v2592 = vadd.f32 0.0, %v2591
  %2593 = vdwg.mxu0
  %2594 = vmatpush.msra.mxu0 %v544
  %2595 = vmatpush.msra.mxu0 %v542
  %2596 = vmatpush.msra.mxu0 %v540
  %2597 = vmatpush.msra.mxu0 %v538
  %2598 = vmatpush.msra.mxu0 %v536
  %2599 = vmatpush.msra.mxu0 %v534
  %2600 = vmatpush.msra.mxu0 %v532
  %2601 = vmatpush.msra.mxu0 %v530
  %2602 = vmatpush.msra.mxu0 %v528
  %2603 = vmatpush.msra.mxu0 %v526
  %2604 = vmatpush.msra.mxu0 %v524
  %2605 = vmatpush.msra.mxu0 %v522
  %2606 = vmatpush.msra.mxu0 %v520
  %2607 = vmatpush.msra.mxu0 %v518
  %2608 = vmatpush.msra.mxu0 %v516
  %2609 = vmatpush.msra.mxu0 %v514
  %2610 = vmatmul.f32.gmra.mxu0 %v2189
  %v2611 = vpop.f32.mrf.mxu0
  %v2612 = vadd.f32 %v2589, %v2611
  %2613 = vmatmul.f32.gmra.mxu0 %v2191
  %v2614 = vpop.f32.mrf.mxu0
  %v2615 = vadd.f32 %v2592, %v2614
  %2616 = vdwg.mxu0
  %s2617 = scalar_lea.vmem %s5, 64
  %v2618 = vld [vmem:[%s2617] sm:$0xff]
  %v2619 = vld [vmem:[%s2617 + $0x8] sm:$0xff]
  %v2620 = vld [vmem:[%s2617 + $0x10] sm:$0xff]
  %v2621 = vld [vmem:[%s2617 + $0x18] sm:$0xff]
  %v2623 = vsel %vm2007, %v2618, 0
  %v2626 = vsel %vm2007, %v2619, 0
  %v2629 = vsel %vm2007, %v2620, 0
  %v2632 = vsel %vm2007, %v2621, 0
  %2634 = vmatpush.msra.mxu0 0.0
  %2635 = vmatpush.msra.mxu0 0.0
  %2636 = vmatpush.msra.mxu0 0.0
  %2637 = vmatpush.msra.mxu0 0.0
  %2638 = vmatpush.msra.mxu0 0.0
  %2639 = vmatpush.msra.mxu0 0.0
  %2640 = vmatpush.msra.mxu0 0.0
  %2641 = vmatpush.msra.mxu0 0.0
  %2642 = vmatpush.msra.mxu0 0.0
  %2643 = vmatpush.msra.mxu0 0.0
  %2644 = vmatpush.msra.mxu0 0.0
  %2645 = vmatpush.msra.mxu0 0.0
  %2646 = vmatpush.msra.mxu0 0.0
  %2647 = vmatpush.msra.mxu0 0.0
  %2648 = vmatpush.msra.mxu0 %v2569
  %2649 = vmatpush.msra.mxu0 %v2566
  %2650 = vmatmul.f32.gmra.mxu0 %v2623
  %v2651 = vpop.f32.mrf.mxu0
  %v2652 = vadd.f32 0.0, %v2651
  %2653 = vmatmul.f32.gmra.mxu0 %v2626
  %v2654 = vpop.f32.mrf.mxu0
  %v2655 = vadd.f32 0.0, %v2654
  %2656 = vmatmul.f32.gmra.mxu0 %v2629
  %v2657 = vpop.f32.mrf.mxu0
  %v2658 = vadd.f32 0.0, %v2657
  %2659 = vmatmul.f32.gmra.mxu0 %v2632
  %v2660 = vpop.f32.mrf.mxu0
  %v2661 = vadd.f32 0.0, %v2660
  %2662 = vdwg.mxu0
  %2663 = vmatpush.msra.mxu0 0.0
  %2664 = vmatpush.msra.mxu0 0.0
  %2665 = vmatpush.msra.mxu0 0.0
  %2666 = vmatpush.msra.mxu0 0.0
  %2667 = vmatpush.msra.mxu0 0.0
  %2668 = vmatpush.msra.mxu0 0.0
  %2669 = vmatpush.msra.mxu0 0.0
  %2670 = vmatpush.msra.mxu0 0.0
  %2671 = vmatpush.msra.mxu0 0.0
  %2672 = vmatpush.msra.mxu0 0.0
  %2673 = vmatpush.msra.mxu0 0.0
  %2674 = vmatpush.msra.mxu0 0.0
  %2675 = vmatpush.msra.mxu0 0.0
  %2676 = vmatpush.msra.mxu0 0.0
  %2677 = vmatpush.msra.mxu0 %v2615
  %2678 = vmatpush.msra.mxu0 %v2612
  %2679 = vmatmul.f32.gmra.mxu0 %v2623
  %v2680 = vpop.f32.mrf.mxu0
  %v2681 = vadd.f32 0.0, %v2680
  %2682 = vmatmul.f32.gmra.mxu0 %v2626
  %v2683 = vpop.f32.mrf.mxu0
  %v2684 = vadd.f32 0.0, %v2683
  %2685 = vmatmul.f32.gmra.mxu0 %v2629
  %v2686 = vpop.f32.mrf.mxu0
  %v2687 = vadd.f32 0.0, %v2686
  %2688 = vmatmul.f32.gmra.mxu0 %v2632
  %v2689 = vpop.f32.mrf.mxu0
  %v2690 = vadd.f32 0.0, %v2689
  %2691 = vdwg.mxu0
  %v2692 = vadd.f32 %v2485, %v2652
  %v2693 = vadd.f32 %v2514, %v2681
  %v2694 = vadd.f32 %v2488, %v2655
  %v2695 = vadd.f32 %v2517, %v2684
  %v2696 = vadd.f32 %v2491, %v2658
  %v2697 = vadd.f32 %v2520, %v2687
  %v2698 = vadd.f32 %v2494, %v2661
  %v2699 = vadd.f32 %v2523, %v2690
  %2700 = vmatpush.msra.mxu0 %v726
  %2701 = vmatpush.msra.mxu0 %v724
  %2702 = vmatpush.msra.mxu0 %v722
  %2703 = vmatpush.msra.mxu0 %v720
  %2704 = vmatpush.msra.mxu0 %v718
  %2705 = vmatpush.msra.mxu0 %v716
  %2706 = vmatpush.msra.mxu0 %v714
  %2707 = vmatpush.msra.mxu0 %v712
  %2708 = vmatpush.msra.mxu0 %v710
  %2709 = vmatpush.msra.mxu0 %v708
  %2710 = vmatpush.msra.mxu0 %v706
  %2711 = vmatpush.msra.mxu0 %v704
  %2712 = vmatpush.msra.mxu0 %v702
  %2713 = vmatpush.msra.mxu0 %v700
  %2714 = vmatpush.msra.mxu0 %v698
  %2715 = vmatpush.msra.mxu0 %v696
  %2716 = vmatmul.f32.gmra.mxu0 %v2188
  %v2717 = vpop.f32.mrf.mxu0
  %v2718 = vadd.f32 0.0, %v2717
  %2719 = vmatmul.f32.gmra.mxu0 %v2190
  %v2720 = vpop.f32.mrf.mxu0
  %v2721 = vadd.f32 0.0, %v2720
  %2722 = vdwg.mxu0
  %2723 = vmatpush.msra.mxu0 %v758
  %2724 = vmatpush.msra.mxu0 %v756
  %2725 = vmatpush.msra.mxu0 %v754
  %2726 = vmatpush.msra.mxu0 %v752
  %2727 = vmatpush.msra.mxu0 %v750
  %2728 = vmatpush.msra.mxu0 %v748
  %2729 = vmatpush.msra.mxu0 %v746
  %2730 = vmatpush.msra.mxu0 %v744
  %2731 = vmatpush.msra.mxu0 %v742
  %2732 = vmatpush.msra.mxu0 %v740
  %2733 = vmatpush.msra.mxu0 %v738
  %2734 = vmatpush.msra.mxu0 %v736
  %2735 = vmatpush.msra.mxu0 %v734
  %2736 = vmatpush.msra.mxu0 %v732
  %2737 = vmatpush.msra.mxu0 %v730
  %2738 = vmatpush.msra.mxu0 %v728
  %2739 = vmatmul.f32.gmra.mxu0 %v2189
  %v2740 = vpop.f32.mrf.mxu0
  %v2741 = vadd.f32 %v2718, %v2740
  %2742 = vmatmul.f32.gmra.mxu0 %v2191
  %v2743 = vpop.f32.mrf.mxu0
  %v2744 = vadd.f32 %v2721, %v2743
  %2745 = vdwg.mxu0
  %2746 = vmatpush.msra.mxu0 %v727
  %2747 = vmatpush.msra.mxu0 %v725
  %2748 = vmatpush.msra.mxu0 %v723
  %2749 = vmatpush.msra.mxu0 %v721
  %2750 = vmatpush.msra.mxu0 %v719
  %2751 = vmatpush.msra.mxu0 %v717
  %2752 = vmatpush.msra.mxu0 %v715
  %2753 = vmatpush.msra.mxu0 %v713
  %2754 = vmatpush.msra.mxu0 %v711
  %2755 = vmatpush.msra.mxu0 %v709
  %2756 = vmatpush.msra.mxu0 %v707
  %2757 = vmatpush.msra.mxu0 %v705
  %2758 = vmatpush.msra.mxu0 %v703
  %2759 = vmatpush.msra.mxu0 %v701
  %2760 = vmatpush.msra.mxu0 %v699
  %2761 = vmatpush.msra.mxu0 %v697
  %2762 = vmatmul.f32.gmra.mxu0 %v2188
  %v2763 = vpop.f32.mrf.mxu0
  %v2764 = vadd.f32 0.0, %v2763
  %2765 = vmatmul.f32.gmra.mxu0 %v2190
  %v2766 = vpop.f32.mrf.mxu0
  %v2767 = vadd.f32 0.0, %v2766
  %2768 = vdwg.mxu0
  %2769 = vmatpush.msra.mxu0 %v759
  %2770 = vmatpush.msra.mxu0 %v757
  %2771 = vmatpush.msra.mxu0 %v755
  %2772 = vmatpush.msra.mxu0 %v753
  %2773 = vmatpush.msra.mxu0 %v751
  %2774 = vmatpush.msra.mxu0 %v749
  %2775 = vmatpush.msra.mxu0 %v747
  %2776 = vmatpush.msra.mxu0 %v745
  %2777 = vmatpush.msra.mxu0 %v743
  %2778 = vmatpush.msra.mxu0 %v741
  %2779 = vmatpush.msra.mxu0 %v739
  %2780 = vmatpush.msra.mxu0 %v737
  %2781 = vmatpush.msra.mxu0 %v735
  %2782 = vmatpush.msra.mxu0 %v733
  %2783 = vmatpush.msra.mxu0 %v731
  %2784 = vmatpush.msra.mxu0 %v729
  %2785 = vmatmul.f32.gmra.mxu0 %v2189
  %v2786 = vpop.f32.mrf.mxu0
  %v2787 = vadd.f32 %v2764, %v2786
  %2788 = vmatmul.f32.gmra.mxu0 %v2191
  %v2789 = vpop.f32.mrf.mxu0
  %v2790 = vadd.f32 %v2767, %v2789
  %2791 = vdwg.mxu0
  %s2792 = scalar_lea.vmem %s5, 96
  %v2793 = vld [vmem:[%s2792] sm:$0xff]
  %v2794 = vld [vmem:[%s2792 + $0x8] sm:$0xff]
  %v2795 = vld [vmem:[%s2792 + $0x10] sm:$0xff]
  %v2796 = vld [vmem:[%s2792 + $0x18] sm:$0xff]
  %v2798 = vsel %vm2007, %v2793, 0
  %v2801 = vsel %vm2007, %v2794, 0
  %v2804 = vsel %vm2007, %v2795, 0
  %v2807 = vsel %vm2007, %v2796, 0
  %2809 = vmatpush.msra.mxu0 0.0
  %2810 = vmatpush.msra.mxu0 0.0
  %2811 = vmatpush.msra.mxu0 0.0
  %2812 = vmatpush.msra.mxu0 0.0
  %2813 = vmatpush.msra.mxu0 0.0
  %2814 = vmatpush.msra.mxu0 0.0
  %2815 = vmatpush.msra.mxu0 0.0
  %2816 = vmatpush.msra.mxu0 0.0
  %2817 = vmatpush.msra.mxu0 0.0
  %2818 = vmatpush.msra.mxu0 0.0
  %2819 = vmatpush.msra.mxu0 0.0
  %2820 = vmatpush.msra.mxu0 0.0
  %2821 = vmatpush.msra.mxu0 0.0
  %2822 = vmatpush.msra.mxu0 0.0
  %2823 = vmatpush.msra.mxu0 %v2744
  %2824 = vmatpush.msra.mxu0 %v2741
  %2825 = vmatmul.f32.gmra.mxu0 %v2798
  %v2826 = vpop.f32.mrf.mxu0
  %v2827 = vadd.f32 0.0, %v2826
  %2828 = vmatmul.f32.gmra.mxu0 %v2801
  %v2829 = vpop.f32.mrf.mxu0
  %v2830 = vadd.f32 0.0, %v2829
  %2831 = vmatmul.f32.gmra.mxu0 %v2804
  %v2832 = vpop.f32.mrf.mxu0
  %v2833 = vadd.f32 0.0, %v2832
  %2834 = vmatmul.f32.gmra.mxu0 %v2807
  %v2835 = vpop.f32.mrf.mxu0
  %v2836 = vadd.f32 0.0, %v2835
  %2837 = vdwg.mxu0
  %2838 = vmatpush.msra.mxu0 0.0
  %2839 = vmatpush.msra.mxu0 0.0
  %2840 = vmatpush.msra.mxu0 0.0
  %2841 = vmatpush.msra.mxu0 0.0
  %2842 = vmatpush.msra.mxu0 0.0
  %2843 = vmatpush.msra.mxu0 0.0
  %2844 = vmatpush.msra.mxu0 0.0
  %2845 = vmatpush.msra.mxu0 0.0
  %2846 = vmatpush.msra.mxu0 0.0
  %2847 = vmatpush.msra.mxu0 0.0
  %2848 = vmatpush.msra.mxu0 0.0
  %2849 = vmatpush.msra.mxu0 0.0
  %2850 = vmatpush.msra.mxu0 0.0
  %2851 = vmatpush.msra.mxu0 0.0
  %2852 = vmatpush.msra.mxu0 %v2790
  %2853 = vmatpush.msra.mxu0 %v2787
  %2854 = vmatmul.f32.gmra.mxu0 %v2798
  %v2855 = vpop.f32.mrf.mxu0
  %v2856 = vadd.f32 0.0, %v2855
  %2857 = vmatmul.f32.gmra.mxu0 %v2801
  %v2858 = vpop.f32.mrf.mxu0
  %v2859 = vadd.f32 0.0, %v2858
  %2860 = vmatmul.f32.gmra.mxu0 %v2804
  %v2861 = vpop.f32.mrf.mxu0
  %v2862 = vadd.f32 0.0, %v2861
  %2863 = vmatmul.f32.gmra.mxu0 %v2807
  %v2864 = vpop.f32.mrf.mxu0
  %v2865 = vadd.f32 0.0, %v2864
  %2866 = vdwg.mxu0
  %v2867 = vadd.f32 %v2692, %v2827
  %v2868 = vadd.f32 %v2693, %v2856
  %v2869 = vadd.f32 %v2694, %v2830
  %v2870 = vadd.f32 %v2695, %v2859
  %v2871 = vadd.f32 %v2696, %v2833
  %v2872 = vadd.f32 %v2697, %v2862
  %v2873 = vadd.f32 %v2698, %v2836
  %v2874 = vadd.f32 %v2699, %v2865
  %2875 = vmatpush.msra.mxu0 %v941
  %2876 = vmatpush.msra.mxu0 %v939
  %2877 = vmatpush.msra.mxu0 %v937
  %2878 = vmatpush.msra.mxu0 %v935
  %2879 = vmatpush.msra.mxu0 %v933
  %2880 = vmatpush.msra.mxu0 %v931
  %2881 = vmatpush.msra.mxu0 %v929
  %2882 = vmatpush.msra.mxu0 %v927
  %2883 = vmatpush.msra.mxu0 %v925
  %2884 = vmatpush.msra.mxu0 %v923
  %2885 = vmatpush.msra.mxu0 %v921
  %2886 = vmatpush.msra.mxu0 %v919
  %2887 = vmatpush.msra.mxu0 %v917
  %2888 = vmatpush.msra.mxu0 %v915
  %2889 = vmatpush.msra.mxu0 %v913
  %2890 = vmatpush.msra.mxu0 %v911
  %2891 = vmatmul.f32.gmra.mxu0 %v2188
  %v2892 = vpop.f32.mrf.mxu0
  %v2893 = vadd.f32 0.0, %v2892
  %2894 = vmatmul.f32.gmra.mxu0 %v2190
  %v2895 = vpop.f32.mrf.mxu0
  %v2896 = vadd.f32 0.0, %v2895
  %2897 = vdwg.mxu0
  %2898 = vmatpush.msra.mxu0 %v973
  %2899 = vmatpush.msra.mxu0 %v971
  %2900 = vmatpush.msra.mxu0 %v969
  %2901 = vmatpush.msra.mxu0 %v967
  %2902 = vmatpush.msra.mxu0 %v965
  %2903 = vmatpush.msra.mxu0 %v963
  %2904 = vmatpush.msra.mxu0 %v961
  %2905 = vmatpush.msra.mxu0 %v959
  %2906 = vmatpush.msra.mxu0 %v957
  %2907 = vmatpush.msra.mxu0 %v955
  %2908 = vmatpush.msra.mxu0 %v953
  %2909 = vmatpush.msra.mxu0 %v951
  %2910 = vmatpush.msra.mxu0 %v949
  %2911 = vmatpush.msra.mxu0 %v947
  %2912 = vmatpush.msra.mxu0 %v945
  %2913 = vmatpush.msra.mxu0 %v943
  %2914 = vmatmul.f32.gmra.mxu0 %v2189
  %v2915 = vpop.f32.mrf.mxu0
  %v2916 = vadd.f32 %v2893, %v2915
  %2917 = vmatmul.f32.gmra.mxu0 %v2191
  %v2918 = vpop.f32.mrf.mxu0
  %v2919 = vadd.f32 %v2896, %v2918
  %2920 = vdwg.mxu0
  %2921 = vmatpush.msra.mxu0 %v942
  %2922 = vmatpush.msra.mxu0 %v940
  %2923 = vmatpush.msra.mxu0 %v938
  %2924 = vmatpush.msra.mxu0 %v936
  %2925 = vmatpush.msra.mxu0 %v934
  %2926 = vmatpush.msra.mxu0 %v932
  %2927 = vmatpush.msra.mxu0 %v930
  %2928 = vmatpush.msra.mxu0 %v928
  %2929 = vmatpush.msra.mxu0 %v926
  %2930 = vmatpush.msra.mxu0 %v924
  %2931 = vmatpush.msra.mxu0 %v922
  %2932 = vmatpush.msra.mxu0 %v920
  %2933 = vmatpush.msra.mxu0 %v918
  %2934 = vmatpush.msra.mxu0 %v916
  %2935 = vmatpush.msra.mxu0 %v914
  %2936 = vmatpush.msra.mxu0 %v912
  %2937 = vmatmul.f32.gmra.mxu0 %v2188
  %v2938 = vpop.f32.mrf.mxu0
  %v2939 = vadd.f32 0.0, %v2938
  %2940 = vmatmul.f32.gmra.mxu0 %v2190
  %v2941 = vpop.f32.mrf.mxu0
  %v2942 = vadd.f32 0.0, %v2941
  %2943 = vdwg.mxu0
  %2944 = vmatpush.msra.mxu0 %v974
  %2945 = vmatpush.msra.mxu0 %v972
  %2946 = vmatpush.msra.mxu0 %v970
  %2947 = vmatpush.msra.mxu0 %v968
  %2948 = vmatpush.msra.mxu0 %v966
  %2949 = vmatpush.msra.mxu0 %v964
  %2950 = vmatpush.msra.mxu0 %v962
  %2951 = vmatpush.msra.mxu0 %v960
  %2952 = vmatpush.msra.mxu0 %v958
  %2953 = vmatpush.msra.mxu0 %v956
  %2954 = vmatpush.msra.mxu0 %v954
  %2955 = vmatpush.msra.mxu0 %v952
  %2956 = vmatpush.msra.mxu0 %v950
  %2957 = vmatpush.msra.mxu0 %v948
  %2958 = vmatpush.msra.mxu0 %v946
  %2959 = vmatpush.msra.mxu0 %v944
  %2960 = vmatmul.f32.gmra.mxu0 %v2189
  %v2961 = vpop.f32.mrf.mxu0
  %v2962 = vadd.f32 %v2939, %v2961
  %2963 = vmatmul.f32.gmra.mxu0 %v2191
  %v2964 = vpop.f32.mrf.mxu0
  %v2965 = vadd.f32 %v2942, %v2964
  %2966 = vdwg.mxu0
  %s2967 = scalar_lea.vmem %s5, 128
  %v2968 = vld [vmem:[%s2967] sm:$0xff]
  %v2969 = vld [vmem:[%s2967 + $0x8] sm:$0xff]
  %v2970 = vld [vmem:[%s2967 + $0x10] sm:$0xff]
  %v2971 = vld [vmem:[%s2967 + $0x18] sm:$0xff]
  %v2973 = vsel %vm2007, %v2968, 0
  %v2976 = vsel %vm2007, %v2969, 0
  %v2979 = vsel %vm2007, %v2970, 0
  %v2982 = vsel %vm2007, %v2971, 0
  %2984 = vmatpush.msra.mxu0 0.0
  %2985 = vmatpush.msra.mxu0 0.0
  %2986 = vmatpush.msra.mxu0 0.0
  %2987 = vmatpush.msra.mxu0 0.0
  %2988 = vmatpush.msra.mxu0 0.0
  %2989 = vmatpush.msra.mxu0 0.0
  %2990 = vmatpush.msra.mxu0 0.0
  %2991 = vmatpush.msra.mxu0 0.0
  %2992 = vmatpush.msra.mxu0 0.0
  %2993 = vmatpush.msra.mxu0 0.0
  %2994 = vmatpush.msra.mxu0 0.0
  %2995 = vmatpush.msra.mxu0 0.0
  %2996 = vmatpush.msra.mxu0 0.0
  %2997 = vmatpush.msra.mxu0 0.0
  %2998 = vmatpush.msra.mxu0 %v2919
  %2999 = vmatpush.msra.mxu0 %v2916
  %3000 = vmatmul.f32.gmra.mxu0 %v2973
  %v3001 = vpop.f32.mrf.mxu0
  %v3002 = vadd.f32 0.0, %v3001
  %3003 = vmatmul.f32.gmra.mxu0 %v2976
  %v3004 = vpop.f32.mrf.mxu0
  %v3005 = vadd.f32 0.0, %v3004
  %3006 = vmatmul.f32.gmra.mxu0 %v2979
  %v3007 = vpop.f32.mrf.mxu0
  %v3008 = vadd.f32 0.0, %v3007
  %3009 = vmatmul.f32.gmra.mxu0 %v2982
  %v3010 = vpop.f32.mrf.mxu0
  %v3011 = vadd.f32 0.0, %v3010
  %3012 = vdwg.mxu0
  %3013 = vmatpush.msra.mxu0 0.0
  %3014 = vmatpush.msra.mxu0 0.0
  %3015 = vmatpush.msra.mxu0 0.0
  %3016 = vmatpush.msra.mxu0 0.0
  %3017 = vmatpush.msra.mxu0 0.0
  %3018 = vmatpush.msra.mxu0 0.0
  %3019 = vmatpush.msra.mxu0 0.0
  %3020 = vmatpush.msra.mxu0 0.0
  %3021 = vmatpush.msra.mxu0 0.0
  %3022 = vmatpush.msra.mxu0 0.0
  %3023 = vmatpush.msra.mxu0 0.0
  %3024 = vmatpush.msra.mxu0 0.0
  %3025 = vmatpush.msra.mxu0 0.0
  %3026 = vmatpush.msra.mxu0 0.0
  %3027 = vmatpush.msra.mxu0 %v2965
  %3028 = vmatpush.msra.mxu0 %v2962
  %3029 = vmatmul.f32.gmra.mxu0 %v2973
  %v3030 = vpop.f32.mrf.mxu0
  %v3031 = vadd.f32 0.0, %v3030
  %3032 = vmatmul.f32.gmra.mxu0 %v2976
  %v3033 = vpop.f32.mrf.mxu0
  %v3034 = vadd.f32 0.0, %v3033
  %3035 = vmatmul.f32.gmra.mxu0 %v2979
  %v3036 = vpop.f32.mrf.mxu0
  %v3037 = vadd.f32 0.0, %v3036
  %3038 = vmatmul.f32.gmra.mxu0 %v2982
  %v3039 = vpop.f32.mrf.mxu0
  %v3040 = vadd.f32 0.0, %v3039
  %3041 = vdwg.mxu0
  %v3042 = vadd.f32 %v2867, %v3002
  %v3043 = vadd.f32 %v2868, %v3031
  %v3044 = vadd.f32 %v2869, %v3005
  %v3045 = vadd.f32 %v2870, %v3034
  %v3046 = vadd.f32 %v2871, %v3008
  %v3047 = vadd.f32 %v2872, %v3037
  %v3048 = vadd.f32 %v2873, %v3011
  %v3049 = vadd.f32 %v2874, %v3040
  %3050 = vmatpush.msra.mxu0 %v1156
  %3051 = vmatpush.msra.mxu0 %v1154
  %3052 = vmatpush.msra.mxu0 %v1152
  %3053 = vmatpush.msra.mxu0 %v1150
  %3054 = vmatpush.msra.mxu0 %v1148
  %3055 = vmatpush.msra.mxu0 %v1146
  %3056 = vmatpush.msra.mxu0 %v1144
  %3057 = vmatpush.msra.mxu0 %v1142
  %3058 = vmatpush.msra.mxu0 %v1140
  %3059 = vmatpush.msra.mxu0 %v1138
  %3060 = vmatpush.msra.mxu0 %v1136
  %3061 = vmatpush.msra.mxu0 %v1134
  %3062 = vmatpush.msra.mxu0 %v1132
  %3063 = vmatpush.msra.mxu0 %v1130
  %3064 = vmatpush.msra.mxu0 %v1128
  %3065 = vmatpush.msra.mxu0 %v1126
  %3066 = vmatmul.f32.gmra.mxu0 %v2188
  %v3067 = vpop.f32.mrf.mxu0
  %v3068 = vadd.f32 0.0, %v3067
  %3069 = vmatmul.f32.gmra.mxu0 %v2190
  %v3070 = vpop.f32.mrf.mxu0
  %v3071 = vadd.f32 0.0, %v3070
  %3072 = vdwg.mxu0
  %3073 = vmatpush.msra.mxu0 %v1188
  %3074 = vmatpush.msra.mxu0 %v1186
  %3075 = vmatpush.msra.mxu0 %v1184
  %3076 = vmatpush.msra.mxu0 %v1182
  %3077 = vmatpush.msra.mxu0 %v1180
  %3078 = vmatpush.msra.mxu0 %v1178
  %3079 = vmatpush.msra.mxu0 %v1176
  %3080 = vmatpush.msra.mxu0 %v1174
  %3081 = vmatpush.msra.mxu0 %v1172
  %3082 = vmatpush.msra.mxu0 %v1170
  %3083 = vmatpush.msra.mxu0 %v1168
  %3084 = vmatpush.msra.mxu0 %v1166
  %3085 = vmatpush.msra.mxu0 %v1164
  %3086 = vmatpush.msra.mxu0 %v1162
  %3087 = vmatpush.msra.mxu0 %v1160
  %3088 = vmatpush.msra.mxu0 %v1158
  %3089 = vmatmul.f32.gmra.mxu0 %v2189
  %v3090 = vpop.f32.mrf.mxu0
  %v3091 = vadd.f32 %v3068, %v3090
  %3092 = vmatmul.f32.gmra.mxu0 %v2191
  %v3093 = vpop.f32.mrf.mxu0
  %v3094 = vadd.f32 %v3071, %v3093
  %3095 = vdwg.mxu0
  %3096 = vmatpush.msra.mxu0 %v1157
  %3097 = vmatpush.msra.mxu0 %v1155
  %3098 = vmatpush.msra.mxu0 %v1153
  %3099 = vmatpush.msra.mxu0 %v1151
  %3100 = vmatpush.msra.mxu0 %v1149
  %3101 = vmatpush.msra.mxu0 %v1147
  %3102 = vmatpush.msra.mxu0 %v1145
  %3103 = vmatpush.msra.mxu0 %v1143
  %3104 = vmatpush.msra.mxu0 %v1141
  %3105 = vmatpush.msra.mxu0 %v1139
  %3106 = vmatpush.msra.mxu0 %v1137
  %3107 = vmatpush.msra.mxu0 %v1135
  %3108 = vmatpush.msra.mxu0 %v1133
  %3109 = vmatpush.msra.mxu0 %v1131
  %3110 = vmatpush.msra.mxu0 %v1129
  %3111 = vmatpush.msra.mxu0 %v1127
  %3112 = vmatmul.f32.gmra.mxu0 %v2188
  %v3113 = vpop.f32.mrf.mxu0
  %v3114 = vadd.f32 0.0, %v3113
  %3115 = vmatmul.f32.gmra.mxu0 %v2190
  %v3116 = vpop.f32.mrf.mxu0
  %v3117 = vadd.f32 0.0, %v3116
  %3118 = vdwg.mxu0
  %3119 = vmatpush.msra.mxu0 %v1189
  %3120 = vmatpush.msra.mxu0 %v1187
  %3121 = vmatpush.msra.mxu0 %v1185
  %3122 = vmatpush.msra.mxu0 %v1183
  %3123 = vmatpush.msra.mxu0 %v1181
  %3124 = vmatpush.msra.mxu0 %v1179
  %3125 = vmatpush.msra.mxu0 %v1177
  %3126 = vmatpush.msra.mxu0 %v1175
  %3127 = vmatpush.msra.mxu0 %v1173
  %3128 = vmatpush.msra.mxu0 %v1171
  %3129 = vmatpush.msra.mxu0 %v1169
  %3130 = vmatpush.msra.mxu0 %v1167
  %3131 = vmatpush.msra.mxu0 %v1165
  %3132 = vmatpush.msra.mxu0 %v1163
  %3133 = vmatpush.msra.mxu0 %v1161
  %3134 = vmatpush.msra.mxu0 %v1159
  %3135 = vmatmul.f32.gmra.mxu0 %v2189
  %v3136 = vpop.f32.mrf.mxu0
  %v3137 = vadd.f32 %v3114, %v3136
  %3138 = vmatmul.f32.gmra.mxu0 %v2191
  %v3139 = vpop.f32.mrf.mxu0
  %v3140 = vadd.f32 %v3117, %v3139
  %3141 = vdwg.mxu0
  %s3142 = scalar_lea.vmem %s5, 160
  %v3143 = vld [vmem:[%s3142] sm:$0xff]
  %v3144 = vld [vmem:[%s3142 + $0x8] sm:$0xff]
  %v3145 = vld [vmem:[%s3142 + $0x10] sm:$0xff]
  %v3146 = vld [vmem:[%s3142 + $0x18] sm:$0xff]
  %v3148 = vsel %vm2007, %v3143, 0
  %v3151 = vsel %vm2007, %v3144, 0
  %v3154 = vsel %vm2007, %v3145, 0
  %v3157 = vsel %vm2007, %v3146, 0
  %3159 = vmatpush.msra.mxu0 0.0
  %3160 = vmatpush.msra.mxu0 0.0
  %3161 = vmatpush.msra.mxu0 0.0
  %3162 = vmatpush.msra.mxu0 0.0
  %3163 = vmatpush.msra.mxu0 0.0
  %3164 = vmatpush.msra.mxu0 0.0
  %3165 = vmatpush.msra.mxu0 0.0
  %3166 = vmatpush.msra.mxu0 0.0
  %3167 = vmatpush.msra.mxu0 0.0
  %3168 = vmatpush.msra.mxu0 0.0
  %3169 = vmatpush.msra.mxu0 0.0
  %3170 = vmatpush.msra.mxu0 0.0
  %3171 = vmatpush.msra.mxu0 0.0
  %3172 = vmatpush.msra.mxu0 0.0
  %3173 = vmatpush.msra.mxu0 %v3094
  %3174 = vmatpush.msra.mxu0 %v3091
  %3175 = vmatmul.f32.gmra.mxu0 %v3148
  %v3176 = vpop.f32.mrf.mxu0
  %v3177 = vadd.f32 0.0, %v3176
  %3178 = vmatmul.f32.gmra.mxu0 %v3151
  %v3179 = vpop.f32.mrf.mxu0
  %v3180 = vadd.f32 0.0, %v3179
  %3181 = vmatmul.f32.gmra.mxu0 %v3154
  %v3182 = vpop.f32.mrf.mxu0
  %v3183 = vadd.f32 0.0, %v3182
  %3184 = vmatmul.f32.gmra.mxu0 %v3157
  %v3185 = vpop.f32.mrf.mxu0
  %v3186 = vadd.f32 0.0, %v3185
  %3187 = vdwg.mxu0
  %3188 = vmatpush.msra.mxu0 0.0
  %3189 = vmatpush.msra.mxu0 0.0
  %3190 = vmatpush.msra.mxu0 0.0
  %3191 = vmatpush.msra.mxu0 0.0
  %3192 = vmatpush.msra.mxu0 0.0
  %3193 = vmatpush.msra.mxu0 0.0
  %3194 = vmatpush.msra.mxu0 0.0
  %3195 = vmatpush.msra.mxu0 0.0
  %3196 = vmatpush.msra.mxu0 0.0
  %3197 = vmatpush.msra.mxu0 0.0
  %3198 = vmatpush.msra.mxu0 0.0
  %3199 = vmatpush.msra.mxu0 0.0
  %3200 = vmatpush.msra.mxu0 0.0
  %3201 = vmatpush.msra.mxu0 0.0
  %3202 = vmatpush.msra.mxu0 %v3140
  %3203 = vmatpush.msra.mxu0 %v3137
  %3204 = vmatmul.f32.gmra.mxu0 %v3148
  %v3205 = vpop.f32.mrf.mxu0
  %v3206 = vadd.f32 0.0, %v3205
  %3207 = vmatmul.f32.gmra.mxu0 %v3151
  %v3208 = vpop.f32.mrf.mxu0
  %v3209 = vadd.f32 0.0, %v3208
  %3210 = vmatmul.f32.gmra.mxu0 %v3154
  %v3211 = vpop.f32.mrf.mxu0
  %v3212 = vadd.f32 0.0, %v3211
  %3213 = vmatmul.f32.gmra.mxu0 %v3157
  %v3214 = vpop.f32.mrf.mxu0
  %v3215 = vadd.f32 0.0, %v3214
  %3216 = vdwg.mxu0
  %v3217 = vadd.f32 %v3042, %v3177
  %v3218 = vadd.f32 %v3043, %v3206
  %v3219 = vadd.f32 %v3044, %v3180
  %v3220 = vadd.f32 %v3045, %v3209
  %v3221 = vadd.f32 %v3046, %v3183
  %v3222 = vadd.f32 %v3047, %v3212
  %v3223 = vadd.f32 %v3048, %v3186
  %v3224 = vadd.f32 %v3049, %v3215
  %3225 = vmatpush.msra.mxu0 %v1371
  %3226 = vmatpush.msra.mxu0 %v1369
  %3227 = vmatpush.msra.mxu0 %v1367
  %3228 = vmatpush.msra.mxu0 %v1365
  %3229 = vmatpush.msra.mxu0 %v1363
  %3230 = vmatpush.msra.mxu0 %v1361
  %3231 = vmatpush.msra.mxu0 %v1359
  %3232 = vmatpush.msra.mxu0 %v1357
  %3233 = vmatpush.msra.mxu0 %v1355
  %3234 = vmatpush.msra.mxu0 %v1353
  %3235 = vmatpush.msra.mxu0 %v1351
  %3236 = vmatpush.msra.mxu0 %v1349
  %3237 = vmatpush.msra.mxu0 %v1347
  %3238 = vmatpush.msra.mxu0 %v1345
  %3239 = vmatpush.msra.mxu0 %v1343
  %3240 = vmatpush.msra.mxu0 %v1341
  %3241 = vmatmul.f32.gmra.mxu0 %v2188
  %v3242 = vpop.f32.mrf.mxu0
  %v3243 = vadd.f32 0.0, %v3242
  %3244 = vmatmul.f32.gmra.mxu0 %v2190
  %v3245 = vpop.f32.mrf.mxu0
  %v3246 = vadd.f32 0.0, %v3245
  %3247 = vdwg.mxu0
  %3248 = vmatpush.msra.mxu0 %v1403
  %3249 = vmatpush.msra.mxu0 %v1401
  %3250 = vmatpush.msra.mxu0 %v1399
  %3251 = vmatpush.msra.mxu0 %v1397
  %3252 = vmatpush.msra.mxu0 %v1395
  %3253 = vmatpush.msra.mxu0 %v1393
  %3254 = vmatpush.msra.mxu0 %v1391
  %3255 = vmatpush.msra.mxu0 %v1389
  %3256 = vmatpush.msra.mxu0 %v1387
  %3257 = vmatpush.msra.mxu0 %v1385
  %3258 = vmatpush.msra.mxu0 %v1383
  %3259 = vmatpush.msra.mxu0 %v1381
  %3260 = vmatpush.msra.mxu0 %v1379
  %3261 = vmatpush.msra.mxu0 %v1377
  %3262 = vmatpush.msra.mxu0 %v1375
  %3263 = vmatpush.msra.mxu0 %v1373
  %3264 = vmatmul.f32.gmra.mxu0 %v2189
  %v3265 = vpop.f32.mrf.mxu0
  %v3266 = vadd.f32 %v3243, %v3265
  %3267 = vmatmul.f32.gmra.mxu0 %v2191
  %v3268 = vpop.f32.mrf.mxu0
  %v3269 = vadd.f32 %v3246, %v3268
  %3270 = vdwg.mxu0
  %3271 = vmatpush.msra.mxu0 %v1372
  %3272 = vmatpush.msra.mxu0 %v1370
  %3273 = vmatpush.msra.mxu0 %v1368
  %3274 = vmatpush.msra.mxu0 %v1366
  %3275 = vmatpush.msra.mxu0 %v1364
  %3276 = vmatpush.msra.mxu0 %v1362
  %3277 = vmatpush.msra.mxu0 %v1360
  %3278 = vmatpush.msra.mxu0 %v1358
  %3279 = vmatpush.msra.mxu0 %v1356
  %3280 = vmatpush.msra.mxu0 %v1354
  %3281 = vmatpush.msra.mxu0 %v1352
  %3282 = vmatpush.msra.mxu0 %v1350
  %3283 = vmatpush.msra.mxu0 %v1348
  %3284 = vmatpush.msra.mxu0 %v1346
  %3285 = vmatpush.msra.mxu0 %v1344
  %3286 = vmatpush.msra.mxu0 %v1342
  %3287 = vmatmul.f32.gmra.mxu0 %v2188
  %v3288 = vpop.f32.mrf.mxu0
  %v3289 = vadd.f32 0.0, %v3288
  %3290 = vmatmul.f32.gmra.mxu0 %v2190
  %v3291 = vpop.f32.mrf.mxu0
  %v3292 = vadd.f32 0.0, %v3291
  %3293 = vdwg.mxu0
  %3294 = vmatpush.msra.mxu0 %v1404
  %3295 = vmatpush.msra.mxu0 %v1402
  %3296 = vmatpush.msra.mxu0 %v1400
  %3297 = vmatpush.msra.mxu0 %v1398
  %3298 = vmatpush.msra.mxu0 %v1396
  %3299 = vmatpush.msra.mxu0 %v1394
  %3300 = vmatpush.msra.mxu0 %v1392
  %3301 = vmatpush.msra.mxu0 %v1390
  %3302 = vmatpush.msra.mxu0 %v1388
  %3303 = vmatpush.msra.mxu0 %v1386
  %3304 = vmatpush.msra.mxu0 %v1384
  %3305 = vmatpush.msra.mxu0 %v1382
  %3306 = vmatpush.msra.mxu0 %v1380
  %3307 = vmatpush.msra.mxu0 %v1378
  %3308 = vmatpush.msra.mxu0 %v1376
  %3309 = vmatpush.msra.mxu0 %v1374
  %3310 = vmatmul.f32.gmra.mxu0 %v2189
  %v3311 = vpop.f32.mrf.mxu0
  %v3312 = vadd.f32 %v3289, %v3311
  %3313 = vmatmul.f32.gmra.mxu0 %v2191
  %v3314 = vpop.f32.mrf.mxu0
  %v3315 = vadd.f32 %v3292, %v3314
  %3316 = vdwg.mxu0
  %s3317 = scalar_lea.vmem %s5, 192
  %v3318 = vld [vmem:[%s3317] sm:$0xff]
  %v3319 = vld [vmem:[%s3317 + $0x8] sm:$0xff]
  %v3320 = vld [vmem:[%s3317 + $0x10] sm:$0xff]
  %v3321 = vld [vmem:[%s3317 + $0x18] sm:$0xff]
  %v3323 = vsel %vm2007, %v3318, 0
  %v3326 = vsel %vm2007, %v3319, 0
  %v3329 = vsel %vm2007, %v3320, 0
  %v3332 = vsel %vm2007, %v3321, 0
  %3334 = vmatpush.msra.mxu0 0.0
  %3335 = vmatpush.msra.mxu0 0.0
  %3336 = vmatpush.msra.mxu0 0.0
  %3337 = vmatpush.msra.mxu0 0.0
  %3338 = vmatpush.msra.mxu0 0.0
  %3339 = vmatpush.msra.mxu0 0.0
  %3340 = vmatpush.msra.mxu0 0.0
  %3341 = vmatpush.msra.mxu0 0.0
  %3342 = vmatpush.msra.mxu0 0.0
  %3343 = vmatpush.msra.mxu0 0.0
  %3344 = vmatpush.msra.mxu0 0.0
  %3345 = vmatpush.msra.mxu0 0.0
  %3346 = vmatpush.msra.mxu0 0.0
  %3347 = vmatpush.msra.mxu0 0.0
  %3348 = vmatpush.msra.mxu0 %v3269
  %3349 = vmatpush.msra.mxu0 %v3266
  %3350 = vmatmul.f32.gmra.mxu0 %v3323
  %v3351 = vpop.f32.mrf.mxu0
  %v3352 = vadd.f32 0.0, %v3351
  %3353 = vmatmul.f32.gmra.mxu0 %v3326
  %v3354 = vpop.f32.mrf.mxu0
  %v3355 = vadd.f32 0.0, %v3354
  %3356 = vmatmul.f32.gmra.mxu0 %v3329
  %v3357 = vpop.f32.mrf.mxu0
  %v3358 = vadd.f32 0.0, %v3357
  %3359 = vmatmul.f32.gmra.mxu0 %v3332
  %v3360 = vpop.f32.mrf.mxu0
  %v3361 = vadd.f32 0.0, %v3360
  %3362 = vdwg.mxu0
  %3363 = vmatpush.msra.mxu0 0.0
  %3364 = vmatpush.msra.mxu0 0.0
  %3365 = vmatpush.msra.mxu0 0.0
  %3366 = vmatpush.msra.mxu0 0.0
  %3367 = vmatpush.msra.mxu0 0.0
  %3368 = vmatpush.msra.mxu0 0.0
  %3369 = vmatpush.msra.mxu0 0.0
  %3370 = vmatpush.msra.mxu0 0.0
  %3371 = vmatpush.msra.mxu0 0.0
  %3372 = vmatpush.msra.mxu0 0.0
  %3373 = vmatpush.msra.mxu0 0.0
  %3374 = vmatpush.msra.mxu0 0.0
  %3375 = vmatpush.msra.mxu0 0.0
  %3376 = vmatpush.msra.mxu0 0.0
  %3377 = vmatpush.msra.mxu0 %v3315
  %3378 = vmatpush.msra.mxu0 %v3312
  %3379 = vmatmul.f32.gmra.mxu0 %v3323
  %v3380 = vpop.f32.mrf.mxu0
  %v3381 = vadd.f32 0.0, %v3380
  %3382 = vmatmul.f32.gmra.mxu0 %v3326
  %v3383 = vpop.f32.mrf.mxu0
  %v3384 = vadd.f32 0.0, %v3383
  %3385 = vmatmul.f32.gmra.mxu0 %v3329
  %v3386 = vpop.f32.mrf.mxu0
  %v3387 = vadd.f32 0.0, %v3386
  %3388 = vmatmul.f32.gmra.mxu0 %v3332
  %v3389 = vpop.f32.mrf.mxu0
  %v3390 = vadd.f32 0.0, %v3389
  %3391 = vdwg.mxu0
  %v3392 = vadd.f32 %v3217, %v3352
  %v3393 = vadd.f32 %v3218, %v3381
  %v3394 = vadd.f32 %v3219, %v3355
  %v3395 = vadd.f32 %v3220, %v3384
  %v3396 = vadd.f32 %v3221, %v3358
  %v3397 = vadd.f32 %v3222, %v3387
  %v3398 = vadd.f32 %v3223, %v3361
  %v3399 = vadd.f32 %v3224, %v3390
  %3400 = vmatpush.msra.mxu0 %v1586
  %3401 = vmatpush.msra.mxu0 %v1584
  %3402 = vmatpush.msra.mxu0 %v1582
  %3403 = vmatpush.msra.mxu0 %v1580
  %3404 = vmatpush.msra.mxu0 %v1578
  %3405 = vmatpush.msra.mxu0 %v1576
  %3406 = vmatpush.msra.mxu0 %v1574
  %3407 = vmatpush.msra.mxu0 %v1572
  %3408 = vmatpush.msra.mxu0 %v1570
  %3409 = vmatpush.msra.mxu0 %v1568
  %3410 = vmatpush.msra.mxu0 %v1566
  %3411 = vmatpush.msra.mxu0 %v1564
  %3412 = vmatpush.msra.mxu0 %v1562
  %3413 = vmatpush.msra.mxu0 %v1560
  %3414 = vmatpush.msra.mxu0 %v1558
  %3415 = vmatpush.msra.mxu0 %v1556
  %3416 = vmatmul.f32.gmra.mxu0 %v2188
  %v3417 = vpop.f32.mrf.mxu0
  %v3418 = vadd.f32 0.0, %v3417
  %3419 = vmatmul.f32.gmra.mxu0 %v2190
  %v3420 = vpop.f32.mrf.mxu0
  %v3421 = vadd.f32 0.0, %v3420
  %3422 = vdwg.mxu0
  %3423 = vmatpush.msra.mxu0 %v1618
  %3424 = vmatpush.msra.mxu0 %v1616
  %3425 = vmatpush.msra.mxu0 %v1614
  %3426 = vmatpush.msra.mxu0 %v1612
  %3427 = vmatpush.msra.mxu0 %v1610
  %3428 = vmatpush.msra.mxu0 %v1608
  %3429 = vmatpush.msra.mxu0 %v1606
  %3430 = vmatpush.msra.mxu0 %v1604
  %3431 = vmatpush.msra.mxu0 %v1602
  %3432 = vmatpush.msra.mxu0 %v1600
  %3433 = vmatpush.msra.mxu0 %v1598
  %3434 = vmatpush.msra.mxu0 %v1596
  %3435 = vmatpush.msra.mxu0 %v1594
  %3436 = vmatpush.msra.mxu0 %v1592
  %3437 = vmatpush.msra.mxu0 %v1590
  %3438 = vmatpush.msra.mxu0 %v1588
  %3439 = vmatmul.f32.gmra.mxu0 %v2189
  %v3440 = vpop.f32.mrf.mxu0
  %v3441 = vadd.f32 %v3418, %v3440
  %3442 = vmatmul.f32.gmra.mxu0 %v2191
  %v3443 = vpop.f32.mrf.mxu0
  %v3444 = vadd.f32 %v3421, %v3443
  %3445 = vdwg.mxu0
  %3446 = vmatpush.msra.mxu0 %v1587
  %3447 = vmatpush.msra.mxu0 %v1585
  %3448 = vmatpush.msra.mxu0 %v1583
  %3449 = vmatpush.msra.mxu0 %v1581
  %3450 = vmatpush.msra.mxu0 %v1579
  %3451 = vmatpush.msra.mxu0 %v1577
  %3452 = vmatpush.msra.mxu0 %v1575
  %3453 = vmatpush.msra.mxu0 %v1573
  %3454 = vmatpush.msra.mxu0 %v1571
  %3455 = vmatpush.msra.mxu0 %v1569
  %3456 = vmatpush.msra.mxu0 %v1567
  %3457 = vmatpush.msra.mxu0 %v1565
  %3458 = vmatpush.msra.mxu0 %v1563
  %3459 = vmatpush.msra.mxu0 %v1561
  %3460 = vmatpush.msra.mxu0 %v1559
  %3461 = vmatpush.msra.mxu0 %v1557
  %3462 = vmatmul.f32.gmra.mxu0 %v2188
  %v3463 = vpop.f32.mrf.mxu0
  %v3464 = vadd.f32 0.0, %v3463
  %3465 = vmatmul.f32.gmra.mxu0 %v2190
  %v3466 = vpop.f32.mrf.mxu0
  %v3467 = vadd.f32 0.0, %v3466
  %3468 = vdwg.mxu0
  %3469 = vmatpush.msra.mxu0 %v1619
  %3470 = vmatpush.msra.mxu0 %v1617
  %3471 = vmatpush.msra.mxu0 %v1615
  %3472 = vmatpush.msra.mxu0 %v1613
  %3473 = vmatpush.msra.mxu0 %v1611
  %3474 = vmatpush.msra.mxu0 %v1609
  %3475 = vmatpush.msra.mxu0 %v1607
  %3476 = vmatpush.msra.mxu0 %v1605
  %3477 = vmatpush.msra.mxu0 %v1603
  %3478 = vmatpush.msra.mxu0 %v1601
  %3479 = vmatpush.msra.mxu0 %v1599
  %3480 = vmatpush.msra.mxu0 %v1597
  %3481 = vmatpush.msra.mxu0 %v1595
  %3482 = vmatpush.msra.mxu0 %v1593
  %3483 = vmatpush.msra.mxu0 %v1591
  %3484 = vmatpush.msra.mxu0 %v1589
  %3485 = vmatmul.f32.gmra.mxu0 %v2189
  %v3486 = vpop.f32.mrf.mxu0
  %v3487 = vadd.f32 %v3464, %v3486
  %3488 = vmatmul.f32.gmra.mxu0 %v2191
  %v3489 = vpop.f32.mrf.mxu0
  %v3490 = vadd.f32 %v3467, %v3489
  %3491 = vdwg.mxu0
  %s3492 = scalar_lea.vmem %s5, 224
  %v3493 = vld [vmem:[%s3492] sm:$0xff]
  %v3494 = vld [vmem:[%s3492 + $0x8] sm:$0xff]
  %v3495 = vld [vmem:[%s3492 + $0x10] sm:$0xff]
  %v3496 = vld [vmem:[%s3492 + $0x18] sm:$0xff]
  %v3498 = vsel %vm2007, %v3493, 0
  %v3501 = vsel %vm2007, %v3494, 0
  %v3504 = vsel %vm2007, %v3495, 0
  %v3507 = vsel %vm2007, %v3496, 0
  %3509 = vmatpush.msra.mxu0 0.0
  %3510 = vmatpush.msra.mxu0 0.0
  %3511 = vmatpush.msra.mxu0 0.0
  %3512 = vmatpush.msra.mxu0 0.0
  %3513 = vmatpush.msra.mxu0 0.0
  %3514 = vmatpush.msra.mxu0 0.0
  %3515 = vmatpush.msra.mxu0 0.0
  %3516 = vmatpush.msra.mxu0 0.0
  %3517 = vmatpush.msra.mxu0 0.0
  %3518 = vmatpush.msra.mxu0 0.0
  %3519 = vmatpush.msra.mxu0 0.0
  %3520 = vmatpush.msra.mxu0 0.0
  %3521 = vmatpush.msra.mxu0 0.0
  %3522 = vmatpush.msra.mxu0 0.0
  %3523 = vmatpush.msra.mxu0 %v3444
  %3524 = vmatpush.msra.mxu0 %v3441
  %3525 = vmatmul.f32.gmra.mxu0 %v3498
  %v3526 = vpop.f32.mrf.mxu0
  %v3527 = vadd.f32 0.0, %v3526
  %3528 = vmatmul.f32.gmra.mxu0 %v3501
  %v3529 = vpop.f32.mrf.mxu0
  %v3530 = vadd.f32 0.0, %v3529
  %3531 = vmatmul.f32.gmra.mxu0 %v3504
  %v3532 = vpop.f32.mrf.mxu0
  %v3533 = vadd.f32 0.0, %v3532
  %3534 = vmatmul.f32.gmra.mxu0 %v3507
  %v3535 = vpop.f32.mrf.mxu0
  %v3536 = vadd.f32 0.0, %v3535
  %3537 = vdwg.mxu0
  %3538 = vmatpush.msra.mxu0 0.0
  %3539 = vmatpush.msra.mxu0 0.0
  %3540 = vmatpush.msra.mxu0 0.0
  %3541 = vmatpush.msra.mxu0 0.0
  %3542 = vmatpush.msra.mxu0 0.0
  %3543 = vmatpush.msra.mxu0 0.0
  %3544 = vmatpush.msra.mxu0 0.0
  %3545 = vmatpush.msra.mxu0 0.0
  %3546 = vmatpush.msra.mxu0 0.0
  %3547 = vmatpush.msra.mxu0 0.0
  %3548 = vmatpush.msra.mxu0 0.0
  %3549 = vmatpush.msra.mxu0 0.0
  %3550 = vmatpush.msra.mxu0 0.0
  %3551 = vmatpush.msra.mxu0 0.0
  %3552 = vmatpush.msra.mxu0 %v3490
  %3553 = vmatpush.msra.mxu0 %v3487
  %3554 = vmatmul.f32.gmra.mxu0 %v3498
  %v3555 = vpop.f32.mrf.mxu0
  %v3556 = vadd.f32 0.0, %v3555
  %3557 = vmatmul.f32.gmra.mxu0 %v3501
  %v3558 = vpop.f32.mrf.mxu0
  %v3559 = vadd.f32 0.0, %v3558
  %3560 = vmatmul.f32.gmra.mxu0 %v3504
  %v3561 = vpop.f32.mrf.mxu0
  %v3562 = vadd.f32 0.0, %v3561
  %3563 = vmatmul.f32.gmra.mxu0 %v3507
  %v3564 = vpop.f32.mrf.mxu0
  %v3565 = vadd.f32 0.0, %v3564
  %3566 = vdwg.mxu0
  %v3567 = vadd.f32 %v3392, %v3527
  %v3568 = vadd.f32 %v3393, %v3556
  %v3569 = vadd.f32 %v3394, %v3530
  %v3570 = vadd.f32 %v3395, %v3559
  %v3571 = vadd.f32 %v3396, %v3533
  %v3572 = vadd.f32 %v3397, %v3562
  %v3573 = vadd.f32 %v3398, %v3536
  %v3574 = vadd.f32 %v3399, %v3565
  %3575 = vmatpush.msra.mxu0 %v1801
  %3576 = vmatpush.msra.mxu0 %v1799
  %3577 = vmatpush.msra.mxu0 %v1797
  %3578 = vmatpush.msra.mxu0 %v1795
  %3579 = vmatpush.msra.mxu0 %v1793
  %3580 = vmatpush.msra.mxu0 %v1791
  %3581 = vmatpush.msra.mxu0 %v1789
  %3582 = vmatpush.msra.mxu0 %v1787
  %3583 = vmatpush.msra.mxu0 %v1785
  %3584 = vmatpush.msra.mxu0 %v1783
  %3585 = vmatpush.msra.mxu0 %v1781
  %3586 = vmatpush.msra.mxu0 %v1779
  %3587 = vmatpush.msra.mxu0 %v1777
  %3588 = vmatpush.msra.mxu0 %v1775
  %3589 = vmatpush.msra.mxu0 %v1773
  %3590 = vmatpush.msra.mxu0 %v1771
  %3591 = vmatmul.f32.gmra.mxu0 %v2188
  %v3592 = vpop.f32.mrf.mxu0
  %v3593 = vadd.f32 0.0, %v3592
  %3594 = vmatmul.f32.gmra.mxu0 %v2190
  %v3595 = vpop.f32.mrf.mxu0
  %v3596 = vadd.f32 0.0, %v3595
  %3597 = vdwg.mxu0
  %3598 = vmatpush.msra.mxu0 %v1833
  %3599 = vmatpush.msra.mxu0 %v1831
  %3600 = vmatpush.msra.mxu0 %v1829
  %3601 = vmatpush.msra.mxu0 %v1827
  %3602 = vmatpush.msra.mxu0 %v1825
  %3603 = vmatpush.msra.mxu0 %v1823
  %3604 = vmatpush.msra.mxu0 %v1821
  %3605 = vmatpush.msra.mxu0 %v1819
  %3606 = vmatpush.msra.mxu0 %v1817
  %3607 = vmatpush.msra.mxu0 %v1815
  %3608 = vmatpush.msra.mxu0 %v1813
  %3609 = vmatpush.msra.mxu0 %v1811
  %3610 = vmatpush.msra.mxu0 %v1809
  %3611 = vmatpush.msra.mxu0 %v1807
  %3612 = vmatpush.msra.mxu0 %v1805
  %3613 = vmatpush.msra.mxu0 %v1803
  %3614 = vmatmul.f32.gmra.mxu0 %v2189
  %v3615 = vpop.f32.mrf.mxu0
  %v3616 = vadd.f32 %v3593, %v3615
  %3617 = vmatmul.f32.gmra.mxu0 %v2191
  %v3618 = vpop.f32.mrf.mxu0
  %v3619 = vadd.f32 %v3596, %v3618
  %3620 = vdwg.mxu0
  %3621 = vmatpush.msra.mxu0 %v1802
  %3622 = vmatpush.msra.mxu0 %v1800
  %3623 = vmatpush.msra.mxu0 %v1798
  %3624 = vmatpush.msra.mxu0 %v1796
  %3625 = vmatpush.msra.mxu0 %v1794
  %3626 = vmatpush.msra.mxu0 %v1792
  %3627 = vmatpush.msra.mxu0 %v1790
  %3628 = vmatpush.msra.mxu0 %v1788
  %3629 = vmatpush.msra.mxu0 %v1786
  %3630 = vmatpush.msra.mxu0 %v1784
  %3631 = vmatpush.msra.mxu0 %v1782
  %3632 = vmatpush.msra.mxu0 %v1780
  %3633 = vmatpush.msra.mxu0 %v1778
  %3634 = vmatpush.msra.mxu0 %v1776
  %3635 = vmatpush.msra.mxu0 %v1774
  %3636 = vmatpush.msra.mxu0 %v1772
  %3637 = vmatmul.f32.gmra.mxu0 %v2188
  %v3638 = vpop.f32.mrf.mxu0
  %v3639 = vadd.f32 0.0, %v3638
  %3640 = vmatmul.f32.gmra.mxu0 %v2190
  %v3641 = vpop.f32.mrf.mxu0
  %v3642 = vadd.f32 0.0, %v3641
  %3643 = vdwg.mxu0
  %3644 = vmatpush.msra.mxu0 %v1834
  %3645 = vmatpush.msra.mxu0 %v1832
  %3646 = vmatpush.msra.mxu0 %v1830
  %3647 = vmatpush.msra.mxu0 %v1828
  %3648 = vmatpush.msra.mxu0 %v1826
  %3649 = vmatpush.msra.mxu0 %v1824
  %3650 = vmatpush.msra.mxu0 %v1822
  %3651 = vmatpush.msra.mxu0 %v1820
  %3652 = vmatpush.msra.mxu0 %v1818
  %3653 = vmatpush.msra.mxu0 %v1816
  %3654 = vmatpush.msra.mxu0 %v1814
  %3655 = vmatpush.msra.mxu0 %v1812
  %3656 = vmatpush.msra.mxu0 %v1810
  %3657 = vmatpush.msra.mxu0 %v1808
  %3658 = vmatpush.msra.mxu0 %v1806
  %3659 = vmatpush.msra.mxu0 %v1804
  %3660 = vmatmul.f32.gmra.mxu0 %v2189
  %v3661 = vpop.f32.mrf.mxu0
  %v3662 = vadd.f32 %v3639, %v3661
  %3663 = vmatmul.f32.gmra.mxu0 %v2191
  %v3664 = vpop.f32.mrf.mxu0
  %v3665 = vadd.f32 %v3642, %v3664
  %3666 = vdwg.mxu0
  %s3667 = scalar_lea.vmem %s5, 256
  %v3668 = vld [vmem:[%s3667] sm:$0xff]
  %v3669 = vld [vmem:[%s3667 + $0x8] sm:$0xff]
  %v3670 = vld [vmem:[%s3667 + $0x10] sm:$0xff]
  %v3671 = vld [vmem:[%s3667 + $0x18] sm:$0xff]
  %v3673 = vsel %vm2007, %v3668, 0
  %v3676 = vsel %vm2007, %v3669, 0
  %v3679 = vsel %vm2007, %v3670, 0
  %v3682 = vsel %vm2007, %v3671, 0
  %3684 = vmatpush.msra.mxu0 0.0
  %3685 = vmatpush.msra.mxu0 0.0
  %3686 = vmatpush.msra.mxu0 0.0
  %3687 = vmatpush.msra.mxu0 0.0
  %3688 = vmatpush.msra.mxu0 0.0
  %3689 = vmatpush.msra.mxu0 0.0
  %3690 = vmatpush.msra.mxu0 0.0
  %3691 = vmatpush.msra.mxu0 0.0
  %3692 = vmatpush.msra.mxu0 0.0
  %3693 = vmatpush.msra.mxu0 0.0
  %3694 = vmatpush.msra.mxu0 0.0
  %3695 = vmatpush.msra.mxu0 0.0
  %3696 = vmatpush.msra.mxu0 0.0
  %3697 = vmatpush.msra.mxu0 0.0
  %3698 = vmatpush.msra.mxu0 %v3619
  %3699 = vmatpush.msra.mxu0 %v3616
  %3700 = vmatmul.f32.gmra.mxu0 %v3673
  %v3701 = vpop.f32.mrf.mxu0
  %v3702 = vadd.f32 0.0, %v3701
  %3703 = vmatmul.f32.gmra.mxu0 %v3676
  %v3704 = vpop.f32.mrf.mxu0
  %v3705 = vadd.f32 0.0, %v3704
  %3706 = vmatmul.f32.gmra.mxu0 %v3679
  %v3707 = vpop.f32.mrf.mxu0
  %v3708 = vadd.f32 0.0, %v3707
  %3709 = vmatmul.f32.gmra.mxu0 %v3682
  %v3710 = vpop.f32.mrf.mxu0
  %v3711 = vadd.f32 0.0, %v3710
  %3712 = vdwg.mxu0
  %3713 = vmatpush.msra.mxu0 0.0
  %3714 = vmatpush.msra.mxu0 0.0
  %3715 = vmatpush.msra.mxu0 0.0
  %3716 = vmatpush.msra.mxu0 0.0
  %3717 = vmatpush.msra.mxu0 0.0
  %3718 = vmatpush.msra.mxu0 0.0
  %3719 = vmatpush.msra.mxu0 0.0
  %3720 = vmatpush.msra.mxu0 0.0
  %3721 = vmatpush.msra.mxu0 0.0
  %3722 = vmatpush.msra.mxu0 0.0
  %3723 = vmatpush.msra.mxu0 0.0
  %3724 = vmatpush.msra.mxu0 0.0
  %3725 = vmatpush.msra.mxu0 0.0
  %3726 = vmatpush.msra.mxu0 0.0
  %3727 = vmatpush.msra.mxu0 %v3665
  %3728 = vmatpush.msra.mxu0 %v3662
  %3729 = vmatmul.f32.gmra.mxu0 %v3673
  %v3730 = vpop.f32.mrf.mxu0
  %v3731 = vadd.f32 0.0, %v3730
  %3732 = vmatmul.f32.gmra.mxu0 %v3676
  %v3733 = vpop.f32.mrf.mxu0
  %v3734 = vadd.f32 0.0, %v3733
  %3735 = vmatmul.f32.gmra.mxu0 %v3679
  %v3736 = vpop.f32.mrf.mxu0
  %v3737 = vadd.f32 0.0, %v3736
  %3738 = vmatmul.f32.gmra.mxu0 %v3682
  %v3739 = vpop.f32.mrf.mxu0
  %v3740 = vadd.f32 0.0, %v3739
  %3741 = vdwg.mxu0
  %v3742 = vadd.f32 %v3567, %v3702
  %v3743 = vadd.f32 %v3568, %v3731
  %v3744 = vadd.f32 %v3569, %v3705
  %v3745 = vadd.f32 %v3570, %v3734
  %v3746 = vadd.f32 %v3571, %v3708
  %v3747 = vadd.f32 %v3572, %v3737
  %v3748 = vadd.f32 %v3573, %v3711
  %v3749 = vadd.f32 %v3574, %v3740
  %v3750 = vld [vmem:[%s6] sm:$0xff]
  %v3751 = vld [vmem:[%s6 + $0x8] sm:$0xff]
  %v3752 = vld [vmem:[%s6 + $0x10] sm:$0xff]
  %v3753 = vld [vmem:[%s6 + $0x18] sm:$0xff]
  %3755 = vset.pattern.permute.xlu0 0
  %3756 = vperm.xlu0 %3755, %v3750
  %v3757 = vpop.permute.xlu0 %3756
  %3760 = vset.pattern.permute.xlu0 0
  %3761 = vperm.xlu0 %3760, %v3751
  %v3762 = vpop.permute.xlu0 %3761
  %3765 = vset.pattern.permute.xlu0 0
  %3766 = vperm.xlu0 %3765, %v3752
  %v3767 = vpop.permute.xlu0 %3766
  %3770 = vset.pattern.permute.xlu0 0
  %3771 = vperm.xlu0 %3770, %v3753
  %v3772 = vpop.permute.xlu0 %3771
  %v3774 = vadd.f32 %v3742, %v3757
  %v3775 = vadd.f32 %v3743, %v3757
  %v3776 = vadd.f32 %v3744, %v3762
  %v3777 = vadd.f32 %v3745, %v3762
  %v3778 = vadd.f32 %v3746, %v3767
  %v3779 = vadd.f32 %v3747, %v3767
  %v3780 = vadd.f32 %v3748, %v3772
  %v3781 = vadd.f32 %v3749, %v3772
  %v3782 = vmax.f32 %v3774, 0.0
  %v3783 = vmax.f32 %v3775, 0.0
  %v3784 = vmax.f32 %v3776, 0.0
  %v3785 = vmax.f32 %v3777, 0.0
  %v3786 = vmax.f32 %v3778, 0.0
  %v3787 = vmax.f32 %v3779, 0.0
  %v3788 = vmax.f32 %v3780, 0.0
  %v3789 = vmax.f32 %v3781, 0.0
  %v3790 = vld [vmem:[%s7] sm:$0xff]
  %v3791 = vld [vmem:[%s7 + $0x8] sm:$0xff]
  %v3792 = vld [vmem:[%s7 + $0x10] sm:$0xff]
  %v3793 = vld [vmem:[%s7 + $0x18] sm:$0xff]
  %vm3794 = vcmask 261120
  %v3796 = vsel %vm3794, %v3790, 0
  %v3799 = vsel %vm3794, %v3791, 0
  %v3802 = vsel %vm3794, %v3792, 0
  %v3805 = vsel %vm3794, %v3793, 0
  %3807 = vmatpush.msra.mxu0 0.0
  %3808 = vmatpush.msra.mxu0 0.0
  %3809 = vmatpush.msra.mxu0 0.0
  %3810 = vmatpush.msra.mxu0 0.0
  %3811 = vmatpush.msra.mxu0 0.0
  %3812 = vmatpush.msra.mxu0 0.0
  %3813 = vmatpush.msra.mxu0 0.0
  %3814 = vmatpush.msra.mxu0 0.0
  %3815 = vmatpush.msra.mxu0 0.0
  %3816 = vmatpush.msra.mxu0 0.0
  %3817 = vmatpush.msra.mxu0 0.0
  %3818 = vmatpush.msra.mxu0 0.0
  %3819 = vmatpush.msra.mxu0 %v3788
  %3820 = vmatpush.msra.mxu0 %v3786
  %3821 = vmatpush.msra.mxu0 %v3784
  %3822 = vmatpush.msra.mxu0 %v3782
  %3823 = vmatmul.f32.gmra.mxu0 %v3796
  %v3824 = vpop.f32.mrf.mxu0
  %v3825 = vadd.f32 0.0, %v3824
  %3826 = vmatmul.f32.gmra.mxu0 %v3799
  %v3827 = vpop.f32.mrf.mxu0
  %v3828 = vadd.f32 0.0, %v3827
  %3829 = vmatmul.f32.gmra.mxu0 %v3802
  %v3830 = vpop.f32.mrf.mxu0
  %v3831 = vadd.f32 0.0, %v3830
  %3832 = vmatmul.f32.gmra.mxu0 %v3805
  %v3833 = vpop.f32.mrf.mxu0
  %v3834 = vadd.f32 0.0, %v3833
  %3835 = vdwg.mxu0
  %3836 = vmatpush.msra.mxu0 0.0
  %3837 = vmatpush.msra.mxu0 0.0
  %3838 = vmatpush.msra.mxu0 0.0
  %3839 = vmatpush.msra.mxu0 0.0
  %3840 = vmatpush.msra.mxu0 0.0
  %3841 = vmatpush.msra.mxu0 0.0
  %3842 = vmatpush.msra.mxu0 0.0
  %3843 = vmatpush.msra.mxu0 0.0
  %3844 = vmatpush.msra.mxu0 0.0
  %3845 = vmatpush.msra.mxu0 0.0
  %3846 = vmatpush.msra.mxu0 0.0
  %3847 = vmatpush.msra.mxu0 0.0
  %3848 = vmatpush.msra.mxu0 %v3789
  %3849 = vmatpush.msra.mxu0 %v3787
  %3850 = vmatpush.msra.mxu0 %v3785
  %3851 = vmatpush.msra.mxu0 %v3783
  %3852 = vmatmul.f32.gmra.mxu0 %v3796
  %v3853 = vpop.f32.mrf.mxu0
  %v3854 = vadd.f32 0.0, %v3853
  %3855 = vmatmul.f32.gmra.mxu0 %v3799
  %v3856 = vpop.f32.mrf.mxu0
  %v3857 = vadd.f32 0.0, %v3856
  %3858 = vmatmul.f32.gmra.mxu0 %v3802
  %v3859 = vpop.f32.mrf.mxu0
  %v3860 = vadd.f32 0.0, %v3859
  %3861 = vmatmul.f32.gmra.mxu0 %v3805
  %v3862 = vpop.f32.mrf.mxu0
  %v3863 = vadd.f32 0.0, %v3862
  %3864 = vdwg.mxu0
  %v3865 = vmul.f32 %v3782, %v3782
  %v3866 = vmul.f32 %v3783, %v3783
  %v3867 = vmul.f32 %v3784, %v3784
  %v3868 = vmul.f32 %v3785, %v3785
  %v3869 = vmul.f32 %v3786, %v3786
  %v3870 = vmul.f32 %v3787, %v3787
  %v3871 = vmul.f32 %v3788, %v3788
  %v3872 = vmul.f32 %v3789, %v3789
  %3873 = vmatpush.msra.mxu0 0.0
  %3874 = vmatpush.msra.mxu0 0.0
  %3875 = vmatpush.msra.mxu0 0.0
  %3876 = vmatpush.msra.mxu0 0.0
  %3877 = vmatpush.msra.mxu0 0.0
  %3878 = vmatpush.msra.mxu0 0.0
  %3879 = vmatpush.msra.mxu0 0.0
  %3880 = vmatpush.msra.mxu0 0.0
  %3881 = vmatpush.msra.mxu0 0.0
  %3882 = vmatpush.msra.mxu0 0.0
  %3883 = vmatpush.msra.mxu0 0.0
  %3884 = vmatpush.msra.mxu0 0.0
  %3885 = vmatpush.msra.mxu0 %v3871
  %3886 = vmatpush.msra.mxu0 %v3869
  %3887 = vmatpush.msra.mxu0 %v3867
  %3888 = vmatpush.msra.mxu0 %v3865
  %3889 = vmatmul.f32.gmra.mxu0 %v3796
  %v3890 = vpop.f32.mrf.mxu0
  %v3891 = vadd.f32 0.0, %v3890
  %3892 = vmatmul.f32.gmra.mxu0 %v3799
  %v3893 = vpop.f32.mrf.mxu0
  %v3894 = vadd.f32 0.0, %v3893
  %3895 = vmatmul.f32.gmra.mxu0 %v3802
  %v3896 = vpop.f32.mrf.mxu0
  %v3897 = vadd.f32 0.0, %v3896
  %3898 = vmatmul.f32.gmra.mxu0 %v3805
  %v3899 = vpop.f32.mrf.mxu0
  %v3900 = vadd.f32 0.0, %v3899
  %3901 = vdwg.mxu0
  %3902 = vmatpush.msra.mxu0 0.0
  %3903 = vmatpush.msra.mxu0 0.0
  %3904 = vmatpush.msra.mxu0 0.0
  %3905 = vmatpush.msra.mxu0 0.0
  %3906 = vmatpush.msra.mxu0 0.0
  %3907 = vmatpush.msra.mxu0 0.0
  %3908 = vmatpush.msra.mxu0 0.0
  %3909 = vmatpush.msra.mxu0 0.0
  %3910 = vmatpush.msra.mxu0 0.0
  %3911 = vmatpush.msra.mxu0 0.0
  %3912 = vmatpush.msra.mxu0 0.0
  %3913 = vmatpush.msra.mxu0 0.0
  %3914 = vmatpush.msra.mxu0 %v3872
  %3915 = vmatpush.msra.mxu0 %v3870
  %3916 = vmatpush.msra.mxu0 %v3868
  %3917 = vmatpush.msra.mxu0 %v3866
  %3918 = vmatmul.f32.gmra.mxu0 %v3796
  %v3919 = vpop.f32.mrf.mxu0
  %v3920 = vadd.f32 0.0, %v3919
  %3921 = vmatmul.f32.gmra.mxu0 %v3799
  %v3922 = vpop.f32.mrf.mxu0
  %v3923 = vadd.f32 0.0, %v3922
  %3924 = vmatmul.f32.gmra.mxu0 %v3802
  %v3925 = vpop.f32.mrf.mxu0
  %v3926 = vadd.f32 0.0, %v3925
  %3927 = vmatmul.f32.gmra.mxu0 %v3805
  %v3928 = vpop.f32.mrf.mxu0
  %v3929 = vadd.f32 0.0, %v3928
  %3930 = vdwg.mxu0
  %v3931 = vadd.f32 %v3825, %v3854
  %3932 = vadd.xlane.f32.xlu0 %v3931
  %v3933 = vpop.xlane.xlu0 %3932
  %v3934 = vadd.f32 %v3828, %v3857
  %3935 = vadd.xlane.f32.xlu0 %v3934
  %v3936 = vpop.xlane.xlu0 %3935
  %v3937 = vadd.f32 %v3831, %v3860
  %3938 = vadd.xlane.f32.xlu0 %v3937
  %v3939 = vpop.xlane.xlu0 %3938
  %v3940 = vadd.f32 %v3834, %v3863
  %3941 = vadd.xlane.f32.xlu0 %v3940
  %v3942 = vpop.xlane.xlu0 %3941
  %v3943 = vmul.f32 %v3933, 0.001953125
  %v3944 = vmul.f32 %v3936, 0.001953125
  %v3945 = vmul.f32 %v3939, 0.001953125
  %v3946 = vmul.f32 %v3942, 0.001953125
  %v3947 = vadd.f32 %v3891, %v3920
  %3948 = vadd.xlane.f32.xlu0 %v3947
  %v3949 = vpop.xlane.xlu0 %3948
  %v3950 = vadd.f32 %v3894, %v3923
  %3951 = vadd.xlane.f32.xlu0 %v3950
  %v3952 = vpop.xlane.xlu0 %3951
  %v3953 = vadd.f32 %v3897, %v3926
  %3954 = vadd.xlane.f32.xlu0 %v3953
  %v3955 = vpop.xlane.xlu0 %3954
  %v3956 = vadd.f32 %v3900, %v3929
  %3957 = vadd.xlane.f32.xlu0 %v3956
  %v3958 = vpop.xlane.xlu0 %3957
  %v3959 = vmul.f32 %v3949, 0.001953125
  %v3960 = vmul.f32 %v3952, 0.001953125
  %v3961 = vmul.f32 %v3955, 0.001953125
  %v3962 = vmul.f32 %v3958, 0.001953125
  %v3963 = vmul.f32 %v3943, %v3943
  %v3964 = vmul.f32 %v3944, %v3944
  %v3965 = vmul.f32 %v3945, %v3945
  %v3966 = vmul.f32 %v3946, %v3946
  %v3967 = vsub.f32 %v3959, %v3963
  %v3968 = vsub.f32 %v3960, %v3964
  %v3969 = vsub.f32 %v3961, %v3965
  %v3970 = vsub.f32 %v3962, %v3966
  %s3971 = scalar_lea.vmem %s6, 32
  %v3972 = vld [vmem:[%s3971] sm:$0xff]
  %v3973 = vld [vmem:[%s3971 + $0x8] sm:$0xff]
  %v3974 = vld [vmem:[%s3971 + $0x10] sm:$0xff]
  %v3975 = vld [vmem:[%s3971 + $0x18] sm:$0xff]
  %v3976 = vadd.f32 %v3967, 1e-05
  %v3977 = vadd.f32 %v3968, 1e-05
  %v3978 = vadd.f32 %v3969, 1e-05
  %v3979 = vadd.f32 %v3970, 1e-05
  %v3980 = vrsqrt.pop %v3976
  %v3981 = vmul.f32 %v3980, %v3976
  %v3982 = vmul.f32 %v3981, %v3980
  %v3983 = vmul.f32 0.5, %v3982
  %v3984 = vsub.f32 1.5, %v3983
  %v3985 = vmul.f32 %v3980, %v3984
  %vm3986 = vweird.f32 %v3976
  %vm3987 = vweird.f32 %v3980
  %vm3988 = vmor %vm3986, %vm3987
  %v3989 = vsel %vm3988, %v3980, %v3985
  %v3990 = vrsqrt.pop %v3977
  %v3991 = vmul.f32 %v3990, %v3977
  %v3992 = vmul.f32 %v3991, %v3990
  %v3993 = vmul.f32 0.5, %v3992
  %v3994 = vsub.f32 1.5, %v3993
  %v3995 = vmul.f32 %v3990, %v3994
  %vm3996 = vweird.f32 %v3977
  %vm3997 = vweird.f32 %v3990
  %vm3998 = vmor %vm3996, %vm3997
  %v3999 = vsel %vm3998, %v3990, %v3995
  %v4000 = vrsqrt.pop %v3978
  %v4001 = vmul.f32 %v4000, %v3978
  %v4002 = vmul.f32 %v4001, %v4000
  %v4003 = vmul.f32 0.5, %v4002
  %v4004 = vsub.f32 1.5, %v4003
  %v4005 = vmul.f32 %v4000, %v4004
  %vm4006 = vweird.f32 %v3978
  %vm4007 = vweird.f32 %v4000
  %vm4008 = vmor %vm4006, %vm4007
  %v4009 = vsel %vm4008, %v4000, %v4005
  %v4010 = vrsqrt.pop %v3979
  %v4011 = vmul.f32 %v4010, %v3979
  %v4012 = vmul.f32 %v4011, %v4010
  %v4013 = vmul.f32 0.5, %v4012
  %v4014 = vsub.f32 1.5, %v4013
  %v4015 = vmul.f32 %v4010, %v4014
  %vm4016 = vweird.f32 %v3979
  %vm4017 = vweird.f32 %v4010
  %vm4018 = vmor %vm4016, %vm4017
  %v4019 = vsel %vm4018, %v4010, %v4015
  %v4020 = vmul.f32 %v3972, %v3989
  %v4021 = vmul.f32 %v3973, %v3999
  %v4022 = vmul.f32 %v3974, %v4009
  %v4023 = vmul.f32 %v3975, %v4019
  %s4024 = scalar_lea.vmem %s6, 64
  %v4025 = vld [vmem:[%s4024] sm:$0xff]
  %v4026 = vld [vmem:[%s4024 + $0x8] sm:$0xff]
  %v4027 = vld [vmem:[%s4024 + $0x10] sm:$0xff]
  %v4028 = vld [vmem:[%s4024 + $0x18] sm:$0xff]
  %v4029 = vmul.f32 %v3943, %v4020
  %v4030 = vmul.f32 %v3944, %v4021
  %v4031 = vmul.f32 %v3945, %v4022
  %v4032 = vmul.f32 %v3946, %v4023
  %v4033 = vsub.f32 %v4025, %v4029
  %v4034 = vsub.f32 %v4026, %v4030
  %v4035 = vsub.f32 %v4027, %v4031
  %v4036 = vsub.f32 %v4028, %v4032
  %4038 = vset.pattern.permute.xlu0 0
  %4039 = vperm.xlu0 %4038, %v4020
  %v4040 = vpop.permute.xlu0 %4039
  %4043 = vset.pattern.permute.xlu0 0
  %4044 = vperm.xlu0 %4043, %v4021
  %v4045 = vpop.permute.xlu0 %4044
  %4048 = vset.pattern.permute.xlu0 0
  %4049 = vperm.xlu0 %4048, %v4022
  %v4050 = vpop.permute.xlu0 %4049
  %4053 = vset.pattern.permute.xlu0 0
  %4054 = vperm.xlu0 %4053, %v4023
  %v4055 = vpop.permute.xlu0 %4054
  %v4057 = vmul.f32 %v3782, %v4040
  %v4058 = vmul.f32 %v3783, %v4040
  %v4059 = vmul.f32 %v3784, %v4045
  %v4060 = vmul.f32 %v3785, %v4045
  %v4061 = vmul.f32 %v3786, %v4050
  %v4062 = vmul.f32 %v3787, %v4050
  %v4063 = vmul.f32 %v3788, %v4055
  %v4064 = vmul.f32 %v3789, %v4055
  %4066 = vset.pattern.permute.xlu0 0
  %4067 = vperm.xlu0 %4066, %v4033
  %v4068 = vpop.permute.xlu0 %4067
  %4071 = vset.pattern.permute.xlu0 0
  %4072 = vperm.xlu0 %4071, %v4034
  %v4073 = vpop.permute.xlu0 %4072
  %4076 = vset.pattern.permute.xlu0 0
  %4077 = vperm.xlu0 %4076, %v4035
  %v4078 = vpop.permute.xlu0 %4077
  %4081 = vset.pattern.permute.xlu0 0
  %4082 = vperm.xlu0 %4081, %v4036
  %v4083 = vpop.permute.xlu0 %4082
  %v4085 = vadd.f32 %v4057, %v4068
  %v4086 = vadd.f32 %v4058, %v4068
  %v4087 = vadd.f32 %v4059, %v4073
  %v4088 = vadd.f32 %v4060, %v4073
  %v4089 = vadd.f32 %v4061, %v4078
  %v4090 = vadd.f32 %v4062, %v4078
  %v4091 = vadd.f32 %v4063, %v4083
  %v4092 = vadd.f32 %v4064, %v4083
  %4093 = vmatpush.msra.mxu0 %v87
  %4094 = vmatpush.msra.mxu0 %v85
  %4095 = vmatpush.msra.mxu0 %v83
  %4096 = vmatpush.msra.mxu0 %v81
  %4097 = vmatpush.msra.mxu0 %v79
  %4098 = vmatpush.msra.mxu0 %v77
  %4099 = vmatpush.msra.mxu0 %v75
  %4100 = vmatpush.msra.mxu0 %v73
  %4101 = vmatpush.msra.mxu0 %v71
  %4102 = vmatpush.msra.mxu0 %v69
  %4103 = vmatpush.msra.mxu0 %v67
  %4104 = vmatpush.msra.mxu0 %v65
  %4105 = vmatpush.msra.mxu0 %v63
  %4106 = vmatpush.msra.mxu0 %v61
  %4107 = vmatpush.msra.mxu0 %v59
  %4108 = vmatpush.msra.mxu0 %v57
  %4109 = vmatmul.f32.gmra.mxu0 %v4085
  %v4110 = vpop.f32.mrf.mxu0
  %v4111 = vadd.f32 0.0, %v4110
  %4112 = vmatmul.f32.gmra.mxu0 %v4087
  %v4113 = vpop.f32.mrf.mxu0
  %v4114 = vadd.f32 0.0, %v4113
  %4115 = vmatmul.f32.gmra.mxu0 %v4089
  %v4116 = vpop.f32.mrf.mxu0
  %v4117 = vadd.f32 0.0, %v4116
  %4118 = vmatmul.f32.gmra.mxu0 %v4091
  %v4119 = vpop.f32.mrf.mxu0
  %v4120 = vadd.f32 0.0, %v4119
  %4121 = vdwg.mxu0
  %4122 = vmatpush.msra.mxu0 %v119
  %4123 = vmatpush.msra.mxu0 %v117
  %4124 = vmatpush.msra.mxu0 %v115
  %4125 = vmatpush.msra.mxu0 %v113
  %4126 = vmatpush.msra.mxu0 %v111
  %4127 = vmatpush.msra.mxu0 %v109
  %4128 = vmatpush.msra.mxu0 %v107
  %4129 = vmatpush.msra.mxu0 %v105
  %4130 = vmatpush.msra.mxu0 %v103
  %4131 = vmatpush.msra.mxu0 %v101
  %4132 = vmatpush.msra.mxu0 %v99
  %4133 = vmatpush.msra.mxu0 %v97
  %4134 = vmatpush.msra.mxu0 %v95
  %4135 = vmatpush.msra.mxu0 %v93
  %4136 = vmatpush.msra.mxu0 %v91
  %4137 = vmatpush.msra.mxu0 %v89
  %4138 = vmatmul.f32.gmra.mxu0 %v4086
  %v4139 = vpop.f32.mrf.mxu0
  %v4140 = vadd.f32 %v4111, %v4139
  %4141 = vmatmul.f32.gmra.mxu0 %v4088
  %v4142 = vpop.f32.mrf.mxu0
  %v4143 = vadd.f32 %v4114, %v4142
  %4144 = vmatmul.f32.gmra.mxu0 %v4090
  %v4145 = vpop.f32.mrf.mxu0
  %v4146 = vadd.f32 %v4117, %v4145
  %4147 = vmatmul.f32.gmra.mxu0 %v4092
  %v4148 = vpop.f32.mrf.mxu0
  %v4149 = vadd.f32 %v4120, %v4148
  %4150 = vdwg.mxu0
  %4151 = vmatpush.msra.mxu0 %v88
  %4152 = vmatpush.msra.mxu0 %v86
  %4153 = vmatpush.msra.mxu0 %v84
  %4154 = vmatpush.msra.mxu0 %v82
  %4155 = vmatpush.msra.mxu0 %v80
  %4156 = vmatpush.msra.mxu0 %v78
  %4157 = vmatpush.msra.mxu0 %v76
  %4158 = vmatpush.msra.mxu0 %v74
  %4159 = vmatpush.msra.mxu0 %v72
  %4160 = vmatpush.msra.mxu0 %v70
  %4161 = vmatpush.msra.mxu0 %v68
  %4162 = vmatpush.msra.mxu0 %v66
  %4163 = vmatpush.msra.mxu0 %v64
  %4164 = vmatpush.msra.mxu0 %v62
  %4165 = vmatpush.msra.mxu0 %v60
  %4166 = vmatpush.msra.mxu0 %v58
  %4167 = vmatmul.f32.gmra.mxu0 %v4085
  %v4168 = vpop.f32.mrf.mxu0
  %v4169 = vadd.f32 0.0, %v4168
  %4170 = vmatmul.f32.gmra.mxu0 %v4087
  %v4171 = vpop.f32.mrf.mxu0
  %v4172 = vadd.f32 0.0, %v4171
  %4173 = vmatmul.f32.gmra.mxu0 %v4089
  %v4174 = vpop.f32.mrf.mxu0
  %v4175 = vadd.f32 0.0, %v4174
  %4176 = vmatmul.f32.gmra.mxu0 %v4091
  %v4177 = vpop.f32.mrf.mxu0
  %v4178 = vadd.f32 0.0, %v4177
  %4179 = vdwg.mxu0
  %4180 = vmatpush.msra.mxu0 %v120
  %4181 = vmatpush.msra.mxu0 %v118
  %4182 = vmatpush.msra.mxu0 %v116
  %4183 = vmatpush.msra.mxu0 %v114
  %4184 = vmatpush.msra.mxu0 %v112
  %4185 = vmatpush.msra.mxu0 %v110
  %4186 = vmatpush.msra.mxu0 %v108
  %4187 = vmatpush.msra.mxu0 %v106
  %4188 = vmatpush.msra.mxu0 %v104
  %4189 = vmatpush.msra.mxu0 %v102
  %4190 = vmatpush.msra.mxu0 %v100
  %4191 = vmatpush.msra.mxu0 %v98
  %4192 = vmatpush.msra.mxu0 %v96
  %4193 = vmatpush.msra.mxu0 %v94
  %4194 = vmatpush.msra.mxu0 %v92
  %4195 = vmatpush.msra.mxu0 %v90
  %4196 = vmatmul.f32.gmra.mxu0 %v4086
  %v4197 = vpop.f32.mrf.mxu0
  %v4198 = vadd.f32 %v4169, %v4197
  %4199 = vmatmul.f32.gmra.mxu0 %v4088
  %v4200 = vpop.f32.mrf.mxu0
  %v4201 = vadd.f32 %v4172, %v4200
  %4202 = vmatmul.f32.gmra.mxu0 %v4090
  %v4203 = vpop.f32.mrf.mxu0
  %v4204 = vadd.f32 %v4175, %v4203
  %4205 = vmatmul.f32.gmra.mxu0 %v4092
  %v4206 = vpop.f32.mrf.mxu0
  %v4207 = vadd.f32 %v4178, %v4206
  %4208 = vdwg.mxu0
  %v4209 = vld [vmem:[%s8] sm:$0xff]
  %v4210 = vld [vmem:[%s8 + $0x8] sm:$0xff]
  %v4211 = vld [vmem:[%s8 + $0x10] sm:$0xff]
  %v4212 = vld [vmem:[%s8 + $0x18] sm:$0xff]
  %4213 = vmatpush.msra.mxu0 %v240
  %4214 = vmatpush.msra.mxu0 %v238
  %4215 = vmatpush.msra.mxu0 %v236
  %4216 = vmatpush.msra.mxu0 %v234
  %4217 = vmatpush.msra.mxu0 %v232
  %4218 = vmatpush.msra.mxu0 %v230
  %4219 = vmatpush.msra.mxu0 %v228
  %4220 = vmatpush.msra.mxu0 %v226
  %4221 = vmatpush.msra.mxu0 %v224
  %4222 = vmatpush.msra.mxu0 %v222
  %4223 = vmatpush.msra.mxu0 %v220
  %4224 = vmatpush.msra.mxu0 %v218
  %4225 = vmatpush.msra.mxu0 %v216
  %4226 = vmatpush.msra.mxu0 %v214
  %4227 = vmatpush.msra.mxu0 %v212
  %4228 = vmatpush.msra.mxu0 %v210
  %4229 = vmatmul.f32.gmra.mxu0 %v4085
  %v4230 = vpop.f32.mrf.mxu0
  %v4231 = vadd.f32 0.0, %v4230
  %4232 = vmatmul.f32.gmra.mxu0 %v4087
  %v4233 = vpop.f32.mrf.mxu0
  %v4234 = vadd.f32 0.0, %v4233
  %4235 = vmatmul.f32.gmra.mxu0 %v4089
  %v4236 = vpop.f32.mrf.mxu0
  %v4237 = vadd.f32 0.0, %v4236
  %4238 = vmatmul.f32.gmra.mxu0 %v4091
  %v4239 = vpop.f32.mrf.mxu0
  %v4240 = vadd.f32 0.0, %v4239
  %4241 = vdwg.mxu0
  %4242 = vmatpush.msra.mxu0 %v272
  %4243 = vmatpush.msra.mxu0 %v270
  %4244 = vmatpush.msra.mxu0 %v268
  %4245 = vmatpush.msra.mxu0 %v266
  %4246 = vmatpush.msra.mxu0 %v264
  %4247 = vmatpush.msra.mxu0 %v262
  %4248 = vmatpush.msra.mxu0 %v260
  %4249 = vmatpush.msra.mxu0 %v258
  %4250 = vmatpush.msra.mxu0 %v256
  %4251 = vmatpush.msra.mxu0 %v254
  %4252 = vmatpush.msra.mxu0 %v252
  %4253 = vmatpush.msra.mxu0 %v250
  %4254 = vmatpush.msra.mxu0 %v248
  %4255 = vmatpush.msra.mxu0 %v246
  %4256 = vmatpush.msra.mxu0 %v244
  %4257 = vmatpush.msra.mxu0 %v242
  %4258 = vmatmul.f32.gmra.mxu0 %v4086
  %v4259 = vpop.f32.mrf.mxu0
  %v4260 = vadd.f32 %v4231, %v4259
  %4261 = vmatmul.f32.gmra.mxu0 %v4088
  %v4262 = vpop.f32.mrf.mxu0
  %v4263 = vadd.f32 %v4234, %v4262
  %4264 = vmatmul.f32.gmra.mxu0 %v4090
  %v4265 = vpop.f32.mrf.mxu0
  %v4266 = vadd.f32 %v4237, %v4265
  %4267 = vmatmul.f32.gmra.mxu0 %v4092
  %v4268 = vpop.f32.mrf.mxu0
  %v4269 = vadd.f32 %v4240, %v4268
  %4270 = vdwg.mxu0
  %4271 = vmatpush.msra.mxu0 %v241
  %4272 = vmatpush.msra.mxu0 %v239
  %4273 = vmatpush.msra.mxu0 %v237
  %4274 = vmatpush.msra.mxu0 %v235
  %4275 = vmatpush.msra.mxu0 %v233
  %4276 = vmatpush.msra.mxu0 %v231
  %4277 = vmatpush.msra.mxu0 %v229
  %4278 = vmatpush.msra.mxu0 %v227
  %4279 = vmatpush.msra.mxu0 %v225
  %4280 = vmatpush.msra.mxu0 %v223
  %4281 = vmatpush.msra.mxu0 %v221
  %4282 = vmatpush.msra.mxu0 %v219
  %4283 = vmatpush.msra.mxu0 %v217
  %4284 = vmatpush.msra.mxu0 %v215
  %4285 = vmatpush.msra.mxu0 %v213
  %4286 = vmatpush.msra.mxu0 %v211
  %4287 = vmatmul.f32.gmra.mxu0 %v4085
  %v4288 = vpop.f32.mrf.mxu0
  %v4289 = vadd.f32 0.0, %v4288
  %4290 = vmatmul.f32.gmra.mxu0 %v4087
  %v4291 = vpop.f32.mrf.mxu0
  %v4292 = vadd.f32 0.0, %v4291
  %4293 = vmatmul.f32.gmra.mxu0 %v4089
  %v4294 = vpop.f32.mrf.mxu0
  %v4295 = vadd.f32 0.0, %v4294
  %4296 = vmatmul.f32.gmra.mxu0 %v4091
  %v4297 = vpop.f32.mrf.mxu0
  %v4298 = vadd.f32 0.0, %v4297
  %4299 = vdwg.mxu0
  %4300 = vmatpush.msra.mxu0 %v273
  %4301 = vmatpush.msra.mxu0 %v271
  %4302 = vmatpush.msra.mxu0 %v269
  %4303 = vmatpush.msra.mxu0 %v267
  %4304 = vmatpush.msra.mxu0 %v265
  %4305 = vmatpush.msra.mxu0 %v263
  %4306 = vmatpush.msra.mxu0 %v261
  %4307 = vmatpush.msra.mxu0 %v259
  %4308 = vmatpush.msra.mxu0 %v257
  %4309 = vmatpush.msra.mxu0 %v255
  %4310 = vmatpush.msra.mxu0 %v253
  %4311 = vmatpush.msra.mxu0 %v251
  %4312 = vmatpush.msra.mxu0 %v249
  %4313 = vmatpush.msra.mxu0 %v247
  %4314 = vmatpush.msra.mxu0 %v245
  %4315 = vmatpush.msra.mxu0 %v243
  %4316 = vmatmul.f32.gmra.mxu0 %v4086
  %v4317 = vpop.f32.mrf.mxu0
  %v4318 = vadd.f32 %v4289, %v4317
  %4319 = vmatmul.f32.gmra.mxu0 %v4088
  %v4320 = vpop.f32.mrf.mxu0
  %v4321 = vadd.f32 %v4292, %v4320
  %4322 = vmatmul.f32.gmra.mxu0 %v4090
  %v4323 = vpop.f32.mrf.mxu0
  %v4324 = vadd.f32 %v4295, %v4323
  %4325 = vmatmul.f32.gmra.mxu0 %v4092
  %v4326 = vpop.f32.mrf.mxu0
  %v4327 = vadd.f32 %v4298, %v4326
  %4328 = vdwg.mxu0
  %s4329 = scalar_lea.vmem %s8, 32
  %v4330 = vld [vmem:[%s4329] sm:$0xff]
  %v4331 = vld [vmem:[%s4329 + $0x8] sm:$0xff]
  %v4332 = vld [vmem:[%s4329 + $0x10] sm:$0xff]
  %v4333 = vld [vmem:[%s4329 + $0x18] sm:$0xff]
  %v4335 = vsel %vm3794, %v4330, 0
  %v4338 = vsel %vm3794, %v4331, 0
  %v4341 = vsel %vm3794, %v4332, 0
  %v4344 = vsel %vm3794, %v4333, 0
  %4346 = vmatpush.msra.mxu0 0.0
  %4347 = vmatpush.msra.mxu0 0.0
  %4348 = vmatpush.msra.mxu0 0.0
  %4349 = vmatpush.msra.mxu0 0.0
  %4350 = vmatpush.msra.mxu0 0.0
  %4351 = vmatpush.msra.mxu0 0.0
  %4352 = vmatpush.msra.mxu0 0.0
  %4353 = vmatpush.msra.mxu0 0.0
  %4354 = vmatpush.msra.mxu0 0.0
  %4355 = vmatpush.msra.mxu0 0.0
  %4356 = vmatpush.msra.mxu0 0.0
  %4357 = vmatpush.msra.mxu0 0.0
  %4358 = vmatpush.msra.mxu0 %v4269
  %4359 = vmatpush.msra.mxu0 %v4266
  %4360 = vmatpush.msra.mxu0 %v4263
  %4361 = vmatpush.msra.mxu0 %v4260
  %4362 = vmatmul.f32.gmra.mxu0 %v4335
  %v4363 = vpop.f32.mrf.mxu0
  %v4364 = vadd.f32 0.0, %v4363
  %4365 = vmatmul.f32.gmra.mxu0 %v4338
  %v4366 = vpop.f32.mrf.mxu0
  %v4367 = vadd.f32 0.0, %v4366
  %4368 = vmatmul.f32.gmra.mxu0 %v4341
  %v4369 = vpop.f32.mrf.mxu0
  %v4370 = vadd.f32 0.0, %v4369
  %4371 = vmatmul.f32.gmra.mxu0 %v4344
  %v4372 = vpop.f32.mrf.mxu0
  %v4373 = vadd.f32 0.0, %v4372
  %4374 = vdwg.mxu0
  %4375 = vmatpush.msra.mxu0 0.0
  %4376 = vmatpush.msra.mxu0 0.0
  %4377 = vmatpush.msra.mxu0 0.0
  %4378 = vmatpush.msra.mxu0 0.0
  %4379 = vmatpush.msra.mxu0 0.0
  %4380 = vmatpush.msra.mxu0 0.0
  %4381 = vmatpush.msra.mxu0 0.0
  %4382 = vmatpush.msra.mxu0 0.0
  %4383 = vmatpush.msra.mxu0 0.0
  %4384 = vmatpush.msra.mxu0 0.0
  %4385 = vmatpush.msra.mxu0 0.0
  %4386 = vmatpush.msra.mxu0 0.0
  %4387 = vmatpush.msra.mxu0 %v4327
  %4388 = vmatpush.msra.mxu0 %v4324
  %4389 = vmatpush.msra.mxu0 %v4321
  %4390 = vmatpush.msra.mxu0 %v4318
  %4391 = vmatmul.f32.gmra.mxu0 %v4335
  %v4392 = vpop.f32.mrf.mxu0
  %v4393 = vadd.f32 0.0, %v4392
  %4394 = vmatmul.f32.gmra.mxu0 %v4338
  %v4395 = vpop.f32.mrf.mxu0
  %v4396 = vadd.f32 0.0, %v4395
  %4397 = vmatmul.f32.gmra.mxu0 %v4341
  %v4398 = vpop.f32.mrf.mxu0
  %v4399 = vadd.f32 0.0, %v4398
  %4400 = vmatmul.f32.gmra.mxu0 %v4344
  %v4401 = vpop.f32.mrf.mxu0
  %v4402 = vadd.f32 0.0, %v4401
  %4403 = vdwg.mxu0
  %v4405 = vsel %vm3794, %v4209, 0
  %v4408 = vsel %vm3794, %v4210, 0
  %v4411 = vsel %vm3794, %v4211, 0
  %v4414 = vsel %vm3794, %v4212, 0
  %4416 = vmatpush.msra.mxu0 0.0
  %4417 = vmatpush.msra.mxu0 0.0
  %4418 = vmatpush.msra.mxu0 0.0
  %4419 = vmatpush.msra.mxu0 0.0
  %4420 = vmatpush.msra.mxu0 0.0
  %4421 = vmatpush.msra.mxu0 0.0
  %4422 = vmatpush.msra.mxu0 0.0
  %4423 = vmatpush.msra.mxu0 0.0
  %4424 = vmatpush.msra.mxu0 0.0
  %4425 = vmatpush.msra.mxu0 0.0
  %4426 = vmatpush.msra.mxu0 0.0
  %4427 = vmatpush.msra.mxu0 0.0
  %4428 = vmatpush.msra.mxu0 %v4149
  %4429 = vmatpush.msra.mxu0 %v4146
  %4430 = vmatpush.msra.mxu0 %v4143
  %4431 = vmatpush.msra.mxu0 %v4140
  %4432 = vmatmul.f32.gmra.mxu0 %v4405
  %v4433 = vpop.f32.mrf.mxu0
  %v4434 = vadd.f32 %v4364, %v4433
  %4435 = vmatmul.f32.gmra.mxu0 %v4408
  %v4436 = vpop.f32.mrf.mxu0
  %v4437 = vadd.f32 %v4367, %v4436
  %4438 = vmatmul.f32.gmra.mxu0 %v4411
  %v4439 = vpop.f32.mrf.mxu0
  %v4440 = vadd.f32 %v4370, %v4439
  %4441 = vmatmul.f32.gmra.mxu0 %v4414
  %v4442 = vpop.f32.mrf.mxu0
  %v4443 = vadd.f32 %v4373, %v4442
  %4444 = vdwg.mxu0
  %4445 = vmatpush.msra.mxu0 0.0
  %4446 = vmatpush.msra.mxu0 0.0
  %4447 = vmatpush.msra.mxu0 0.0
  %4448 = vmatpush.msra.mxu0 0.0
  %4449 = vmatpush.msra.mxu0 0.0
  %4450 = vmatpush.msra.mxu0 0.0
  %4451 = vmatpush.msra.mxu0 0.0
  %4452 = vmatpush.msra.mxu0 0.0
  %4453 = vmatpush.msra.mxu0 0.0
  %4454 = vmatpush.msra.mxu0 0.0
  %4455 = vmatpush.msra.mxu0 0.0
  %4456 = vmatpush.msra.mxu0 0.0
  %4457 = vmatpush.msra.mxu0 %v4207
  %4458 = vmatpush.msra.mxu0 %v4204
  %4459 = vmatpush.msra.mxu0 %v4201
  %4460 = vmatpush.msra.mxu0 %v4198
  %4461 = vmatmul.f32.gmra.mxu0 %v4405
  %v4462 = vpop.f32.mrf.mxu0
  %v4463 = vadd.f32 %v4393, %v4462
  %4464 = vmatmul.f32.gmra.mxu0 %v4408
  %v4465 = vpop.f32.mrf.mxu0
  %v4466 = vadd.f32 %v4396, %v4465
  %4467 = vmatmul.f32.gmra.mxu0 %v4411
  %v4468 = vpop.f32.mrf.mxu0
  %v4469 = vadd.f32 %v4399, %v4468
  %4470 = vmatmul.f32.gmra.mxu0 %v4414
  %v4471 = vpop.f32.mrf.mxu0
  %v4472 = vadd.f32 %v4402, %v4471
  %4473 = vdwg.mxu0
  %4474 = vmatpush.msra.mxu0 %v511
  %4475 = vmatpush.msra.mxu0 %v509
  %4476 = vmatpush.msra.mxu0 %v507
  %4477 = vmatpush.msra.mxu0 %v505
  %4478 = vmatpush.msra.mxu0 %v503
  %4479 = vmatpush.msra.mxu0 %v501
  %4480 = vmatpush.msra.mxu0 %v499
  %4481 = vmatpush.msra.mxu0 %v497
  %4482 = vmatpush.msra.mxu0 %v495
  %4483 = vmatpush.msra.mxu0 %v493
  %4484 = vmatpush.msra.mxu0 %v491
  %4485 = vmatpush.msra.mxu0 %v489
  %4486 = vmatpush.msra.mxu0 %v487
  %4487 = vmatpush.msra.mxu0 %v485
  %4488 = vmatpush.msra.mxu0 %v483
  %4489 = vmatpush.msra.mxu0 %v481
  %4490 = vmatmul.f32.gmra.mxu0 %v4085
  %v4491 = vpop.f32.mrf.mxu0
  %v4492 = vadd.f32 0.0, %v4491
  %4493 = vmatmul.f32.gmra.mxu0 %v4087
  %v4494 = vpop.f32.mrf.mxu0
  %v4495 = vadd.f32 0.0, %v4494
  %4496 = vmatmul.f32.gmra.mxu0 %v4089
  %v4497 = vpop.f32.mrf.mxu0
  %v4498 = vadd.f32 0.0, %v4497
  %4499 = vmatmul.f32.gmra.mxu0 %v4091
  %v4500 = vpop.f32.mrf.mxu0
  %v4501 = vadd.f32 0.0, %v4500
  %4502 = vdwg.mxu0
  %4503 = vmatpush.msra.mxu0 %v543
  %4504 = vmatpush.msra.mxu0 %v541
  %4505 = vmatpush.msra.mxu0 %v539
  %4506 = vmatpush.msra.mxu0 %v537
  %4507 = vmatpush.msra.mxu0 %v535
  %4508 = vmatpush.msra.mxu0 %v533
  %4509 = vmatpush.msra.mxu0 %v531
  %4510 = vmatpush.msra.mxu0 %v529
  %4511 = vmatpush.msra.mxu0 %v527
  %4512 = vmatpush.msra.mxu0 %v525
  %4513 = vmatpush.msra.mxu0 %v523
  %4514 = vmatpush.msra.mxu0 %v521
  %4515 = vmatpush.msra.mxu0 %v519
  %4516 = vmatpush.msra.mxu0 %v517
  %4517 = vmatpush.msra.mxu0 %v515
  %4518 = vmatpush.msra.mxu0 %v513
  %4519 = vmatmul.f32.gmra.mxu0 %v4086
  %v4520 = vpop.f32.mrf.mxu0
  %v4521 = vadd.f32 %v4492, %v4520
  %4522 = vmatmul.f32.gmra.mxu0 %v4088
  %v4523 = vpop.f32.mrf.mxu0
  %v4524 = vadd.f32 %v4495, %v4523
  %4525 = vmatmul.f32.gmra.mxu0 %v4090
  %v4526 = vpop.f32.mrf.mxu0
  %v4527 = vadd.f32 %v4498, %v4526
  %4528 = vmatmul.f32.gmra.mxu0 %v4092
  %v4529 = vpop.f32.mrf.mxu0
  %v4530 = vadd.f32 %v4501, %v4529
  %4531 = vdwg.mxu0
  %4532 = vmatpush.msra.mxu0 %v512
  %4533 = vmatpush.msra.mxu0 %v510
  %4534 = vmatpush.msra.mxu0 %v508
  %4535 = vmatpush.msra.mxu0 %v506
  %4536 = vmatpush.msra.mxu0 %v504
  %4537 = vmatpush.msra.mxu0 %v502
  %4538 = vmatpush.msra.mxu0 %v500
  %4539 = vmatpush.msra.mxu0 %v498
  %4540 = vmatpush.msra.mxu0 %v496
  %4541 = vmatpush.msra.mxu0 %v494
  %4542 = vmatpush.msra.mxu0 %v492
  %4543 = vmatpush.msra.mxu0 %v490
  %4544 = vmatpush.msra.mxu0 %v488
  %4545 = vmatpush.msra.mxu0 %v486
  %4546 = vmatpush.msra.mxu0 %v484
  %4547 = vmatpush.msra.mxu0 %v482
  %4548 = vmatmul.f32.gmra.mxu0 %v4085
  %v4549 = vpop.f32.mrf.mxu0
  %v4550 = vadd.f32 0.0, %v4549
  %4551 = vmatmul.f32.gmra.mxu0 %v4087
  %v4552 = vpop.f32.mrf.mxu0
  %v4553 = vadd.f32 0.0, %v4552
  %4554 = vmatmul.f32.gmra.mxu0 %v4089
  %v4555 = vpop.f32.mrf.mxu0
  %v4556 = vadd.f32 0.0, %v4555
  %4557 = vmatmul.f32.gmra.mxu0 %v4091
  %v4558 = vpop.f32.mrf.mxu0
  %v4559 = vadd.f32 0.0, %v4558
  %4560 = vdwg.mxu0
  %4561 = vmatpush.msra.mxu0 %v544
  %4562 = vmatpush.msra.mxu0 %v542
  %4563 = vmatpush.msra.mxu0 %v540
  %4564 = vmatpush.msra.mxu0 %v538
  %4565 = vmatpush.msra.mxu0 %v536
  %4566 = vmatpush.msra.mxu0 %v534
  %4567 = vmatpush.msra.mxu0 %v532
  %4568 = vmatpush.msra.mxu0 %v530
  %4569 = vmatpush.msra.mxu0 %v528
  %4570 = vmatpush.msra.mxu0 %v526
  %4571 = vmatpush.msra.mxu0 %v524
  %4572 = vmatpush.msra.mxu0 %v522
  %4573 = vmatpush.msra.mxu0 %v520
  %4574 = vmatpush.msra.mxu0 %v518
  %4575 = vmatpush.msra.mxu0 %v516
  %4576 = vmatpush.msra.mxu0 %v514
  %4577 = vmatmul.f32.gmra.mxu0 %v4086
  %v4578 = vpop.f32.mrf.mxu0
  %v4579 = vadd.f32 %v4550, %v4578
  %4580 = vmatmul.f32.gmra.mxu0 %v4088
  %v4581 = vpop.f32.mrf.mxu0
  %v4582 = vadd.f32 %v4553, %v4581
  %4583 = vmatmul.f32.gmra.mxu0 %v4090
  %v4584 = vpop.f32.mrf.mxu0
  %v4585 = vadd.f32 %v4556, %v4584
  %4586 = vmatmul.f32.gmra.mxu0 %v4092
  %v4587 = vpop.f32.mrf.mxu0
  %v4588 = vadd.f32 %v4559, %v4587
  %4589 = vdwg.mxu0
  %s4590 = scalar_lea.vmem %s8, 64
  %v4591 = vld [vmem:[%s4590] sm:$0xff]
  %v4592 = vld [vmem:[%s4590 + $0x8] sm:$0xff]
  %v4593 = vld [vmem:[%s4590 + $0x10] sm:$0xff]
  %v4594 = vld [vmem:[%s4590 + $0x18] sm:$0xff]
  %v4596 = vsel %vm3794, %v4591, 0
  %v4599 = vsel %vm3794, %v4592, 0
  %v4602 = vsel %vm3794, %v4593, 0
  %v4605 = vsel %vm3794, %v4594, 0
  %4607 = vmatpush.msra.mxu0 0.0
  %4608 = vmatpush.msra.mxu0 0.0
  %4609 = vmatpush.msra.mxu0 0.0
  %4610 = vmatpush.msra.mxu0 0.0
  %4611 = vmatpush.msra.mxu0 0.0
  %4612 = vmatpush.msra.mxu0 0.0
  %4613 = vmatpush.msra.mxu0 0.0
  %4614 = vmatpush.msra.mxu0 0.0
  %4615 = vmatpush.msra.mxu0 0.0
  %4616 = vmatpush.msra.mxu0 0.0
  %4617 = vmatpush.msra.mxu0 0.0
  %4618 = vmatpush.msra.mxu0 0.0
  %4619 = vmatpush.msra.mxu0 %v4530
  %4620 = vmatpush.msra.mxu0 %v4527
  %4621 = vmatpush.msra.mxu0 %v4524
  %4622 = vmatpush.msra.mxu0 %v4521
  %4623 = vmatmul.f32.gmra.mxu0 %v4596
  %v4624 = vpop.f32.mrf.mxu0
  %v4625 = vadd.f32 0.0, %v4624
  %4626 = vmatmul.f32.gmra.mxu0 %v4599
  %v4627 = vpop.f32.mrf.mxu0
  %v4628 = vadd.f32 0.0, %v4627
  %4629 = vmatmul.f32.gmra.mxu0 %v4602
  %v4630 = vpop.f32.mrf.mxu0
  %v4631 = vadd.f32 0.0, %v4630
  %4632 = vmatmul.f32.gmra.mxu0 %v4605
  %v4633 = vpop.f32.mrf.mxu0
  %v4634 = vadd.f32 0.0, %v4633
  %4635 = vdwg.mxu0
  %4636 = vmatpush.msra.mxu0 0.0
  %4637 = vmatpush.msra.mxu0 0.0
  %4638 = vmatpush.msra.mxu0 0.0
  %4639 = vmatpush.msra.mxu0 0.0
  %4640 = vmatpush.msra.mxu0 0.0
  %4641 = vmatpush.msra.mxu0 0.0
  %4642 = vmatpush.msra.mxu0 0.0
  %4643 = vmatpush.msra.mxu0 0.0
  %4644 = vmatpush.msra.mxu0 0.0
  %4645 = vmatpush.msra.mxu0 0.0
  %4646 = vmatpush.msra.mxu0 0.0
  %4647 = vmatpush.msra.mxu0 0.0
  %4648 = vmatpush.msra.mxu0 %v4588
  %4649 = vmatpush.msra.mxu0 %v4585
  %4650 = vmatpush.msra.mxu0 %v4582
  %4651 = vmatpush.msra.mxu0 %v4579
  %4652 = vmatmul.f32.gmra.mxu0 %v4596
  %v4653 = vpop.f32.mrf.mxu0
  %v4654 = vadd.f32 0.0, %v4653
  %4655 = vmatmul.f32.gmra.mxu0 %v4599
  %v4656 = vpop.f32.mrf.mxu0
  %v4657 = vadd.f32 0.0, %v4656
  %4658 = vmatmul.f32.gmra.mxu0 %v4602
  %v4659 = vpop.f32.mrf.mxu0
  %v4660 = vadd.f32 0.0, %v4659
  %4661 = vmatmul.f32.gmra.mxu0 %v4605
  %v4662 = vpop.f32.mrf.mxu0
  %v4663 = vadd.f32 0.0, %v4662
  %4664 = vdwg.mxu0
  %v4665 = vadd.f32 %v4434, %v4625
  %v4666 = vadd.f32 %v4463, %v4654
  %v4667 = vadd.f32 %v4437, %v4628
  %v4668 = vadd.f32 %v4466, %v4657
  %v4669 = vadd.f32 %v4440, %v4631
  %v4670 = vadd.f32 %v4469, %v4660
  %v4671 = vadd.f32 %v4443, %v4634
  %v4672 = vadd.f32 %v4472, %v4663
  %4673 = vmatpush.msra.mxu0 %v726
  %4674 = vmatpush.msra.mxu0 %v724
  %4675 = vmatpush.msra.mxu0 %v722
  %4676 = vmatpush.msra.mxu0 %v720
  %4677 = vmatpush.msra.mxu0 %v718
  %4678 = vmatpush.msra.mxu0 %v716
  %4679 = vmatpush.msra.mxu0 %v714
  %4680 = vmatpush.msra.mxu0 %v712
  %4681 = vmatpush.msra.mxu0 %v710
  %4682 = vmatpush.msra.mxu0 %v708
  %4683 = vmatpush.msra.mxu0 %v706
  %4684 = vmatpush.msra.mxu0 %v704
  %4685 = vmatpush.msra.mxu0 %v702
  %4686 = vmatpush.msra.mxu0 %v700
  %4687 = vmatpush.msra.mxu0 %v698
  %4688 = vmatpush.msra.mxu0 %v696
  %4689 = vmatmul.f32.gmra.mxu0 %v4085
  %v4690 = vpop.f32.mrf.mxu0
  %v4691 = vadd.f32 0.0, %v4690
  %4692 = vmatmul.f32.gmra.mxu0 %v4087
  %v4693 = vpop.f32.mrf.mxu0
  %v4694 = vadd.f32 0.0, %v4693
  %4695 = vmatmul.f32.gmra.mxu0 %v4089
  %v4696 = vpop.f32.mrf.mxu0
  %v4697 = vadd.f32 0.0, %v4696
  %4698 = vmatmul.f32.gmra.mxu0 %v4091
  %v4699 = vpop.f32.mrf.mxu0
  %v4700 = vadd.f32 0.0, %v4699
  %4701 = vdwg.mxu0
  %4702 = vmatpush.msra.mxu0 %v758
  %4703 = vmatpush.msra.mxu0 %v756
  %4704 = vmatpush.msra.mxu0 %v754
  %4705 = vmatpush.msra.mxu0 %v752
  %4706 = vmatpush.msra.mxu0 %v750
  %4707 = vmatpush.msra.mxu0 %v748
  %4708 = vmatpush.msra.mxu0 %v746
  %4709 = vmatpush.msra.mxu0 %v744
  %4710 = vmatpush.msra.mxu0 %v742
  %4711 = vmatpush.msra.mxu0 %v740
  %4712 = vmatpush.msra.mxu0 %v738
  %4713 = vmatpush.msra.mxu0 %v736
  %4714 = vmatpush.msra.mxu0 %v734
  %4715 = vmatpush.msra.mxu0 %v732
  %4716 = vmatpush.msra.mxu0 %v730
  %4717 = vmatpush.msra.mxu0 %v728
  %4718 = vmatmul.f32.gmra.mxu0 %v4086
  %v4719 = vpop.f32.mrf.mxu0
  %v4720 = vadd.f32 %v4691, %v4719
  %4721 = vmatmul.f32.gmra.mxu0 %v4088
  %v4722 = vpop.f32.mrf.mxu0
  %v4723 = vadd.f32 %v4694, %v4722
  %4724 = vmatmul.f32.gmra.mxu0 %v4090
  %v4725 = vpop.f32.mrf.mxu0
  %v4726 = vadd.f32 %v4697, %v4725
  %4727 = vmatmul.f32.gmra.mxu0 %v4092
  %v4728 = vpop.f32.mrf.mxu0
  %v4729 = vadd.f32 %v4700, %v4728
  %4730 = vdwg.mxu0
  %4731 = vmatpush.msra.mxu0 %v727
  %4732 = vmatpush.msra.mxu0 %v725
  %4733 = vmatpush.msra.mxu0 %v723
  %4734 = vmatpush.msra.mxu0 %v721
  %4735 = vmatpush.msra.mxu0 %v719
  %4736 = vmatpush.msra.mxu0 %v717
  %4737 = vmatpush.msra.mxu0 %v715
  %4738 = vmatpush.msra.mxu0 %v713
  %4739 = vmatpush.msra.mxu0 %v711
  %4740 = vmatpush.msra.mxu0 %v709
  %4741 = vmatpush.msra.mxu0 %v707
  %4742 = vmatpush.msra.mxu0 %v705
  %4743 = vmatpush.msra.mxu0 %v703
  %4744 = vmatpush.msra.mxu0 %v701
  %4745 = vmatpush.msra.mxu0 %v699
  %4746 = vmatpush.msra.mxu0 %v697
  %4747 = vmatmul.f32.gmra.mxu0 %v4085
  %v4748 = vpop.f32.mrf.mxu0
  %v4749 = vadd.f32 0.0, %v4748
  %4750 = vmatmul.f32.gmra.mxu0 %v4087
  %v4751 = vpop.f32.mrf.mxu0
  %v4752 = vadd.f32 0.0, %v4751
  %4753 = vmatmul.f32.gmra.mxu0 %v4089
  %v4754 = vpop.f32.mrf.mxu0
  %v4755 = vadd.f32 0.0, %v4754
  %4756 = vmatmul.f32.gmra.mxu0 %v4091
  %v4757 = vpop.f32.mrf.mxu0
  %v4758 = vadd.f32 0.0, %v4757
  %4759 = vdwg.mxu0
  %4760 = vmatpush.msra.mxu0 %v759
  %4761 = vmatpush.msra.mxu0 %v757
  %4762 = vmatpush.msra.mxu0 %v755
  %4763 = vmatpush.msra.mxu0 %v753
  %4764 = vmatpush.msra.mxu0 %v751
  %4765 = vmatpush.msra.mxu0 %v749
  %4766 = vmatpush.msra.mxu0 %v747
  %4767 = vmatpush.msra.mxu0 %v745
  %4768 = vmatpush.msra.mxu0 %v743
  %4769 = vmatpush.msra.mxu0 %v741
  %4770 = vmatpush.msra.mxu0 %v739
  %4771 = vmatpush.msra.mxu0 %v737
  %4772 = vmatpush.msra.mxu0 %v735
  %4773 = vmatpush.msra.mxu0 %v733
  %4774 = vmatpush.msra.mxu0 %v731
  %4775 = vmatpush.msra.mxu0 %v729
  %4776 = vmatmul.f32.gmra.mxu0 %v4086
  %v4777 = vpop.f32.mrf.mxu0
  %v4778 = vadd.f32 %v4749, %v4777
  %4779 = vmatmul.f32.gmra.mxu0 %v4088
  %v4780 = vpop.f32.mrf.mxu0
  %v4781 = vadd.f32 %v4752, %v4780
  %4782 = vmatmul.f32.gmra.mxu0 %v4090
  %v4783 = vpop.f32.mrf.mxu0
  %v4784 = vadd.f32 %v4755, %v4783
  %4785 = vmatmul.f32.gmra.mxu0 %v4092
  %v4786 = vpop.f32.mrf.mxu0
  %v4787 = vadd.f32 %v4758, %v4786
  %4788 = vdwg.mxu0
  %s4789 = scalar_lea.vmem %s8, 96
  %v4790 = vld [vmem:[%s4789] sm:$0xff]
  %v4791 = vld [vmem:[%s4789 + $0x8] sm:$0xff]
  %v4792 = vld [vmem:[%s4789 + $0x10] sm:$0xff]
  %v4793 = vld [vmem:[%s4789 + $0x18] sm:$0xff]
  %v4795 = vsel %vm3794, %v4790, 0
  %v4798 = vsel %vm3794, %v4791, 0
  %v4801 = vsel %vm3794, %v4792, 0
  %v4804 = vsel %vm3794, %v4793, 0
  %4806 = vmatpush.msra.mxu0 0.0
  %4807 = vmatpush.msra.mxu0 0.0
  %4808 = vmatpush.msra.mxu0 0.0
  %4809 = vmatpush.msra.mxu0 0.0
  %4810 = vmatpush.msra.mxu0 0.0
  %4811 = vmatpush.msra.mxu0 0.0
  %4812 = vmatpush.msra.mxu0 0.0
  %4813 = vmatpush.msra.mxu0 0.0
  %4814 = vmatpush.msra.mxu0 0.0
  %4815 = vmatpush.msra.mxu0 0.0
  %4816 = vmatpush.msra.mxu0 0.0
  %4817 = vmatpush.msra.mxu0 0.0
  %4818 = vmatpush.msra.mxu0 %v4729
  %4819 = vmatpush.msra.mxu0 %v4726
  %4820 = vmatpush.msra.mxu0 %v4723
  %4821 = vmatpush.msra.mxu0 %v4720
  %4822 = vmatmul.f32.gmra.mxu0 %v4795
  %v4823 = vpop.f32.mrf.mxu0
  %v4824 = vadd.f32 0.0, %v4823
  %4825 = vmatmul.f32.gmra.mxu0 %v4798
  %v4826 = vpop.f32.mrf.mxu0
  %v4827 = vadd.f32 0.0, %v4826
  %4828 = vmatmul.f32.gmra.mxu0 %v4801
  %v4829 = vpop.f32.mrf.mxu0
  %v4830 = vadd.f32 0.0, %v4829
  %4831 = vmatmul.f32.gmra.mxu0 %v4804
  %v4832 = vpop.f32.mrf.mxu0
  %v4833 = vadd.f32 0.0, %v4832
  %4834 = vdwg.mxu0
  %4835 = vmatpush.msra.mxu0 0.0
  %4836 = vmatpush.msra.mxu0 0.0
  %4837 = vmatpush.msra.mxu0 0.0
  %4838 = vmatpush.msra.mxu0 0.0
  %4839 = vmatpush.msra.mxu0 0.0
  %4840 = vmatpush.msra.mxu0 0.0
  %4841 = vmatpush.msra.mxu0 0.0
  %4842 = vmatpush.msra.mxu0 0.0
  %4843 = vmatpush.msra.mxu0 0.0
  %4844 = vmatpush.msra.mxu0 0.0
  %4845 = vmatpush.msra.mxu0 0.0
  %4846 = vmatpush.msra.mxu0 0.0
  %4847 = vmatpush.msra.mxu0 %v4787
  %4848 = vmatpush.msra.mxu0 %v4784
  %4849 = vmatpush.msra.mxu0 %v4781
  %4850 = vmatpush.msra.mxu0 %v4778
  %4851 = vmatmul.f32.gmra.mxu0 %v4795
  %v4852 = vpop.f32.mrf.mxu0
  %v4853 = vadd.f32 0.0, %v4852
  %4854 = vmatmul.f32.gmra.mxu0 %v4798
  %v4855 = vpop.f32.mrf.mxu0
  %v4856 = vadd.f32 0.0, %v4855
  %4857 = vmatmul.f32.gmra.mxu0 %v4801
  %v4858 = vpop.f32.mrf.mxu0
  %v4859 = vadd.f32 0.0, %v4858
  %4860 = vmatmul.f32.gmra.mxu0 %v4804
  %v4861 = vpop.f32.mrf.mxu0
  %v4862 = vadd.f32 0.0, %v4861
  %4863 = vdwg.mxu0
  %v4864 = vadd.f32 %v4665, %v4824
  %v4865 = vadd.f32 %v4666, %v4853
  %v4866 = vadd.f32 %v4667, %v4827
  %v4867 = vadd.f32 %v4668, %v4856
  %v4868 = vadd.f32 %v4669, %v4830
  %v4869 = vadd.f32 %v4670, %v4859
  %v4870 = vadd.f32 %v4671, %v4833
  %v4871 = vadd.f32 %v4672, %v4862
  %4872 = vmatpush.msra.mxu0 %v941
  %4873 = vmatpush.msra.mxu0 %v939
  %4874 = vmatpush.msra.mxu0 %v937
  %4875 = vmatpush.msra.mxu0 %v935
  %4876 = vmatpush.msra.mxu0 %v933
  %4877 = vmatpush.msra.mxu0 %v931
  %4878 = vmatpush.msra.mxu0 %v929
  %4879 = vmatpush.msra.mxu0 %v927
  %4880 = vmatpush.msra.mxu0 %v925
  %4881 = vmatpush.msra.mxu0 %v923
  %4882 = vmatpush.msra.mxu0 %v921
  %4883 = vmatpush.msra.mxu0 %v919
  %4884 = vmatpush.msra.mxu0 %v917
  %4885 = vmatpush.msra.mxu0 %v915
  %4886 = vmatpush.msra.mxu0 %v913
  %4887 = vmatpush.msra.mxu0 %v911
  %4888 = vmatmul.f32.gmra.mxu0 %v4085
  %v4889 = vpop.f32.mrf.mxu0
  %v4890 = vadd.f32 0.0, %v4889
  %4891 = vmatmul.f32.gmra.mxu0 %v4087
  %v4892 = vpop.f32.mrf.mxu0
  %v4893 = vadd.f32 0.0, %v4892
  %4894 = vmatmul.f32.gmra.mxu0 %v4089
  %v4895 = vpop.f32.mrf.mxu0
  %v4896 = vadd.f32 0.0, %v4895
  %4897 = vmatmul.f32.gmra.mxu0 %v4091
  %v4898 = vpop.f32.mrf.mxu0
  %v4899 = vadd.f32 0.0, %v4898
  %4900 = vdwg.mxu0
  %4901 = vmatpush.msra.mxu0 %v973
  %4902 = vmatpush.msra.mxu0 %v971
  %4903 = vmatpush.msra.mxu0 %v969
  %4904 = vmatpush.msra.mxu0 %v967
  %4905 = vmatpush.msra.mxu0 %v965
  %4906 = vmatpush.msra.mxu0 %v963
  %4907 = vmatpush.msra.mxu0 %v961
  %4908 = vmatpush.msra.mxu0 %v959
  %4909 = vmatpush.msra.mxu0 %v957
  %4910 = vmatpush.msra.mxu0 %v955
  %4911 = vmatpush.msra.mxu0 %v953
  %4912 = vmatpush.msra.mxu0 %v951
  %4913 = vmatpush.msra.mxu0 %v949
  %4914 = vmatpush.msra.mxu0 %v947
  %4915 = vmatpush.msra.mxu0 %v945
  %4916 = vmatpush.msra.mxu0 %v943
  %4917 = vmatmul.f32.gmra.mxu0 %v4086
  %v4918 = vpop.f32.mrf.mxu0
  %v4919 = vadd.f32 %v4890, %v4918
  %4920 = vmatmul.f32.gmra.mxu0 %v4088
  %v4921 = vpop.f32.mrf.mxu0
  %v4922 = vadd.f32 %v4893, %v4921
  %4923 = vmatmul.f32.gmra.mxu0 %v4090
  %v4924 = vpop.f32.mrf.mxu0
  %v4925 = vadd.f32 %v4896, %v4924
  %4926 = vmatmul.f32.gmra.mxu0 %v4092
  %v4927 = vpop.f32.mrf.mxu0
  %v4928 = vadd.f32 %v4899, %v4927
  %4929 = vdwg.mxu0
  %4930 = vmatpush.msra.mxu0 %v942
  %4931 = vmatpush.msra.mxu0 %v940
  %4932 = vmatpush.msra.mxu0 %v938
  %4933 = vmatpush.msra.mxu0 %v936
  %4934 = vmatpush.msra.mxu0 %v934
  %4935 = vmatpush.msra.mxu0 %v932
  %4936 = vmatpush.msra.mxu0 %v930
  %4937 = vmatpush.msra.mxu0 %v928
  %4938 = vmatpush.msra.mxu0 %v926
  %4939 = vmatpush.msra.mxu0 %v924
  %4940 = vmatpush.msra.mxu0 %v922
  %4941 = vmatpush.msra.mxu0 %v920
  %4942 = vmatpush.msra.mxu0 %v918
  %4943 = vmatpush.msra.mxu0 %v916
  %4944 = vmatpush.msra.mxu0 %v914
  %4945 = vmatpush.msra.mxu0 %v912
  %4946 = vmatmul.f32.gmra.mxu0 %v4085
  %v4947 = vpop.f32.mrf.mxu0
  %v4948 = vadd.f32 0.0, %v4947
  %4949 = vmatmul.f32.gmra.mxu0 %v4087
  %v4950 = vpop.f32.mrf.mxu0
  %v4951 = vadd.f32 0.0, %v4950
  %4952 = vmatmul.f32.gmra.mxu0 %v4089
  %v4953 = vpop.f32.mrf.mxu0
  %v4954 = vadd.f32 0.0, %v4953
  %4955 = vmatmul.f32.gmra.mxu0 %v4091
  %v4956 = vpop.f32.mrf.mxu0
  %v4957 = vadd.f32 0.0, %v4956
  %4958 = vdwg.mxu0
  %4959 = vmatpush.msra.mxu0 %v974
  %4960 = vmatpush.msra.mxu0 %v972
  %4961 = vmatpush.msra.mxu0 %v970
  %4962 = vmatpush.msra.mxu0 %v968
  %4963 = vmatpush.msra.mxu0 %v966
  %4964 = vmatpush.msra.mxu0 %v964
  %4965 = vmatpush.msra.mxu0 %v962
  %4966 = vmatpush.msra.mxu0 %v960
  %4967 = vmatpush.msra.mxu0 %v958
  %4968 = vmatpush.msra.mxu0 %v956
  %4969 = vmatpush.msra.mxu0 %v954
  %4970 = vmatpush.msra.mxu0 %v952
  %4971 = vmatpush.msra.mxu0 %v950
  %4972 = vmatpush.msra.mxu0 %v948
  %4973 = vmatpush.msra.mxu0 %v946
  %4974 = vmatpush.msra.mxu0 %v944
  %4975 = vmatmul.f32.gmra.mxu0 %v4086
  %v4976 = vpop.f32.mrf.mxu0
  %v4977 = vadd.f32 %v4948, %v4976
  %4978 = vmatmul.f32.gmra.mxu0 %v4088
  %v4979 = vpop.f32.mrf.mxu0
  %v4980 = vadd.f32 %v4951, %v4979
  %4981 = vmatmul.f32.gmra.mxu0 %v4090
  %v4982 = vpop.f32.mrf.mxu0
  %v4983 = vadd.f32 %v4954, %v4982
  %4984 = vmatmul.f32.gmra.mxu0 %v4092
  %v4985 = vpop.f32.mrf.mxu0
  %v4986 = vadd.f32 %v4957, %v4985
  %4987 = vdwg.mxu0
  %s4988 = scalar_lea.vmem %s8, 128
  %v4989 = vld [vmem:[%s4988] sm:$0xff]
  %v4990 = vld [vmem:[%s4988 + $0x8] sm:$0xff]
  %v4991 = vld [vmem:[%s4988 + $0x10] sm:$0xff]
  %v4992 = vld [vmem:[%s4988 + $0x18] sm:$0xff]
  %v4994 = vsel %vm3794, %v4989, 0
  %v4997 = vsel %vm3794, %v4990, 0
  %v5000 = vsel %vm3794, %v4991, 0
  %v5003 = vsel %vm3794, %v4992, 0
  %5005 = vmatpush.msra.mxu0 0.0
  %5006 = vmatpush.msra.mxu0 0.0
  %5007 = vmatpush.msra.mxu0 0.0
  %5008 = vmatpush.msra.mxu0 0.0
  %5009 = vmatpush.msra.mxu0 0.0
  %5010 = vmatpush.msra.mxu0 0.0
  %5011 = vmatpush.msra.mxu0 0.0
  %5012 = vmatpush.msra.mxu0 0.0
  %5013 = vmatpush.msra.mxu0 0.0
  %5014 = vmatpush.msra.mxu0 0.0
  %5015 = vmatpush.msra.mxu0 0.0
  %5016 = vmatpush.msra.mxu0 0.0
  %5017 = vmatpush.msra.mxu0 %v4928
  %5018 = vmatpush.msra.mxu0 %v4925
  %5019 = vmatpush.msra.mxu0 %v4922
  %5020 = vmatpush.msra.mxu0 %v4919
  %5021 = vmatmul.f32.gmra.mxu0 %v4994
  %v5022 = vpop.f32.mrf.mxu0
  %v5023 = vadd.f32 0.0, %v5022
  %5024 = vmatmul.f32.gmra.mxu0 %v4997
  %v5025 = vpop.f32.mrf.mxu0
  %v5026 = vadd.f32 0.0, %v5025
  %5027 = vmatmul.f32.gmra.mxu0 %v5000
  %v5028 = vpop.f32.mrf.mxu0
  %v5029 = vadd.f32 0.0, %v5028
  %5030 = vmatmul.f32.gmra.mxu0 %v5003
  %v5031 = vpop.f32.mrf.mxu0
  %v5032 = vadd.f32 0.0, %v5031
  %5033 = vdwg.mxu0
  %5034 = vmatpush.msra.mxu0 0.0
  %5035 = vmatpush.msra.mxu0 0.0
  %5036 = vmatpush.msra.mxu0 0.0
  %5037 = vmatpush.msra.mxu0 0.0
  %5038 = vmatpush.msra.mxu0 0.0
  %5039 = vmatpush.msra.mxu0 0.0
  %5040 = vmatpush.msra.mxu0 0.0
  %5041 = vmatpush.msra.mxu0 0.0
  %5042 = vmatpush.msra.mxu0 0.0
  %5043 = vmatpush.msra.mxu0 0.0
  %5044 = vmatpush.msra.mxu0 0.0
  %5045 = vmatpush.msra.mxu0 0.0
  %5046 = vmatpush.msra.mxu0 %v4986
  %5047 = vmatpush.msra.mxu0 %v4983
  %5048 = vmatpush.msra.mxu0 %v4980
  %5049 = vmatpush.msra.mxu0 %v4977
  %5050 = vmatmul.f32.gmra.mxu0 %v4994
  %v5051 = vpop.f32.mrf.mxu0
  %v5052 = vadd.f32 0.0, %v5051
  %5053 = vmatmul.f32.gmra.mxu0 %v4997
  %v5054 = vpop.f32.mrf.mxu0
  %v5055 = vadd.f32 0.0, %v5054
  %5056 = vmatmul.f32.gmra.mxu0 %v5000
  %v5057 = vpop.f32.mrf.mxu0
  %v5058 = vadd.f32 0.0, %v5057
  %5059 = vmatmul.f32.gmra.mxu0 %v5003
  %v5060 = vpop.f32.mrf.mxu0
  %v5061 = vadd.f32 0.0, %v5060
  %5062 = vdwg.mxu0
  %v5063 = vadd.f32 %v4864, %v5023
  %v5064 = vadd.f32 %v4865, %v5052
  %v5065 = vadd.f32 %v4866, %v5026
  %v5066 = vadd.f32 %v4867, %v5055
  %v5067 = vadd.f32 %v4868, %v5029
  %v5068 = vadd.f32 %v4869, %v5058
  %v5069 = vadd.f32 %v4870, %v5032
  %v5070 = vadd.f32 %v4871, %v5061
  %5071 = vmatpush.msra.mxu0 %v1156
  %5072 = vmatpush.msra.mxu0 %v1154
  %5073 = vmatpush.msra.mxu0 %v1152
  %5074 = vmatpush.msra.mxu0 %v1150
  %5075 = vmatpush.msra.mxu0 %v1148
  %5076 = vmatpush.msra.mxu0 %v1146
  %5077 = vmatpush.msra.mxu0 %v1144
  %5078 = vmatpush.msra.mxu0 %v1142
  %5079 = vmatpush.msra.mxu0 %v1140
  %5080 = vmatpush.msra.mxu0 %v1138
  %5081 = vmatpush.msra.mxu0 %v1136
  %5082 = vmatpush.msra.mxu0 %v1134
  %5083 = vmatpush.msra.mxu0 %v1132
  %5084 = vmatpush.msra.mxu0 %v1130
  %5085 = vmatpush.msra.mxu0 %v1128
  %5086 = vmatpush.msra.mxu0 %v1126
  %5087 = vmatmul.f32.gmra.mxu0 %v4085
  %v5088 = vpop.f32.mrf.mxu0
  %v5089 = vadd.f32 0.0, %v5088
  %5090 = vmatmul.f32.gmra.mxu0 %v4087
  %v5091 = vpop.f32.mrf.mxu0
  %v5092 = vadd.f32 0.0, %v5091
  %5093 = vmatmul.f32.gmra.mxu0 %v4089
  %v5094 = vpop.f32.mrf.mxu0
  %v5095 = vadd.f32 0.0, %v5094
  %5096 = vmatmul.f32.gmra.mxu0 %v4091
  %v5097 = vpop.f32.mrf.mxu0
  %v5098 = vadd.f32 0.0, %v5097
  %5099 = vdwg.mxu0
  %5100 = vmatpush.msra.mxu0 %v1188
  %5101 = vmatpush.msra.mxu0 %v1186
  %5102 = vmatpush.msra.mxu0 %v1184
  %5103 = vmatpush.msra.mxu0 %v1182
  %5104 = vmatpush.msra.mxu0 %v1180
  %5105 = vmatpush.msra.mxu0 %v1178
  %5106 = vmatpush.msra.mxu0 %v1176
  %5107 = vmatpush.msra.mxu0 %v1174
  %5108 = vmatpush.msra.mxu0 %v1172
  %5109 = vmatpush.msra.mxu0 %v1170
  %5110 = vmatpush.msra.mxu0 %v1168
  %5111 = vmatpush.msra.mxu0 %v1166
  %5112 = vmatpush.msra.mxu0 %v1164
  %5113 = vmatpush.msra.mxu0 %v1162
  %5114 = vmatpush.msra.mxu0 %v1160
  %5115 = vmatpush.msra.mxu0 %v1158
  %5116 = vmatmul.f32.gmra.mxu0 %v4086
  %v5117 = vpop.f32.mrf.mxu0
  %v5118 = vadd.f32 %v5089, %v5117
  %5119 = vmatmul.f32.gmra.mxu0 %v4088
  %v5120 = vpop.f32.mrf.mxu0
  %v5121 = vadd.f32 %v5092, %v5120
  %5122 = vmatmul.f32.gmra.mxu0 %v4090
  %v5123 = vpop.f32.mrf.mxu0
  %v5124 = vadd.f32 %v5095, %v5123
  %5125 = vmatmul.f32.gmra.mxu0 %v4092
  %v5126 = vpop.f32.mrf.mxu0
  %v5127 = vadd.f32 %v5098, %v5126
  %5128 = vdwg.mxu0
  %5129 = vmatpush.msra.mxu0 %v1157
  %5130 = vmatpush.msra.mxu0 %v1155
  %5131 = vmatpush.msra.mxu0 %v1153
  %5132 = vmatpush.msra.mxu0 %v1151
  %5133 = vmatpush.msra.mxu0 %v1149
  %5134 = vmatpush.msra.mxu0 %v1147
  %5135 = vmatpush.msra.mxu0 %v1145
  %5136 = vmatpush.msra.mxu0 %v1143
  %5137 = vmatpush.msra.mxu0 %v1141
  %5138 = vmatpush.msra.mxu0 %v1139
  %5139 = vmatpush.msra.mxu0 %v1137
  %5140 = vmatpush.msra.mxu0 %v1135
  %5141 = vmatpush.msra.mxu0 %v1133
  %5142 = vmatpush.msra.mxu0 %v1131
  %5143 = vmatpush.msra.mxu0 %v1129
  %5144 = vmatpush.msra.mxu0 %v1127
  %5145 = vmatmul.f32.gmra.mxu0 %v4085
  %v5146 = vpop.f32.mrf.mxu0
  %v5147 = vadd.f32 0.0, %v5146
  %5148 = vmatmul.f32.gmra.mxu0 %v4087
  %v5149 = vpop.f32.mrf.mxu0
  %v5150 = vadd.f32 0.0, %v5149
  %5151 = vmatmul.f32.gmra.mxu0 %v4089
  %v5152 = vpop.f32.mrf.mxu0
  %v5153 = vadd.f32 0.0, %v5152
  %5154 = vmatmul.f32.gmra.mxu0 %v4091
  %v5155 = vpop.f32.mrf.mxu0
  %v5156 = vadd.f32 0.0, %v5155
  %5157 = vdwg.mxu0
  %5158 = vmatpush.msra.mxu0 %v1189
  %5159 = vmatpush.msra.mxu0 %v1187
  %5160 = vmatpush.msra.mxu0 %v1185
  %5161 = vmatpush.msra.mxu0 %v1183
  %5162 = vmatpush.msra.mxu0 %v1181
  %5163 = vmatpush.msra.mxu0 %v1179
  %5164 = vmatpush.msra.mxu0 %v1177
  %5165 = vmatpush.msra.mxu0 %v1175
  %5166 = vmatpush.msra.mxu0 %v1173
  %5167 = vmatpush.msra.mxu0 %v1171
  %5168 = vmatpush.msra.mxu0 %v1169
  %5169 = vmatpush.msra.mxu0 %v1167
  %5170 = vmatpush.msra.mxu0 %v1165
  %5171 = vmatpush.msra.mxu0 %v1163
  %5172 = vmatpush.msra.mxu0 %v1161
  %5173 = vmatpush.msra.mxu0 %v1159
  %5174 = vmatmul.f32.gmra.mxu0 %v4086
  %v5175 = vpop.f32.mrf.mxu0
  %v5176 = vadd.f32 %v5147, %v5175
  %5177 = vmatmul.f32.gmra.mxu0 %v4088
  %v5178 = vpop.f32.mrf.mxu0
  %v5179 = vadd.f32 %v5150, %v5178
  %5180 = vmatmul.f32.gmra.mxu0 %v4090
  %v5181 = vpop.f32.mrf.mxu0
  %v5182 = vadd.f32 %v5153, %v5181
  %5183 = vmatmul.f32.gmra.mxu0 %v4092
  %v5184 = vpop.f32.mrf.mxu0
  %v5185 = vadd.f32 %v5156, %v5184
  %5186 = vdwg.mxu0
  %s5187 = scalar_lea.vmem %s8, 160
  %v5188 = vld [vmem:[%s5187] sm:$0xff]
  %v5189 = vld [vmem:[%s5187 + $0x8] sm:$0xff]
  %v5190 = vld [vmem:[%s5187 + $0x10] sm:$0xff]
  %v5191 = vld [vmem:[%s5187 + $0x18] sm:$0xff]
  %v5193 = vsel %vm3794, %v5188, 0
  %v5196 = vsel %vm3794, %v5189, 0
  %v5199 = vsel %vm3794, %v5190, 0
  %v5202 = vsel %vm3794, %v5191, 0
  %5204 = vmatpush.msra.mxu0 0.0
  %5205 = vmatpush.msra.mxu0 0.0
  %5206 = vmatpush.msra.mxu0 0.0
  %5207 = vmatpush.msra.mxu0 0.0
  %5208 = vmatpush.msra.mxu0 0.0
  %5209 = vmatpush.msra.mxu0 0.0
  %5210 = vmatpush.msra.mxu0 0.0
  %5211 = vmatpush.msra.mxu0 0.0
  %5212 = vmatpush.msra.mxu0 0.0
  %5213 = vmatpush.msra.mxu0 0.0
  %5214 = vmatpush.msra.mxu0 0.0
  %5215 = vmatpush.msra.mxu0 0.0
  %5216 = vmatpush.msra.mxu0 %v5127
  %5217 = vmatpush.msra.mxu0 %v5124
  %5218 = vmatpush.msra.mxu0 %v5121
  %5219 = vmatpush.msra.mxu0 %v5118
  %5220 = vmatmul.f32.gmra.mxu0 %v5193
  %v5221 = vpop.f32.mrf.mxu0
  %v5222 = vadd.f32 0.0, %v5221
  %5223 = vmatmul.f32.gmra.mxu0 %v5196
  %v5224 = vpop.f32.mrf.mxu0
  %v5225 = vadd.f32 0.0, %v5224
  %5226 = vmatmul.f32.gmra.mxu0 %v5199
  %v5227 = vpop.f32.mrf.mxu0
  %v5228 = vadd.f32 0.0, %v5227
  %5229 = vmatmul.f32.gmra.mxu0 %v5202
  %v5230 = vpop.f32.mrf.mxu0
  %v5231 = vadd.f32 0.0, %v5230
  %5232 = vdwg.mxu0
  %5233 = vmatpush.msra.mxu0 0.0
  %5234 = vmatpush.msra.mxu0 0.0
  %5235 = vmatpush.msra.mxu0 0.0
  %5236 = vmatpush.msra.mxu0 0.0
  %5237 = vmatpush.msra.mxu0 0.0
  %5238 = vmatpush.msra.mxu0 0.0
  %5239 = vmatpush.msra.mxu0 0.0
  %5240 = vmatpush.msra.mxu0 0.0
  %5241 = vmatpush.msra.mxu0 0.0
  %5242 = vmatpush.msra.mxu0 0.0
  %5243 = vmatpush.msra.mxu0 0.0
  %5244 = vmatpush.msra.mxu0 0.0
  %5245 = vmatpush.msra.mxu0 %v5185
  %5246 = vmatpush.msra.mxu0 %v5182
  %5247 = vmatpush.msra.mxu0 %v5179
  %5248 = vmatpush.msra.mxu0 %v5176
  %5249 = vmatmul.f32.gmra.mxu0 %v5193
  %v5250 = vpop.f32.mrf.mxu0
  %v5251 = vadd.f32 0.0, %v5250
  %5252 = vmatmul.f32.gmra.mxu0 %v5196
  %v5253 = vpop.f32.mrf.mxu0
  %v5254 = vadd.f32 0.0, %v5253
  %5255 = vmatmul.f32.gmra.mxu0 %v5199
  %v5256 = vpop.f32.mrf.mxu0
  %v5257 = vadd.f32 0.0, %v5256
  %5258 = vmatmul.f32.gmra.mxu0 %v5202
  %v5259 = vpop.f32.mrf.mxu0
  %v5260 = vadd.f32 0.0, %v5259
  %5261 = vdwg.mxu0
  %v5262 = vadd.f32 %v5063, %v5222
  %v5263 = vadd.f32 %v5064, %v5251
  %v5264 = vadd.f32 %v5065, %v5225
  %v5265 = vadd.f32 %v5066, %v5254
  %v5266 = vadd.f32 %v5067, %v5228
  %v5267 = vadd.f32 %v5068, %v5257
  %v5268 = vadd.f32 %v5069, %v5231
  %v5269 = vadd.f32 %v5070, %v5260
  %5270 = vmatpush.msra.mxu0 %v1371
  %5271 = vmatpush.msra.mxu0 %v1369
  %5272 = vmatpush.msra.mxu0 %v1367
  %5273 = vmatpush.msra.mxu0 %v1365
  %5274 = vmatpush.msra.mxu0 %v1363
  %5275 = vmatpush.msra.mxu0 %v1361
  %5276 = vmatpush.msra.mxu0 %v1359
  %5277 = vmatpush.msra.mxu0 %v1357
  %5278 = vmatpush.msra.mxu0 %v1355
  %5279 = vmatpush.msra.mxu0 %v1353
  %5280 = vmatpush.msra.mxu0 %v1351
  %5281 = vmatpush.msra.mxu0 %v1349
  %5282 = vmatpush.msra.mxu0 %v1347
  %5283 = vmatpush.msra.mxu0 %v1345
  %5284 = vmatpush.msra.mxu0 %v1343
  %5285 = vmatpush.msra.mxu0 %v1341
  %5286 = vmatmul.f32.gmra.mxu0 %v4085
  %v5287 = vpop.f32.mrf.mxu0
  %v5288 = vadd.f32 0.0, %v5287
  %5289 = vmatmul.f32.gmra.mxu0 %v4087
  %v5290 = vpop.f32.mrf.mxu0
  %v5291 = vadd.f32 0.0, %v5290
  %5292 = vmatmul.f32.gmra.mxu0 %v4089
  %v5293 = vpop.f32.mrf.mxu0
  %v5294 = vadd.f32 0.0, %v5293
  %5295 = vmatmul.f32.gmra.mxu0 %v4091
  %v5296 = vpop.f32.mrf.mxu0
  %v5297 = vadd.f32 0.0, %v5296
  %5298 = vdwg.mxu0
  %5299 = vmatpush.msra.mxu0 %v1403
  %5300 = vmatpush.msra.mxu0 %v1401
  %5301 = vmatpush.msra.mxu0 %v1399
  %5302 = vmatpush.msra.mxu0 %v1397
  %5303 = vmatpush.msra.mxu0 %v1395
  %5304 = vmatpush.msra.mxu0 %v1393
  %5305 = vmatpush.msra.mxu0 %v1391
  %5306 = vmatpush.msra.mxu0 %v1389
  %5307 = vmatpush.msra.mxu0 %v1387
  %5308 = vmatpush.msra.mxu0 %v1385
  %5309 = vmatpush.msra.mxu0 %v1383
  %5310 = vmatpush.msra.mxu0 %v1381
  %5311 = vmatpush.msra.mxu0 %v1379
  %5312 = vmatpush.msra.mxu0 %v1377
  %5313 = vmatpush.msra.mxu0 %v1375
  %5314 = vmatpush.msra.mxu0 %v1373
  %5315 = vmatmul.f32.gmra.mxu0 %v4086
  %v5316 = vpop.f32.mrf.mxu0
  %v5317 = vadd.f32 %v5288, %v5316
  %5318 = vmatmul.f32.gmra.mxu0 %v4088
  %v5319 = vpop.f32.mrf.mxu0
  %v5320 = vadd.f32 %v5291, %v5319
  %5321 = vmatmul.f32.gmra.mxu0 %v4090
  %v5322 = vpop.f32.mrf.mxu0
  %v5323 = vadd.f32 %v5294, %v5322
  %5324 = vmatmul.f32.gmra.mxu0 %v4092
  %v5325 = vpop.f32.mrf.mxu0
  %v5326 = vadd.f32 %v5297, %v5325
  %5327 = vdwg.mxu0
  %5328 = vmatpush.msra.mxu0 %v1372
  %5329 = vmatpush.msra.mxu0 %v1370
  %5330 = vmatpush.msra.mxu0 %v1368
  %5331 = vmatpush.msra.mxu0 %v1366
  %5332 = vmatpush.msra.mxu0 %v1364
  %5333 = vmatpush.msra.mxu0 %v1362
  %5334 = vmatpush.msra.mxu0 %v1360
  %5335 = vmatpush.msra.mxu0 %v1358
  %5336 = vmatpush.msra.mxu0 %v1356
  %5337 = vmatpush.msra.mxu0 %v1354
  %5338 = vmatpush.msra.mxu0 %v1352
  %5339 = vmatpush.msra.mxu0 %v1350
  %5340 = vmatpush.msra.mxu0 %v1348
  %5341 = vmatpush.msra.mxu0 %v1346
  %5342 = vmatpush.msra.mxu0 %v1344
  %5343 = vmatpush.msra.mxu0 %v1342
  %5344 = vmatmul.f32.gmra.mxu0 %v4085
  %v5345 = vpop.f32.mrf.mxu0
  %v5346 = vadd.f32 0.0, %v5345
  %5347 = vmatmul.f32.gmra.mxu0 %v4087
  %v5348 = vpop.f32.mrf.mxu0
  %v5349 = vadd.f32 0.0, %v5348
  %5350 = vmatmul.f32.gmra.mxu0 %v4089
  %v5351 = vpop.f32.mrf.mxu0
  %v5352 = vadd.f32 0.0, %v5351
  %5353 = vmatmul.f32.gmra.mxu0 %v4091
  %v5354 = vpop.f32.mrf.mxu0
  %v5355 = vadd.f32 0.0, %v5354
  %5356 = vdwg.mxu0
  %5357 = vmatpush.msra.mxu0 %v1404
  %5358 = vmatpush.msra.mxu0 %v1402
  %5359 = vmatpush.msra.mxu0 %v1400
  %5360 = vmatpush.msra.mxu0 %v1398
  %5361 = vmatpush.msra.mxu0 %v1396
  %5362 = vmatpush.msra.mxu0 %v1394
  %5363 = vmatpush.msra.mxu0 %v1392
  %5364 = vmatpush.msra.mxu0 %v1390
  %5365 = vmatpush.msra.mxu0 %v1388
  %5366 = vmatpush.msra.mxu0 %v1386
  %5367 = vmatpush.msra.mxu0 %v1384
  %5368 = vmatpush.msra.mxu0 %v1382
  %5369 = vmatpush.msra.mxu0 %v1380
  %5370 = vmatpush.msra.mxu0 %v1378
  %5371 = vmatpush.msra.mxu0 %v1376
  %5372 = vmatpush.msra.mxu0 %v1374
  %5373 = vmatmul.f32.gmra.mxu0 %v4086
  %v5374 = vpop.f32.mrf.mxu0
  %v5375 = vadd.f32 %v5346, %v5374
  %5376 = vmatmul.f32.gmra.mxu0 %v4088
  %v5377 = vpop.f32.mrf.mxu0
  %v5378 = vadd.f32 %v5349, %v5377
  %5379 = vmatmul.f32.gmra.mxu0 %v4090
  %v5380 = vpop.f32.mrf.mxu0
  %v5381 = vadd.f32 %v5352, %v5380
  %5382 = vmatmul.f32.gmra.mxu0 %v4092
  %v5383 = vpop.f32.mrf.mxu0
  %v5384 = vadd.f32 %v5355, %v5383
  %5385 = vdwg.mxu0
  %s5386 = scalar_lea.vmem %s8, 192
  %v5387 = vld [vmem:[%s5386] sm:$0xff]
  %v5388 = vld [vmem:[%s5386 + $0x8] sm:$0xff]
  %v5389 = vld [vmem:[%s5386 + $0x10] sm:$0xff]
  %v5390 = vld [vmem:[%s5386 + $0x18] sm:$0xff]
  %v5392 = vsel %vm3794, %v5387, 0
  %v5395 = vsel %vm3794, %v5388, 0
  %v5398 = vsel %vm3794, %v5389, 0
  %v5401 = vsel %vm3794, %v5390, 0
  %5403 = vmatpush.msra.mxu0 0.0
  %5404 = vmatpush.msra.mxu0 0.0
  %5405 = vmatpush.msra.mxu0 0.0
  %5406 = vmatpush.msra.mxu0 0.0
  %5407 = vmatpush.msra.mxu0 0.0
  %5408 = vmatpush.msra.mxu0 0.0
  %5409 = vmatpush.msra.mxu0 0.0
  %5410 = vmatpush.msra.mxu0 0.0
  %5411 = vmatpush.msra.mxu0 0.0
  %5412 = vmatpush.msra.mxu0 0.0
  %5413 = vmatpush.msra.mxu0 0.0
  %5414 = vmatpush.msra.mxu0 0.0
  %5415 = vmatpush.msra.mxu0 %v5326
  %5416 = vmatpush.msra.mxu0 %v5323
  %5417 = vmatpush.msra.mxu0 %v5320
  %5418 = vmatpush.msra.mxu0 %v5317
  %5419 = vmatmul.f32.gmra.mxu0 %v5392
  %v5420 = vpop.f32.mrf.mxu0
  %v5421 = vadd.f32 0.0, %v5420
  %5422 = vmatmul.f32.gmra.mxu0 %v5395
  %v5423 = vpop.f32.mrf.mxu0
  %v5424 = vadd.f32 0.0, %v5423
  %5425 = vmatmul.f32.gmra.mxu0 %v5398
  %v5426 = vpop.f32.mrf.mxu0
  %v5427 = vadd.f32 0.0, %v5426
  %5428 = vmatmul.f32.gmra.mxu0 %v5401
  %v5429 = vpop.f32.mrf.mxu0
  %v5430 = vadd.f32 0.0, %v5429
  %5431 = vdwg.mxu0
  %5432 = vmatpush.msra.mxu0 0.0
  %5433 = vmatpush.msra.mxu0 0.0
  %5434 = vmatpush.msra.mxu0 0.0
  %5435 = vmatpush.msra.mxu0 0.0
  %5436 = vmatpush.msra.mxu0 0.0
  %5437 = vmatpush.msra.mxu0 0.0
  %5438 = vmatpush.msra.mxu0 0.0
  %5439 = vmatpush.msra.mxu0 0.0
  %5440 = vmatpush.msra.mxu0 0.0
  %5441 = vmatpush.msra.mxu0 0.0
  %5442 = vmatpush.msra.mxu0 0.0
  %5443 = vmatpush.msra.mxu0 0.0
  %5444 = vmatpush.msra.mxu0 %v5384
  %5445 = vmatpush.msra.mxu0 %v5381
  %5446 = vmatpush.msra.mxu0 %v5378
  %5447 = vmatpush.msra.mxu0 %v5375
  %5448 = vmatmul.f32.gmra.mxu0 %v5392
  %v5449 = vpop.f32.mrf.mxu0
  %v5450 = vadd.f32 0.0, %v5449
  %5451 = vmatmul.f32.gmra.mxu0 %v5395
  %v5452 = vpop.f32.mrf.mxu0
  %v5453 = vadd.f32 0.0, %v5452
  %5454 = vmatmul.f32.gmra.mxu0 %v5398
  %v5455 = vpop.f32.mrf.mxu0
  %v5456 = vadd.f32 0.0, %v5455
  %5457 = vmatmul.f32.gmra.mxu0 %v5401
  %v5458 = vpop.f32.mrf.mxu0
  %v5459 = vadd.f32 0.0, %v5458
  %5460 = vdwg.mxu0
  %v5461 = vadd.f32 %v5262, %v5421
  %v5462 = vadd.f32 %v5263, %v5450
  %v5463 = vadd.f32 %v5264, %v5424
  %v5464 = vadd.f32 %v5265, %v5453
  %v5465 = vadd.f32 %v5266, %v5427
  %v5466 = vadd.f32 %v5267, %v5456
  %v5467 = vadd.f32 %v5268, %v5430
  %v5468 = vadd.f32 %v5269, %v5459
  %5469 = vmatpush.msra.mxu0 %v1586
  %5470 = vmatpush.msra.mxu0 %v1584
  %5471 = vmatpush.msra.mxu0 %v1582
  %5472 = vmatpush.msra.mxu0 %v1580
  %5473 = vmatpush.msra.mxu0 %v1578
  %5474 = vmatpush.msra.mxu0 %v1576
  %5475 = vmatpush.msra.mxu0 %v1574
  %5476 = vmatpush.msra.mxu0 %v1572
  %5477 = vmatpush.msra.mxu0 %v1570
  %5478 = vmatpush.msra.mxu0 %v1568
  %5479 = vmatpush.msra.mxu0 %v1566
  %5480 = vmatpush.msra.mxu0 %v1564
  %5481 = vmatpush.msra.mxu0 %v1562
  %5482 = vmatpush.msra.mxu0 %v1560
  %5483 = vmatpush.msra.mxu0 %v1558
  %5484 = vmatpush.msra.mxu0 %v1556
  %5485 = vmatmul.f32.gmra.mxu0 %v4085
  %v5486 = vpop.f32.mrf.mxu0
  %v5487 = vadd.f32 0.0, %v5486
  %5488 = vmatmul.f32.gmra.mxu0 %v4087
  %v5489 = vpop.f32.mrf.mxu0
  %v5490 = vadd.f32 0.0, %v5489
  %5491 = vmatmul.f32.gmra.mxu0 %v4089
  %v5492 = vpop.f32.mrf.mxu0
  %v5493 = vadd.f32 0.0, %v5492
  %5494 = vmatmul.f32.gmra.mxu0 %v4091
  %v5495 = vpop.f32.mrf.mxu0
  %v5496 = vadd.f32 0.0, %v5495
  %5497 = vdwg.mxu0
  %5498 = vmatpush.msra.mxu0 %v1618
  %5499 = vmatpush.msra.mxu0 %v1616
  %5500 = vmatpush.msra.mxu0 %v1614
  %5501 = vmatpush.msra.mxu0 %v1612
  %5502 = vmatpush.msra.mxu0 %v1610
  %5503 = vmatpush.msra.mxu0 %v1608
  %5504 = vmatpush.msra.mxu0 %v1606
  %5505 = vmatpush.msra.mxu0 %v1604
  %5506 = vmatpush.msra.mxu0 %v1602
  %5507 = vmatpush.msra.mxu0 %v1600
  %5508 = vmatpush.msra.mxu0 %v1598
  %5509 = vmatpush.msra.mxu0 %v1596
  %5510 = vmatpush.msra.mxu0 %v1594
  %5511 = vmatpush.msra.mxu0 %v1592
  %5512 = vmatpush.msra.mxu0 %v1590
  %5513 = vmatpush.msra.mxu0 %v1588
  %5514 = vmatmul.f32.gmra.mxu0 %v4086
  %v5515 = vpop.f32.mrf.mxu0
  %v5516 = vadd.f32 %v5487, %v5515
  %5517 = vmatmul.f32.gmra.mxu0 %v4088
  %v5518 = vpop.f32.mrf.mxu0
  %v5519 = vadd.f32 %v5490, %v5518
  %5520 = vmatmul.f32.gmra.mxu0 %v4090
  %v5521 = vpop.f32.mrf.mxu0
  %v5522 = vadd.f32 %v5493, %v5521
  %5523 = vmatmul.f32.gmra.mxu0 %v4092
  %v5524 = vpop.f32.mrf.mxu0
  %v5525 = vadd.f32 %v5496, %v5524
  %5526 = vdwg.mxu0
  %5527 = vmatpush.msra.mxu0 %v1587
  %5528 = vmatpush.msra.mxu0 %v1585
  %5529 = vmatpush.msra.mxu0 %v1583
  %5530 = vmatpush.msra.mxu0 %v1581
  %5531 = vmatpush.msra.mxu0 %v1579
  %5532 = vmatpush.msra.mxu0 %v1577
  %5533 = vmatpush.msra.mxu0 %v1575
  %5534 = vmatpush.msra.mxu0 %v1573
  %5535 = vmatpush.msra.mxu0 %v1571
  %5536 = vmatpush.msra.mxu0 %v1569
  %5537 = vmatpush.msra.mxu0 %v1567
  %5538 = vmatpush.msra.mxu0 %v1565
  %5539 = vmatpush.msra.mxu0 %v1563
  %5540 = vmatpush.msra.mxu0 %v1561
  %5541 = vmatpush.msra.mxu0 %v1559
  %5542 = vmatpush.msra.mxu0 %v1557
  %5543 = vmatmul.f32.gmra.mxu0 %v4085
  %v5544 = vpop.f32.mrf.mxu0
  %v5545 = vadd.f32 0.0, %v5544
  %5546 = vmatmul.f32.gmra.mxu0 %v4087
  %v5547 = vpop.f32.mrf.mxu0
  %v5548 = vadd.f32 0.0, %v5547
  %5549 = vmatmul.f32.gmra.mxu0 %v4089
  %v5550 = vpop.f32.mrf.mxu0
  %v5551 = vadd.f32 0.0, %v5550
  %5552 = vmatmul.f32.gmra.mxu0 %v4091
  %v5553 = vpop.f32.mrf.mxu0
  %v5554 = vadd.f32 0.0, %v5553
  %5555 = vdwg.mxu0
  %5556 = vmatpush.msra.mxu0 %v1619
  %5557 = vmatpush.msra.mxu0 %v1617
  %5558 = vmatpush.msra.mxu0 %v1615
  %5559 = vmatpush.msra.mxu0 %v1613
  %5560 = vmatpush.msra.mxu0 %v1611
  %5561 = vmatpush.msra.mxu0 %v1609
  %5562 = vmatpush.msra.mxu0 %v1607
  %5563 = vmatpush.msra.mxu0 %v1605
  %5564 = vmatpush.msra.mxu0 %v1603
  %5565 = vmatpush.msra.mxu0 %v1601
  %5566 = vmatpush.msra.mxu0 %v1599
  %5567 = vmatpush.msra.mxu0 %v1597
  %5568 = vmatpush.msra.mxu0 %v1595
  %5569 = vmatpush.msra.mxu0 %v1593
  %5570 = vmatpush.msra.mxu0 %v1591
  %5571 = vmatpush.msra.mxu0 %v1589
  %5572 = vmatmul.f32.gmra.mxu0 %v4086
  %v5573 = vpop.f32.mrf.mxu0
  %v5574 = vadd.f32 %v5545, %v5573
  %5575 = vmatmul.f32.gmra.mxu0 %v4088
  %v5576 = vpop.f32.mrf.mxu0
  %v5577 = vadd.f32 %v5548, %v5576
  %5578 = vmatmul.f32.gmra.mxu0 %v4090
  %v5579 = vpop.f32.mrf.mxu0
  %v5580 = vadd.f32 %v5551, %v5579
  %5581 = vmatmul.f32.gmra.mxu0 %v4092
  %v5582 = vpop.f32.mrf.mxu0
  %v5583 = vadd.f32 %v5554, %v5582
  %5584 = vdwg.mxu0
  %s5585 = scalar_lea.vmem %s8, 224
  %v5586 = vld [vmem:[%s5585] sm:$0xff]
  %v5587 = vld [vmem:[%s5585 + $0x8] sm:$0xff]
  %v5588 = vld [vmem:[%s5585 + $0x10] sm:$0xff]
  %v5589 = vld [vmem:[%s5585 + $0x18] sm:$0xff]
  %v5591 = vsel %vm3794, %v5586, 0
  %v5594 = vsel %vm3794, %v5587, 0
  %v5597 = vsel %vm3794, %v5588, 0
  %v5600 = vsel %vm3794, %v5589, 0
  %5602 = vmatpush.msra.mxu0 0.0
  %5603 = vmatpush.msra.mxu0 0.0
  %5604 = vmatpush.msra.mxu0 0.0
  %5605 = vmatpush.msra.mxu0 0.0
  %5606 = vmatpush.msra.mxu0 0.0
  %5607 = vmatpush.msra.mxu0 0.0
  %5608 = vmatpush.msra.mxu0 0.0
  %5609 = vmatpush.msra.mxu0 0.0
  %5610 = vmatpush.msra.mxu0 0.0
  %5611 = vmatpush.msra.mxu0 0.0
  %5612 = vmatpush.msra.mxu0 0.0
  %5613 = vmatpush.msra.mxu0 0.0
  %5614 = vmatpush.msra.mxu0 %v5525
  %5615 = vmatpush.msra.mxu0 %v5522
  %5616 = vmatpush.msra.mxu0 %v5519
  %5617 = vmatpush.msra.mxu0 %v5516
  %5618 = vmatmul.f32.gmra.mxu0 %v5591
  %v5619 = vpop.f32.mrf.mxu0
  %v5620 = vadd.f32 0.0, %v5619
  %5621 = vmatmul.f32.gmra.mxu0 %v5594
  %v5622 = vpop.f32.mrf.mxu0
  %v5623 = vadd.f32 0.0, %v5622
  %5624 = vmatmul.f32.gmra.mxu0 %v5597
  %v5625 = vpop.f32.mrf.mxu0
  %v5626 = vadd.f32 0.0, %v5625
  %5627 = vmatmul.f32.gmra.mxu0 %v5600
  %v5628 = vpop.f32.mrf.mxu0
  %v5629 = vadd.f32 0.0, %v5628
  %5630 = vdwg.mxu0
  %5631 = vmatpush.msra.mxu0 0.0
  %5632 = vmatpush.msra.mxu0 0.0
  %5633 = vmatpush.msra.mxu0 0.0
  %5634 = vmatpush.msra.mxu0 0.0
  %5635 = vmatpush.msra.mxu0 0.0
  %5636 = vmatpush.msra.mxu0 0.0
  %5637 = vmatpush.msra.mxu0 0.0
  %5638 = vmatpush.msra.mxu0 0.0
  %5639 = vmatpush.msra.mxu0 0.0
  %5640 = vmatpush.msra.mxu0 0.0
  %5641 = vmatpush.msra.mxu0 0.0
  %5642 = vmatpush.msra.mxu0 0.0
  %5643 = vmatpush.msra.mxu0 %v5583
  %5644 = vmatpush.msra.mxu0 %v5580
  %5645 = vmatpush.msra.mxu0 %v5577
  %5646 = vmatpush.msra.mxu0 %v5574
  %5647 = vmatmul.f32.gmra.mxu0 %v5591
  %v5648 = vpop.f32.mrf.mxu0
  %v5649 = vadd.f32 0.0, %v5648
  %5650 = vmatmul.f32.gmra.mxu0 %v5594
  %v5651 = vpop.f32.mrf.mxu0
  %v5652 = vadd.f32 0.0, %v5651
  %5653 = vmatmul.f32.gmra.mxu0 %v5597
  %v5654 = vpop.f32.mrf.mxu0
  %v5655 = vadd.f32 0.0, %v5654
  %5656 = vmatmul.f32.gmra.mxu0 %v5600
  %v5657 = vpop.f32.mrf.mxu0
  %v5658 = vadd.f32 0.0, %v5657
  %5659 = vdwg.mxu0
  %v5660 = vadd.f32 %v5461, %v5620
  %v5661 = vadd.f32 %v5462, %v5649
  %v5662 = vadd.f32 %v5463, %v5623
  %v5663 = vadd.f32 %v5464, %v5652
  %v5664 = vadd.f32 %v5465, %v5626
  %v5665 = vadd.f32 %v5466, %v5655
  %v5666 = vadd.f32 %v5467, %v5629
  %v5667 = vadd.f32 %v5468, %v5658
  %5668 = vmatpush.msra.mxu0 %v1801
  %5669 = vmatpush.msra.mxu0 %v1799
  %5670 = vmatpush.msra.mxu0 %v1797
  %5671 = vmatpush.msra.mxu0 %v1795
  %5672 = vmatpush.msra.mxu0 %v1793
  %5673 = vmatpush.msra.mxu0 %v1791
  %5674 = vmatpush.msra.mxu0 %v1789
  %5675 = vmatpush.msra.mxu0 %v1787
  %5676 = vmatpush.msra.mxu0 %v1785
  %5677 = vmatpush.msra.mxu0 %v1783
  %5678 = vmatpush.msra.mxu0 %v1781
  %5679 = vmatpush.msra.mxu0 %v1779
  %5680 = vmatpush.msra.mxu0 %v1777
  %5681 = vmatpush.msra.mxu0 %v1775
  %5682 = vmatpush.msra.mxu0 %v1773
  %5683 = vmatpush.msra.mxu0 %v1771
  %5684 = vmatmul.f32.gmra.mxu0 %v4085
  %v5685 = vpop.f32.mrf.mxu0
  %v5686 = vadd.f32 0.0, %v5685
  %5687 = vmatmul.f32.gmra.mxu0 %v4087
  %v5688 = vpop.f32.mrf.mxu0
  %v5689 = vadd.f32 0.0, %v5688
  %5690 = vmatmul.f32.gmra.mxu0 %v4089
  %v5691 = vpop.f32.mrf.mxu0
  %v5692 = vadd.f32 0.0, %v5691
  %5693 = vmatmul.f32.gmra.mxu0 %v4091
  %v5694 = vpop.f32.mrf.mxu0
  %v5695 = vadd.f32 0.0, %v5694
  %5696 = vdwg.mxu0
  %5697 = vmatpush.msra.mxu0 %v1833
  %5698 = vmatpush.msra.mxu0 %v1831
  %5699 = vmatpush.msra.mxu0 %v1829
  %5700 = vmatpush.msra.mxu0 %v1827
  %5701 = vmatpush.msra.mxu0 %v1825
  %5702 = vmatpush.msra.mxu0 %v1823
  %5703 = vmatpush.msra.mxu0 %v1821
  %5704 = vmatpush.msra.mxu0 %v1819
  %5705 = vmatpush.msra.mxu0 %v1817
  %5706 = vmatpush.msra.mxu0 %v1815
  %5707 = vmatpush.msra.mxu0 %v1813
  %5708 = vmatpush.msra.mxu0 %v1811
  %5709 = vmatpush.msra.mxu0 %v1809
  %5710 = vmatpush.msra.mxu0 %v1807
  %5711 = vmatpush.msra.mxu0 %v1805
  %5712 = vmatpush.msra.mxu0 %v1803
  %5713 = vmatmul.f32.gmra.mxu0 %v4086
  %v5714 = vpop.f32.mrf.mxu0
  %v5715 = vadd.f32 %v5686, %v5714
  %5716 = vmatmul.f32.gmra.mxu0 %v4088
  %v5717 = vpop.f32.mrf.mxu0
  %v5718 = vadd.f32 %v5689, %v5717
  %5719 = vmatmul.f32.gmra.mxu0 %v4090
  %v5720 = vpop.f32.mrf.mxu0
  %v5721 = vadd.f32 %v5692, %v5720
  %5722 = vmatmul.f32.gmra.mxu0 %v4092
  %v5723 = vpop.f32.mrf.mxu0
  %v5724 = vadd.f32 %v5695, %v5723
  %5725 = vdwg.mxu0
  %5726 = vmatpush.msra.mxu0 %v1802
  %5727 = vmatpush.msra.mxu0 %v1800
  %5728 = vmatpush.msra.mxu0 %v1798
  %5729 = vmatpush.msra.mxu0 %v1796
  %5730 = vmatpush.msra.mxu0 %v1794
  %5731 = vmatpush.msra.mxu0 %v1792
  %5732 = vmatpush.msra.mxu0 %v1790
  %5733 = vmatpush.msra.mxu0 %v1788
  %5734 = vmatpush.msra.mxu0 %v1786
  %5735 = vmatpush.msra.mxu0 %v1784
  %5736 = vmatpush.msra.mxu0 %v1782
  %5737 = vmatpush.msra.mxu0 %v1780
  %5738 = vmatpush.msra.mxu0 %v1778
  %5739 = vmatpush.msra.mxu0 %v1776
  %5740 = vmatpush.msra.mxu0 %v1774
  %5741 = vmatpush.msra.mxu0 %v1772
  %5742 = vmatmul.f32.gmra.mxu0 %v4085
  %v5743 = vpop.f32.mrf.mxu0
  %v5744 = vadd.f32 0.0, %v5743
  %5745 = vmatmul.f32.gmra.mxu0 %v4087
  %v5746 = vpop.f32.mrf.mxu0
  %v5747 = vadd.f32 0.0, %v5746
  %5748 = vmatmul.f32.gmra.mxu0 %v4089
  %v5749 = vpop.f32.mrf.mxu0
  %v5750 = vadd.f32 0.0, %v5749
  %5751 = vmatmul.f32.gmra.mxu0 %v4091
  %v5752 = vpop.f32.mrf.mxu0
  %v5753 = vadd.f32 0.0, %v5752
  %5754 = vdwg.mxu0
  %5755 = vmatpush.msra.mxu0 %v1834
  %5756 = vmatpush.msra.mxu0 %v1832
  %5757 = vmatpush.msra.mxu0 %v1830
  %5758 = vmatpush.msra.mxu0 %v1828
  %5759 = vmatpush.msra.mxu0 %v1826
  %5760 = vmatpush.msra.mxu0 %v1824
  %5761 = vmatpush.msra.mxu0 %v1822
  %5762 = vmatpush.msra.mxu0 %v1820
  %5763 = vmatpush.msra.mxu0 %v1818
  %5764 = vmatpush.msra.mxu0 %v1816
  %5765 = vmatpush.msra.mxu0 %v1814
  %5766 = vmatpush.msra.mxu0 %v1812
  %5767 = vmatpush.msra.mxu0 %v1810
  %5768 = vmatpush.msra.mxu0 %v1808
  %5769 = vmatpush.msra.mxu0 %v1806
  %5770 = vmatpush.msra.mxu0 %v1804
  %5771 = vmatmul.f32.gmra.mxu0 %v4086
  %v5772 = vpop.f32.mrf.mxu0
  %v5773 = vadd.f32 %v5744, %v5772
  %5774 = vmatmul.f32.gmra.mxu0 %v4088
  %v5775 = vpop.f32.mrf.mxu0
  %v5776 = vadd.f32 %v5747, %v5775
  %5777 = vmatmul.f32.gmra.mxu0 %v4090
  %v5778 = vpop.f32.mrf.mxu0
  %v5779 = vadd.f32 %v5750, %v5778
  %5780 = vmatmul.f32.gmra.mxu0 %v4092
  %v5781 = vpop.f32.mrf.mxu0
  %v5782 = vadd.f32 %v5753, %v5781
  %5783 = vdwg.mxu0
  %s5784 = scalar_lea.vmem %s8, 256
  %v5785 = vld [vmem:[%s5784] sm:$0xff]
  %v5786 = vld [vmem:[%s5784 + $0x8] sm:$0xff]
  %v5787 = vld [vmem:[%s5784 + $0x10] sm:$0xff]
  %v5788 = vld [vmem:[%s5784 + $0x18] sm:$0xff]
  %v5790 = vsel %vm3794, %v5785, 0
  %v5793 = vsel %vm3794, %v5786, 0
  %v5796 = vsel %vm3794, %v5787, 0
  %v5799 = vsel %vm3794, %v5788, 0
  %5801 = vmatpush.msra.mxu0 0.0
  %5802 = vmatpush.msra.mxu0 0.0
  %5803 = vmatpush.msra.mxu0 0.0
  %5804 = vmatpush.msra.mxu0 0.0
  %5805 = vmatpush.msra.mxu0 0.0
  %5806 = vmatpush.msra.mxu0 0.0
  %5807 = vmatpush.msra.mxu0 0.0
  %5808 = vmatpush.msra.mxu0 0.0
  %5809 = vmatpush.msra.mxu0 0.0
  %5810 = vmatpush.msra.mxu0 0.0
  %5811 = vmatpush.msra.mxu0 0.0
  %5812 = vmatpush.msra.mxu0 0.0
  %5813 = vmatpush.msra.mxu0 %v5724
  %5814 = vmatpush.msra.mxu0 %v5721
  %5815 = vmatpush.msra.mxu0 %v5718
  %5816 = vmatpush.msra.mxu0 %v5715
  %5817 = vmatmul.f32.gmra.mxu0 %v5790
  %v5818 = vpop.f32.mrf.mxu0
  %v5819 = vadd.f32 0.0, %v5818
  %5820 = vmatmul.f32.gmra.mxu0 %v5793
  %v5821 = vpop.f32.mrf.mxu0
  %v5822 = vadd.f32 0.0, %v5821
  %5823 = vmatmul.f32.gmra.mxu0 %v5796
  %v5824 = vpop.f32.mrf.mxu0
  %v5825 = vadd.f32 0.0, %v5824
  %5826 = vmatmul.f32.gmra.mxu0 %v5799
  %v5827 = vpop.f32.mrf.mxu0
  %v5828 = vadd.f32 0.0, %v5827
  %5829 = vdwg.mxu0
  %5830 = vmatpush.msra.mxu0 0.0
  %5831 = vmatpush.msra.mxu0 0.0
  %5832 = vmatpush.msra.mxu0 0.0
  %5833 = vmatpush.msra.mxu0 0.0
  %5834 = vmatpush.msra.mxu0 0.0
  %5835 = vmatpush.msra.mxu0 0.0
  %5836 = vmatpush.msra.mxu0 0.0
  %5837 = vmatpush.msra.mxu0 0.0
  %5838 = vmatpush.msra.mxu0 0.0
  %5839 = vmatpush.msra.mxu0 0.0
  %5840 = vmatpush.msra.mxu0 0.0
  %5841 = vmatpush.msra.mxu0 0.0
  %5842 = vmatpush.msra.mxu0 %v5782
  %5843 = vmatpush.msra.mxu0 %v5779
  %5844 = vmatpush.msra.mxu0 %v5776
  %5845 = vmatpush.msra.mxu0 %v5773
  %5846 = vmatmul.f32.gmra.mxu0 %v5790
  %v5847 = vpop.f32.mrf.mxu0
  %v5848 = vadd.f32 0.0, %v5847
  %5849 = vmatmul.f32.gmra.mxu0 %v5793
  %v5850 = vpop.f32.mrf.mxu0
  %v5851 = vadd.f32 0.0, %v5850
  %5852 = vmatmul.f32.gmra.mxu0 %v5796
  %v5853 = vpop.f32.mrf.mxu0
  %v5854 = vadd.f32 0.0, %v5853
  %5855 = vmatmul.f32.gmra.mxu0 %v5799
  %v5856 = vpop.f32.mrf.mxu0
  %v5857 = vadd.f32 0.0, %v5856
  %5858 = vdwg.mxu0
  %v5859 = vadd.f32 %v5660, %v5819
  %v5860 = vadd.f32 %v5661, %v5848
  %v5861 = vadd.f32 %v5662, %v5822
  %v5862 = vadd.f32 %v5663, %v5851
  %v5863 = vadd.f32 %v5664, %v5825
  %v5864 = vadd.f32 %v5665, %v5854
  %v5865 = vadd.f32 %v5666, %v5828
  %v5866 = vadd.f32 %v5667, %v5857
  %v5867 = vld [vmem:[%s9] sm:$0xff]
  %v5868 = vld [vmem:[%s9 + $0x8] sm:$0xff]
  %v5869 = vld [vmem:[%s9 + $0x10] sm:$0xff]
  %v5870 = vld [vmem:[%s9 + $0x18] sm:$0xff]
  %5872 = vset.pattern.permute.xlu0 0
  %5873 = vperm.xlu0 %5872, %v5867
  %v5874 = vpop.permute.xlu0 %5873
  %5877 = vset.pattern.permute.xlu0 0
  %5878 = vperm.xlu0 %5877, %v5868
  %v5879 = vpop.permute.xlu0 %5878
  %5882 = vset.pattern.permute.xlu0 0
  %5883 = vperm.xlu0 %5882, %v5869
  %v5884 = vpop.permute.xlu0 %5883
  %5887 = vset.pattern.permute.xlu0 0
  %5888 = vperm.xlu0 %5887, %v5870
  %v5889 = vpop.permute.xlu0 %5888
  %v5891 = vadd.f32 %v5859, %v5874
  %v5892 = vadd.f32 %v5860, %v5874
  %v5893 = vadd.f32 %v5861, %v5879
  %v5894 = vadd.f32 %v5862, %v5879
  %v5895 = vadd.f32 %v5863, %v5884
  %v5896 = vadd.f32 %v5864, %v5884
  %v5897 = vadd.f32 %v5865, %v5889
  %v5898 = vadd.f32 %v5866, %v5889
  %v5899 = vmax.f32 %v5891, 0.0
  %v5900 = vmax.f32 %v5892, 0.0
  %v5901 = vmax.f32 %v5893, 0.0
  %v5902 = vmax.f32 %v5894, 0.0
  %v5903 = vmax.f32 %v5895, 0.0
  %v5904 = vmax.f32 %v5896, 0.0
  %v5905 = vmax.f32 %v5897, 0.0
  %v5906 = vmax.f32 %v5898, 0.0
  %v5907 = vld [vmem:[%s10] sm:$0xff]
  %v5908 = vld [vmem:[%s10 + $0x8] sm:$0xff]
  %v5909 = vld [vmem:[%s10 + $0x10] sm:$0xff]
  %v5910 = vld [vmem:[%s10 + $0x18] sm:$0xff]
  %v5912 = vsel %vm3794, %v5907, 0
  %v5915 = vsel %vm3794, %v5908, 0
  %v5918 = vsel %vm3794, %v5909, 0
  %v5921 = vsel %vm3794, %v5910, 0
  %5923 = vmatpush.msra.mxu0 0.0
  %5924 = vmatpush.msra.mxu0 0.0
  %5925 = vmatpush.msra.mxu0 0.0
  %5926 = vmatpush.msra.mxu0 0.0
  %5927 = vmatpush.msra.mxu0 0.0
  %5928 = vmatpush.msra.mxu0 0.0
  %5929 = vmatpush.msra.mxu0 0.0
  %5930 = vmatpush.msra.mxu0 0.0
  %5931 = vmatpush.msra.mxu0 0.0
  %5932 = vmatpush.msra.mxu0 0.0
  %5933 = vmatpush.msra.mxu0 0.0
  %5934 = vmatpush.msra.mxu0 0.0
  %5935 = vmatpush.msra.mxu0 %v5905
  %5936 = vmatpush.msra.mxu0 %v5903
  %5937 = vmatpush.msra.mxu0 %v5901
  %5938 = vmatpush.msra.mxu0 %v5899
  %5939 = vmatmul.f32.gmra.mxu0 %v5912
  %v5940 = vpop.f32.mrf.mxu0
  %v5941 = vadd.f32 0.0, %v5940
  %5942 = vmatmul.f32.gmra.mxu0 %v5915
  %v5943 = vpop.f32.mrf.mxu0
  %v5944 = vadd.f32 0.0, %v5943
  %5945 = vmatmul.f32.gmra.mxu0 %v5918
  %v5946 = vpop.f32.mrf.mxu0
  %v5947 = vadd.f32 0.0, %v5946
  %5948 = vmatmul.f32.gmra.mxu0 %v5921
  %v5949 = vpop.f32.mrf.mxu0
  %v5950 = vadd.f32 0.0, %v5949
  %5951 = vdwg.mxu0
  %5952 = vmatpush.msra.mxu0 0.0
  %5953 = vmatpush.msra.mxu0 0.0
  %5954 = vmatpush.msra.mxu0 0.0
  %5955 = vmatpush.msra.mxu0 0.0
  %5956 = vmatpush.msra.mxu0 0.0
  %5957 = vmatpush.msra.mxu0 0.0
  %5958 = vmatpush.msra.mxu0 0.0
  %5959 = vmatpush.msra.mxu0 0.0
  %5960 = vmatpush.msra.mxu0 0.0
  %5961 = vmatpush.msra.mxu0 0.0
  %5962 = vmatpush.msra.mxu0 0.0
  %5963 = vmatpush.msra.mxu0 0.0
  %5964 = vmatpush.msra.mxu0 %v5906
  %5965 = vmatpush.msra.mxu0 %v5904
  %5966 = vmatpush.msra.mxu0 %v5902
  %5967 = vmatpush.msra.mxu0 %v5900
  %5968 = vmatmul.f32.gmra.mxu0 %v5912
  %v5969 = vpop.f32.mrf.mxu0
  %v5970 = vadd.f32 0.0, %v5969
  %5971 = vmatmul.f32.gmra.mxu0 %v5915
  %v5972 = vpop.f32.mrf.mxu0
  %v5973 = vadd.f32 0.0, %v5972
  %5974 = vmatmul.f32.gmra.mxu0 %v5918
  %v5975 = vpop.f32.mrf.mxu0
  %v5976 = vadd.f32 0.0, %v5975
  %5977 = vmatmul.f32.gmra.mxu0 %v5921
  %v5978 = vpop.f32.mrf.mxu0
  %v5979 = vadd.f32 0.0, %v5978
  %5980 = vdwg.mxu0
  %v5981 = vmul.f32 %v5899, %v5899
  %v5982 = vmul.f32 %v5900, %v5900
  %v5983 = vmul.f32 %v5901, %v5901
  %v5984 = vmul.f32 %v5902, %v5902
  %v5985 = vmul.f32 %v5903, %v5903
  %v5986 = vmul.f32 %v5904, %v5904
  %v5987 = vmul.f32 %v5905, %v5905
  %v5988 = vmul.f32 %v5906, %v5906
  %5989 = vmatpush.msra.mxu0 0.0
  %5990 = vmatpush.msra.mxu0 0.0
  %5991 = vmatpush.msra.mxu0 0.0
  %5992 = vmatpush.msra.mxu0 0.0
  %5993 = vmatpush.msra.mxu0 0.0
  %5994 = vmatpush.msra.mxu0 0.0
  %5995 = vmatpush.msra.mxu0 0.0
  %5996 = vmatpush.msra.mxu0 0.0
  %5997 = vmatpush.msra.mxu0 0.0
  %5998 = vmatpush.msra.mxu0 0.0
  %5999 = vmatpush.msra.mxu0 0.0
  %6000 = vmatpush.msra.mxu0 0.0
  %6001 = vmatpush.msra.mxu0 %v5987
  %6002 = vmatpush.msra.mxu0 %v5985
  %6003 = vmatpush.msra.mxu0 %v5983
  %6004 = vmatpush.msra.mxu0 %v5981
  %6005 = vmatmul.f32.gmra.mxu0 %v5912
  %v6006 = vpop.f32.mrf.mxu0
  %v6007 = vadd.f32 0.0, %v6006
  %6008 = vmatmul.f32.gmra.mxu0 %v5915
  %v6009 = vpop.f32.mrf.mxu0
  %v6010 = vadd.f32 0.0, %v6009
  %6011 = vmatmul.f32.gmra.mxu0 %v5918
  %v6012 = vpop.f32.mrf.mxu0
  %v6013 = vadd.f32 0.0, %v6012
  %6014 = vmatmul.f32.gmra.mxu0 %v5921
  %v6015 = vpop.f32.mrf.mxu0
  %v6016 = vadd.f32 0.0, %v6015
  %6017 = vdwg.mxu0
  %6018 = vmatpush.msra.mxu0 0.0
  %6019 = vmatpush.msra.mxu0 0.0
  %6020 = vmatpush.msra.mxu0 0.0
  %6021 = vmatpush.msra.mxu0 0.0
  %6022 = vmatpush.msra.mxu0 0.0
  %6023 = vmatpush.msra.mxu0 0.0
  %6024 = vmatpush.msra.mxu0 0.0
  %6025 = vmatpush.msra.mxu0 0.0
  %6026 = vmatpush.msra.mxu0 0.0
  %6027 = vmatpush.msra.mxu0 0.0
  %6028 = vmatpush.msra.mxu0 0.0
  %6029 = vmatpush.msra.mxu0 0.0
  %6030 = vmatpush.msra.mxu0 %v5988
  %6031 = vmatpush.msra.mxu0 %v5986
  %6032 = vmatpush.msra.mxu0 %v5984
  %6033 = vmatpush.msra.mxu0 %v5982
  %6034 = vmatmul.f32.gmra.mxu0 %v5912
  %v6035 = vpop.f32.mrf.mxu0
  %v6036 = vadd.f32 0.0, %v6035
  %6037 = vmatmul.f32.gmra.mxu0 %v5915
  %v6038 = vpop.f32.mrf.mxu0
  %v6039 = vadd.f32 0.0, %v6038
  %6040 = vmatmul.f32.gmra.mxu0 %v5918
  %v6041 = vpop.f32.mrf.mxu0
  %v6042 = vadd.f32 0.0, %v6041
  %6043 = vmatmul.f32.gmra.mxu0 %v5921
  %v6044 = vpop.f32.mrf.mxu0
  %v6045 = vadd.f32 0.0, %v6044
  %6046 = vdwg.mxu0
  %v6047 = vadd.f32 %v5941, %v5970
  %6048 = vadd.xlane.f32.xlu0 %v6047
  %v6049 = vpop.xlane.xlu0 %6048
  %v6050 = vadd.f32 %v5944, %v5973
  %6051 = vadd.xlane.f32.xlu0 %v6050
  %v6052 = vpop.xlane.xlu0 %6051
  %v6053 = vadd.f32 %v5947, %v5976
  %6054 = vadd.xlane.f32.xlu0 %v6053
  %v6055 = vpop.xlane.xlu0 %6054
  %v6056 = vadd.f32 %v5950, %v5979
  %6057 = vadd.xlane.f32.xlu0 %v6056
  %v6058 = vpop.xlane.xlu0 %6057
  %v6059 = vmul.f32 %v6049, 0.001953125
  %v6060 = vmul.f32 %v6052, 0.001953125
  %v6061 = vmul.f32 %v6055, 0.001953125
  %v6062 = vmul.f32 %v6058, 0.001953125
  %v6063 = vadd.f32 %v6007, %v6036
  %6064 = vadd.xlane.f32.xlu0 %v6063
  %v6065 = vpop.xlane.xlu0 %6064
  %v6066 = vadd.f32 %v6010, %v6039
  %6067 = vadd.xlane.f32.xlu0 %v6066
  %v6068 = vpop.xlane.xlu0 %6067
  %v6069 = vadd.f32 %v6013, %v6042
  %6070 = vadd.xlane.f32.xlu0 %v6069
  %v6071 = vpop.xlane.xlu0 %6070
  %v6072 = vadd.f32 %v6016, %v6045
  %6073 = vadd.xlane.f32.xlu0 %v6072
  %v6074 = vpop.xlane.xlu0 %6073
  %v6075 = vmul.f32 %v6065, 0.001953125
  %v6076 = vmul.f32 %v6068, 0.001953125
  %v6077 = vmul.f32 %v6071, 0.001953125
  %v6078 = vmul.f32 %v6074, 0.001953125
  %v6079 = vmul.f32 %v6059, %v6059
  %v6080 = vmul.f32 %v6060, %v6060
  %v6081 = vmul.f32 %v6061, %v6061
  %v6082 = vmul.f32 %v6062, %v6062
  %v6083 = vsub.f32 %v6075, %v6079
  %v6084 = vsub.f32 %v6076, %v6080
  %v6085 = vsub.f32 %v6077, %v6081
  %v6086 = vsub.f32 %v6078, %v6082
  %s6087 = scalar_lea.vmem %s9, 32
  %v6088 = vld [vmem:[%s6087] sm:$0xff]
  %v6089 = vld [vmem:[%s6087 + $0x8] sm:$0xff]
  %v6090 = vld [vmem:[%s6087 + $0x10] sm:$0xff]
  %v6091 = vld [vmem:[%s6087 + $0x18] sm:$0xff]
  %v6092 = vadd.f32 %v6083, 1e-05
  %v6093 = vadd.f32 %v6084, 1e-05
  %v6094 = vadd.f32 %v6085, 1e-05
  %v6095 = vadd.f32 %v6086, 1e-05
  %v6096 = vrsqrt.pop %v6092
  %v6097 = vmul.f32 %v6096, %v6092
  %v6098 = vmul.f32 %v6097, %v6096
  %v6099 = vmul.f32 0.5, %v6098
  %v6100 = vsub.f32 1.5, %v6099
  %v6101 = vmul.f32 %v6096, %v6100
  %vm6102 = vweird.f32 %v6092
  %vm6103 = vweird.f32 %v6096
  %vm6104 = vmor %vm6102, %vm6103
  %v6105 = vsel %vm6104, %v6096, %v6101
  %v6106 = vrsqrt.pop %v6093
  %v6107 = vmul.f32 %v6106, %v6093
  %v6108 = vmul.f32 %v6107, %v6106
  %v6109 = vmul.f32 0.5, %v6108
  %v6110 = vsub.f32 1.5, %v6109
  %v6111 = vmul.f32 %v6106, %v6110
  %vm6112 = vweird.f32 %v6093
  %vm6113 = vweird.f32 %v6106
  %vm6114 = vmor %vm6112, %vm6113
  %v6115 = vsel %vm6114, %v6106, %v6111
  %v6116 = vrsqrt.pop %v6094
  %v6117 = vmul.f32 %v6116, %v6094
  %v6118 = vmul.f32 %v6117, %v6116
  %v6119 = vmul.f32 0.5, %v6118
  %v6120 = vsub.f32 1.5, %v6119
  %v6121 = vmul.f32 %v6116, %v6120
  %vm6122 = vweird.f32 %v6094
  %vm6123 = vweird.f32 %v6116
  %vm6124 = vmor %vm6122, %vm6123
  %v6125 = vsel %vm6124, %v6116, %v6121
  %v6126 = vrsqrt.pop %v6095
  %v6127 = vmul.f32 %v6126, %v6095
  %v6128 = vmul.f32 %v6127, %v6126
  %v6129 = vmul.f32 0.5, %v6128
  %v6130 = vsub.f32 1.5, %v6129
  %v6131 = vmul.f32 %v6126, %v6130
  %vm6132 = vweird.f32 %v6095
  %vm6133 = vweird.f32 %v6126
  %vm6134 = vmor %vm6132, %vm6133
  %v6135 = vsel %vm6134, %v6126, %v6131
  %v6136 = vmul.f32 %v6088, %v6105
  %v6137 = vmul.f32 %v6089, %v6115
  %v6138 = vmul.f32 %v6090, %v6125
  %v6139 = vmul.f32 %v6091, %v6135
  %s6140 = scalar_lea.vmem %s9, 64
  %v6141 = vld [vmem:[%s6140] sm:$0xff]
  %v6142 = vld [vmem:[%s6140 + $0x8] sm:$0xff]
  %v6143 = vld [vmem:[%s6140 + $0x10] sm:$0xff]
  %v6144 = vld [vmem:[%s6140 + $0x18] sm:$0xff]
  %v6145 = vmul.f32 %v6059, %v6136
  %v6146 = vmul.f32 %v6060, %v6137
  %v6147 = vmul.f32 %v6061, %v6138
  %v6148 = vmul.f32 %v6062, %v6139
  %v6149 = vsub.f32 %v6141, %v6145
  %v6150 = vsub.f32 %v6142, %v6146
  %v6151 = vsub.f32 %v6143, %v6147
  %v6152 = vsub.f32 %v6144, %v6148
  %6154 = vset.pattern.permute.xlu0 0
  %6155 = vperm.xlu0 %6154, %v6136
  %v6156 = vpop.permute.xlu0 %6155
  %6159 = vset.pattern.permute.xlu0 0
  %6160 = vperm.xlu0 %6159, %v6137
  %v6161 = vpop.permute.xlu0 %6160
  %6164 = vset.pattern.permute.xlu0 0
  %6165 = vperm.xlu0 %6164, %v6138
  %v6166 = vpop.permute.xlu0 %6165
  %6169 = vset.pattern.permute.xlu0 0
  %6170 = vperm.xlu0 %6169, %v6139
  %v6171 = vpop.permute.xlu0 %6170
  %v6173 = vmul.f32 %v5899, %v6156
  %v6174 = vmul.f32 %v5900, %v6156
  %v6175 = vmul.f32 %v5901, %v6161
  %v6176 = vmul.f32 %v5902, %v6161
  %v6177 = vmul.f32 %v5903, %v6166
  %v6178 = vmul.f32 %v5904, %v6166
  %v6179 = vmul.f32 %v5905, %v6171
  %v6180 = vmul.f32 %v5906, %v6171
  %6182 = vset.pattern.permute.xlu0 0
  %6183 = vperm.xlu0 %6182, %v6149
  %v6184 = vpop.permute.xlu0 %6183
  %6187 = vset.pattern.permute.xlu0 0
  %6188 = vperm.xlu0 %6187, %v6150
  %v6189 = vpop.permute.xlu0 %6188
  %6192 = vset.pattern.permute.xlu0 0
  %6193 = vperm.xlu0 %6192, %v6151
  %v6194 = vpop.permute.xlu0 %6193
  %6197 = vset.pattern.permute.xlu0 0
  %6198 = vperm.xlu0 %6197, %v6152
  %v6199 = vpop.permute.xlu0 %6198
  %v6201 = vadd.f32 %v6173, %v6184
  %v6202 = vadd.f32 %v6174, %v6184
  %v6203 = vadd.f32 %v6175, %v6189
  %v6204 = vadd.f32 %v6176, %v6189
  %v6205 = vadd.f32 %v6177, %v6194
  %v6206 = vadd.f32 %v6178, %v6194
  %v6207 = vadd.f32 %v6179, %v6199
  %v6208 = vadd.f32 %v6180, %v6199
  %v6211 = vrot.slane %v6201, 4
  %v6212 = vrot.slane %v6202, 4
  %v6217 = vrot.slane %v6203, 4
  %v6218 = vrot.slane %v6204, 4
  %v6223 = vrot.slane %v6205, 4
  %v6224 = vrot.slane %v6206, 4
  %v6229 = vrot.slane %v6207, 4
  %v6230 = vrot.slane %v6208, 4
  %v6233 = vld [vmem:[%s11] sm:$0xff]
  %v6234 = vld [vmem:[%s11 + $0x8] sm:$0xff]
  %v6235 = vld [vmem:[%s11 + $0x10] sm:$0xff]
  %v6236 = vld [vmem:[%s11 + $0x18] sm:$0xff]
  %v6237 = vld [vmem:[%s11 + $0x20] sm:$0xff]
  %v6238 = vld [vmem:[%s11 + $0x28] sm:$0xff]
  %v6239 = vld [vmem:[%s11 + $0x30] sm:$0xff]
  %v6240 = vld [vmem:[%s11 + $0x38] sm:$0xff]
  %v6241 = vld [vmem:[%s11 + $0x40] sm:$0xff]
  %v6242 = vld [vmem:[%s11 + $0x48] sm:$0xff]
  %v6243 = vld [vmem:[%s11 + $0x50] sm:$0xff]
  %v6244 = vld [vmem:[%s11 + $0x58] sm:$0xff]
  %v6245 = vld [vmem:[%s11 + $0x60] sm:$0xff]
  %v6246 = vld [vmem:[%s11 + $0x68] sm:$0xff]
  %v6247 = vld [vmem:[%s11 + $0x70] sm:$0xff]
  %v6248 = vld [vmem:[%s11 + $0x78] sm:$0xff]
  %v6249 = vld [vmem:[%s11 + $0x80] sm:$0xff]
  %v6250 = vld [vmem:[%s11 + $0x88] sm:$0xff]
  %v6251 = vld [vmem:[%s11 + $0x90] sm:$0xff]
  %v6252 = vld [vmem:[%s11 + $0x98] sm:$0xff]
  %v6253 = vld [vmem:[%s11 + $0xa0] sm:$0xff]
  %v6254 = vld [vmem:[%s11 + $0xa8] sm:$0xff]
  %v6255 = vld [vmem:[%s11 + $0xb0] sm:$0xff]
  %v6256 = vld [vmem:[%s11 + $0xb8] sm:$0xff]
  %v6257 = vld [vmem:[%s11 + $0xc0] sm:$0xff]
  %v6258 = vld [vmem:[%s11 + $0xc8] sm:$0xff]
  %v6259 = vld [vmem:[%s11 + $0xd0] sm:$0xff]
  %v6260 = vld [vmem:[%s11 + $0xd8] sm:$0xff]
  %v6261 = vld [vmem:[%s11 + $0xe0] sm:$0xff]
  %v6262 = vld [vmem:[%s11 + $0xe8] sm:$0xff]
  %v6263 = vld [vmem:[%s11 + $0xf0] sm:$0xff]
  %v6264 = vld [vmem:[%s11 + $0xf8] sm:$0xff]
  %v6265 = vld [vmem:[%s11 + $0x100] sm:$0xff]
  %v6266 = vld [vmem:[%s11 + $0x108] sm:$0xff]
  %v6267 = vld [vmem:[%s11 + $0x110] sm:$0xff]
  %v6268 = vld [vmem:[%s11 + $0x118] sm:$0xff]
  %v6269 = vld [vmem:[%s11 + $0x120] sm:$0xff]
  %v6270 = vld [vmem:[%s11 + $0x128] sm:$0xff]
  %v6271 = vld [vmem:[%s11 + $0x130] sm:$0xff]
  %v6272 = vld [vmem:[%s11 + $0x138] sm:$0xff]
  %v6273 = vld [vmem:[%s11 + $0x140] sm:$0xff]
  %v6274 = vld [vmem:[%s11 + $0x148] sm:$0xff]
  %v6275 = vld [vmem:[%s11 + $0x150] sm:$0xff]
  %v6276 = vld [vmem:[%s11 + $0x158] sm:$0xff]
  %v6277 = vld [vmem:[%s11 + $0x160] sm:$0xff]
  %v6278 = vld [vmem:[%s11 + $0x168] sm:$0xff]
  %v6279 = vld [vmem:[%s11 + $0x170] sm:$0xff]
  %v6280 = vld [vmem:[%s11 + $0x178] sm:$0xff]
  %v6281 = vld [vmem:[%s11 + $0x180] sm:$0xff]
  %v6282 = vld [vmem:[%s11 + $0x188] sm:$0xff]
  %v6283 = vld [vmem:[%s11 + $0x190] sm:$0xff]
  %v6284 = vld [vmem:[%s11 + $0x198] sm:$0xff]
  %v6285 = vld [vmem:[%s11 + $0x1a0] sm:$0xff]
  %v6286 = vld [vmem:[%s11 + $0x1a8] sm:$0xff]
  %v6287 = vld [vmem:[%s11 + $0x1b0] sm:$0xff]
  %v6288 = vld [vmem:[%s11 + $0x1b8] sm:$0xff]
  %v6289 = vld [vmem:[%s11 + $0x1c0] sm:$0xff]
  %v6290 = vld [vmem:[%s11 + $0x1c8] sm:$0xff]
  %v6291 = vld [vmem:[%s11 + $0x1d0] sm:$0xff]
  %v6292 = vld [vmem:[%s11 + $0x1d8] sm:$0xff]
  %v6293 = vld [vmem:[%s11 + $0x1e0] sm:$0xff]
  %v6294 = vld [vmem:[%s11 + $0x1e8] sm:$0xff]
  %v6295 = vld [vmem:[%s11 + $0x1f0] sm:$0xff]
  %v6296 = vld [vmem:[%s11 + $0x1f8] sm:$0xff]
  %v6297 = vld [vmem:[%s11 + $0x200] sm:$0xff]
  %v6298 = vld [vmem:[%s11 + $0x208] sm:$0xff]
  %v6299 = vld [vmem:[%s11 + $0x210] sm:$0xff]
  %v6300 = vld [vmem:[%s11 + $0x218] sm:$0xff]
  %v6301 = vld [vmem:[%s11 + $0x220] sm:$0xff]
  %v6302 = vld [vmem:[%s11 + $0x228] sm:$0xff]
  %v6303 = vld [vmem:[%s11 + $0x230] sm:$0xff]
  %v6304 = vld [vmem:[%s11 + $0x238] sm:$0xff]
  %v6305 = vld [vmem:[%s11 + $0x240] sm:$0xff]
  %v6306 = vld [vmem:[%s11 + $0x248] sm:$0xff]
  %v6307 = vld [vmem:[%s11 + $0x250] sm:$0xff]
  %v6308 = vld [vmem:[%s11 + $0x258] sm:$0xff]
  %v6309 = vld [vmem:[%s11 + $0x260] sm:$0xff]
  %v6310 = vld [vmem:[%s11 + $0x268] sm:$0xff]
  %v6311 = vld [vmem:[%s11 + $0x270] sm:$0xff]
  %v6312 = vld [vmem:[%s11 + $0x278] sm:$0xff]
  %v6313 = vld [vmem:[%s11 + $0x280] sm:$0xff]
  %v6314 = vld [vmem:[%s11 + $0x288] sm:$0xff]
  %v6315 = vld [vmem:[%s11 + $0x290] sm:$0xff]
  %v6316 = vld [vmem:[%s11 + $0x298] sm:$0xff]
  %v6317 = vld [vmem:[%s11 + $0x2a0] sm:$0xff]
  %v6318 = vld [vmem:[%s11 + $0x2a8] sm:$0xff]
  %v6319 = vld [vmem:[%s11 + $0x2b0] sm:$0xff]
  %v6320 = vld [vmem:[%s11 + $0x2b8] sm:$0xff]
  %v6321 = vld [vmem:[%s11 + $0x2c0] sm:$0xff]
  %v6322 = vld [vmem:[%s11 + $0x2c8] sm:$0xff]
  %v6323 = vld [vmem:[%s11 + $0x2d0] sm:$0xff]
  %v6324 = vld [vmem:[%s11 + $0x2d8] sm:$0xff]
  %v6325 = vld [vmem:[%s11 + $0x2e0] sm:$0xff]
  %v6326 = vld [vmem:[%s11 + $0x2e8] sm:$0xff]
  %v6327 = vld [vmem:[%s11 + $0x2f0] sm:$0xff]
  %v6328 = vld [vmem:[%s11 + $0x2f8] sm:$0xff]
  %v6329 = vld [vmem:[%s11 + $0x300] sm:$0xff]
  %v6330 = vld [vmem:[%s11 + $0x308] sm:$0xff]
  %v6331 = vld [vmem:[%s11 + $0x310] sm:$0xff]
  %v6332 = vld [vmem:[%s11 + $0x318] sm:$0xff]
  %v6333 = vld [vmem:[%s11 + $0x320] sm:$0xff]
  %v6334 = vld [vmem:[%s11 + $0x328] sm:$0xff]
  %v6335 = vld [vmem:[%s11 + $0x330] sm:$0xff]
  %v6336 = vld [vmem:[%s11 + $0x338] sm:$0xff]
  %v6337 = vld [vmem:[%s11 + $0x340] sm:$0xff]
  %v6338 = vld [vmem:[%s11 + $0x348] sm:$0xff]
  %v6339 = vld [vmem:[%s11 + $0x350] sm:$0xff]
  %v6340 = vld [vmem:[%s11 + $0x358] sm:$0xff]
  %v6341 = vld [vmem:[%s11 + $0x360] sm:$0xff]
  %v6342 = vld [vmem:[%s11 + $0x368] sm:$0xff]
  %v6343 = vld [vmem:[%s11 + $0x370] sm:$0xff]
  %v6344 = vld [vmem:[%s11 + $0x378] sm:$0xff]
  %v6345 = vld [vmem:[%s11 + $0x380] sm:$0xff]
  %v6346 = vld [vmem:[%s11 + $0x388] sm:$0xff]
  %v6347 = vld [vmem:[%s11 + $0x390] sm:$0xff]
  %v6348 = vld [vmem:[%s11 + $0x398] sm:$0xff]
  %v6349 = vld [vmem:[%s11 + $0x3a0] sm:$0xff]
  %v6350 = vld [vmem:[%s11 + $0x3a8] sm:$0xff]
  %v6351 = vld [vmem:[%s11 + $0x3b0] sm:$0xff]
  %v6352 = vld [vmem:[%s11 + $0x3b8] sm:$0xff]
  %v6353 = vld [vmem:[%s11 + $0x3c0] sm:$0xff]
  %v6354 = vld [vmem:[%s11 + $0x3c8] sm:$0xff]
  %v6355 = vld [vmem:[%s11 + $0x3d0] sm:$0xff]
  %v6356 = vld [vmem:[%s11 + $0x3d8] sm:$0xff]
  %v6357 = vld [vmem:[%s11 + $0x3e0] sm:$0xff]
  %v6358 = vld [vmem:[%s11 + $0x3e8] sm:$0xff]
  %v6359 = vld [vmem:[%s11 + $0x3f0] sm:$0xff]
  %v6360 = vld [vmem:[%s11 + $0x3f8] sm:$0xff]
  %v6361 = vld [vmem:[%s11 + $0x400] sm:$0xff]
  %v6362 = vld [vmem:[%s11 + $0x408] sm:$0xff]
  %v6363 = vld [vmem:[%s11 + $0x410] sm:$0xff]
  %v6364 = vld [vmem:[%s11 + $0x418] sm:$0xff]
  %v6365 = vld [vmem:[%s11 + $0x420] sm:$0xff]
  %v6366 = vld [vmem:[%s11 + $0x428] sm:$0xff]
  %v6367 = vld [vmem:[%s11 + $0x430] sm:$0xff]
  %v6368 = vld [vmem:[%s11 + $0x438] sm:$0xff]
  %v6369 = vld [vmem:[%s11 + $0x440] sm:$0xff]
  %v6370 = vld [vmem:[%s11 + $0x448] sm:$0xff]
  %v6371 = vld [vmem:[%s11 + $0x450] sm:$0xff]
  %v6372 = vld [vmem:[%s11 + $0x458] sm:$0xff]
  %v6373 = vld [vmem:[%s11 + $0x460] sm:$0xff]
  %v6374 = vld [vmem:[%s11 + $0x468] sm:$0xff]
  %v6375 = vld [vmem:[%s11 + $0x470] sm:$0xff]
  %v6376 = vld [vmem:[%s11 + $0x478] sm:$0xff]
  %v6377 = vld [vmem:[%s11 + $0x480] sm:$0xff]
  %v6378 = vld [vmem:[%s11 + $0x488] sm:$0xff]
  %v6379 = vld [vmem:[%s11 + $0x490] sm:$0xff]
  %v6380 = vld [vmem:[%s11 + $0x498] sm:$0xff]
  %v6381 = vld [vmem:[%s11 + $0x4a0] sm:$0xff]
  %v6382 = vld [vmem:[%s11 + $0x4a8] sm:$0xff]
  %v6383 = vld [vmem:[%s11 + $0x4b0] sm:$0xff]
  %v6384 = vld [vmem:[%s11 + $0x4b8] sm:$0xff]
  %v6385 = vld [vmem:[%s11 + $0x4c0] sm:$0xff]
  %v6386 = vld [vmem:[%s11 + $0x4c8] sm:$0xff]
  %v6387 = vld [vmem:[%s11 + $0x4d0] sm:$0xff]
  %v6388 = vld [vmem:[%s11 + $0x4d8] sm:$0xff]
  %v6389 = vld [vmem:[%s11 + $0x4e0] sm:$0xff]
  %v6390 = vld [vmem:[%s11 + $0x4e8] sm:$0xff]
  %v6391 = vld [vmem:[%s11 + $0x4f0] sm:$0xff]
  %v6392 = vld [vmem:[%s11 + $0x4f8] sm:$0xff]
  %v6393 = vld [vmem:[%s11 + $0x500] sm:$0xff]
  %v6394 = vld [vmem:[%s11 + $0x508] sm:$0xff]
  %v6395 = vld [vmem:[%s11 + $0x510] sm:$0xff]
  %v6396 = vld [vmem:[%s11 + $0x518] sm:$0xff]
  %v6397 = vld [vmem:[%s11 + $0x520] sm:$0xff]
  %v6398 = vld [vmem:[%s11 + $0x528] sm:$0xff]
  %v6399 = vld [vmem:[%s11 + $0x530] sm:$0xff]
  %v6400 = vld [vmem:[%s11 + $0x538] sm:$0xff]
  %v6401 = vld [vmem:[%s11 + $0x540] sm:$0xff]
  %v6402 = vld [vmem:[%s11 + $0x548] sm:$0xff]
  %v6403 = vld [vmem:[%s11 + $0x550] sm:$0xff]
  %v6404 = vld [vmem:[%s11 + $0x558] sm:$0xff]
  %v6405 = vld [vmem:[%s11 + $0x560] sm:$0xff]
  %v6406 = vld [vmem:[%s11 + $0x568] sm:$0xff]
  %v6407 = vld [vmem:[%s11 + $0x570] sm:$0xff]
  %v6408 = vld [vmem:[%s11 + $0x578] sm:$0xff]
  %v6409 = vld [vmem:[%s11 + $0x580] sm:$0xff]
  %v6410 = vld [vmem:[%s11 + $0x588] sm:$0xff]
  %v6411 = vld [vmem:[%s11 + $0x590] sm:$0xff]
  %v6412 = vld [vmem:[%s11 + $0x598] sm:$0xff]
  %v6413 = vld [vmem:[%s11 + $0x5a0] sm:$0xff]
  %v6414 = vld [vmem:[%s11 + $0x5a8] sm:$0xff]
  %v6415 = vld [vmem:[%s11 + $0x5b0] sm:$0xff]
  %v6416 = vld [vmem:[%s11 + $0x5b8] sm:$0xff]
  %v6417 = vld [vmem:[%s11 + $0x5c0] sm:$0xff]
  %v6418 = vld [vmem:[%s11 + $0x5c8] sm:$0xff]
  %v6419 = vld [vmem:[%s11 + $0x5d0] sm:$0xff]
  %v6420 = vld [vmem:[%s11 + $0x5d8] sm:$0xff]
  %v6421 = vld [vmem:[%s11 + $0x5e0] sm:$0xff]
  %v6422 = vld [vmem:[%s11 + $0x5e8] sm:$0xff]
  %v6423 = vld [vmem:[%s11 + $0x5f0] sm:$0xff]
  %v6424 = vld [vmem:[%s11 + $0x5f8] sm:$0xff]
  %v6425 = vld [vmem:[%s11 + $0x600] sm:$0xff]
  %v6426 = vld [vmem:[%s11 + $0x608] sm:$0xff]
  %v6427 = vld [vmem:[%s11 + $0x610] sm:$0xff]
  %v6428 = vld [vmem:[%s11 + $0x618] sm:$0xff]
  %v6429 = vld [vmem:[%s11 + $0x620] sm:$0xff]
  %v6430 = vld [vmem:[%s11 + $0x628] sm:$0xff]
  %v6431 = vld [vmem:[%s11 + $0x630] sm:$0xff]
  %v6432 = vld [vmem:[%s11 + $0x638] sm:$0xff]
  %v6433 = vld [vmem:[%s11 + $0x640] sm:$0xff]
  %v6434 = vld [vmem:[%s11 + $0x648] sm:$0xff]
  %v6435 = vld [vmem:[%s11 + $0x650] sm:$0xff]
  %v6436 = vld [vmem:[%s11 + $0x658] sm:$0xff]
  %v6437 = vld [vmem:[%s11 + $0x660] sm:$0xff]
  %v6438 = vld [vmem:[%s11 + $0x668] sm:$0xff]
  %v6439 = vld [vmem:[%s11 + $0x670] sm:$0xff]
  %v6440 = vld [vmem:[%s11 + $0x678] sm:$0xff]
  %v6441 = vld [vmem:[%s11 + $0x680] sm:$0xff]
  %v6442 = vld [vmem:[%s11 + $0x688] sm:$0xff]
  %v6443 = vld [vmem:[%s11 + $0x690] sm:$0xff]
  %v6444 = vld [vmem:[%s11 + $0x698] sm:$0xff]
  %v6445 = vld [vmem:[%s11 + $0x6a0] sm:$0xff]
  %v6446 = vld [vmem:[%s11 + $0x6a8] sm:$0xff]
  %v6447 = vld [vmem:[%s11 + $0x6b0] sm:$0xff]
  %v6448 = vld [vmem:[%s11 + $0x6b8] sm:$0xff]
  %v6449 = vld [vmem:[%s11 + $0x6c0] sm:$0xff]
  %v6450 = vld [vmem:[%s11 + $0x6c8] sm:$0xff]
  %v6451 = vld [vmem:[%s11 + $0x6d0] sm:$0xff]
  %v6452 = vld [vmem:[%s11 + $0x6d8] sm:$0xff]
  %v6453 = vld [vmem:[%s11 + $0x6e0] sm:$0xff]
  %v6454 = vld [vmem:[%s11 + $0x6e8] sm:$0xff]
  %v6455 = vld [vmem:[%s11 + $0x6f0] sm:$0xff]
  %v6456 = vld [vmem:[%s11 + $0x6f8] sm:$0xff]
  %v6457 = vld [vmem:[%s11 + $0x700] sm:$0xff]
  %v6458 = vld [vmem:[%s11 + $0x708] sm:$0xff]
  %v6459 = vld [vmem:[%s11 + $0x710] sm:$0xff]
  %v6460 = vld [vmem:[%s11 + $0x718] sm:$0xff]
  %v6461 = vld [vmem:[%s11 + $0x720] sm:$0xff]
  %v6462 = vld [vmem:[%s11 + $0x728] sm:$0xff]
  %v6463 = vld [vmem:[%s11 + $0x730] sm:$0xff]
  %v6464 = vld [vmem:[%s11 + $0x738] sm:$0xff]
  %v6465 = vld [vmem:[%s11 + $0x740] sm:$0xff]
  %v6466 = vld [vmem:[%s11 + $0x748] sm:$0xff]
  %v6467 = vld [vmem:[%s11 + $0x750] sm:$0xff]
  %v6468 = vld [vmem:[%s11 + $0x758] sm:$0xff]
  %v6469 = vld [vmem:[%s11 + $0x760] sm:$0xff]
  %v6470 = vld [vmem:[%s11 + $0x768] sm:$0xff]
  %v6471 = vld [vmem:[%s11 + $0x770] sm:$0xff]
  %v6472 = vld [vmem:[%s11 + $0x778] sm:$0xff]
  %v6473 = vld [vmem:[%s11 + $0x780] sm:$0xff]
  %v6474 = vld [vmem:[%s11 + $0x788] sm:$0xff]
  %v6475 = vld [vmem:[%s11 + $0x790] sm:$0xff]
  %v6476 = vld [vmem:[%s11 + $0x798] sm:$0xff]
  %v6477 = vld [vmem:[%s11 + $0x7a0] sm:$0xff]
  %v6478 = vld [vmem:[%s11 + $0x7a8] sm:$0xff]
  %v6479 = vld [vmem:[%s11 + $0x7b0] sm:$0xff]
  %v6480 = vld [vmem:[%s11 + $0x7b8] sm:$0xff]
  %v6481 = vld [vmem:[%s11 + $0x7c0] sm:$0xff]
  %v6482 = vld [vmem:[%s11 + $0x7c8] sm:$0xff]
  %v6483 = vld [vmem:[%s11 + $0x7d0] sm:$0xff]
  %v6484 = vld [vmem:[%s11 + $0x7d8] sm:$0xff]
  %v6485 = vld [vmem:[%s11 + $0x7e0] sm:$0xff]
  %v6486 = vld [vmem:[%s11 + $0x7e8] sm:$0xff]
  %v6487 = vld [vmem:[%s11 + $0x7f0] sm:$0xff]
  %v6488 = vld [vmem:[%s11 + $0x7f8] sm:$0xff]
  %v6489 = vld [vmem:[%s11 + $0x800] sm:$0xff]
  %v6490 = vld [vmem:[%s11 + $0x808] sm:$0xff]
  %v6491 = vld [vmem:[%s11 + $0x810] sm:$0xff]
  %v6492 = vld [vmem:[%s11 + $0x818] sm:$0xff]
  %v6493 = vld [vmem:[%s11 + $0x820] sm:$0xff]
  %v6494 = vld [vmem:[%s11 + $0x828] sm:$0xff]
  %v6495 = vld [vmem:[%s11 + $0x830] sm:$0xff]
  %v6496 = vld [vmem:[%s11 + $0x838] sm:$0xff]
  %v6497 = vld [vmem:[%s11 + $0x840] sm:$0xff]
  %v6498 = vld [vmem:[%s11 + $0x848] sm:$0xff]
  %v6499 = vld [vmem:[%s11 + $0x850] sm:$0xff]
  %v6500 = vld [vmem:[%s11 + $0x858] sm:$0xff]
  %v6501 = vld [vmem:[%s11 + $0x860] sm:$0xff]
  %v6502 = vld [vmem:[%s11 + $0x868] sm:$0xff]
  %v6503 = vld [vmem:[%s11 + $0x870] sm:$0xff]
  %v6504 = vld [vmem:[%s11 + $0x878] sm:$0xff]
  %v6505 = vld [vmem:[%s11 + $0x880] sm:$0xff]
  %v6506 = vld [vmem:[%s11 + $0x888] sm:$0xff]
  %v6507 = vld [vmem:[%s11 + $0x890] sm:$0xff]
  %v6508 = vld [vmem:[%s11 + $0x898] sm:$0xff]
  %v6509 = vld [vmem:[%s11 + $0x8a0] sm:$0xff]
  %v6510 = vld [vmem:[%s11 + $0x8a8] sm:$0xff]
  %v6511 = vld [vmem:[%s11 + $0x8b0] sm:$0xff]
  %v6512 = vld [vmem:[%s11 + $0x8b8] sm:$0xff]
  %v6513 = vld [vmem:[%s11 + $0x8c0] sm:$0xff]
  %v6514 = vld [vmem:[%s11 + $0x8c8] sm:$0xff]
  %v6515 = vld [vmem:[%s11 + $0x8d0] sm:$0xff]
  %v6516 = vld [vmem:[%s11 + $0x8d8] sm:$0xff]
  %v6517 = vld [vmem:[%s11 + $0x8e0] sm:$0xff]
  %v6518 = vld [vmem:[%s11 + $0x8e8] sm:$0xff]
  %v6519 = vld [vmem:[%s11 + $0x8f0] sm:$0xff]
  %v6520 = vld [vmem:[%s11 + $0x8f8] sm:$0xff]
  %v6521 = vld [vmem:[%s11 + $0x900] sm:$0xff]
  %v6522 = vld [vmem:[%s11 + $0x908] sm:$0xff]
  %v6523 = vld [vmem:[%s11 + $0x910] sm:$0xff]
  %v6524 = vld [vmem:[%s11 + $0x918] sm:$0xff]
  %v6525 = vld [vmem:[%s11 + $0x920] sm:$0xff]
  %v6526 = vld [vmem:[%s11 + $0x928] sm:$0xff]
  %v6527 = vld [vmem:[%s11 + $0x930] sm:$0xff]
  %v6528 = vld [vmem:[%s11 + $0x938] sm:$0xff]
  %v6529 = vld [vmem:[%s11 + $0x940] sm:$0xff]
  %v6530 = vld [vmem:[%s11 + $0x948] sm:$0xff]
  %v6531 = vld [vmem:[%s11 + $0x950] sm:$0xff]
  %v6532 = vld [vmem:[%s11 + $0x958] sm:$0xff]
  %v6533 = vld [vmem:[%s11 + $0x960] sm:$0xff]
  %v6534 = vld [vmem:[%s11 + $0x968] sm:$0xff]
  %v6535 = vld [vmem:[%s11 + $0x970] sm:$0xff]
  %v6536 = vld [vmem:[%s11 + $0x978] sm:$0xff]
  %v6537 = vld [vmem:[%s11 + $0x980] sm:$0xff]
  %v6538 = vld [vmem:[%s11 + $0x988] sm:$0xff]
  %v6539 = vld [vmem:[%s11 + $0x990] sm:$0xff]
  %v6540 = vld [vmem:[%s11 + $0x998] sm:$0xff]
  %v6541 = vld [vmem:[%s11 + $0x9a0] sm:$0xff]
  %v6542 = vld [vmem:[%s11 + $0x9a8] sm:$0xff]
  %v6543 = vld [vmem:[%s11 + $0x9b0] sm:$0xff]
  %v6544 = vld [vmem:[%s11 + $0x9b8] sm:$0xff]
  %v6545 = vld [vmem:[%s11 + $0x9c0] sm:$0xff]
  %v6546 = vld [vmem:[%s11 + $0x9c8] sm:$0xff]
  %v6547 = vld [vmem:[%s11 + $0x9d0] sm:$0xff]
  %v6548 = vld [vmem:[%s11 + $0x9d8] sm:$0xff]
  %v6549 = vld [vmem:[%s11 + $0x9e0] sm:$0xff]
  %v6550 = vld [vmem:[%s11 + $0x9e8] sm:$0xff]
  %v6551 = vld [vmem:[%s11 + $0x9f0] sm:$0xff]
  %v6552 = vld [vmem:[%s11 + $0x9f8] sm:$0xff]
  %v6553 = vld [vmem:[%s11 + $0xa00] sm:$0xff]
  %v6554 = vld [vmem:[%s11 + $0xa08] sm:$0xff]
  %v6555 = vld [vmem:[%s11 + $0xa10] sm:$0xff]
  %v6556 = vld [vmem:[%s11 + $0xa18] sm:$0xff]
  %v6557 = vld [vmem:[%s11 + $0xa20] sm:$0xff]
  %v6558 = vld [vmem:[%s11 + $0xa28] sm:$0xff]
  %v6559 = vld [vmem:[%s11 + $0xa30] sm:$0xff]
  %v6560 = vld [vmem:[%s11 + $0xa38] sm:$0xff]
  %v6561 = vld [vmem:[%s11 + $0xa40] sm:$0xff]
  %v6562 = vld [vmem:[%s11 + $0xa48] sm:$0xff]
  %v6563 = vld [vmem:[%s11 + $0xa50] sm:$0xff]
  %v6564 = vld [vmem:[%s11 + $0xa58] sm:$0xff]
  %v6565 = vld [vmem:[%s11 + $0xa60] sm:$0xff]
  %v6566 = vld [vmem:[%s11 + $0xa68] sm:$0xff]
  %v6567 = vld [vmem:[%s11 + $0xa70] sm:$0xff]
  %v6568 = vld [vmem:[%s11 + $0xa78] sm:$0xff]
  %v6569 = vld [vmem:[%s11 + $0xa80] sm:$0xff]
  %v6570 = vld [vmem:[%s11 + $0xa88] sm:$0xff]
  %v6571 = vld [vmem:[%s11 + $0xa90] sm:$0xff]
  %v6572 = vld [vmem:[%s11 + $0xa98] sm:$0xff]
  %v6573 = vld [vmem:[%s11 + $0xaa0] sm:$0xff]
  %v6574 = vld [vmem:[%s11 + $0xaa8] sm:$0xff]
  %v6575 = vld [vmem:[%s11 + $0xab0] sm:$0xff]
  %v6576 = vld [vmem:[%s11 + $0xab8] sm:$0xff]
  %v6577 = vld [vmem:[%s11 + $0xac0] sm:$0xff]
  %v6578 = vld [vmem:[%s11 + $0xac8] sm:$0xff]
  %v6579 = vld [vmem:[%s11 + $0xad0] sm:$0xff]
  %v6580 = vld [vmem:[%s11 + $0xad8] sm:$0xff]
  %v6581 = vld [vmem:[%s11 + $0xae0] sm:$0xff]
  %v6582 = vld [vmem:[%s11 + $0xae8] sm:$0xff]
  %v6583 = vld [vmem:[%s11 + $0xaf0] sm:$0xff]
  %v6584 = vld [vmem:[%s11 + $0xaf8] sm:$0xff]
  %v6585 = vld [vmem:[%s11 + $0xb00] sm:$0xff]
  %v6586 = vld [vmem:[%s11 + $0xb08] sm:$0xff]
  %v6587 = vld [vmem:[%s11 + $0xb10] sm:$0xff]
  %v6588 = vld [vmem:[%s11 + $0xb18] sm:$0xff]
  %v6589 = vld [vmem:[%s11 + $0xb20] sm:$0xff]
  %v6590 = vld [vmem:[%s11 + $0xb28] sm:$0xff]
  %v6591 = vld [vmem:[%s11 + $0xb30] sm:$0xff]
  %v6592 = vld [vmem:[%s11 + $0xb38] sm:$0xff]
  %v6593 = vld [vmem:[%s11 + $0xb40] sm:$0xff]
  %v6594 = vld [vmem:[%s11 + $0xb48] sm:$0xff]
  %v6595 = vld [vmem:[%s11 + $0xb50] sm:$0xff]
  %v6596 = vld [vmem:[%s11 + $0xb58] sm:$0xff]
  %v6597 = vld [vmem:[%s11 + $0xb60] sm:$0xff]
  %v6598 = vld [vmem:[%s11 + $0xb68] sm:$0xff]
  %v6599 = vld [vmem:[%s11 + $0xb70] sm:$0xff]
  %v6600 = vld [vmem:[%s11 + $0xb78] sm:$0xff]
  %v6601 = vld [vmem:[%s11 + $0xb80] sm:$0xff]
  %v6602 = vld [vmem:[%s11 + $0xb88] sm:$0xff]
  %v6603 = vld [vmem:[%s11 + $0xb90] sm:$0xff]
  %v6604 = vld [vmem:[%s11 + $0xb98] sm:$0xff]
  %v6605 = vld [vmem:[%s11 + $0xba0] sm:$0xff]
  %v6606 = vld [vmem:[%s11 + $0xba8] sm:$0xff]
  %v6607 = vld [vmem:[%s11 + $0xbb0] sm:$0xff]
  %v6608 = vld [vmem:[%s11 + $0xbb8] sm:$0xff]
  %v6609 = vld [vmem:[%s11 + $0xbc0] sm:$0xff]
  %v6610 = vld [vmem:[%s11 + $0xbc8] sm:$0xff]
  %v6611 = vld [vmem:[%s11 + $0xbd0] sm:$0xff]
  %v6612 = vld [vmem:[%s11 + $0xbd8] sm:$0xff]
  %v6613 = vld [vmem:[%s11 + $0xbe0] sm:$0xff]
  %v6614 = vld [vmem:[%s11 + $0xbe8] sm:$0xff]
  %v6615 = vld [vmem:[%s11 + $0xbf0] sm:$0xff]
  %v6616 = vld [vmem:[%s11 + $0xbf8] sm:$0xff]
  %v6617 = vld [vmem:[%s11 + $0xc00] sm:$0xff]
  %v6618 = vld [vmem:[%s11 + $0xc08] sm:$0xff]
  %v6619 = vld [vmem:[%s11 + $0xc10] sm:$0xff]
  %v6620 = vld [vmem:[%s11 + $0xc18] sm:$0xff]
  %v6621 = vld [vmem:[%s11 + $0xc20] sm:$0xff]
  %v6622 = vld [vmem:[%s11 + $0xc28] sm:$0xff]
  %v6623 = vld [vmem:[%s11 + $0xc30] sm:$0xff]
  %v6624 = vld [vmem:[%s11 + $0xc38] sm:$0xff]
  %v6625 = vld [vmem:[%s11 + $0xc40] sm:$0xff]
  %v6626 = vld [vmem:[%s11 + $0xc48] sm:$0xff]
  %v6627 = vld [vmem:[%s11 + $0xc50] sm:$0xff]
  %v6628 = vld [vmem:[%s11 + $0xc58] sm:$0xff]
  %v6629 = vld [vmem:[%s11 + $0xc60] sm:$0xff]
  %v6630 = vld [vmem:[%s11 + $0xc68] sm:$0xff]
  %v6631 = vld [vmem:[%s11 + $0xc70] sm:$0xff]
  %v6632 = vld [vmem:[%s11 + $0xc78] sm:$0xff]
  %v6633 = vld [vmem:[%s11 + $0xc80] sm:$0xff]
  %v6634 = vld [vmem:[%s11 + $0xc88] sm:$0xff]
  %v6635 = vld [vmem:[%s11 + $0xc90] sm:$0xff]
  %v6636 = vld [vmem:[%s11 + $0xc98] sm:$0xff]
  %v6637 = vld [vmem:[%s11 + $0xca0] sm:$0xff]
  %v6638 = vld [vmem:[%s11 + $0xca8] sm:$0xff]
  %v6639 = vld [vmem:[%s11 + $0xcb0] sm:$0xff]
  %v6640 = vld [vmem:[%s11 + $0xcb8] sm:$0xff]
  %v6641 = vld [vmem:[%s11 + $0xcc0] sm:$0xff]
  %v6642 = vld [vmem:[%s11 + $0xcc8] sm:$0xff]
  %v6643 = vld [vmem:[%s11 + $0xcd0] sm:$0xff]
  %v6644 = vld [vmem:[%s11 + $0xcd8] sm:$0xff]
  %v6645 = vld [vmem:[%s11 + $0xce0] sm:$0xff]
  %v6646 = vld [vmem:[%s11 + $0xce8] sm:$0xff]
  %v6647 = vld [vmem:[%s11 + $0xcf0] sm:$0xff]
  %v6648 = vld [vmem:[%s11 + $0xcf8] sm:$0xff]
  %v6649 = vld [vmem:[%s11 + $0xd00] sm:$0xff]
  %v6650 = vld [vmem:[%s11 + $0xd08] sm:$0xff]
  %v6651 = vld [vmem:[%s11 + $0xd10] sm:$0xff]
  %v6652 = vld [vmem:[%s11 + $0xd18] sm:$0xff]
  %v6653 = vld [vmem:[%s11 + $0xd20] sm:$0xff]
  %v6654 = vld [vmem:[%s11 + $0xd28] sm:$0xff]
  %v6655 = vld [vmem:[%s11 + $0xd30] sm:$0xff]
  %v6656 = vld [vmem:[%s11 + $0xd38] sm:$0xff]
  %v6657 = vld [vmem:[%s11 + $0xd40] sm:$0xff]
  %v6658 = vld [vmem:[%s11 + $0xd48] sm:$0xff]
  %v6659 = vld [vmem:[%s11 + $0xd50] sm:$0xff]
  %v6660 = vld [vmem:[%s11 + $0xd58] sm:$0xff]
  %v6661 = vld [vmem:[%s11 + $0xd60] sm:$0xff]
  %v6662 = vld [vmem:[%s11 + $0xd68] sm:$0xff]
  %v6663 = vld [vmem:[%s11 + $0xd70] sm:$0xff]
  %v6664 = vld [vmem:[%s11 + $0xd78] sm:$0xff]
  %v6665 = vld [vmem:[%s11 + $0xd80] sm:$0xff]
  %v6666 = vld [vmem:[%s11 + $0xd88] sm:$0xff]
  %v6667 = vld [vmem:[%s11 + $0xd90] sm:$0xff]
  %v6668 = vld [vmem:[%s11 + $0xd98] sm:$0xff]
  %v6669 = vld [vmem:[%s11 + $0xda0] sm:$0xff]
  %v6670 = vld [vmem:[%s11 + $0xda8] sm:$0xff]
  %v6671 = vld [vmem:[%s11 + $0xdb0] sm:$0xff]
  %v6672 = vld [vmem:[%s11 + $0xdb8] sm:$0xff]
  %v6673 = vld [vmem:[%s11 + $0xdc0] sm:$0xff]
  %v6674 = vld [vmem:[%s11 + $0xdc8] sm:$0xff]
  %v6675 = vld [vmem:[%s11 + $0xdd0] sm:$0xff]
  %v6676 = vld [vmem:[%s11 + $0xdd8] sm:$0xff]
  %v6677 = vld [vmem:[%s11 + $0xde0] sm:$0xff]
  %v6678 = vld [vmem:[%s11 + $0xde8] sm:$0xff]
  %v6679 = vld [vmem:[%s11 + $0xdf0] sm:$0xff]
  %v6680 = vld [vmem:[%s11 + $0xdf8] sm:$0xff]
  %v6681 = vld [vmem:[%s11 + $0xe00] sm:$0xff]
  %v6682 = vld [vmem:[%s11 + $0xe08] sm:$0xff]
  %v6683 = vld [vmem:[%s11 + $0xe10] sm:$0xff]
  %v6684 = vld [vmem:[%s11 + $0xe18] sm:$0xff]
  %v6685 = vld [vmem:[%s11 + $0xe20] sm:$0xff]
  %v6686 = vld [vmem:[%s11 + $0xe28] sm:$0xff]
  %v6687 = vld [vmem:[%s11 + $0xe30] sm:$0xff]
  %v6688 = vld [vmem:[%s11 + $0xe38] sm:$0xff]
  %v6689 = vld [vmem:[%s11 + $0xe40] sm:$0xff]
  %v6690 = vld [vmem:[%s11 + $0xe48] sm:$0xff]
  %v6691 = vld [vmem:[%s11 + $0xe50] sm:$0xff]
  %v6692 = vld [vmem:[%s11 + $0xe58] sm:$0xff]
  %v6693 = vld [vmem:[%s11 + $0xe60] sm:$0xff]
  %v6694 = vld [vmem:[%s11 + $0xe68] sm:$0xff]
  %v6695 = vld [vmem:[%s11 + $0xe70] sm:$0xff]
  %v6696 = vld [vmem:[%s11 + $0xe78] sm:$0xff]
  %v6697 = vld [vmem:[%s11 + $0xe80] sm:$0xff]
  %v6698 = vld [vmem:[%s11 + $0xe88] sm:$0xff]
  %v6699 = vld [vmem:[%s11 + $0xe90] sm:$0xff]
  %v6700 = vld [vmem:[%s11 + $0xe98] sm:$0xff]
  %v6701 = vld [vmem:[%s11 + $0xea0] sm:$0xff]
  %v6702 = vld [vmem:[%s11 + $0xea8] sm:$0xff]
  %v6703 = vld [vmem:[%s11 + $0xeb0] sm:$0xff]
  %v6704 = vld [vmem:[%s11 + $0xeb8] sm:$0xff]
  %v6705 = vld [vmem:[%s11 + $0xec0] sm:$0xff]
  %v6706 = vld [vmem:[%s11 + $0xec8] sm:$0xff]
  %v6707 = vld [vmem:[%s11 + $0xed0] sm:$0xff]
  %v6708 = vld [vmem:[%s11 + $0xed8] sm:$0xff]
  %v6709 = vld [vmem:[%s11 + $0xee0] sm:$0xff]
  %v6710 = vld [vmem:[%s11 + $0xee8] sm:$0xff]
  %v6711 = vld [vmem:[%s11 + $0xef0] sm:$0xff]
  %v6712 = vld [vmem:[%s11 + $0xef8] sm:$0xff]
  %v6713 = vld [vmem:[%s11 + $0xf00] sm:$0xff]
  %v6714 = vld [vmem:[%s11 + $0xf08] sm:$0xff]
  %v6715 = vld [vmem:[%s11 + $0xf10] sm:$0xff]
  %v6716 = vld [vmem:[%s11 + $0xf18] sm:$0xff]
  %v6717 = vld [vmem:[%s11 + $0xf20] sm:$0xff]
  %v6718 = vld [vmem:[%s11 + $0xf28] sm:$0xff]
  %v6719 = vld [vmem:[%s11 + $0xf30] sm:$0xff]
  %v6720 = vld [vmem:[%s11 + $0xf38] sm:$0xff]
  %v6721 = vld [vmem:[%s11 + $0xf40] sm:$0xff]
  %v6722 = vld [vmem:[%s11 + $0xf48] sm:$0xff]
  %v6723 = vld [vmem:[%s11 + $0xf50] sm:$0xff]
  %v6724 = vld [vmem:[%s11 + $0xf58] sm:$0xff]
  %v6725 = vld [vmem:[%s11 + $0xf60] sm:$0xff]
  %v6726 = vld [vmem:[%s11 + $0xf68] sm:$0xff]
  %v6727 = vld [vmem:[%s11 + $0xf70] sm:$0xff]
  %v6728 = vld [vmem:[%s11 + $0xf78] sm:$0xff]
  %v6729 = vld [vmem:[%s11 + $0xf80] sm:$0xff]
  %v6730 = vld [vmem:[%s11 + $0xf88] sm:$0xff]
  %v6731 = vld [vmem:[%s11 + $0xf90] sm:$0xff]
  %v6732 = vld [vmem:[%s11 + $0xf98] sm:$0xff]
  %v6733 = vld [vmem:[%s11 + $0xfa0] sm:$0xff]
  %v6734 = vld [vmem:[%s11 + $0xfa8] sm:$0xff]
  %v6735 = vld [vmem:[%s11 + $0xfb0] sm:$0xff]
  %v6736 = vld [vmem:[%s11 + $0xfb8] sm:$0xff]
  %v6737 = vld [vmem:[%s11 + $0xfc0] sm:$0xff]
  %v6738 = vld [vmem:[%s11 + $0xfc8] sm:$0xff]
  %v6739 = vld [vmem:[%s11 + $0xfd0] sm:$0xff]
  %v6740 = vld [vmem:[%s11 + $0xfd8] sm:$0xff]
  %v6741 = vld [vmem:[%s11 + $0xfe0] sm:$0xff]
  %v6742 = vld [vmem:[%s11 + $0xfe8] sm:$0xff]
  %v6743 = vld [vmem:[%s11 + $0xff0] sm:$0xff]
  %v6744 = vld [vmem:[%s11 + $0xff8] sm:$0xff]
  %v6745 = vld [vmem:[%s11 + $0x1000] sm:$0xff]
  %v6746 = vld [vmem:[%s11 + $0x1008] sm:$0xff]
  %v6747 = vld [vmem:[%s11 + $0x1010] sm:$0xff]
  %v6748 = vld [vmem:[%s11 + $0x1018] sm:$0xff]
  %v6749 = vld [vmem:[%s11 + $0x1020] sm:$0xff]
  %v6750 = vld [vmem:[%s11 + $0x1028] sm:$0xff]
  %v6751 = vld [vmem:[%s11 + $0x1030] sm:$0xff]
  %v6752 = vld [vmem:[%s11 + $0x1038] sm:$0xff]
  %v6753 = vld [vmem:[%s11 + $0x1040] sm:$0xff]
  %v6754 = vld [vmem:[%s11 + $0x1048] sm:$0xff]
  %v6755 = vld [vmem:[%s11 + $0x1050] sm:$0xff]
  %v6756 = vld [vmem:[%s11 + $0x1058] sm:$0xff]
  %v6757 = vld [vmem:[%s11 + $0x1060] sm:$0xff]
  %v6758 = vld [vmem:[%s11 + $0x1068] sm:$0xff]
  %v6759 = vld [vmem:[%s11 + $0x1070] sm:$0xff]
  %v6760 = vld [vmem:[%s11 + $0x1078] sm:$0xff]
  %v6761 = vld [vmem:[%s11 + $0x1080] sm:$0xff]
  %v6762 = vld [vmem:[%s11 + $0x1088] sm:$0xff]
  %v6763 = vld [vmem:[%s11 + $0x1090] sm:$0xff]
  %v6764 = vld [vmem:[%s11 + $0x1098] sm:$0xff]
  %v6765 = vld [vmem:[%s11 + $0x10a0] sm:$0xff]
  %v6766 = vld [vmem:[%s11 + $0x10a8] sm:$0xff]
  %v6767 = vld [vmem:[%s11 + $0x10b0] sm:$0xff]
  %v6768 = vld [vmem:[%s11 + $0x10b8] sm:$0xff]
  %v6769 = vld [vmem:[%s11 + $0x10c0] sm:$0xff]
  %v6770 = vld [vmem:[%s11 + $0x10c8] sm:$0xff]
  %v6771 = vld [vmem:[%s11 + $0x10d0] sm:$0xff]
  %v6772 = vld [vmem:[%s11 + $0x10d8] sm:$0xff]
  %v6773 = vld [vmem:[%s11 + $0x10e0] sm:$0xff]
  %v6774 = vld [vmem:[%s11 + $0x10e8] sm:$0xff]
  %v6775 = vld [vmem:[%s11 + $0x10f0] sm:$0xff]
  %v6776 = vld [vmem:[%s11 + $0x10f8] sm:$0xff]
  %v6777 = vld [vmem:[%s11 + $0x1100] sm:$0xff]
  %v6778 = vld [vmem:[%s11 + $0x1108] sm:$0xff]
  %v6779 = vld [vmem:[%s11 + $0x1110] sm:$0xff]
  %v6780 = vld [vmem:[%s11 + $0x1118] sm:$0xff]
  %v6781 = vld [vmem:[%s11 + $0x1120] sm:$0xff]
  %v6782 = vld [vmem:[%s11 + $0x1128] sm:$0xff]
  %v6783 = vld [vmem:[%s11 + $0x1130] sm:$0xff]
  %v6784 = vld [vmem:[%s11 + $0x1138] sm:$0xff]
  %v6785 = vld [vmem:[%s11 + $0x1140] sm:$0xff]
  %v6786 = vld [vmem:[%s11 + $0x1148] sm:$0xff]
  %v6787 = vld [vmem:[%s11 + $0x1150] sm:$0xff]
  %v6788 = vld [vmem:[%s11 + $0x1158] sm:$0xff]
  %v6789 = vld [vmem:[%s11 + $0x1160] sm:$0xff]
  %v6790 = vld [vmem:[%s11 + $0x1168] sm:$0xff]
  %v6791 = vld [vmem:[%s11 + $0x1170] sm:$0xff]
  %v6792 = vld [vmem:[%s11 + $0x1178] sm:$0xff]
  %v6793 = vld [vmem:[%s11 + $0x1180] sm:$0xff]
  %v6794 = vld [vmem:[%s11 + $0x1188] sm:$0xff]
  %v6795 = vld [vmem:[%s11 + $0x1190] sm:$0xff]
  %v6796 = vld [vmem:[%s11 + $0x1198] sm:$0xff]
  %v6797 = vld [vmem:[%s11 + $0x11a0] sm:$0xff]
  %v6798 = vld [vmem:[%s11 + $0x11a8] sm:$0xff]
  %v6799 = vld [vmem:[%s11 + $0x11b0] sm:$0xff]
  %v6800 = vld [vmem:[%s11 + $0x11b8] sm:$0xff]
  %v6801 = vld [vmem:[%s11 + $0x11c0] sm:$0xff]
  %v6802 = vld [vmem:[%s11 + $0x11c8] sm:$0xff]
  %v6803 = vld [vmem:[%s11 + $0x11d0] sm:$0xff]
  %v6804 = vld [vmem:[%s11 + $0x11d8] sm:$0xff]
  %v6805 = vld [vmem:[%s11 + $0x11e0] sm:$0xff]
  %v6806 = vld [vmem:[%s11 + $0x11e8] sm:$0xff]
  %v6807 = vld [vmem:[%s11 + $0x11f0] sm:$0xff]
  %v6808 = vld [vmem:[%s11 + $0x11f8] sm:$0xff]
  %v6809 = vld [vmem:[%s11 + $0x1200] sm:$0xff]
  %v6810 = vld [vmem:[%s11 + $0x1208] sm:$0xff]
  %v6811 = vld [vmem:[%s11 + $0x1210] sm:$0xff]
  %v6812 = vld [vmem:[%s11 + $0x1218] sm:$0xff]
  %v6813 = vld [vmem:[%s11 + $0x1220] sm:$0xff]
  %v6814 = vld [vmem:[%s11 + $0x1228] sm:$0xff]
  %v6815 = vld [vmem:[%s11 + $0x1230] sm:$0xff]
  %v6816 = vld [vmem:[%s11 + $0x1238] sm:$0xff]
  %v6817 = vld [vmem:[%s11 + $0x1240] sm:$0xff]
  %v6818 = vld [vmem:[%s11 + $0x1248] sm:$0xff]
  %v6819 = vld [vmem:[%s11 + $0x1250] sm:$0xff]
  %v6820 = vld [vmem:[%s11 + $0x1258] sm:$0xff]
  %v6821 = vld [vmem:[%s11 + $0x1260] sm:$0xff]
  %v6822 = vld [vmem:[%s11 + $0x1268] sm:$0xff]
  %v6823 = vld [vmem:[%s11 + $0x1270] sm:$0xff]
  %v6824 = vld [vmem:[%s11 + $0x1278] sm:$0xff]
  %v6825 = vld [vmem:[%s11 + $0x1280] sm:$0xff]
  %v6826 = vld [vmem:[%s11 + $0x1288] sm:$0xff]
  %v6827 = vld [vmem:[%s11 + $0x1290] sm:$0xff]
  %v6828 = vld [vmem:[%s11 + $0x1298] sm:$0xff]
  %v6829 = vld [vmem:[%s11 + $0x12a0] sm:$0xff]
  %v6830 = vld [vmem:[%s11 + $0x12a8] sm:$0xff]
  %v6831 = vld [vmem:[%s11 + $0x12b0] sm:$0xff]
  %v6832 = vld [vmem:[%s11 + $0x12b8] sm:$0xff]
  %v6833 = vld [vmem:[%s11 + $0x12c0] sm:$0xff]
  %v6834 = vld [vmem:[%s11 + $0x12c8] sm:$0xff]
  %v6835 = vld [vmem:[%s11 + $0x12d0] sm:$0xff]
  %v6836 = vld [vmem:[%s11 + $0x12d8] sm:$0xff]
  %v6837 = vld [vmem:[%s11 + $0x12e0] sm:$0xff]
  %v6838 = vld [vmem:[%s11 + $0x12e8] sm:$0xff]
  %v6839 = vld [vmem:[%s11 + $0x12f0] sm:$0xff]
  %v6840 = vld [vmem:[%s11 + $0x12f8] sm:$0xff]
  %v6841 = vld [vmem:[%s11 + $0x1300] sm:$0xff]
  %v6842 = vld [vmem:[%s11 + $0x1308] sm:$0xff]
  %v6843 = vld [vmem:[%s11 + $0x1310] sm:$0xff]
  %v6844 = vld [vmem:[%s11 + $0x1318] sm:$0xff]
  %v6845 = vld [vmem:[%s11 + $0x1320] sm:$0xff]
  %v6846 = vld [vmem:[%s11 + $0x1328] sm:$0xff]
  %v6847 = vld [vmem:[%s11 + $0x1330] sm:$0xff]
  %v6848 = vld [vmem:[%s11 + $0x1338] sm:$0xff]
  %v6849 = vld [vmem:[%s11 + $0x1340] sm:$0xff]
  %v6850 = vld [vmem:[%s11 + $0x1348] sm:$0xff]
  %v6851 = vld [vmem:[%s11 + $0x1350] sm:$0xff]
  %v6852 = vld [vmem:[%s11 + $0x1358] sm:$0xff]
  %v6853 = vld [vmem:[%s11 + $0x1360] sm:$0xff]
  %v6854 = vld [vmem:[%s11 + $0x1368] sm:$0xff]
  %v6855 = vld [vmem:[%s11 + $0x1370] sm:$0xff]
  %v6856 = vld [vmem:[%s11 + $0x1378] sm:$0xff]
  %v6857 = vld [vmem:[%s11 + $0x1380] sm:$0xff]
  %v6858 = vld [vmem:[%s11 + $0x1388] sm:$0xff]
  %v6859 = vld [vmem:[%s11 + $0x1390] sm:$0xff]
  %v6860 = vld [vmem:[%s11 + $0x1398] sm:$0xff]
  %v6861 = vld [vmem:[%s11 + $0x13a0] sm:$0xff]
  %v6862 = vld [vmem:[%s11 + $0x13a8] sm:$0xff]
  %v6863 = vld [vmem:[%s11 + $0x13b0] sm:$0xff]
  %v6864 = vld [vmem:[%s11 + $0x13b8] sm:$0xff]
  %v6865 = vld [vmem:[%s11 + $0x13c0] sm:$0xff]
  %v6866 = vld [vmem:[%s11 + $0x13c8] sm:$0xff]
  %v6867 = vld [vmem:[%s11 + $0x13d0] sm:$0xff]
  %v6868 = vld [vmem:[%s11 + $0x13d8] sm:$0xff]
  %v6869 = vld [vmem:[%s11 + $0x13e0] sm:$0xff]
  %v6870 = vld [vmem:[%s11 + $0x13e8] sm:$0xff]
  %v6871 = vld [vmem:[%s11 + $0x13f0] sm:$0xff]
  %v6872 = vld [vmem:[%s11 + $0x13f8] sm:$0xff]
  %v6873 = vld [vmem:[%s11 + $0x1400] sm:$0xff]
  %v6874 = vld [vmem:[%s11 + $0x1408] sm:$0xff]
  %v6875 = vld [vmem:[%s11 + $0x1410] sm:$0xff]
  %v6876 = vld [vmem:[%s11 + $0x1418] sm:$0xff]
  %v6877 = vld [vmem:[%s11 + $0x1420] sm:$0xff]
  %v6878 = vld [vmem:[%s11 + $0x1428] sm:$0xff]
  %v6879 = vld [vmem:[%s11 + $0x1430] sm:$0xff]
  %v6880 = vld [vmem:[%s11 + $0x1438] sm:$0xff]
  %v6881 = vld [vmem:[%s11 + $0x1440] sm:$0xff]
  %v6882 = vld [vmem:[%s11 + $0x1448] sm:$0xff]
  %v6883 = vld [vmem:[%s11 + $0x1450] sm:$0xff]
  %v6884 = vld [vmem:[%s11 + $0x1458] sm:$0xff]
  %v6885 = vld [vmem:[%s11 + $0x1460] sm:$0xff]
  %v6886 = vld [vmem:[%s11 + $0x1468] sm:$0xff]
  %v6887 = vld [vmem:[%s11 + $0x1470] sm:$0xff]
  %v6888 = vld [vmem:[%s11 + $0x1478] sm:$0xff]
  %v6889 = vld [vmem:[%s11 + $0x1480] sm:$0xff]
  %v6890 = vld [vmem:[%s11 + $0x1488] sm:$0xff]
  %v6891 = vld [vmem:[%s11 + $0x1490] sm:$0xff]
  %v6892 = vld [vmem:[%s11 + $0x1498] sm:$0xff]
  %v6893 = vld [vmem:[%s11 + $0x14a0] sm:$0xff]
  %v6894 = vld [vmem:[%s11 + $0x14a8] sm:$0xff]
  %v6895 = vld [vmem:[%s11 + $0x14b0] sm:$0xff]
  %v6896 = vld [vmem:[%s11 + $0x14b8] sm:$0xff]
  %v6897 = vld [vmem:[%s11 + $0x14c0] sm:$0xff]
  %v6898 = vld [vmem:[%s11 + $0x14c8] sm:$0xff]
  %v6899 = vld [vmem:[%s11 + $0x14d0] sm:$0xff]
  %v6900 = vld [vmem:[%s11 + $0x14d8] sm:$0xff]
  %v6901 = vld [vmem:[%s11 + $0x14e0] sm:$0xff]
  %v6902 = vld [vmem:[%s11 + $0x14e8] sm:$0xff]
  %v6903 = vld [vmem:[%s11 + $0x14f0] sm:$0xff]
  %v6904 = vld [vmem:[%s11 + $0x14f8] sm:$0xff]
  %v6905 = vld [vmem:[%s11 + $0x1500] sm:$0xff]
  %v6906 = vld [vmem:[%s11 + $0x1508] sm:$0xff]
  %v6907 = vld [vmem:[%s11 + $0x1510] sm:$0xff]
  %v6908 = vld [vmem:[%s11 + $0x1518] sm:$0xff]
  %v6909 = vld [vmem:[%s11 + $0x1520] sm:$0xff]
  %v6910 = vld [vmem:[%s11 + $0x1528] sm:$0xff]
  %v6911 = vld [vmem:[%s11 + $0x1530] sm:$0xff]
  %v6912 = vld [vmem:[%s11 + $0x1538] sm:$0xff]
  %v6913 = vld [vmem:[%s11 + $0x1540] sm:$0xff]
  %v6914 = vld [vmem:[%s11 + $0x1548] sm:$0xff]
  %v6915 = vld [vmem:[%s11 + $0x1550] sm:$0xff]
  %v6916 = vld [vmem:[%s11 + $0x1558] sm:$0xff]
  %v6917 = vld [vmem:[%s11 + $0x1560] sm:$0xff]
  %v6918 = vld [vmem:[%s11 + $0x1568] sm:$0xff]
  %v6919 = vld [vmem:[%s11 + $0x1570] sm:$0xff]
  %v6920 = vld [vmem:[%s11 + $0x1578] sm:$0xff]
  %v6921 = vld [vmem:[%s11 + $0x1580] sm:$0xff]
  %v6922 = vld [vmem:[%s11 + $0x1588] sm:$0xff]
  %v6923 = vld [vmem:[%s11 + $0x1590] sm:$0xff]
  %v6924 = vld [vmem:[%s11 + $0x1598] sm:$0xff]
  %v6925 = vld [vmem:[%s11 + $0x15a0] sm:$0xff]
  %v6926 = vld [vmem:[%s11 + $0x15a8] sm:$0xff]
  %v6927 = vld [vmem:[%s11 + $0x15b0] sm:$0xff]
  %v6928 = vld [vmem:[%s11 + $0x15b8] sm:$0xff]
  %v6929 = vld [vmem:[%s11 + $0x15c0] sm:$0xff]
  %v6930 = vld [vmem:[%s11 + $0x15c8] sm:$0xff]
  %v6931 = vld [vmem:[%s11 + $0x15d0] sm:$0xff]
  %v6932 = vld [vmem:[%s11 + $0x15d8] sm:$0xff]
  %v6933 = vld [vmem:[%s11 + $0x15e0] sm:$0xff]
  %v6934 = vld [vmem:[%s11 + $0x15e8] sm:$0xff]
  %v6935 = vld [vmem:[%s11 + $0x15f0] sm:$0xff]
  %v6936 = vld [vmem:[%s11 + $0x15f8] sm:$0xff]
  %v6937 = vld [vmem:[%s11 + $0x1600] sm:$0xff]
  %v6938 = vld [vmem:[%s11 + $0x1608] sm:$0xff]
  %v6939 = vld [vmem:[%s11 + $0x1610] sm:$0xff]
  %v6940 = vld [vmem:[%s11 + $0x1618] sm:$0xff]
  %v6941 = vld [vmem:[%s11 + $0x1620] sm:$0xff]
  %v6942 = vld [vmem:[%s11 + $0x1628] sm:$0xff]
  %v6943 = vld [vmem:[%s11 + $0x1630] sm:$0xff]
  %v6944 = vld [vmem:[%s11 + $0x1638] sm:$0xff]
  %v6945 = vld [vmem:[%s11 + $0x1640] sm:$0xff]
  %v6946 = vld [vmem:[%s11 + $0x1648] sm:$0xff]
  %v6947 = vld [vmem:[%s11 + $0x1650] sm:$0xff]
  %v6948 = vld [vmem:[%s11 + $0x1658] sm:$0xff]
  %v6949 = vld [vmem:[%s11 + $0x1660] sm:$0xff]
  %v6950 = vld [vmem:[%s11 + $0x1668] sm:$0xff]
  %v6951 = vld [vmem:[%s11 + $0x1670] sm:$0xff]
  %v6952 = vld [vmem:[%s11 + $0x1678] sm:$0xff]
  %v6953 = vld [vmem:[%s11 + $0x1680] sm:$0xff]
  %v6954 = vld [vmem:[%s11 + $0x1688] sm:$0xff]
  %v6955 = vld [vmem:[%s11 + $0x1690] sm:$0xff]
  %v6956 = vld [vmem:[%s11 + $0x1698] sm:$0xff]
  %v6957 = vld [vmem:[%s11 + $0x16a0] sm:$0xff]
  %v6958 = vld [vmem:[%s11 + $0x16a8] sm:$0xff]
  %v6959 = vld [vmem:[%s11 + $0x16b0] sm:$0xff]
  %v6960 = vld [vmem:[%s11 + $0x16b8] sm:$0xff]
  %v6961 = vld [vmem:[%s11 + $0x16c0] sm:$0xff]
  %v6962 = vld [vmem:[%s11 + $0x16c8] sm:$0xff]
  %v6963 = vld [vmem:[%s11 + $0x16d0] sm:$0xff]
  %v6964 = vld [vmem:[%s11 + $0x16d8] sm:$0xff]
  %v6965 = vld [vmem:[%s11 + $0x16e0] sm:$0xff]
  %v6966 = vld [vmem:[%s11 + $0x16e8] sm:$0xff]
  %v6967 = vld [vmem:[%s11 + $0x16f0] sm:$0xff]
  %v6968 = vld [vmem:[%s11 + $0x16f8] sm:$0xff]
  %v6969 = vld [vmem:[%s11 + $0x1700] sm:$0xff]
  %v6970 = vld [vmem:[%s11 + $0x1708] sm:$0xff]
  %v6971 = vld [vmem:[%s11 + $0x1710] sm:$0xff]
  %v6972 = vld [vmem:[%s11 + $0x1718] sm:$0xff]
  %v6973 = vld [vmem:[%s11 + $0x1720] sm:$0xff]
  %v6974 = vld [vmem:[%s11 + $0x1728] sm:$0xff]
  %v6975 = vld [vmem:[%s11 + $0x1730] sm:$0xff]
  %v6976 = vld [vmem:[%s11 + $0x1738] sm:$0xff]
  %v6977 = vld [vmem:[%s11 + $0x1740] sm:$0xff]
  %v6978 = vld [vmem:[%s11 + $0x1748] sm:$0xff]
  %v6979 = vld [vmem:[%s11 + $0x1750] sm:$0xff]
  %v6980 = vld [vmem:[%s11 + $0x1758] sm:$0xff]
  %v6981 = vld [vmem:[%s11 + $0x1760] sm:$0xff]
  %v6982 = vld [vmem:[%s11 + $0x1768] sm:$0xff]
  %v6983 = vld [vmem:[%s11 + $0x1770] sm:$0xff]
  %v6984 = vld [vmem:[%s11 + $0x1778] sm:$0xff]
  %v6985 = vld [vmem:[%s11 + $0x1780] sm:$0xff]
  %v6986 = vld [vmem:[%s11 + $0x1788] sm:$0xff]
  %v6987 = vld [vmem:[%s11 + $0x1790] sm:$0xff]
  %v6988 = vld [vmem:[%s11 + $0x1798] sm:$0xff]
  %v6989 = vld [vmem:[%s11 + $0x17a0] sm:$0xff]
  %v6990 = vld [vmem:[%s11 + $0x17a8] sm:$0xff]
  %v6991 = vld [vmem:[%s11 + $0x17b0] sm:$0xff]
  %v6992 = vld [vmem:[%s11 + $0x17b8] sm:$0xff]
  %v6993 = vld [vmem:[%s11 + $0x17c0] sm:$0xff]
  %v6994 = vld [vmem:[%s11 + $0x17c8] sm:$0xff]
  %v6995 = vld [vmem:[%s11 + $0x17d0] sm:$0xff]
  %v6996 = vld [vmem:[%s11 + $0x17d8] sm:$0xff]
  %v6997 = vld [vmem:[%s11 + $0x17e0] sm:$0xff]
  %v6998 = vld [vmem:[%s11 + $0x17e8] sm:$0xff]
  %v6999 = vld [vmem:[%s11 + $0x17f0] sm:$0xff]
  %v7000 = vld [vmem:[%s11 + $0x17f8] sm:$0xff]
  %v7001 = vld [vmem:[%s11 + $0x1800] sm:$0xff]
  %v7002 = vld [vmem:[%s11 + $0x1808] sm:$0xff]
  %v7003 = vld [vmem:[%s11 + $0x1810] sm:$0xff]
  %v7004 = vld [vmem:[%s11 + $0x1818] sm:$0xff]
  %v7005 = vld [vmem:[%s11 + $0x1820] sm:$0xff]
  %v7006 = vld [vmem:[%s11 + $0x1828] sm:$0xff]
  %v7007 = vld [vmem:[%s11 + $0x1830] sm:$0xff]
  %v7008 = vld [vmem:[%s11 + $0x1838] sm:$0xff]
  %v7009 = vld [vmem:[%s11 + $0x1840] sm:$0xff]
  %v7010 = vld [vmem:[%s11 + $0x1848] sm:$0xff]
  %v7011 = vld [vmem:[%s11 + $0x1850] sm:$0xff]
  %v7012 = vld [vmem:[%s11 + $0x1858] sm:$0xff]
  %v7013 = vld [vmem:[%s11 + $0x1860] sm:$0xff]
  %v7014 = vld [vmem:[%s11 + $0x1868] sm:$0xff]
  %v7015 = vld [vmem:[%s11 + $0x1870] sm:$0xff]
  %v7016 = vld [vmem:[%s11 + $0x1878] sm:$0xff]
  %v7017 = vld [vmem:[%s11 + $0x1880] sm:$0xff]
  %v7018 = vld [vmem:[%s11 + $0x1888] sm:$0xff]
  %v7019 = vld [vmem:[%s11 + $0x1890] sm:$0xff]
  %v7020 = vld [vmem:[%s11 + $0x1898] sm:$0xff]
  %v7021 = vld [vmem:[%s11 + $0x18a0] sm:$0xff]
  %v7022 = vld [vmem:[%s11 + $0x18a8] sm:$0xff]
  %v7023 = vld [vmem:[%s11 + $0x18b0] sm:$0xff]
  %v7024 = vld [vmem:[%s11 + $0x18b8] sm:$0xff]
  %v7025 = vld [vmem:[%s11 + $0x18c0] sm:$0xff]
  %v7026 = vld [vmem:[%s11 + $0x18c8] sm:$0xff]
  %v7027 = vld [vmem:[%s11 + $0x18d0] sm:$0xff]
  %v7028 = vld [vmem:[%s11 + $0x18d8] sm:$0xff]
  %v7029 = vld [vmem:[%s11 + $0x18e0] sm:$0xff]
  %v7030 = vld [vmem:[%s11 + $0x18e8] sm:$0xff]
  %v7031 = vld [vmem:[%s11 + $0x18f0] sm:$0xff]
  %v7032 = vld [vmem:[%s11 + $0x18f8] sm:$0xff]
  %v7033 = vld [vmem:[%s11 + $0x1900] sm:$0xff]
  %v7034 = vld [vmem:[%s11 + $0x1908] sm:$0xff]
  %v7035 = vld [vmem:[%s11 + $0x1910] sm:$0xff]
  %v7036 = vld [vmem:[%s11 + $0x1918] sm:$0xff]
  %v7037 = vld [vmem:[%s11 + $0x1920] sm:$0xff]
  %v7038 = vld [vmem:[%s11 + $0x1928] sm:$0xff]
  %v7039 = vld [vmem:[%s11 + $0x1930] sm:$0xff]
  %v7040 = vld [vmem:[%s11 + $0x1938] sm:$0xff]
  %v7041 = vld [vmem:[%s11 + $0x1940] sm:$0xff]
  %v7042 = vld [vmem:[%s11 + $0x1948] sm:$0xff]
  %v7043 = vld [vmem:[%s11 + $0x1950] sm:$0xff]
  %v7044 = vld [vmem:[%s11 + $0x1958] sm:$0xff]
  %v7045 = vld [vmem:[%s11 + $0x1960] sm:$0xff]
  %v7046 = vld [vmem:[%s11 + $0x1968] sm:$0xff]
  %v7047 = vld [vmem:[%s11 + $0x1970] sm:$0xff]
  %v7048 = vld [vmem:[%s11 + $0x1978] sm:$0xff]
  %v7049 = vld [vmem:[%s11 + $0x1980] sm:$0xff]
  %v7050 = vld [vmem:[%s11 + $0x1988] sm:$0xff]
  %v7051 = vld [vmem:[%s11 + $0x1990] sm:$0xff]
  %v7052 = vld [vmem:[%s11 + $0x1998] sm:$0xff]
  %v7053 = vld [vmem:[%s11 + $0x19a0] sm:$0xff]
  %v7054 = vld [vmem:[%s11 + $0x19a8] sm:$0xff]
  %v7055 = vld [vmem:[%s11 + $0x19b0] sm:$0xff]
  %v7056 = vld [vmem:[%s11 + $0x19b8] sm:$0xff]
  %v7057 = vld [vmem:[%s11 + $0x19c0] sm:$0xff]
  %v7058 = vld [vmem:[%s11 + $0x19c8] sm:$0xff]
  %v7059 = vld [vmem:[%s11 + $0x19d0] sm:$0xff]
  %v7060 = vld [vmem:[%s11 + $0x19d8] sm:$0xff]
  %v7061 = vld [vmem:[%s11 + $0x19e0] sm:$0xff]
  %v7062 = vld [vmem:[%s11 + $0x19e8] sm:$0xff]
  %v7063 = vld [vmem:[%s11 + $0x19f0] sm:$0xff]
  %v7064 = vld [vmem:[%s11 + $0x19f8] sm:$0xff]
  %v7065 = vld [vmem:[%s11 + $0x1a00] sm:$0xff]
  %v7066 = vld [vmem:[%s11 + $0x1a08] sm:$0xff]
  %v7067 = vld [vmem:[%s11 + $0x1a10] sm:$0xff]
  %v7068 = vld [vmem:[%s11 + $0x1a18] sm:$0xff]
  %v7069 = vld [vmem:[%s11 + $0x1a20] sm:$0xff]
  %v7070 = vld [vmem:[%s11 + $0x1a28] sm:$0xff]
  %v7071 = vld [vmem:[%s11 + $0x1a30] sm:$0xff]
  %v7072 = vld [vmem:[%s11 + $0x1a38] sm:$0xff]
  %v7073 = vld [vmem:[%s11 + $0x1a40] sm:$0xff]
  %v7074 = vld [vmem:[%s11 + $0x1a48] sm:$0xff]
  %v7075 = vld [vmem:[%s11 + $0x1a50] sm:$0xff]
  %v7076 = vld [vmem:[%s11 + $0x1a58] sm:$0xff]
  %v7077 = vld [vmem:[%s11 + $0x1a60] sm:$0xff]
  %v7078 = vld [vmem:[%s11 + $0x1a68] sm:$0xff]
  %v7079 = vld [vmem:[%s11 + $0x1a70] sm:$0xff]
  %v7080 = vld [vmem:[%s11 + $0x1a78] sm:$0xff]
  %v7081 = vld [vmem:[%s11 + $0x1a80] sm:$0xff]
  %v7082 = vld [vmem:[%s11 + $0x1a88] sm:$0xff]
  %v7083 = vld [vmem:[%s11 + $0x1a90] sm:$0xff]
  %v7084 = vld [vmem:[%s11 + $0x1a98] sm:$0xff]
  %v7085 = vld [vmem:[%s11 + $0x1aa0] sm:$0xff]
  %v7086 = vld [vmem:[%s11 + $0x1aa8] sm:$0xff]
  %v7087 = vld [vmem:[%s11 + $0x1ab0] sm:$0xff]
  %v7088 = vld [vmem:[%s11 + $0x1ab8] sm:$0xff]
  %v7089 = vld [vmem:[%s11 + $0x1ac0] sm:$0xff]
  %v7090 = vld [vmem:[%s11 + $0x1ac8] sm:$0xff]
  %v7091 = vld [vmem:[%s11 + $0x1ad0] sm:$0xff]
  %v7092 = vld [vmem:[%s11 + $0x1ad8] sm:$0xff]
  %v7093 = vld [vmem:[%s11 + $0x1ae0] sm:$0xff]
  %v7094 = vld [vmem:[%s11 + $0x1ae8] sm:$0xff]
  %v7095 = vld [vmem:[%s11 + $0x1af0] sm:$0xff]
  %v7096 = vld [vmem:[%s11 + $0x1af8] sm:$0xff]
  %v7097 = vld [vmem:[%s11 + $0x1b00] sm:$0xff]
  %v7098 = vld [vmem:[%s11 + $0x1b08] sm:$0xff]
  %v7099 = vld [vmem:[%s11 + $0x1b10] sm:$0xff]
  %v7100 = vld [vmem:[%s11 + $0x1b18] sm:$0xff]
  %v7101 = vld [vmem:[%s11 + $0x1b20] sm:$0xff]
  %v7102 = vld [vmem:[%s11 + $0x1b28] sm:$0xff]
  %v7103 = vld [vmem:[%s11 + $0x1b30] sm:$0xff]
  %v7104 = vld [vmem:[%s11 + $0x1b38] sm:$0xff]
  %v7105 = vld [vmem:[%s11 + $0x1b40] sm:$0xff]
  %v7106 = vld [vmem:[%s11 + $0x1b48] sm:$0xff]
  %v7107 = vld [vmem:[%s11 + $0x1b50] sm:$0xff]
  %v7108 = vld [vmem:[%s11 + $0x1b58] sm:$0xff]
  %v7109 = vld [vmem:[%s11 + $0x1b60] sm:$0xff]
  %v7110 = vld [vmem:[%s11 + $0x1b68] sm:$0xff]
  %v7111 = vld [vmem:[%s11 + $0x1b70] sm:$0xff]
  %v7112 = vld [vmem:[%s11 + $0x1b78] sm:$0xff]
  %v7113 = vld [vmem:[%s11 + $0x1b80] sm:$0xff]
  %v7114 = vld [vmem:[%s11 + $0x1b88] sm:$0xff]
  %v7115 = vld [vmem:[%s11 + $0x1b90] sm:$0xff]
  %v7116 = vld [vmem:[%s11 + $0x1b98] sm:$0xff]
  %v7117 = vld [vmem:[%s11 + $0x1ba0] sm:$0xff]
  %v7118 = vld [vmem:[%s11 + $0x1ba8] sm:$0xff]
  %v7119 = vld [vmem:[%s11 + $0x1bb0] sm:$0xff]
  %v7120 = vld [vmem:[%s11 + $0x1bb8] sm:$0xff]
  %v7121 = vld [vmem:[%s11 + $0x1bc0] sm:$0xff]
  %v7122 = vld [vmem:[%s11 + $0x1bc8] sm:$0xff]
  %v7123 = vld [vmem:[%s11 + $0x1bd0] sm:$0xff]
  %v7124 = vld [vmem:[%s11 + $0x1bd8] sm:$0xff]
  %v7125 = vld [vmem:[%s11 + $0x1be0] sm:$0xff]
  %v7126 = vld [vmem:[%s11 + $0x1be8] sm:$0xff]
  %v7127 = vld [vmem:[%s11 + $0x1bf0] sm:$0xff]
  %v7128 = vld [vmem:[%s11 + $0x1bf8] sm:$0xff]
  %v7129 = vld [vmem:[%s11 + $0x1c00] sm:$0xff]
  %v7130 = vld [vmem:[%s11 + $0x1c08] sm:$0xff]
  %v7131 = vld [vmem:[%s11 + $0x1c10] sm:$0xff]
  %v7132 = vld [vmem:[%s11 + $0x1c18] sm:$0xff]
  %v7133 = vld [vmem:[%s11 + $0x1c20] sm:$0xff]
  %v7134 = vld [vmem:[%s11 + $0x1c28] sm:$0xff]
  %v7135 = vld [vmem:[%s11 + $0x1c30] sm:$0xff]
  %v7136 = vld [vmem:[%s11 + $0x1c38] sm:$0xff]
  %v7137 = vld [vmem:[%s11 + $0x1c40] sm:$0xff]
  %v7138 = vld [vmem:[%s11 + $0x1c48] sm:$0xff]
  %v7139 = vld [vmem:[%s11 + $0x1c50] sm:$0xff]
  %v7140 = vld [vmem:[%s11 + $0x1c58] sm:$0xff]
  %v7141 = vld [vmem:[%s11 + $0x1c60] sm:$0xff]
  %v7142 = vld [vmem:[%s11 + $0x1c68] sm:$0xff]
  %v7143 = vld [vmem:[%s11 + $0x1c70] sm:$0xff]
  %v7144 = vld [vmem:[%s11 + $0x1c78] sm:$0xff]
  %v7145 = vld [vmem:[%s11 + $0x1c80] sm:$0xff]
  %v7146 = vld [vmem:[%s11 + $0x1c88] sm:$0xff]
  %v7147 = vld [vmem:[%s11 + $0x1c90] sm:$0xff]
  %v7148 = vld [vmem:[%s11 + $0x1c98] sm:$0xff]
  %v7149 = vld [vmem:[%s11 + $0x1ca0] sm:$0xff]
  %v7150 = vld [vmem:[%s11 + $0x1ca8] sm:$0xff]
  %v7151 = vld [vmem:[%s11 + $0x1cb0] sm:$0xff]
  %v7152 = vld [vmem:[%s11 + $0x1cb8] sm:$0xff]
  %v7153 = vld [vmem:[%s11 + $0x1cc0] sm:$0xff]
  %v7154 = vld [vmem:[%s11 + $0x1cc8] sm:$0xff]
  %v7155 = vld [vmem:[%s11 + $0x1cd0] sm:$0xff]
  %v7156 = vld [vmem:[%s11 + $0x1cd8] sm:$0xff]
  %v7157 = vld [vmem:[%s11 + $0x1ce0] sm:$0xff]
  %v7158 = vld [vmem:[%s11 + $0x1ce8] sm:$0xff]
  %v7159 = vld [vmem:[%s11 + $0x1cf0] sm:$0xff]
  %v7160 = vld [vmem:[%s11 + $0x1cf8] sm:$0xff]
  %v7161 = vld [vmem:[%s11 + $0x1d00] sm:$0xff]
  %v7162 = vld [vmem:[%s11 + $0x1d08] sm:$0xff]
  %v7163 = vld [vmem:[%s11 + $0x1d10] sm:$0xff]
  %v7164 = vld [vmem:[%s11 + $0x1d18] sm:$0xff]
  %v7165 = vld [vmem:[%s11 + $0x1d20] sm:$0xff]
  %v7166 = vld [vmem:[%s11 + $0x1d28] sm:$0xff]
  %v7167 = vld [vmem:[%s11 + $0x1d30] sm:$0xff]
  %v7168 = vld [vmem:[%s11 + $0x1d38] sm:$0xff]
  %v7169 = vld [vmem:[%s11 + $0x1d40] sm:$0xff]
  %v7170 = vld [vmem:[%s11 + $0x1d48] sm:$0xff]
  %v7171 = vld [vmem:[%s11 + $0x1d50] sm:$0xff]
  %v7172 = vld [vmem:[%s11 + $0x1d58] sm:$0xff]
  %v7173 = vld [vmem:[%s11 + $0x1d60] sm:$0xff]
  %v7174 = vld [vmem:[%s11 + $0x1d68] sm:$0xff]
  %v7175 = vld [vmem:[%s11 + $0x1d70] sm:$0xff]
  %v7176 = vld [vmem:[%s11 + $0x1d78] sm:$0xff]
  %v7177 = vld [vmem:[%s11 + $0x1d80] sm:$0xff]
  %v7178 = vld [vmem:[%s11 + $0x1d88] sm:$0xff]
  %v7179 = vld [vmem:[%s11 + $0x1d90] sm:$0xff]
  %v7180 = vld [vmem:[%s11 + $0x1d98] sm:$0xff]
  %v7181 = vld [vmem:[%s11 + $0x1da0] sm:$0xff]
  %v7182 = vld [vmem:[%s11 + $0x1da8] sm:$0xff]
  %v7183 = vld [vmem:[%s11 + $0x1db0] sm:$0xff]
  %v7184 = vld [vmem:[%s11 + $0x1db8] sm:$0xff]
  %v7185 = vld [vmem:[%s11 + $0x1dc0] sm:$0xff]
  %v7186 = vld [vmem:[%s11 + $0x1dc8] sm:$0xff]
  %v7187 = vld [vmem:[%s11 + $0x1dd0] sm:$0xff]
  %v7188 = vld [vmem:[%s11 + $0x1dd8] sm:$0xff]
  %v7189 = vld [vmem:[%s11 + $0x1de0] sm:$0xff]
  %v7190 = vld [vmem:[%s11 + $0x1de8] sm:$0xff]
  %v7191 = vld [vmem:[%s11 + $0x1df0] sm:$0xff]
  %v7192 = vld [vmem:[%s11 + $0x1df8] sm:$0xff]
  %v7193 = vld [vmem:[%s11 + $0x1e00] sm:$0xff]
  %v7194 = vld [vmem:[%s11 + $0x1e08] sm:$0xff]
  %v7195 = vld [vmem:[%s11 + $0x1e10] sm:$0xff]
  %v7196 = vld [vmem:[%s11 + $0x1e18] sm:$0xff]
  %v7197 = vld [vmem:[%s11 + $0x1e20] sm:$0xff]
  %v7198 = vld [vmem:[%s11 + $0x1e28] sm:$0xff]
  %v7199 = vld [vmem:[%s11 + $0x1e30] sm:$0xff]
  %v7200 = vld [vmem:[%s11 + $0x1e38] sm:$0xff]
  %v7201 = vld [vmem:[%s11 + $0x1e40] sm:$0xff]
  %v7202 = vld [vmem:[%s11 + $0x1e48] sm:$0xff]
  %v7203 = vld [vmem:[%s11 + $0x1e50] sm:$0xff]
  %v7204 = vld [vmem:[%s11 + $0x1e58] sm:$0xff]
  %v7205 = vld [vmem:[%s11 + $0x1e60] sm:$0xff]
  %v7206 = vld [vmem:[%s11 + $0x1e68] sm:$0xff]
  %v7207 = vld [vmem:[%s11 + $0x1e70] sm:$0xff]
  %v7208 = vld [vmem:[%s11 + $0x1e78] sm:$0xff]
  %v7209 = vld [vmem:[%s11 + $0x1e80] sm:$0xff]
  %v7210 = vld [vmem:[%s11 + $0x1e88] sm:$0xff]
  %v7211 = vld [vmem:[%s11 + $0x1e90] sm:$0xff]
  %v7212 = vld [vmem:[%s11 + $0x1e98] sm:$0xff]
  %v7213 = vld [vmem:[%s11 + $0x1ea0] sm:$0xff]
  %v7214 = vld [vmem:[%s11 + $0x1ea8] sm:$0xff]
  %v7215 = vld [vmem:[%s11 + $0x1eb0] sm:$0xff]
  %v7216 = vld [vmem:[%s11 + $0x1eb8] sm:$0xff]
  %v7217 = vld [vmem:[%s11 + $0x1ec0] sm:$0xff]
  %v7218 = vld [vmem:[%s11 + $0x1ec8] sm:$0xff]
  %v7219 = vld [vmem:[%s11 + $0x1ed0] sm:$0xff]
  %v7220 = vld [vmem:[%s11 + $0x1ed8] sm:$0xff]
  %v7221 = vld [vmem:[%s11 + $0x1ee0] sm:$0xff]
  %v7222 = vld [vmem:[%s11 + $0x1ee8] sm:$0xff]
  %v7223 = vld [vmem:[%s11 + $0x1ef0] sm:$0xff]
  %v7224 = vld [vmem:[%s11 + $0x1ef8] sm:$0xff]
  %v7225 = vld [vmem:[%s11 + $0x1f00] sm:$0xff]
  %v7226 = vld [vmem:[%s11 + $0x1f08] sm:$0xff]
  %v7227 = vld [vmem:[%s11 + $0x1f10] sm:$0xff]
  %v7228 = vld [vmem:[%s11 + $0x1f18] sm:$0xff]
  %v7229 = vld [vmem:[%s11 + $0x1f20] sm:$0xff]
  %v7230 = vld [vmem:[%s11 + $0x1f28] sm:$0xff]
  %v7231 = vld [vmem:[%s11 + $0x1f30] sm:$0xff]
  %v7232 = vld [vmem:[%s11 + $0x1f38] sm:$0xff]
  %v7233 = vld [vmem:[%s11 + $0x1f40] sm:$0xff]
  %v7234 = vld [vmem:[%s11 + $0x1f48] sm:$0xff]
  %v7235 = vld [vmem:[%s11 + $0x1f50] sm:$0xff]
  %v7236 = vld [vmem:[%s11 + $0x1f58] sm:$0xff]
  %v7237 = vld [vmem:[%s11 + $0x1f60] sm:$0xff]
  %v7238 = vld [vmem:[%s11 + $0x1f68] sm:$0xff]
  %v7239 = vld [vmem:[%s11 + $0x1f70] sm:$0xff]
  %v7240 = vld [vmem:[%s11 + $0x1f78] sm:$0xff]
  %v7241 = vld [vmem:[%s11 + $0x1f80] sm:$0xff]
  %v7242 = vld [vmem:[%s11 + $0x1f88] sm:$0xff]
  %v7243 = vld [vmem:[%s11 + $0x1f90] sm:$0xff]
  %v7244 = vld [vmem:[%s11 + $0x1f98] sm:$0xff]
  %v7245 = vld [vmem:[%s11 + $0x1fa0] sm:$0xff]
  %v7246 = vld [vmem:[%s11 + $0x1fa8] sm:$0xff]
  %v7247 = vld [vmem:[%s11 + $0x1fb0] sm:$0xff]
  %v7248 = vld [vmem:[%s11 + $0x1fb8] sm:$0xff]
  %v7249 = vld [vmem:[%s11 + $0x1fc0] sm:$0xff]
  %v7250 = vld [vmem:[%s11 + $0x1fc8] sm:$0xff]
  %v7251 = vld [vmem:[%s11 + $0x1fd0] sm:$0xff]
  %v7252 = vld [vmem:[%s11 + $0x1fd8] sm:$0xff]
  %v7253 = vld [vmem:[%s11 + $0x1fe0] sm:$0xff]
  %v7254 = vld [vmem:[%s11 + $0x1fe8] sm:$0xff]
  %v7255 = vld [vmem:[%s11 + $0x1ff0] sm:$0xff]
  %v7256 = vld [vmem:[%s11 + $0x1ff8] sm:$0xff]
  %v7257 = vld [vmem:[%s12] sm:$0xf]
  %v7259 = vperm.slane %v7257, 0
  %v7260 = vperm.slane %v7257, 1
  %v7261 = vperm.slane %v7257, 2
  %v7262 = vperm.slane %v7257, 3
  %7267 = vmatpush.msra.mxu0 %v6293
  %7268 = vmatpush.msra.mxu0 %v6289
  %7269 = vmatpush.msra.mxu0 %v6285
  %7270 = vmatpush.msra.mxu0 %v6281
  %7271 = vmatpush.msra.mxu0 %v6277
  %7272 = vmatpush.msra.mxu0 %v6273
  %7273 = vmatpush.msra.mxu0 %v6269
  %7274 = vmatpush.msra.mxu0 %v6265
  %7275 = vmatpush.msra.mxu0 %v6261
  %7276 = vmatpush.msra.mxu0 %v6257
  %7277 = vmatpush.msra.mxu0 %v6253
  %7278 = vmatpush.msra.mxu0 %v6249
  %7279 = vmatpush.msra.mxu0 %v6245
  %7280 = vmatpush.msra.mxu0 %v6241
  %7281 = vmatpush.msra.mxu0 %v6237
  %7282 = vmatpush.msra.mxu0 %v6233
  %7283 = vmatmul.f32.gmra.mxu0 %v6201
  %v7284 = vpop.f32.mrf.mxu0
  %v7285 = vadd.f32 %v7259, %v7284
  %7286 = vdwg.mxu0
  %7287 = vmatpush.msra.mxu0 %v6357
  %7288 = vmatpush.msra.mxu0 %v6353
  %7289 = vmatpush.msra.mxu0 %v6349
  %7290 = vmatpush.msra.mxu0 %v6345
  %7291 = vmatpush.msra.mxu0 %v6341
  %7292 = vmatpush.msra.mxu0 %v6337
  %7293 = vmatpush.msra.mxu0 %v6333
  %7294 = vmatpush.msra.mxu0 %v6329
  %7295 = vmatpush.msra.mxu0 %v6325
  %7296 = vmatpush.msra.mxu0 %v6321
  %7297 = vmatpush.msra.mxu0 %v6317
  %7298 = vmatpush.msra.mxu0 %v6313
  %7299 = vmatpush.msra.mxu0 %v6309
  %7300 = vmatpush.msra.mxu0 %v6305
  %7301 = vmatpush.msra.mxu0 %v6301
  %7302 = vmatpush.msra.mxu0 %v6297
  %7303 = vmatmul.f32.gmra.mxu0 %v6202
  %v7304 = vpop.f32.mrf.mxu0
  %v7305 = vadd.f32 %v7285, %v7304
  %7306 = vdwg.mxu0
  %7307 = vmatpush.msra.mxu0 %v6421
  %7308 = vmatpush.msra.mxu0 %v6417
  %7309 = vmatpush.msra.mxu0 %v6413
  %7310 = vmatpush.msra.mxu0 %v6409
  %7311 = vmatpush.msra.mxu0 %v6405
  %7312 = vmatpush.msra.mxu0 %v6401
  %7313 = vmatpush.msra.mxu0 %v6397
  %7314 = vmatpush.msra.mxu0 %v6393
  %7315 = vmatpush.msra.mxu0 %v6389
  %7316 = vmatpush.msra.mxu0 %v6385
  %7317 = vmatpush.msra.mxu0 %v6381
  %7318 = vmatpush.msra.mxu0 %v6377
  %7319 = vmatpush.msra.mxu0 %v6373
  %7320 = vmatpush.msra.mxu0 %v6369
  %7321 = vmatpush.msra.mxu0 %v6365
  %7322 = vmatpush.msra.mxu0 %v6361
  %7323 = vmatmul.f32.gmra.mxu0 %v6211
  %v7324 = vpop.f32.mrf.mxu0
  %v7325 = vadd.f32 %v7305, %v7324
  %7326 = vdwg.mxu0
  %7327 = vmatpush.msra.mxu0 %v6485
  %7328 = vmatpush.msra.mxu0 %v6481
  %7329 = vmatpush.msra.mxu0 %v6477
  %7330 = vmatpush.msra.mxu0 %v6473
  %7331 = vmatpush.msra.mxu0 %v6469
  %7332 = vmatpush.msra.mxu0 %v6465
  %7333 = vmatpush.msra.mxu0 %v6461
  %7334 = vmatpush.msra.mxu0 %v6457
  %7335 = vmatpush.msra.mxu0 %v6453
  %7336 = vmatpush.msra.mxu0 %v6449
  %7337 = vmatpush.msra.mxu0 %v6445
  %7338 = vmatpush.msra.mxu0 %v6441
  %7339 = vmatpush.msra.mxu0 %v6437
  %7340 = vmatpush.msra.mxu0 %v6433
  %7341 = vmatpush.msra.mxu0 %v6429
  %7342 = vmatpush.msra.mxu0 %v6425
  %7343 = vmatmul.f32.gmra.mxu0 %v6212
  %v7344 = vpop.f32.mrf.mxu0
  %v7345 = vadd.f32 %v7325, %v7344
  %7346 = vdwg.mxu0
  %7347 = vmatpush.msra.mxu0 %v6549
  %7348 = vmatpush.msra.mxu0 %v6545
  %7349 = vmatpush.msra.mxu0 %v6541
  %7350 = vmatpush.msra.mxu0 %v6537
  %7351 = vmatpush.msra.mxu0 %v6533
  %7352 = vmatpush.msra.mxu0 %v6529
  %7353 = vmatpush.msra.mxu0 %v6525
  %7354 = vmatpush.msra.mxu0 %v6521
  %7355 = vmatpush.msra.mxu0 %v6517
  %7356 = vmatpush.msra.mxu0 %v6513
  %7357 = vmatpush.msra.mxu0 %v6509
  %7358 = vmatpush.msra.mxu0 %v6505
  %7359 = vmatpush.msra.mxu0 %v6501
  %7360 = vmatpush.msra.mxu0 %v6497
  %7361 = vmatpush.msra.mxu0 %v6493
  %7362 = vmatpush.msra.mxu0 %v6489
  %7363 = vmatmul.f32.gmra.mxu0 %v6203
  %v7364 = vpop.f32.mrf.mxu0
  %v7365 = vadd.f32 %v7345, %v7364
  %7366 = vdwg.mxu0
  %7367 = vmatpush.msra.mxu0 %v6613
  %7368 = vmatpush.msra.mxu0 %v6609
  %7369 = vmatpush.msra.mxu0 %v6605
  %7370 = vmatpush.msra.mxu0 %v6601
  %7371 = vmatpush.msra.mxu0 %v6597
  %7372 = vmatpush.msra.mxu0 %v6593
  %7373 = vmatpush.msra.mxu0 %v6589
  %7374 = vmatpush.msra.mxu0 %v6585
  %7375 = vmatpush.msra.mxu0 %v6581
  %7376 = vmatpush.msra.mxu0 %v6577
  %7377 = vmatpush.msra.mxu0 %v6573
  %7378 = vmatpush.msra.mxu0 %v6569
  %7379 = vmatpush.msra.mxu0 %v6565
  %7380 = vmatpush.msra.mxu0 %v6561
  %7381 = vmatpush.msra.mxu0 %v6557
  %7382 = vmatpush.msra.mxu0 %v6553
  %7383 = vmatmul.f32.gmra.mxu0 %v6204
  %v7384 = vpop.f32.mrf.mxu0
  %v7385 = vadd.f32 %v7365, %v7384
  %7386 = vdwg.mxu0
  %7387 = vmatpush.msra.mxu0 %v6677
  %7388 = vmatpush.msra.mxu0 %v6673
  %7389 = vmatpush.msra.mxu0 %v6669
  %7390 = vmatpush.msra.mxu0 %v6665
  %7391 = vmatpush.msra.mxu0 %v6661
  %7392 = vmatpush.msra.mxu0 %v6657
  %7393 = vmatpush.msra.mxu0 %v6653
  %7394 = vmatpush.msra.mxu0 %v6649
  %7395 = vmatpush.msra.mxu0 %v6645
  %7396 = vmatpush.msra.mxu0 %v6641
  %7397 = vmatpush.msra.mxu0 %v6637
  %7398 = vmatpush.msra.mxu0 %v6633
  %7399 = vmatpush.msra.mxu0 %v6629
  %7400 = vmatpush.msra.mxu0 %v6625
  %7401 = vmatpush.msra.mxu0 %v6621
  %7402 = vmatpush.msra.mxu0 %v6617
  %7403 = vmatmul.f32.gmra.mxu0 %v6217
  %v7404 = vpop.f32.mrf.mxu0
  %v7405 = vadd.f32 %v7385, %v7404
  %7406 = vdwg.mxu0
  %7407 = vmatpush.msra.mxu0 %v6741
  %7408 = vmatpush.msra.mxu0 %v6737
  %7409 = vmatpush.msra.mxu0 %v6733
  %7410 = vmatpush.msra.mxu0 %v6729
  %7411 = vmatpush.msra.mxu0 %v6725
  %7412 = vmatpush.msra.mxu0 %v6721
  %7413 = vmatpush.msra.mxu0 %v6717
  %7414 = vmatpush.msra.mxu0 %v6713
  %7415 = vmatpush.msra.mxu0 %v6709
  %7416 = vmatpush.msra.mxu0 %v6705
  %7417 = vmatpush.msra.mxu0 %v6701
  %7418 = vmatpush.msra.mxu0 %v6697
  %7419 = vmatpush.msra.mxu0 %v6693
  %7420 = vmatpush.msra.mxu0 %v6689
  %7421 = vmatpush.msra.mxu0 %v6685
  %7422 = vmatpush.msra.mxu0 %v6681
  %7423 = vmatmul.f32.gmra.mxu0 %v6218
  %v7424 = vpop.f32.mrf.mxu0
  %v7425 = vadd.f32 %v7405, %v7424
  %7426 = vdwg.mxu0
  %7427 = vmatpush.msra.mxu0 %v6805
  %7428 = vmatpush.msra.mxu0 %v6801
  %7429 = vmatpush.msra.mxu0 %v6797
  %7430 = vmatpush.msra.mxu0 %v6793
  %7431 = vmatpush.msra.mxu0 %v6789
  %7432 = vmatpush.msra.mxu0 %v6785
  %7433 = vmatpush.msra.mxu0 %v6781
  %7434 = vmatpush.msra.mxu0 %v6777
  %7435 = vmatpush.msra.mxu0 %v6773
  %7436 = vmatpush.msra.mxu0 %v6769
  %7437 = vmatpush.msra.mxu0 %v6765
  %7438 = vmatpush.msra.mxu0 %v6761
  %7439 = vmatpush.msra.mxu0 %v6757
  %7440 = vmatpush.msra.mxu0 %v6753
  %7441 = vmatpush.msra.mxu0 %v6749
  %7442 = vmatpush.msra.mxu0 %v6745
  %7443 = vmatmul.f32.gmra.mxu0 %v6205
  %v7444 = vpop.f32.mrf.mxu0
  %v7445 = vadd.f32 %v7425, %v7444
  %7446 = vdwg.mxu0
  %7447 = vmatpush.msra.mxu0 %v6869
  %7448 = vmatpush.msra.mxu0 %v6865
  %7449 = vmatpush.msra.mxu0 %v6861
  %7450 = vmatpush.msra.mxu0 %v6857
  %7451 = vmatpush.msra.mxu0 %v6853
  %7452 = vmatpush.msra.mxu0 %v6849
  %7453 = vmatpush.msra.mxu0 %v6845
  %7454 = vmatpush.msra.mxu0 %v6841
  %7455 = vmatpush.msra.mxu0 %v6837
  %7456 = vmatpush.msra.mxu0 %v6833
  %7457 = vmatpush.msra.mxu0 %v6829
  %7458 = vmatpush.msra.mxu0 %v6825
  %7459 = vmatpush.msra.mxu0 %v6821
  %7460 = vmatpush.msra.mxu0 %v6817
  %7461 = vmatpush.msra.mxu0 %v6813
  %7462 = vmatpush.msra.mxu0 %v6809
  %7463 = vmatmul.f32.gmra.mxu0 %v6206
  %v7464 = vpop.f32.mrf.mxu0
  %v7465 = vadd.f32 %v7445, %v7464
  %7466 = vdwg.mxu0
  %7467 = vmatpush.msra.mxu0 %v6933
  %7468 = vmatpush.msra.mxu0 %v6929
  %7469 = vmatpush.msra.mxu0 %v6925
  %7470 = vmatpush.msra.mxu0 %v6921
  %7471 = vmatpush.msra.mxu0 %v6917
  %7472 = vmatpush.msra.mxu0 %v6913
  %7473 = vmatpush.msra.mxu0 %v6909
  %7474 = vmatpush.msra.mxu0 %v6905
  %7475 = vmatpush.msra.mxu0 %v6901
  %7476 = vmatpush.msra.mxu0 %v6897
  %7477 = vmatpush.msra.mxu0 %v6893
  %7478 = vmatpush.msra.mxu0 %v6889
  %7479 = vmatpush.msra.mxu0 %v6885
  %7480 = vmatpush.msra.mxu0 %v6881
  %7481 = vmatpush.msra.mxu0 %v6877
  %7482 = vmatpush.msra.mxu0 %v6873
  %7483 = vmatmul.f32.gmra.mxu0 %v6223
  %v7484 = vpop.f32.mrf.mxu0
  %v7485 = vadd.f32 %v7465, %v7484
  %7486 = vdwg.mxu0
  %7487 = vmatpush.msra.mxu0 %v6997
  %7488 = vmatpush.msra.mxu0 %v6993
  %7489 = vmatpush.msra.mxu0 %v6989
  %7490 = vmatpush.msra.mxu0 %v6985
  %7491 = vmatpush.msra.mxu0 %v6981
  %7492 = vmatpush.msra.mxu0 %v6977
  %7493 = vmatpush.msra.mxu0 %v6973
  %7494 = vmatpush.msra.mxu0 %v6969
  %7495 = vmatpush.msra.mxu0 %v6965
  %7496 = vmatpush.msra.mxu0 %v6961
  %7497 = vmatpush.msra.mxu0 %v6957
  %7498 = vmatpush.msra.mxu0 %v6953
  %7499 = vmatpush.msra.mxu0 %v6949
  %7500 = vmatpush.msra.mxu0 %v6945
  %7501 = vmatpush.msra.mxu0 %v6941
  %7502 = vmatpush.msra.mxu0 %v6937
  %7503 = vmatmul.f32.gmra.mxu0 %v6224
  %v7504 = vpop.f32.mrf.mxu0
  %v7505 = vadd.f32 %v7485, %v7504
  %7506 = vdwg.mxu0
  %7507 = vmatpush.msra.mxu0 %v7061
  %7508 = vmatpush.msra.mxu0 %v7057
  %7509 = vmatpush.msra.mxu0 %v7053
  %7510 = vmatpush.msra.mxu0 %v7049
  %7511 = vmatpush.msra.mxu0 %v7045
  %7512 = vmatpush.msra.mxu0 %v7041
  %7513 = vmatpush.msra.mxu0 %v7037
  %7514 = vmatpush.msra.mxu0 %v7033
  %7515 = vmatpush.msra.mxu0 %v7029
  %7516 = vmatpush.msra.mxu0 %v7025
  %7517 = vmatpush.msra.mxu0 %v7021
  %7518 = vmatpush.msra.mxu0 %v7017
  %7519 = vmatpush.msra.mxu0 %v7013
  %7520 = vmatpush.msra.mxu0 %v7009
  %7521 = vmatpush.msra.mxu0 %v7005
  %7522 = vmatpush.msra.mxu0 %v7001
  %7523 = vmatmul.f32.gmra.mxu0 %v6207
  %v7524 = vpop.f32.mrf.mxu0
  %v7525 = vadd.f32 %v7505, %v7524
  %7526 = vdwg.mxu0
  %7527 = vmatpush.msra.mxu0 %v7125
  %7528 = vmatpush.msra.mxu0 %v7121
  %7529 = vmatpush.msra.mxu0 %v7117
  %7530 = vmatpush.msra.mxu0 %v7113
  %7531 = vmatpush.msra.mxu0 %v7109
  %7532 = vmatpush.msra.mxu0 %v7105
  %7533 = vmatpush.msra.mxu0 %v7101
  %7534 = vmatpush.msra.mxu0 %v7097
  %7535 = vmatpush.msra.mxu0 %v7093
  %7536 = vmatpush.msra.mxu0 %v7089
  %7537 = vmatpush.msra.mxu0 %v7085
  %7538 = vmatpush.msra.mxu0 %v7081
  %7539 = vmatpush.msra.mxu0 %v7077
  %7540 = vmatpush.msra.mxu0 %v7073
  %7541 = vmatpush.msra.mxu0 %v7069
  %7542 = vmatpush.msra.mxu0 %v7065
  %7543 = vmatmul.f32.gmra.mxu0 %v6208
  %v7544 = vpop.f32.mrf.mxu0
  %v7545 = vadd.f32 %v7525, %v7544
  %7546 = vdwg.mxu0
  %7547 = vmatpush.msra.mxu0 %v7189
  %7548 = vmatpush.msra.mxu0 %v7185
  %7549 = vmatpush.msra.mxu0 %v7181
  %7550 = vmatpush.msra.mxu0 %v7177
  %7551 = vmatpush.msra.mxu0 %v7173
  %7552 = vmatpush.msra.mxu0 %v7169
  %7553 = vmatpush.msra.mxu0 %v7165
  %7554 = vmatpush.msra.mxu0 %v7161
  %7555 = vmatpush.msra.mxu0 %v7157
  %7556 = vmatpush.msra.mxu0 %v7153
  %7557 = vmatpush.msra.mxu0 %v7149
  %7558 = vmatpush.msra.mxu0 %v7145
  %7559 = vmatpush.msra.mxu0 %v7141
  %7560 = vmatpush.msra.mxu0 %v7137
  %7561 = vmatpush.msra.mxu0 %v7133
  %7562 = vmatpush.msra.mxu0 %v7129
  %7563 = vmatmul.f32.gmra.mxu0 %v6229
  %v7564 = vpop.f32.mrf.mxu0
  %v7565 = vadd.f32 %v7545, %v7564
  %7566 = vdwg.mxu0
  %7567 = vmatpush.msra.mxu0 %v7253
  %7568 = vmatpush.msra.mxu0 %v7249
  %7569 = vmatpush.msra.mxu0 %v7245
  %7570 = vmatpush.msra.mxu0 %v7241
  %7571 = vmatpush.msra.mxu0 %v7237
  %7572 = vmatpush.msra.mxu0 %v7233
  %7573 = vmatpush.msra.mxu0 %v7229
  %7574 = vmatpush.msra.mxu0 %v7225
  %7575 = vmatpush.msra.mxu0 %v7221
  %7576 = vmatpush.msra.mxu0 %v7217
  %7577 = vmatpush.msra.mxu0 %v7213
  %7578 = vmatpush.msra.mxu0 %v7209
  %7579 = vmatpush.msra.mxu0 %v7205
  %7580 = vmatpush.msra.mxu0 %v7201
  %7581 = vmatpush.msra.mxu0 %v7197
  %7582 = vmatpush.msra.mxu0 %v7193
  %7583 = vmatmul.f32.gmra.mxu0 %v6230
  %v7584 = vpop.f32.mrf.mxu0
  %v7585 = vadd.f32 %v7565, %v7584
  %7586 = vdwg.mxu0
  %7587 = vmatpush.msra.mxu0 %v6294
  %7588 = vmatpush.msra.mxu0 %v6290
  %7589 = vmatpush.msra.mxu0 %v6286
  %7590 = vmatpush.msra.mxu0 %v6282
  %7591 = vmatpush.msra.mxu0 %v6278
  %7592 = vmatpush.msra.mxu0 %v6274
  %7593 = vmatpush.msra.mxu0 %v6270
  %7594 = vmatpush.msra.mxu0 %v6266
  %7595 = vmatpush.msra.mxu0 %v6262
  %7596 = vmatpush.msra.mxu0 %v6258
  %7597 = vmatpush.msra.mxu0 %v6254
  %7598 = vmatpush.msra.mxu0 %v6250
  %7599 = vmatpush.msra.mxu0 %v6246
  %7600 = vmatpush.msra.mxu0 %v6242
  %7601 = vmatpush.msra.mxu0 %v6238
  %7602 = vmatpush.msra.mxu0 %v6234
  %7603 = vmatmul.f32.gmra.mxu0 %v6201
  %v7604 = vpop.f32.mrf.mxu0
  %v7605 = vadd.f32 %v7260, %v7604
  %7606 = vdwg.mxu0
  %7607 = vmatpush.msra.mxu0 %v6358
  %7608 = vmatpush.msra.mxu0 %v6354
  %7609 = vmatpush.msra.mxu0 %v6350
  %7610 = vmatpush.msra.mxu0 %v6346
  %7611 = vmatpush.msra.mxu0 %v6342
  %7612 = vmatpush.msra.mxu0 %v6338
  %7613 = vmatpush.msra.mxu0 %v6334
  %7614 = vmatpush.msra.mxu0 %v6330
  %7615 = vmatpush.msra.mxu0 %v6326
  %7616 = vmatpush.msra.mxu0 %v6322
  %7617 = vmatpush.msra.mxu0 %v6318
  %7618 = vmatpush.msra.mxu0 %v6314
  %7619 = vmatpush.msra.mxu0 %v6310
  %7620 = vmatpush.msra.mxu0 %v6306
  %7621 = vmatpush.msra.mxu0 %v6302
  %7622 = vmatpush.msra.mxu0 %v6298
  %7623 = vmatmul.f32.gmra.mxu0 %v6202
  %v7624 = vpop.f32.mrf.mxu0
  %v7625 = vadd.f32 %v7605, %v7624
  %7626 = vdwg.mxu0
  %7627 = vmatpush.msra.mxu0 %v6422
  %7628 = vmatpush.msra.mxu0 %v6418
  %7629 = vmatpush.msra.mxu0 %v6414
  %7630 = vmatpush.msra.mxu0 %v6410
  %7631 = vmatpush.msra.mxu0 %v6406
  %7632 = vmatpush.msra.mxu0 %v6402
  %7633 = vmatpush.msra.mxu0 %v6398
  %7634 = vmatpush.msra.mxu0 %v6394
  %7635 = vmatpush.msra.mxu0 %v6390
  %7636 = vmatpush.msra.mxu0 %v6386
  %7637 = vmatpush.msra.mxu0 %v6382
  %7638 = vmatpush.msra.mxu0 %v6378
  %7639 = vmatpush.msra.mxu0 %v6374
  %7640 = vmatpush.msra.mxu0 %v6370
  %7641 = vmatpush.msra.mxu0 %v6366
  %7642 = vmatpush.msra.mxu0 %v6362
  %7643 = vmatmul.f32.gmra.mxu0 %v6211
  %v7644 = vpop.f32.mrf.mxu0
  %v7645 = vadd.f32 %v7625, %v7644
  %7646 = vdwg.mxu0
  %7647 = vmatpush.msra.mxu0 %v6486
  %7648 = vmatpush.msra.mxu0 %v6482
  %7649 = vmatpush.msra.mxu0 %v6478
  %7650 = vmatpush.msra.mxu0 %v6474
  %7651 = vmatpush.msra.mxu0 %v6470
  %7652 = vmatpush.msra.mxu0 %v6466
  %7653 = vmatpush.msra.mxu0 %v6462
  %7654 = vmatpush.msra.mxu0 %v6458
  %7655 = vmatpush.msra.mxu0 %v6454
  %7656 = vmatpush.msra.mxu0 %v6450
  %7657 = vmatpush.msra.mxu0 %v6446
  %7658 = vmatpush.msra.mxu0 %v6442
  %7659 = vmatpush.msra.mxu0 %v6438
  %7660 = vmatpush.msra.mxu0 %v6434
  %7661 = vmatpush.msra.mxu0 %v6430
  %7662 = vmatpush.msra.mxu0 %v6426
  %7663 = vmatmul.f32.gmra.mxu0 %v6212
  %v7664 = vpop.f32.mrf.mxu0
  %v7665 = vadd.f32 %v7645, %v7664
  %7666 = vdwg.mxu0
  %7667 = vmatpush.msra.mxu0 %v6550
  %7668 = vmatpush.msra.mxu0 %v6546
  %7669 = vmatpush.msra.mxu0 %v6542
  %7670 = vmatpush.msra.mxu0 %v6538
  %7671 = vmatpush.msra.mxu0 %v6534
  %7672 = vmatpush.msra.mxu0 %v6530
  %7673 = vmatpush.msra.mxu0 %v6526
  %7674 = vmatpush.msra.mxu0 %v6522
  %7675 = vmatpush.msra.mxu0 %v6518
  %7676 = vmatpush.msra.mxu0 %v6514
  %7677 = vmatpush.msra.mxu0 %v6510
  %7678 = vmatpush.msra.mxu0 %v6506
  %7679 = vmatpush.msra.mxu0 %v6502
  %7680 = vmatpush.msra.mxu0 %v6498
  %7681 = vmatpush.msra.mxu0 %v6494
  %7682 = vmatpush.msra.mxu0 %v6490
  %7683 = vmatmul.f32.gmra.mxu0 %v6203
  %v7684 = vpop.f32.mrf.mxu0
  %v7685 = vadd.f32 %v7665, %v7684
  %7686 = vdwg.mxu0
  %7687 = vmatpush.msra.mxu0 %v6614
  %7688 = vmatpush.msra.mxu0 %v6610
  %7689 = vmatpush.msra.mxu0 %v6606
  %7690 = vmatpush.msra.mxu0 %v6602
  %7691 = vmatpush.msra.mxu0 %v6598
  %7692 = vmatpush.msra.mxu0 %v6594
  %7693 = vmatpush.msra.mxu0 %v6590
  %7694 = vmatpush.msra.mxu0 %v6586
  %7695 = vmatpush.msra.mxu0 %v6582
  %7696 = vmatpush.msra.mxu0 %v6578
  %7697 = vmatpush.msra.mxu0 %v6574
  %7698 = vmatpush.msra.mxu0 %v6570
  %7699 = vmatpush.msra.mxu0 %v6566
  %7700 = vmatpush.msra.mxu0 %v6562
  %7701 = vmatpush.msra.mxu0 %v6558
  %7702 = vmatpush.msra.mxu0 %v6554
  %7703 = vmatmul.f32.gmra.mxu0 %v6204
  %v7704 = vpop.f32.mrf.mxu0
  %v7705 = vadd.f32 %v7685, %v7704
  %7706 = vdwg.mxu0
  %7707 = vmatpush.msra.mxu0 %v6678
  %7708 = vmatpush.msra.mxu0 %v6674
  %7709 = vmatpush.msra.mxu0 %v6670
  %7710 = vmatpush.msra.mxu0 %v6666
  %7711 = vmatpush.msra.mxu0 %v6662
  %7712 = vmatpush.msra.mxu0 %v6658
  %7713 = vmatpush.msra.mxu0 %v6654
  %7714 = vmatpush.msra.mxu0 %v6650
  %7715 = vmatpush.msra.mxu0 %v6646
  %7716 = vmatpush.msra.mxu0 %v6642
  %7717 = vmatpush.msra.mxu0 %v6638
  %7718 = vmatpush.msra.mxu0 %v6634
  %7719 = vmatpush.msra.mxu0 %v6630
  %7720 = vmatpush.msra.mxu0 %v6626
  %7721 = vmatpush.msra.mxu0 %v6622
  %7722 = vmatpush.msra.mxu0 %v6618
  %7723 = vmatmul.f32.gmra.mxu0 %v6217
  %v7724 = vpop.f32.mrf.mxu0
  %v7725 = vadd.f32 %v7705, %v7724
  %7726 = vdwg.mxu0
  %7727 = vmatpush.msra.mxu0 %v6742
  %7728 = vmatpush.msra.mxu0 %v6738
  %7729 = vmatpush.msra.mxu0 %v6734
  %7730 = vmatpush.msra.mxu0 %v6730
  %7731 = vmatpush.msra.mxu0 %v6726
  %7732 = vmatpush.msra.mxu0 %v6722
  %7733 = vmatpush.msra.mxu0 %v6718
  %7734 = vmatpush.msra.mxu0 %v6714
  %7735 = vmatpush.msra.mxu0 %v6710
  %7736 = vmatpush.msra.mxu0 %v6706
  %7737 = vmatpush.msra.mxu0 %v6702
  %7738 = vmatpush.msra.mxu0 %v6698
  %7739 = vmatpush.msra.mxu0 %v6694
  %7740 = vmatpush.msra.mxu0 %v6690
  %7741 = vmatpush.msra.mxu0 %v6686
  %7742 = vmatpush.msra.mxu0 %v6682
  %7743 = vmatmul.f32.gmra.mxu0 %v6218
  %v7744 = vpop.f32.mrf.mxu0
  %v7745 = vadd.f32 %v7725, %v7744
  %7746 = vdwg.mxu0
  %7747 = vmatpush.msra.mxu0 %v6806
  %7748 = vmatpush.msra.mxu0 %v6802
  %7749 = vmatpush.msra.mxu0 %v6798
  %7750 = vmatpush.msra.mxu0 %v6794
  %7751 = vmatpush.msra.mxu0 %v6790
  %7752 = vmatpush.msra.mxu0 %v6786
  %7753 = vmatpush.msra.mxu0 %v6782
  %7754 = vmatpush.msra.mxu0 %v6778
  %7755 = vmatpush.msra.mxu0 %v6774
  %7756 = vmatpush.msra.mxu0 %v6770
  %7757 = vmatpush.msra.mxu0 %v6766
  %7758 = vmatpush.msra.mxu0 %v6762
  %7759 = vmatpush.msra.mxu0 %v6758
  %7760 = vmatpush.msra.mxu0 %v6754
  %7761 = vmatpush.msra.mxu0 %v6750
  %7762 = vmatpush.msra.mxu0 %v6746
  %7763 = vmatmul.f32.gmra.mxu0 %v6205
  %v7764 = vpop.f32.mrf.mxu0
  %v7765 = vadd.f32 %v7745, %v7764
  %7766 = vdwg.mxu0
  %7767 = vmatpush.msra.mxu0 %v6870
  %7768 = vmatpush.msra.mxu0 %v6866
  %7769 = vmatpush.msra.mxu0 %v6862
  %7770 = vmatpush.msra.mxu0 %v6858
  %7771 = vmatpush.msra.mxu0 %v6854
  %7772 = vmatpush.msra.mxu0 %v6850
  %7773 = vmatpush.msra.mxu0 %v6846
  %7774 = vmatpush.msra.mxu0 %v6842
  %7775 = vmatpush.msra.mxu0 %v6838
  %7776 = vmatpush.msra.mxu0 %v6834
  %7777 = vmatpush.msra.mxu0 %v6830
  %7778 = vmatpush.msra.mxu0 %v6826
  %7779 = vmatpush.msra.mxu0 %v6822
  %7780 = vmatpush.msra.mxu0 %v6818
  %7781 = vmatpush.msra.mxu0 %v6814
  %7782 = vmatpush.msra.mxu0 %v6810
  %7783 = vmatmul.f32.gmra.mxu0 %v6206
  %v7784 = vpop.f32.mrf.mxu0
  %v7785 = vadd.f32 %v7765, %v7784
  %7786 = vdwg.mxu0
  %7787 = vmatpush.msra.mxu0 %v6934
  %7788 = vmatpush.msra.mxu0 %v6930
  %7789 = vmatpush.msra.mxu0 %v6926
  %7790 = vmatpush.msra.mxu0 %v6922
  %7791 = vmatpush.msra.mxu0 %v6918
  %7792 = vmatpush.msra.mxu0 %v6914
  %7793 = vmatpush.msra.mxu0 %v6910
  %7794 = vmatpush.msra.mxu0 %v6906
  %7795 = vmatpush.msra.mxu0 %v6902
  %7796 = vmatpush.msra.mxu0 %v6898
  %7797 = vmatpush.msra.mxu0 %v6894
  %7798 = vmatpush.msra.mxu0 %v6890
  %7799 = vmatpush.msra.mxu0 %v6886
  %7800 = vmatpush.msra.mxu0 %v6882
  %7801 = vmatpush.msra.mxu0 %v6878
  %7802 = vmatpush.msra.mxu0 %v6874
  %7803 = vmatmul.f32.gmra.mxu0 %v6223
  %v7804 = vpop.f32.mrf.mxu0
  %v7805 = vadd.f32 %v7785, %v7804
  %7806 = vdwg.mxu0
  %7807 = vmatpush.msra.mxu0 %v6998
  %7808 = vmatpush.msra.mxu0 %v6994
  %7809 = vmatpush.msra.mxu0 %v6990
  %7810 = vmatpush.msra.mxu0 %v6986
  %7811 = vmatpush.msra.mxu0 %v6982
  %7812 = vmatpush.msra.mxu0 %v6978
  %7813 = vmatpush.msra.mxu0 %v6974
  %7814 = vmatpush.msra.mxu0 %v6970
  %7815 = vmatpush.msra.mxu0 %v6966
  %7816 = vmatpush.msra.mxu0 %v6962
  %7817 = vmatpush.msra.mxu0 %v6958
  %7818 = vmatpush.msra.mxu0 %v6954
  %7819 = vmatpush.msra.mxu0 %v6950
  %7820 = vmatpush.msra.mxu0 %v6946
  %7821 = vmatpush.msra.mxu0 %v6942
  %7822 = vmatpush.msra.mxu0 %v6938
  %7823 = vmatmul.f32.gmra.mxu0 %v6224
  %v7824 = vpop.f32.mrf.mxu0
  %v7825 = vadd.f32 %v7805, %v7824
  %7826 = vdwg.mxu0
  %7827 = vmatpush.msra.mxu0 %v7062
  %7828 = vmatpush.msra.mxu0 %v7058
  %7829 = vmatpush.msra.mxu0 %v7054
  %7830 = vmatpush.msra.mxu0 %v7050
  %7831 = vmatpush.msra.mxu0 %v7046
  %7832 = vmatpush.msra.mxu0 %v7042
  %7833 = vmatpush.msra.mxu0 %v7038
  %7834 = vmatpush.msra.mxu0 %v7034
  %7835 = vmatpush.msra.mxu0 %v7030
  %7836 = vmatpush.msra.mxu0 %v7026
  %7837 = vmatpush.msra.mxu0 %v7022
  %7838 = vmatpush.msra.mxu0 %v7018
  %7839 = vmatpush.msra.mxu0 %v7014
  %7840 = vmatpush.msra.mxu0 %v7010
  %7841 = vmatpush.msra.mxu0 %v7006
  %7842 = vmatpush.msra.mxu0 %v7002
  %7843 = vmatmul.f32.gmra.mxu0 %v6207
  %v7844 = vpop.f32.mrf.mxu0
  %v7845 = vadd.f32 %v7825, %v7844
  %7846 = vdwg.mxu0
  %7847 = vmatpush.msra.mxu0 %v7126
  %7848 = vmatpush.msra.mxu0 %v7122
  %7849 = vmatpush.msra.mxu0 %v7118
  %7850 = vmatpush.msra.mxu0 %v7114
  %7851 = vmatpush.msra.mxu0 %v7110
  %7852 = vmatpush.msra.mxu0 %v7106
  %7853 = vmatpush.msra.mxu0 %v7102
  %7854 = vmatpush.msra.mxu0 %v7098
  %7855 = vmatpush.msra.mxu0 %v7094
  %7856 = vmatpush.msra.mxu0 %v7090
  %7857 = vmatpush.msra.mxu0 %v7086
  %7858 = vmatpush.msra.mxu0 %v7082
  %7859 = vmatpush.msra.mxu0 %v7078
  %7860 = vmatpush.msra.mxu0 %v7074
  %7861 = vmatpush.msra.mxu0 %v7070
  %7862 = vmatpush.msra.mxu0 %v7066
  %7863 = vmatmul.f32.gmra.mxu0 %v6208
  %v7864 = vpop.f32.mrf.mxu0
  %v7865 = vadd.f32 %v7845, %v7864
  %7866 = vdwg.mxu0
  %7867 = vmatpush.msra.mxu0 %v7190
  %7868 = vmatpush.msra.mxu0 %v7186
  %7869 = vmatpush.msra.mxu0 %v7182
  %7870 = vmatpush.msra.mxu0 %v7178
  %7871 = vmatpush.msra.mxu0 %v7174
  %7872 = vmatpush.msra.mxu0 %v7170
  %7873 = vmatpush.msra.mxu0 %v7166
  %7874 = vmatpush.msra.mxu0 %v7162
  %7875 = vmatpush.msra.mxu0 %v7158
  %7876 = vmatpush.msra.mxu0 %v7154
  %7877 = vmatpush.msra.mxu0 %v7150
  %7878 = vmatpush.msra.mxu0 %v7146
  %7879 = vmatpush.msra.mxu0 %v7142
  %7880 = vmatpush.msra.mxu0 %v7138
  %7881 = vmatpush.msra.mxu0 %v7134
  %7882 = vmatpush.msra.mxu0 %v7130
  %7883 = vmatmul.f32.gmra.mxu0 %v6229
  %v7884 = vpop.f32.mrf.mxu0
  %v7885 = vadd.f32 %v7865, %v7884
  %7886 = vdwg.mxu0
  %7887 = vmatpush.msra.mxu0 %v7254
  %7888 = vmatpush.msra.mxu0 %v7250
  %7889 = vmatpush.msra.mxu0 %v7246
  %7890 = vmatpush.msra.mxu0 %v7242
  %7891 = vmatpush.msra.mxu0 %v7238
  %7892 = vmatpush.msra.mxu0 %v7234
  %7893 = vmatpush.msra.mxu0 %v7230
  %7894 = vmatpush.msra.mxu0 %v7226
  %7895 = vmatpush.msra.mxu0 %v7222
  %7896 = vmatpush.msra.mxu0 %v7218
  %7897 = vmatpush.msra.mxu0 %v7214
  %7898 = vmatpush.msra.mxu0 %v7210
  %7899 = vmatpush.msra.mxu0 %v7206
  %7900 = vmatpush.msra.mxu0 %v7202
  %7901 = vmatpush.msra.mxu0 %v7198
  %7902 = vmatpush.msra.mxu0 %v7194
  %7903 = vmatmul.f32.gmra.mxu0 %v6230
  %v7904 = vpop.f32.mrf.mxu0
  %v7905 = vadd.f32 %v7885, %v7904
  %7906 = vdwg.mxu0
  %7907 = vmatpush.msra.mxu0 %v6295
  %7908 = vmatpush.msra.mxu0 %v6291
  %7909 = vmatpush.msra.mxu0 %v6287
  %7910 = vmatpush.msra.mxu0 %v6283
  %7911 = vmatpush.msra.mxu0 %v6279
  %7912 = vmatpush.msra.mxu0 %v6275
  %7913 = vmatpush.msra.mxu0 %v6271
  %7914 = vmatpush.msra.mxu0 %v6267
  %7915 = vmatpush.msra.mxu0 %v6263
  %7916 = vmatpush.msra.mxu0 %v6259
  %7917 = vmatpush.msra.mxu0 %v6255
  %7918 = vmatpush.msra.mxu0 %v6251
  %7919 = vmatpush.msra.mxu0 %v6247
  %7920 = vmatpush.msra.mxu0 %v6243
  %7921 = vmatpush.msra.mxu0 %v6239
  %7922 = vmatpush.msra.mxu0 %v6235
  %7923 = vmatmul.f32.gmra.mxu0 %v6201
  %v7924 = vpop.f32.mrf.mxu0
  %v7925 = vadd.f32 %v7261, %v7924
  %7926 = vdwg.mxu0
  %7927 = vmatpush.msra.mxu0 %v6359
  %7928 = vmatpush.msra.mxu0 %v6355
  %7929 = vmatpush.msra.mxu0 %v6351
  %7930 = vmatpush.msra.mxu0 %v6347
  %7931 = vmatpush.msra.mxu0 %v6343
  %7932 = vmatpush.msra.mxu0 %v6339
  %7933 = vmatpush.msra.mxu0 %v6335
  %7934 = vmatpush.msra.mxu0 %v6331
  %7935 = vmatpush.msra.mxu0 %v6327
  %7936 = vmatpush.msra.mxu0 %v6323
  %7937 = vmatpush.msra.mxu0 %v6319
  %7938 = vmatpush.msra.mxu0 %v6315
  %7939 = vmatpush.msra.mxu0 %v6311
  %7940 = vmatpush.msra.mxu0 %v6307
  %7941 = vmatpush.msra.mxu0 %v6303
  %7942 = vmatpush.msra.mxu0 %v6299
  %7943 = vmatmul.f32.gmra.mxu0 %v6202
  %v7944 = vpop.f32.mrf.mxu0
  %v7945 = vadd.f32 %v7925, %v7944
  %7946 = vdwg.mxu0
  %7947 = vmatpush.msra.mxu0 %v6423
  %7948 = vmatpush.msra.mxu0 %v6419
  %7949 = vmatpush.msra.mxu0 %v6415
  %7950 = vmatpush.msra.mxu0 %v6411
  %7951 = vmatpush.msra.mxu0 %v6407
  %7952 = vmatpush.msra.mxu0 %v6403
  %7953 = vmatpush.msra.mxu0 %v6399
  %7954 = vmatpush.msra.mxu0 %v6395
  %7955 = vmatpush.msra.mxu0 %v6391
  %7956 = vmatpush.msra.mxu0 %v6387
  %7957 = vmatpush.msra.mxu0 %v6383
  %7958 = vmatpush.msra.mxu0 %v6379
  %7959 = vmatpush.msra.mxu0 %v6375
  %7960 = vmatpush.msra.mxu0 %v6371
  %7961 = vmatpush.msra.mxu0 %v6367
  %7962 = vmatpush.msra.mxu0 %v6363
  %7963 = vmatmul.f32.gmra.mxu0 %v6211
  %v7964 = vpop.f32.mrf.mxu0
  %v7965 = vadd.f32 %v7945, %v7964
  %7966 = vdwg.mxu0
  %7967 = vmatpush.msra.mxu0 %v6487
  %7968 = vmatpush.msra.mxu0 %v6483
  %7969 = vmatpush.msra.mxu0 %v6479
  %7970 = vmatpush.msra.mxu0 %v6475
  %7971 = vmatpush.msra.mxu0 %v6471
  %7972 = vmatpush.msra.mxu0 %v6467
  %7973 = vmatpush.msra.mxu0 %v6463
  %7974 = vmatpush.msra.mxu0 %v6459
  %7975 = vmatpush.msra.mxu0 %v6455
  %7976 = vmatpush.msra.mxu0 %v6451
  %7977 = vmatpush.msra.mxu0 %v6447
  %7978 = vmatpush.msra.mxu0 %v6443
  %7979 = vmatpush.msra.mxu0 %v6439
  %7980 = vmatpush.msra.mxu0 %v6435
  %7981 = vmatpush.msra.mxu0 %v6431
  %7982 = vmatpush.msra.mxu0 %v6427
  %7983 = vmatmul.f32.gmra.mxu0 %v6212
  %v7984 = vpop.f32.mrf.mxu0
  %v7985 = vadd.f32 %v7965, %v7984
  %7986 = vdwg.mxu0
  %7987 = vmatpush.msra.mxu0 %v6551
  %7988 = vmatpush.msra.mxu0 %v6547
  %7989 = vmatpush.msra.mxu0 %v6543
  %7990 = vmatpush.msra.mxu0 %v6539
  %7991 = vmatpush.msra.mxu0 %v6535
  %7992 = vmatpush.msra.mxu0 %v6531
  %7993 = vmatpush.msra.mxu0 %v6527
  %7994 = vmatpush.msra.mxu0 %v6523
  %7995 = vmatpush.msra.mxu0 %v6519
  %7996 = vmatpush.msra.mxu0 %v6515
  %7997 = vmatpush.msra.mxu0 %v6511
  %7998 = vmatpush.msra.mxu0 %v6507
  %7999 = vmatpush.msra.mxu0 %v6503
  %8000 = vmatpush.msra.mxu0 %v6499
  %8001 = vmatpush.msra.mxu0 %v6495
  %8002 = vmatpush.msra.mxu0 %v6491
  %8003 = vmatmul.f32.gmra.mxu0 %v6203
  %v8004 = vpop.f32.mrf.mxu0
  %v8005 = vadd.f32 %v7985, %v8004
  %8006 = vdwg.mxu0
  %8007 = vmatpush.msra.mxu0 %v6615
  %8008 = vmatpush.msra.mxu0 %v6611
  %8009 = vmatpush.msra.mxu0 %v6607
  %8010 = vmatpush.msra.mxu0 %v6603
  %8011 = vmatpush.msra.mxu0 %v6599
  %8012 = vmatpush.msra.mxu0 %v6595
  %8013 = vmatpush.msra.mxu0 %v6591
  %8014 = vmatpush.msra.mxu0 %v6587
  %8015 = vmatpush.msra.mxu0 %v6583
  %8016 = vmatpush.msra.mxu0 %v6579
  %8017 = vmatpush.msra.mxu0 %v6575
  %8018 = vmatpush.msra.mxu0 %v6571
  %8019 = vmatpush.msra.mxu0 %v6567
  %8020 = vmatpush.msra.mxu0 %v6563
  %8021 = vmatpush.msra.mxu0 %v6559
  %8022 = vmatpush.msra.mxu0 %v6555
  %8023 = vmatmul.f32.gmra.mxu0 %v6204
  %v8024 = vpop.f32.mrf.mxu0
  %v8025 = vadd.f32 %v8005, %v8024
  %8026 = vdwg.mxu0
  %8027 = vmatpush.msra.mxu0 %v6679
  %8028 = vmatpush.msra.mxu0 %v6675
  %8029 = vmatpush.msra.mxu0 %v6671
  %8030 = vmatpush.msra.mxu0 %v6667
  %8031 = vmatpush.msra.mxu0 %v6663
  %8032 = vmatpush.msra.mxu0 %v6659
  %8033 = vmatpush.msra.mxu0 %v6655
  %8034 = vmatpush.msra.mxu0 %v6651
  %8035 = vmatpush.msra.mxu0 %v6647
  %8036 = vmatpush.msra.mxu0 %v6643
  %8037 = vmatpush.msra.mxu0 %v6639
  %8038 = vmatpush.msra.mxu0 %v6635
  %8039 = vmatpush.msra.mxu0 %v6631
  %8040 = vmatpush.msra.mxu0 %v6627
  %8041 = vmatpush.msra.mxu0 %v6623
  %8042 = vmatpush.msra.mxu0 %v6619
  %8043 = vmatmul.f32.gmra.mxu0 %v6217
  %v8044 = vpop.f32.mrf.mxu0
  %v8045 = vadd.f32 %v8025, %v8044
  %8046 = vdwg.mxu0
  %8047 = vmatpush.msra.mxu0 %v6743
  %8048 = vmatpush.msra.mxu0 %v6739
  %8049 = vmatpush.msra.mxu0 %v6735
  %8050 = vmatpush.msra.mxu0 %v6731
  %8051 = vmatpush.msra.mxu0 %v6727
  %8052 = vmatpush.msra.mxu0 %v6723
  %8053 = vmatpush.msra.mxu0 %v6719
  %8054 = vmatpush.msra.mxu0 %v6715
  %8055 = vmatpush.msra.mxu0 %v6711
  %8056 = vmatpush.msra.mxu0 %v6707
  %8057 = vmatpush.msra.mxu0 %v6703
  %8058 = vmatpush.msra.mxu0 %v6699
  %8059 = vmatpush.msra.mxu0 %v6695
  %8060 = vmatpush.msra.mxu0 %v6691
  %8061 = vmatpush.msra.mxu0 %v6687
  %8062 = vmatpush.msra.mxu0 %v6683
  %8063 = vmatmul.f32.gmra.mxu0 %v6218
  %v8064 = vpop.f32.mrf.mxu0
  %v8065 = vadd.f32 %v8045, %v8064
  %8066 = vdwg.mxu0
  %8067 = vmatpush.msra.mxu0 %v6807
  %8068 = vmatpush.msra.mxu0 %v6803
  %8069 = vmatpush.msra.mxu0 %v6799
  %8070 = vmatpush.msra.mxu0 %v6795
  %8071 = vmatpush.msra.mxu0 %v6791
  %8072 = vmatpush.msra.mxu0 %v6787
  %8073 = vmatpush.msra.mxu0 %v6783
  %8074 = vmatpush.msra.mxu0 %v6779
  %8075 = vmatpush.msra.mxu0 %v6775
  %8076 = vmatpush.msra.mxu0 %v6771
  %8077 = vmatpush.msra.mxu0 %v6767
  %8078 = vmatpush.msra.mxu0 %v6763
  %8079 = vmatpush.msra.mxu0 %v6759
  %8080 = vmatpush.msra.mxu0 %v6755
  %8081 = vmatpush.msra.mxu0 %v6751
  %8082 = vmatpush.msra.mxu0 %v6747
  %8083 = vmatmul.f32.gmra.mxu0 %v6205
  %v8084 = vpop.f32.mrf.mxu0
  %v8085 = vadd.f32 %v8065, %v8084
  %8086 = vdwg.mxu0
  %8087 = vmatpush.msra.mxu0 %v6871
  %8088 = vmatpush.msra.mxu0 %v6867
  %8089 = vmatpush.msra.mxu0 %v6863
  %8090 = vmatpush.msra.mxu0 %v6859
  %8091 = vmatpush.msra.mxu0 %v6855
  %8092 = vmatpush.msra.mxu0 %v6851
  %8093 = vmatpush.msra.mxu0 %v6847
  %8094 = vmatpush.msra.mxu0 %v6843
  %8095 = vmatpush.msra.mxu0 %v6839
  %8096 = vmatpush.msra.mxu0 %v6835
  %8097 = vmatpush.msra.mxu0 %v6831
  %8098 = vmatpush.msra.mxu0 %v6827
  %8099 = vmatpush.msra.mxu0 %v6823
  %8100 = vmatpush.msra.mxu0 %v6819
  %8101 = vmatpush.msra.mxu0 %v6815
  %8102 = vmatpush.msra.mxu0 %v6811
  %8103 = vmatmul.f32.gmra.mxu0 %v6206
  %v8104 = vpop.f32.mrf.mxu0
  %v8105 = vadd.f32 %v8085, %v8104
  %8106 = vdwg.mxu0
  %8107 = vmatpush.msra.mxu0 %v6935
  %8108 = vmatpush.msra.mxu0 %v6931
  %8109 = vmatpush.msra.mxu0 %v6927
  %8110 = vmatpush.msra.mxu0 %v6923
  %8111 = vmatpush.msra.mxu0 %v6919
  %8112 = vmatpush.msra.mxu0 %v6915
  %8113 = vmatpush.msra.mxu0 %v6911
  %8114 = vmatpush.msra.mxu0 %v6907
  %8115 = vmatpush.msra.mxu0 %v6903
  %8116 = vmatpush.msra.mxu0 %v6899
  %8117 = vmatpush.msra.mxu0 %v6895
  %8118 = vmatpush.msra.mxu0 %v6891
  %8119 = vmatpush.msra.mxu0 %v6887
  %8120 = vmatpush.msra.mxu0 %v6883
  %8121 = vmatpush.msra.mxu0 %v6879
  %8122 = vmatpush.msra.mxu0 %v6875
  %8123 = vmatmul.f32.gmra.mxu0 %v6223
  %v8124 = vpop.f32.mrf.mxu0
  %v8125 = vadd.f32 %v8105, %v8124
  %8126 = vdwg.mxu0
  %8127 = vmatpush.msra.mxu0 %v6999
  %8128 = vmatpush.msra.mxu0 %v6995
  %8129 = vmatpush.msra.mxu0 %v6991
  %8130 = vmatpush.msra.mxu0 %v6987
  %8131 = vmatpush.msra.mxu0 %v6983
  %8132 = vmatpush.msra.mxu0 %v6979
  %8133 = vmatpush.msra.mxu0 %v6975
  %8134 = vmatpush.msra.mxu0 %v6971
  %8135 = vmatpush.msra.mxu0 %v6967
  %8136 = vmatpush.msra.mxu0 %v6963
  %8137 = vmatpush.msra.mxu0 %v6959
  %8138 = vmatpush.msra.mxu0 %v6955
  %8139 = vmatpush.msra.mxu0 %v6951
  %8140 = vmatpush.msra.mxu0 %v6947
  %8141 = vmatpush.msra.mxu0 %v6943
  %8142 = vmatpush.msra.mxu0 %v6939
  %8143 = vmatmul.f32.gmra.mxu0 %v6224
  %v8144 = vpop.f32.mrf.mxu0
  %v8145 = vadd.f32 %v8125, %v8144
  %8146 = vdwg.mxu0
  %8147 = vmatpush.msra.mxu0 %v7063
  %8148 = vmatpush.msra.mxu0 %v7059
  %8149 = vmatpush.msra.mxu0 %v7055
  %8150 = vmatpush.msra.mxu0 %v7051
  %8151 = vmatpush.msra.mxu0 %v7047
  %8152 = vmatpush.msra.mxu0 %v7043
  %8153 = vmatpush.msra.mxu0 %v7039
  %8154 = vmatpush.msra.mxu0 %v7035
  %8155 = vmatpush.msra.mxu0 %v7031
  %8156 = vmatpush.msra.mxu0 %v7027
  %8157 = vmatpush.msra.mxu0 %v7023
  %8158 = vmatpush.msra.mxu0 %v7019
  %8159 = vmatpush.msra.mxu0 %v7015
  %8160 = vmatpush.msra.mxu0 %v7011
  %8161 = vmatpush.msra.mxu0 %v7007
  %8162 = vmatpush.msra.mxu0 %v7003
  %8163 = vmatmul.f32.gmra.mxu0 %v6207
  %v8164 = vpop.f32.mrf.mxu0
  %v8165 = vadd.f32 %v8145, %v8164
  %8166 = vdwg.mxu0
  %8167 = vmatpush.msra.mxu0 %v7127
  %8168 = vmatpush.msra.mxu0 %v7123
  %8169 = vmatpush.msra.mxu0 %v7119
  %8170 = vmatpush.msra.mxu0 %v7115
  %8171 = vmatpush.msra.mxu0 %v7111
  %8172 = vmatpush.msra.mxu0 %v7107
  %8173 = vmatpush.msra.mxu0 %v7103
  %8174 = vmatpush.msra.mxu0 %v7099
  %8175 = vmatpush.msra.mxu0 %v7095
  %8176 = vmatpush.msra.mxu0 %v7091
  %8177 = vmatpush.msra.mxu0 %v7087
  %8178 = vmatpush.msra.mxu0 %v7083
  %8179 = vmatpush.msra.mxu0 %v7079
  %8180 = vmatpush.msra.mxu0 %v7075
  %8181 = vmatpush.msra.mxu0 %v7071
  %8182 = vmatpush.msra.mxu0 %v7067
  %8183 = vmatmul.f32.gmra.mxu0 %v6208
  %v8184 = vpop.f32.mrf.mxu0
  %v8185 = vadd.f32 %v8165, %v8184
  %8186 = vdwg.mxu0
  %8187 = vmatpush.msra.mxu0 %v7191
  %8188 = vmatpush.msra.mxu0 %v7187
  %8189 = vmatpush.msra.mxu0 %v7183
  %8190 = vmatpush.msra.mxu0 %v7179
  %8191 = vmatpush.msra.mxu0 %v7175
  %8192 = vmatpush.msra.mxu0 %v7171
  %8193 = vmatpush.msra.mxu0 %v7167
  %8194 = vmatpush.msra.mxu0 %v7163
  %8195 = vmatpush.msra.mxu0 %v7159
  %8196 = vmatpush.msra.mxu0 %v7155
  %8197 = vmatpush.msra.mxu0 %v7151
  %8198 = vmatpush.msra.mxu0 %v7147
  %8199 = vmatpush.msra.mxu0 %v7143
  %8200 = vmatpush.msra.mxu0 %v7139
  %8201 = vmatpush.msra.mxu0 %v7135
  %8202 = vmatpush.msra.mxu0 %v7131
  %8203 = vmatmul.f32.gmra.mxu0 %v6229
  %v8204 = vpop.f32.mrf.mxu0
  %v8205 = vadd.f32 %v8185, %v8204
  %8206 = vdwg.mxu0
  %8207 = vmatpush.msra.mxu0 %v7255
  %8208 = vmatpush.msra.mxu0 %v7251
  %8209 = vmatpush.msra.mxu0 %v7247
  %8210 = vmatpush.msra.mxu0 %v7243
  %8211 = vmatpush.msra.mxu0 %v7239
  %8212 = vmatpush.msra.mxu0 %v7235
  %8213 = vmatpush.msra.mxu0 %v7231
  %8214 = vmatpush.msra.mxu0 %v7227
  %8215 = vmatpush.msra.mxu0 %v7223
  %8216 = vmatpush.msra.mxu0 %v7219
  %8217 = vmatpush.msra.mxu0 %v7215
  %8218 = vmatpush.msra.mxu0 %v7211
  %8219 = vmatpush.msra.mxu0 %v7207
  %8220 = vmatpush.msra.mxu0 %v7203
  %8221 = vmatpush.msra.mxu0 %v7199
  %8222 = vmatpush.msra.mxu0 %v7195
  %8223 = vmatmul.f32.gmra.mxu0 %v6230
  %v8224 = vpop.f32.mrf.mxu0
  %v8225 = vadd.f32 %v8205, %v8224
  %8226 = vdwg.mxu0
  %8227 = vmatpush.msra.mxu0 %v6296
  %8228 = vmatpush.msra.mxu0 %v6292
  %8229 = vmatpush.msra.mxu0 %v6288
  %8230 = vmatpush.msra.mxu0 %v6284
  %8231 = vmatpush.msra.mxu0 %v6280
  %8232 = vmatpush.msra.mxu0 %v6276
  %8233 = vmatpush.msra.mxu0 %v6272
  %8234 = vmatpush.msra.mxu0 %v6268
  %8235 = vmatpush.msra.mxu0 %v6264
  %8236 = vmatpush.msra.mxu0 %v6260
  %8237 = vmatpush.msra.mxu0 %v6256
  %8238 = vmatpush.msra.mxu0 %v6252
  %8239 = vmatpush.msra.mxu0 %v6248
  %8240 = vmatpush.msra.mxu0 %v6244
  %8241 = vmatpush.msra.mxu0 %v6240
  %8242 = vmatpush.msra.mxu0 %v6236
  %8243 = vmatmul.f32.gmra.mxu0 %v6201
  %v8244 = vpop.f32.mrf.mxu0
  %v8245 = vadd.f32 %v7262, %v8244
  %8246 = vdwg.mxu0
  %8247 = vmatpush.msra.mxu0 %v6360
  %8248 = vmatpush.msra.mxu0 %v6356
  %8249 = vmatpush.msra.mxu0 %v6352
  %8250 = vmatpush.msra.mxu0 %v6348
  %8251 = vmatpush.msra.mxu0 %v6344
  %8252 = vmatpush.msra.mxu0 %v6340
  %8253 = vmatpush.msra.mxu0 %v6336
  %8254 = vmatpush.msra.mxu0 %v6332
  %8255 = vmatpush.msra.mxu0 %v6328
  %8256 = vmatpush.msra.mxu0 %v6324
  %8257 = vmatpush.msra.mxu0 %v6320
  %8258 = vmatpush.msra.mxu0 %v6316
  %8259 = vmatpush.msra.mxu0 %v6312
  %8260 = vmatpush.msra.mxu0 %v6308
  %8261 = vmatpush.msra.mxu0 %v6304
  %8262 = vmatpush.msra.mxu0 %v6300
  %8263 = vmatmul.f32.gmra.mxu0 %v6202
  %v8264 = vpop.f32.mrf.mxu0
  %v8265 = vadd.f32 %v8245, %v8264
  %8266 = vdwg.mxu0
  %8267 = vmatpush.msra.mxu0 %v6424
  %8268 = vmatpush.msra.mxu0 %v6420
  %8269 = vmatpush.msra.mxu0 %v6416
  %8270 = vmatpush.msra.mxu0 %v6412
  %8271 = vmatpush.msra.mxu0 %v6408
  %8272 = vmatpush.msra.mxu0 %v6404
  %8273 = vmatpush.msra.mxu0 %v6400
  %8274 = vmatpush.msra.mxu0 %v6396
  %8275 = vmatpush.msra.mxu0 %v6392
  %8276 = vmatpush.msra.mxu0 %v6388
  %8277 = vmatpush.msra.mxu0 %v6384
  %8278 = vmatpush.msra.mxu0 %v6380
  %8279 = vmatpush.msra.mxu0 %v6376
  %8280 = vmatpush.msra.mxu0 %v6372
  %8281 = vmatpush.msra.mxu0 %v6368
  %8282 = vmatpush.msra.mxu0 %v6364
  %8283 = vmatmul.f32.gmra.mxu0 %v6211
  %v8284 = vpop.f32.mrf.mxu0
  %v8285 = vadd.f32 %v8265, %v8284
  %8286 = vdwg.mxu0
  %8287 = vmatpush.msra.mxu0 %v6488
  %8288 = vmatpush.msra.mxu0 %v6484
  %8289 = vmatpush.msra.mxu0 %v6480
  %8290 = vmatpush.msra.mxu0 %v6476
  %8291 = vmatpush.msra.mxu0 %v6472
  %8292 = vmatpush.msra.mxu0 %v6468
  %8293 = vmatpush.msra.mxu0 %v6464
  %8294 = vmatpush.msra.mxu0 %v6460
  %8295 = vmatpush.msra.mxu0 %v6456
  %8296 = vmatpush.msra.mxu0 %v6452
  %8297 = vmatpush.msra.mxu0 %v6448
  %8298 = vmatpush.msra.mxu0 %v6444
  %8299 = vmatpush.msra.mxu0 %v6440
  %8300 = vmatpush.msra.mxu0 %v6436
  %8301 = vmatpush.msra.mxu0 %v6432
  %8302 = vmatpush.msra.mxu0 %v6428
  %8303 = vmatmul.f32.gmra.mxu0 %v6212
  %v8304 = vpop.f32.mrf.mxu0
  %v8305 = vadd.f32 %v8285, %v8304
  %8306 = vdwg.mxu0
  %8307 = vmatpush.msra.mxu0 %v6552
  %8308 = vmatpush.msra.mxu0 %v6548
  %8309 = vmatpush.msra.mxu0 %v6544
  %8310 = vmatpush.msra.mxu0 %v6540
  %8311 = vmatpush.msra.mxu0 %v6536
  %8312 = vmatpush.msra.mxu0 %v6532
  %8313 = vmatpush.msra.mxu0 %v6528
  %8314 = vmatpush.msra.mxu0 %v6524
  %8315 = vmatpush.msra.mxu0 %v6520
  %8316 = vmatpush.msra.mxu0 %v6516
  %8317 = vmatpush.msra.mxu0 %v6512
  %8318 = vmatpush.msra.mxu0 %v6508
  %8319 = vmatpush.msra.mxu0 %v6504
  %8320 = vmatpush.msra.mxu0 %v6500
  %8321 = vmatpush.msra.mxu0 %v6496
  %8322 = vmatpush.msra.mxu0 %v6492
  %8323 = vmatmul.f32.gmra.mxu0 %v6203
  %v8324 = vpop.f32.mrf.mxu0
  %v8325 = vadd.f32 %v8305, %v8324
  %8326 = vdwg.mxu0
  %8327 = vmatpush.msra.mxu0 %v6616
  %8328 = vmatpush.msra.mxu0 %v6612
  %8329 = vmatpush.msra.mxu0 %v6608
  %8330 = vmatpush.msra.mxu0 %v6604
  %8331 = vmatpush.msra.mxu0 %v6600
  %8332 = vmatpush.msra.mxu0 %v6596
  %8333 = vmatpush.msra.mxu0 %v6592
  %8334 = vmatpush.msra.mxu0 %v6588
  %8335 = vmatpush.msra.mxu0 %v6584
  %8336 = vmatpush.msra.mxu0 %v6580
  %8337 = vmatpush.msra.mxu0 %v6576
  %8338 = vmatpush.msra.mxu0 %v6572
  %8339 = vmatpush.msra.mxu0 %v6568
  %8340 = vmatpush.msra.mxu0 %v6564
  %8341 = vmatpush.msra.mxu0 %v6560
  %8342 = vmatpush.msra.mxu0 %v6556
  %8343 = vmatmul.f32.gmra.mxu0 %v6204
  %v8344 = vpop.f32.mrf.mxu0
  %v8345 = vadd.f32 %v8325, %v8344
  %8346 = vdwg.mxu0
  %8347 = vmatpush.msra.mxu0 %v6680
  %8348 = vmatpush.msra.mxu0 %v6676
  %8349 = vmatpush.msra.mxu0 %v6672
  %8350 = vmatpush.msra.mxu0 %v6668
  %8351 = vmatpush.msra.mxu0 %v6664
  %8352 = vmatpush.msra.mxu0 %v6660
  %8353 = vmatpush.msra.mxu0 %v6656
  %8354 = vmatpush.msra.mxu0 %v6652
  %8355 = vmatpush.msra.mxu0 %v6648
  %8356 = vmatpush.msra.mxu0 %v6644
  %8357 = vmatpush.msra.mxu0 %v6640
  %8358 = vmatpush.msra.mxu0 %v6636
  %8359 = vmatpush.msra.mxu0 %v6632
  %8360 = vmatpush.msra.mxu0 %v6628
  %8361 = vmatpush.msra.mxu0 %v6624
  %8362 = vmatpush.msra.mxu0 %v6620
  %8363 = vmatmul.f32.gmra.mxu0 %v6217
  %v8364 = vpop.f32.mrf.mxu0
  %v8365 = vadd.f32 %v8345, %v8364
  %8366 = vdwg.mxu0
  %8367 = vmatpush.msra.mxu0 %v6744
  %8368 = vmatpush.msra.mxu0 %v6740
  %8369 = vmatpush.msra.mxu0 %v6736
  %8370 = vmatpush.msra.mxu0 %v6732
  %8371 = vmatpush.msra.mxu0 %v6728
  %8372 = vmatpush.msra.mxu0 %v6724
  %8373 = vmatpush.msra.mxu0 %v6720
  %8374 = vmatpush.msra.mxu0 %v6716
  %8375 = vmatpush.msra.mxu0 %v6712
  %8376 = vmatpush.msra.mxu0 %v6708
  %8377 = vmatpush.msra.mxu0 %v6704
  %8378 = vmatpush.msra.mxu0 %v6700
  %8379 = vmatpush.msra.mxu0 %v6696
  %8380 = vmatpush.msra.mxu0 %v6692
  %8381 = vmatpush.msra.mxu0 %v6688
  %8382 = vmatpush.msra.mxu0 %v6684
  %8383 = vmatmul.f32.gmra.mxu0 %v6218
  %v8384 = vpop.f32.mrf.mxu0
  %v8385 = vadd.f32 %v8365, %v8384
  %8386 = vdwg.mxu0
  %8387 = vmatpush.msra.mxu0 %v6808
  %8388 = vmatpush.msra.mxu0 %v6804
  %8389 = vmatpush.msra.mxu0 %v6800
  %8390 = vmatpush.msra.mxu0 %v6796
  %8391 = vmatpush.msra.mxu0 %v6792
  %8392 = vmatpush.msra.mxu0 %v6788
  %8393 = vmatpush.msra.mxu0 %v6784
  %8394 = vmatpush.msra.mxu0 %v6780
  %8395 = vmatpush.msra.mxu0 %v6776
  %8396 = vmatpush.msra.mxu0 %v6772
  %8397 = vmatpush.msra.mxu0 %v6768
  %8398 = vmatpush.msra.mxu0 %v6764
  %8399 = vmatpush.msra.mxu0 %v6760
  %8400 = vmatpush.msra.mxu0 %v6756
  %8401 = vmatpush.msra.mxu0 %v6752
  %8402 = vmatpush.msra.mxu0 %v6748
  %8403 = vmatmul.f32.gmra.mxu0 %v6205
  %v8404 = vpop.f32.mrf.mxu0
  %v8405 = vadd.f32 %v8385, %v8404
  %8406 = vdwg.mxu0
  %8407 = vmatpush.msra.mxu0 %v6872
  %8408 = vmatpush.msra.mxu0 %v6868
  %8409 = vmatpush.msra.mxu0 %v6864
  %8410 = vmatpush.msra.mxu0 %v6860
  %8411 = vmatpush.msra.mxu0 %v6856
  %8412 = vmatpush.msra.mxu0 %v6852
  %8413 = vmatpush.msra.mxu0 %v6848
  %8414 = vmatpush.msra.mxu0 %v6844
  %8415 = vmatpush.msra.mxu0 %v6840
  %8416 = vmatpush.msra.mxu0 %v6836
  %8417 = vmatpush.msra.mxu0 %v6832
  %8418 = vmatpush.msra.mxu0 %v6828
  %8419 = vmatpush.msra.mxu0 %v6824
  %8420 = vmatpush.msra.mxu0 %v6820
  %8421 = vmatpush.msra.mxu0 %v6816
  %8422 = vmatpush.msra.mxu0 %v6812
  %8423 = vmatmul.f32.gmra.mxu0 %v6206
  %v8424 = vpop.f32.mrf.mxu0
  %v8425 = vadd.f32 %v8405, %v8424
  %8426 = vdwg.mxu0
  %8427 = vmatpush.msra.mxu0 %v6936
  %8428 = vmatpush.msra.mxu0 %v6932
  %8429 = vmatpush.msra.mxu0 %v6928
  %8430 = vmatpush.msra.mxu0 %v6924
  %8431 = vmatpush.msra.mxu0 %v6920
  %8432 = vmatpush.msra.mxu0 %v6916
  %8433 = vmatpush.msra.mxu0 %v6912
  %8434 = vmatpush.msra.mxu0 %v6908
  %8435 = vmatpush.msra.mxu0 %v6904
  %8436 = vmatpush.msra.mxu0 %v6900
  %8437 = vmatpush.msra.mxu0 %v6896
  %8438 = vmatpush.msra.mxu0 %v6892
  %8439 = vmatpush.msra.mxu0 %v6888
  %8440 = vmatpush.msra.mxu0 %v6884
  %8441 = vmatpush.msra.mxu0 %v6880
  %8442 = vmatpush.msra.mxu0 %v6876
  %8443 = vmatmul.f32.gmra.mxu0 %v6223
  %v8444 = vpop.f32.mrf.mxu0
  %v8445 = vadd.f32 %v8425, %v8444
  %8446 = vdwg.mxu0
  %8447 = vmatpush.msra.mxu0 %v7000
  %8448 = vmatpush.msra.mxu0 %v6996
  %8449 = vmatpush.msra.mxu0 %v6992
  %8450 = vmatpush.msra.mxu0 %v6988
  %8451 = vmatpush.msra.mxu0 %v6984
  %8452 = vmatpush.msra.mxu0 %v6980
  %8453 = vmatpush.msra.mxu0 %v6976
  %8454 = vmatpush.msra.mxu0 %v6972
  %8455 = vmatpush.msra.mxu0 %v6968
  %8456 = vmatpush.msra.mxu0 %v6964
  %8457 = vmatpush.msra.mxu0 %v6960
  %8458 = vmatpush.msra.mxu0 %v6956
  %8459 = vmatpush.msra.mxu0 %v6952
  %8460 = vmatpush.msra.mxu0 %v6948
  %8461 = vmatpush.msra.mxu0 %v6944
  %8462 = vmatpush.msra.mxu0 %v6940
  %8463 = vmatmul.f32.gmra.mxu0 %v6224
  %v8464 = vpop.f32.mrf.mxu0
  %v8465 = vadd.f32 %v8445, %v8464
  %8466 = vdwg.mxu0
  %8467 = vmatpush.msra.mxu0 %v7064
  %8468 = vmatpush.msra.mxu0 %v7060
  %8469 = vmatpush.msra.mxu0 %v7056
  %8470 = vmatpush.msra.mxu0 %v7052
  %8471 = vmatpush.msra.mxu0 %v7048
  %8472 = vmatpush.msra.mxu0 %v7044
  %8473 = vmatpush.msra.mxu0 %v7040
  %8474 = vmatpush.msra.mxu0 %v7036
  %8475 = vmatpush.msra.mxu0 %v7032
  %8476 = vmatpush.msra.mxu0 %v7028
  %8477 = vmatpush.msra.mxu0 %v7024
  %8478 = vmatpush.msra.mxu0 %v7020
  %8479 = vmatpush.msra.mxu0 %v7016
  %8480 = vmatpush.msra.mxu0 %v7012
  %8481 = vmatpush.msra.mxu0 %v7008
  %8482 = vmatpush.msra.mxu0 %v7004
  %8483 = vmatmul.f32.gmra.mxu0 %v6207
  %v8484 = vpop.f32.mrf.mxu0
  %v8485 = vadd.f32 %v8465, %v8484
  %8486 = vdwg.mxu0
  %8487 = vmatpush.msra.mxu0 %v7128
  %8488 = vmatpush.msra.mxu0 %v7124
  %8489 = vmatpush.msra.mxu0 %v7120
  %8490 = vmatpush.msra.mxu0 %v7116
  %8491 = vmatpush.msra.mxu0 %v7112
  %8492 = vmatpush.msra.mxu0 %v7108
  %8493 = vmatpush.msra.mxu0 %v7104
  %8494 = vmatpush.msra.mxu0 %v7100
  %8495 = vmatpush.msra.mxu0 %v7096
  %8496 = vmatpush.msra.mxu0 %v7092
  %8497 = vmatpush.msra.mxu0 %v7088
  %8498 = vmatpush.msra.mxu0 %v7084
  %8499 = vmatpush.msra.mxu0 %v7080
  %8500 = vmatpush.msra.mxu0 %v7076
  %8501 = vmatpush.msra.mxu0 %v7072
  %8502 = vmatpush.msra.mxu0 %v7068
  %8503 = vmatmul.f32.gmra.mxu0 %v6208
  %v8504 = vpop.f32.mrf.mxu0
  %v8505 = vadd.f32 %v8485, %v8504
  %8506 = vdwg.mxu0
  %8507 = vmatpush.msra.mxu0 %v7192
  %8508 = vmatpush.msra.mxu0 %v7188
  %8509 = vmatpush.msra.mxu0 %v7184
  %8510 = vmatpush.msra.mxu0 %v7180
  %8511 = vmatpush.msra.mxu0 %v7176
  %8512 = vmatpush.msra.mxu0 %v7172
  %8513 = vmatpush.msra.mxu0 %v7168
  %8514 = vmatpush.msra.mxu0 %v7164
  %8515 = vmatpush.msra.mxu0 %v7160
  %8516 = vmatpush.msra.mxu0 %v7156
  %8517 = vmatpush.msra.mxu0 %v7152
  %8518 = vmatpush.msra.mxu0 %v7148
  %8519 = vmatpush.msra.mxu0 %v7144
  %8520 = vmatpush.msra.mxu0 %v7140
  %8521 = vmatpush.msra.mxu0 %v7136
  %8522 = vmatpush.msra.mxu0 %v7132
  %8523 = vmatmul.f32.gmra.mxu0 %v6229
  %v8524 = vpop.f32.mrf.mxu0
  %v8525 = vadd.f32 %v8505, %v8524
  %8526 = vdwg.mxu0
  %8527 = vmatpush.msra.mxu0 %v7256
  %8528 = vmatpush.msra.mxu0 %v7252
  %8529 = vmatpush.msra.mxu0 %v7248
  %8530 = vmatpush.msra.mxu0 %v7244
  %8531 = vmatpush.msra.mxu0 %v7240
  %8532 = vmatpush.msra.mxu0 %v7236
  %8533 = vmatpush.msra.mxu0 %v7232
  %8534 = vmatpush.msra.mxu0 %v7228
  %8535 = vmatpush.msra.mxu0 %v7224
  %8536 = vmatpush.msra.mxu0 %v7220
  %8537 = vmatpush.msra.mxu0 %v7216
  %8538 = vmatpush.msra.mxu0 %v7212
  %8539 = vmatpush.msra.mxu0 %v7208
  %8540 = vmatpush.msra.mxu0 %v7204
  %8541 = vmatpush.msra.mxu0 %v7200
  %8542 = vmatpush.msra.mxu0 %v7196
  %8543 = vmatmul.f32.gmra.mxu0 %v6230
  %v8544 = vpop.f32.mrf.mxu0
  %v8545 = vadd.f32 %v8525, %v8544
  %8546 = vdwg.mxu0
  %v8547 = vmax.f32 %v7585, 0.0
  %v8548 = vmax.f32 %v7905, 0.0
  %v8549 = vmax.f32 %v8225, 0.0
  %v8550 = vmax.f32 %v8545, 0.0
  %v8551 = vld [vmem:[%s13] sm:$0xff]
  %v8552 = vld [vmem:[%s13 + $0x8] sm:$0xff]
  %v8553 = vld [vmem:[%s13 + $0x10] sm:$0xff]
  %v8554 = vld [vmem:[%s13 + $0x18] sm:$0xff]
  %v8555 = vld [vmem:[%s13 + $0x20] sm:$0xff]
  %v8556 = vld [vmem:[%s13 + $0x28] sm:$0xff]
  %v8557 = vld [vmem:[%s13 + $0x30] sm:$0xff]
  %v8558 = vld [vmem:[%s13 + $0x38] sm:$0xff]
  %v8559 = vld [vmem:[%s13 + $0x40] sm:$0xff]
  %v8560 = vld [vmem:[%s13 + $0x48] sm:$0xff]
  %v8561 = vld [vmem:[%s13 + $0x50] sm:$0xff]
  %v8562 = vld [vmem:[%s13 + $0x58] sm:$0xff]
  %v8563 = vld [vmem:[%s13 + $0x60] sm:$0xff]
  %v8564 = vld [vmem:[%s13 + $0x68] sm:$0xff]
  %v8565 = vld [vmem:[%s13 + $0x70] sm:$0xff]
  %v8566 = vld [vmem:[%s13 + $0x78] sm:$0xff]
  %v8567 = vld [vmem:[%s13 + $0x80] sm:$0xff]
  %v8568 = vld [vmem:[%s13 + $0x88] sm:$0xff]
  %v8569 = vld [vmem:[%s13 + $0x90] sm:$0xff]
  %v8570 = vld [vmem:[%s13 + $0x98] sm:$0xff]
  %v8571 = vld [vmem:[%s13 + $0xa0] sm:$0xff]
  %v8572 = vld [vmem:[%s13 + $0xa8] sm:$0xff]
  %v8573 = vld [vmem:[%s13 + $0xb0] sm:$0xff]
  %v8574 = vld [vmem:[%s13 + $0xb8] sm:$0xff]
  %v8575 = vld [vmem:[%s13 + $0xc0] sm:$0xff]
  %v8576 = vld [vmem:[%s13 + $0xc8] sm:$0xff]
  %v8577 = vld [vmem:[%s13 + $0xd0] sm:$0xff]
  %v8578 = vld [vmem:[%s13 + $0xd8] sm:$0xff]
  %v8579 = vld [vmem:[%s13 + $0xe0] sm:$0xff]
  %v8580 = vld [vmem:[%s13 + $0xe8] sm:$0xff]
  %v8581 = vld [vmem:[%s13 + $0xf0] sm:$0xff]
  %v8582 = vld [vmem:[%s13 + $0xf8] sm:$0xff]
  %v8583 = vld [vmem:[%s13 + $0x100] sm:$0xff]
  %v8584 = vld [vmem:[%s13 + $0x108] sm:$0xff]
  %v8585 = vld [vmem:[%s13 + $0x110] sm:$0xff]
  %v8586 = vld [vmem:[%s13 + $0x118] sm:$0xff]
  %v8587 = vld [vmem:[%s13 + $0x120] sm:$0xff]
  %v8588 = vld [vmem:[%s13 + $0x128] sm:$0xff]
  %v8589 = vld [vmem:[%s13 + $0x130] sm:$0xff]
  %v8590 = vld [vmem:[%s13 + $0x138] sm:$0xff]
  %v8591 = vld [vmem:[%s13 + $0x140] sm:$0xff]
  %v8592 = vld [vmem:[%s13 + $0x148] sm:$0xff]
  %v8593 = vld [vmem:[%s13 + $0x150] sm:$0xff]
  %v8594 = vld [vmem:[%s13 + $0x158] sm:$0xff]
  %v8595 = vld [vmem:[%s13 + $0x160] sm:$0xff]
  %v8596 = vld [vmem:[%s13 + $0x168] sm:$0xff]
  %v8597 = vld [vmem:[%s13 + $0x170] sm:$0xff]
  %v8598 = vld [vmem:[%s13 + $0x178] sm:$0xff]
  %v8599 = vld [vmem:[%s13 + $0x180] sm:$0xff]
  %v8600 = vld [vmem:[%s13 + $0x188] sm:$0xff]
  %v8601 = vld [vmem:[%s13 + $0x190] sm:$0xff]
  %v8602 = vld [vmem:[%s13 + $0x198] sm:$0xff]
  %v8603 = vld [vmem:[%s13 + $0x1a0] sm:$0xff]
  %v8604 = vld [vmem:[%s13 + $0x1a8] sm:$0xff]
  %v8605 = vld [vmem:[%s13 + $0x1b0] sm:$0xff]
  %v8606 = vld [vmem:[%s13 + $0x1b8] sm:$0xff]
  %v8607 = vld [vmem:[%s13 + $0x1c0] sm:$0xff]
  %v8608 = vld [vmem:[%s13 + $0x1c8] sm:$0xff]
  %v8609 = vld [vmem:[%s13 + $0x1d0] sm:$0xff]
  %v8610 = vld [vmem:[%s13 + $0x1d8] sm:$0xff]
  %v8611 = vld [vmem:[%s13 + $0x1e0] sm:$0xff]
  %v8612 = vld [vmem:[%s13 + $0x1e8] sm:$0xff]
  %v8613 = vld [vmem:[%s13 + $0x1f0] sm:$0xff]
  %v8614 = vld [vmem:[%s13 + $0x1f8] sm:$0xff]
  %v8615 = vld [vmem:[%s13 + $0x200] sm:$0xff]
  %v8616 = vld [vmem:[%s13 + $0x208] sm:$0xff]
  %v8617 = vld [vmem:[%s13 + $0x210] sm:$0xff]
  %v8618 = vld [vmem:[%s13 + $0x218] sm:$0xff]
  %v8619 = vld [vmem:[%s13 + $0x220] sm:$0xff]
  %v8620 = vld [vmem:[%s13 + $0x228] sm:$0xff]
  %v8621 = vld [vmem:[%s13 + $0x230] sm:$0xff]
  %v8622 = vld [vmem:[%s13 + $0x238] sm:$0xff]
  %v8623 = vld [vmem:[%s13 + $0x240] sm:$0xff]
  %v8624 = vld [vmem:[%s13 + $0x248] sm:$0xff]
  %v8625 = vld [vmem:[%s13 + $0x250] sm:$0xff]
  %v8626 = vld [vmem:[%s13 + $0x258] sm:$0xff]
  %v8627 = vld [vmem:[%s13 + $0x260] sm:$0xff]
  %v8628 = vld [vmem:[%s13 + $0x268] sm:$0xff]
  %v8629 = vld [vmem:[%s13 + $0x270] sm:$0xff]
  %v8630 = vld [vmem:[%s13 + $0x278] sm:$0xff]
  %v8631 = vld [vmem:[%s13 + $0x280] sm:$0xff]
  %v8632 = vld [vmem:[%s13 + $0x288] sm:$0xff]
  %v8633 = vld [vmem:[%s13 + $0x290] sm:$0xff]
  %v8634 = vld [vmem:[%s13 + $0x298] sm:$0xff]
  %v8635 = vld [vmem:[%s13 + $0x2a0] sm:$0xff]
  %v8636 = vld [vmem:[%s13 + $0x2a8] sm:$0xff]
  %v8637 = vld [vmem:[%s13 + $0x2b0] sm:$0xff]
  %v8638 = vld [vmem:[%s13 + $0x2b8] sm:$0xff]
  %v8639 = vld [vmem:[%s13 + $0x2c0] sm:$0xff]
  %v8640 = vld [vmem:[%s13 + $0x2c8] sm:$0xff]
  %v8641 = vld [vmem:[%s13 + $0x2d0] sm:$0xff]
  %v8642 = vld [vmem:[%s13 + $0x2d8] sm:$0xff]
  %v8643 = vld [vmem:[%s13 + $0x2e0] sm:$0xff]
  %v8644 = vld [vmem:[%s13 + $0x2e8] sm:$0xff]
  %v8645 = vld [vmem:[%s13 + $0x2f0] sm:$0xff]
  %v8646 = vld [vmem:[%s13 + $0x2f8] sm:$0xff]
  %v8647 = vld [vmem:[%s13 + $0x300] sm:$0xff]
  %v8648 = vld [vmem:[%s13 + $0x308] sm:$0xff]
  %v8649 = vld [vmem:[%s13 + $0x310] sm:$0xff]
  %v8650 = vld [vmem:[%s13 + $0x318] sm:$0xff]
  %v8651 = vld [vmem:[%s13 + $0x320] sm:$0xff]
  %v8652 = vld [vmem:[%s13 + $0x328] sm:$0xff]
  %v8653 = vld [vmem:[%s13 + $0x330] sm:$0xff]
  %v8654 = vld [vmem:[%s13 + $0x338] sm:$0xff]
  %v8655 = vld [vmem:[%s13 + $0x340] sm:$0xff]
  %v8656 = vld [vmem:[%s13 + $0x348] sm:$0xff]
  %v8657 = vld [vmem:[%s13 + $0x350] sm:$0xff]
  %v8658 = vld [vmem:[%s13 + $0x358] sm:$0xff]
  %v8659 = vld [vmem:[%s13 + $0x360] sm:$0xff]
  %v8660 = vld [vmem:[%s13 + $0x368] sm:$0xff]
  %v8661 = vld [vmem:[%s13 + $0x370] sm:$0xff]
  %v8662 = vld [vmem:[%s13 + $0x378] sm:$0xff]
  %v8663 = vld [vmem:[%s13 + $0x380] sm:$0xff]
  %v8664 = vld [vmem:[%s13 + $0x388] sm:$0xff]
  %v8665 = vld [vmem:[%s13 + $0x390] sm:$0xff]
  %v8666 = vld [vmem:[%s13 + $0x398] sm:$0xff]
  %v8667 = vld [vmem:[%s13 + $0x3a0] sm:$0xff]
  %v8668 = vld [vmem:[%s13 + $0x3a8] sm:$0xff]
  %v8669 = vld [vmem:[%s13 + $0x3b0] sm:$0xff]
  %v8670 = vld [vmem:[%s13 + $0x3b8] sm:$0xff]
  %v8671 = vld [vmem:[%s13 + $0x3c0] sm:$0xff]
  %v8672 = vld [vmem:[%s13 + $0x3c8] sm:$0xff]
  %v8673 = vld [vmem:[%s13 + $0x3d0] sm:$0xff]
  %v8674 = vld [vmem:[%s13 + $0x3d8] sm:$0xff]
  %v8675 = vld [vmem:[%s13 + $0x3e0] sm:$0xff]
  %v8676 = vld [vmem:[%s13 + $0x3e8] sm:$0xff]
  %v8677 = vld [vmem:[%s13 + $0x3f0] sm:$0xff]
  %v8678 = vld [vmem:[%s13 + $0x3f8] sm:$0xff]
  %v8679 = vld [vmem:[%s13 + $0x400] sm:$0xff]
  %v8680 = vld [vmem:[%s13 + $0x408] sm:$0xff]
  %v8681 = vld [vmem:[%s13 + $0x410] sm:$0xff]
  %v8682 = vld [vmem:[%s13 + $0x418] sm:$0xff]
  %v8683 = vld [vmem:[%s13 + $0x420] sm:$0xff]
  %v8684 = vld [vmem:[%s13 + $0x428] sm:$0xff]
  %v8685 = vld [vmem:[%s13 + $0x430] sm:$0xff]
  %v8686 = vld [vmem:[%s13 + $0x438] sm:$0xff]
  %v8687 = vld [vmem:[%s13 + $0x440] sm:$0xff]
  %v8688 = vld [vmem:[%s13 + $0x448] sm:$0xff]
  %v8689 = vld [vmem:[%s13 + $0x450] sm:$0xff]
  %v8690 = vld [vmem:[%s13 + $0x458] sm:$0xff]
  %v8691 = vld [vmem:[%s13 + $0x460] sm:$0xff]
  %v8692 = vld [vmem:[%s13 + $0x468] sm:$0xff]
  %v8693 = vld [vmem:[%s13 + $0x470] sm:$0xff]
  %v8694 = vld [vmem:[%s13 + $0x478] sm:$0xff]
  %v8695 = vld [vmem:[%s13 + $0x480] sm:$0xff]
  %v8696 = vld [vmem:[%s13 + $0x488] sm:$0xff]
  %v8697 = vld [vmem:[%s13 + $0x490] sm:$0xff]
  %v8698 = vld [vmem:[%s13 + $0x498] sm:$0xff]
  %v8699 = vld [vmem:[%s13 + $0x4a0] sm:$0xff]
  %v8700 = vld [vmem:[%s13 + $0x4a8] sm:$0xff]
  %v8701 = vld [vmem:[%s13 + $0x4b0] sm:$0xff]
  %v8702 = vld [vmem:[%s13 + $0x4b8] sm:$0xff]
  %v8703 = vld [vmem:[%s13 + $0x4c0] sm:$0xff]
  %v8704 = vld [vmem:[%s13 + $0x4c8] sm:$0xff]
  %v8705 = vld [vmem:[%s13 + $0x4d0] sm:$0xff]
  %v8706 = vld [vmem:[%s13 + $0x4d8] sm:$0xff]
  %v8707 = vld [vmem:[%s13 + $0x4e0] sm:$0xff]
  %v8708 = vld [vmem:[%s13 + $0x4e8] sm:$0xff]
  %v8709 = vld [vmem:[%s13 + $0x4f0] sm:$0xff]
  %v8710 = vld [vmem:[%s13 + $0x4f8] sm:$0xff]
  %v8711 = vld [vmem:[%s13 + $0x500] sm:$0xff]
  %v8712 = vld [vmem:[%s13 + $0x508] sm:$0xff]
  %v8713 = vld [vmem:[%s13 + $0x510] sm:$0xff]
  %v8714 = vld [vmem:[%s13 + $0x518] sm:$0xff]
  %v8715 = vld [vmem:[%s13 + $0x520] sm:$0xff]
  %v8716 = vld [vmem:[%s13 + $0x528] sm:$0xff]
  %v8717 = vld [vmem:[%s13 + $0x530] sm:$0xff]
  %v8718 = vld [vmem:[%s13 + $0x538] sm:$0xff]
  %v8719 = vld [vmem:[%s13 + $0x540] sm:$0xff]
  %v8720 = vld [vmem:[%s13 + $0x548] sm:$0xff]
  %v8721 = vld [vmem:[%s13 + $0x550] sm:$0xff]
  %v8722 = vld [vmem:[%s13 + $0x558] sm:$0xff]
  %v8723 = vld [vmem:[%s13 + $0x560] sm:$0xff]
  %v8724 = vld [vmem:[%s13 + $0x568] sm:$0xff]
  %v8725 = vld [vmem:[%s13 + $0x570] sm:$0xff]
  %v8726 = vld [vmem:[%s13 + $0x578] sm:$0xff]
  %v8727 = vld [vmem:[%s13 + $0x580] sm:$0xff]
  %v8728 = vld [vmem:[%s13 + $0x588] sm:$0xff]
  %v8729 = vld [vmem:[%s13 + $0x590] sm:$0xff]
  %v8730 = vld [vmem:[%s13 + $0x598] sm:$0xff]
  %v8731 = vld [vmem:[%s13 + $0x5a0] sm:$0xff]
  %v8732 = vld [vmem:[%s13 + $0x5a8] sm:$0xff]
  %v8733 = vld [vmem:[%s13 + $0x5b0] sm:$0xff]
  %v8734 = vld [vmem:[%s13 + $0x5b8] sm:$0xff]
  %v8735 = vld [vmem:[%s13 + $0x5c0] sm:$0xff]
  %v8736 = vld [vmem:[%s13 + $0x5c8] sm:$0xff]
  %v8737 = vld [vmem:[%s13 + $0x5d0] sm:$0xff]
  %v8738 = vld [vmem:[%s13 + $0x5d8] sm:$0xff]
  %v8739 = vld [vmem:[%s13 + $0x5e0] sm:$0xff]
  %v8740 = vld [vmem:[%s13 + $0x5e8] sm:$0xff]
  %v8741 = vld [vmem:[%s13 + $0x5f0] sm:$0xff]
  %v8742 = vld [vmem:[%s13 + $0x5f8] sm:$0xff]
  %v8743 = vld [vmem:[%s13 + $0x600] sm:$0xff]
  %v8744 = vld [vmem:[%s13 + $0x608] sm:$0xff]
  %v8745 = vld [vmem:[%s13 + $0x610] sm:$0xff]
  %v8746 = vld [vmem:[%s13 + $0x618] sm:$0xff]
  %v8747 = vld [vmem:[%s13 + $0x620] sm:$0xff]
  %v8748 = vld [vmem:[%s13 + $0x628] sm:$0xff]
  %v8749 = vld [vmem:[%s13 + $0x630] sm:$0xff]
  %v8750 = vld [vmem:[%s13 + $0x638] sm:$0xff]
  %v8751 = vld [vmem:[%s13 + $0x640] sm:$0xff]
  %v8752 = vld [vmem:[%s13 + $0x648] sm:$0xff]
  %v8753 = vld [vmem:[%s13 + $0x650] sm:$0xff]
  %v8754 = vld [vmem:[%s13 + $0x658] sm:$0xff]
  %v8755 = vld [vmem:[%s13 + $0x660] sm:$0xff]
  %v8756 = vld [vmem:[%s13 + $0x668] sm:$0xff]
  %v8757 = vld [vmem:[%s13 + $0x670] sm:$0xff]
  %v8758 = vld [vmem:[%s13 + $0x678] sm:$0xff]
  %v8759 = vld [vmem:[%s13 + $0x680] sm:$0xff]
  %v8760 = vld [vmem:[%s13 + $0x688] sm:$0xff]
  %v8761 = vld [vmem:[%s13 + $0x690] sm:$0xff]
  %v8762 = vld [vmem:[%s13 + $0x698] sm:$0xff]
  %v8763 = vld [vmem:[%s13 + $0x6a0] sm:$0xff]
  %v8764 = vld [vmem:[%s13 + $0x6a8] sm:$0xff]
  %v8765 = vld [vmem:[%s13 + $0x6b0] sm:$0xff]
  %v8766 = vld [vmem:[%s13 + $0x6b8] sm:$0xff]
  %v8767 = vld [vmem:[%s13 + $0x6c0] sm:$0xff]
  %v8768 = vld [vmem:[%s13 + $0x6c8] sm:$0xff]
  %v8769 = vld [vmem:[%s13 + $0x6d0] sm:$0xff]
  %v8770 = vld [vmem:[%s13 + $0x6d8] sm:$0xff]
  %v8771 = vld [vmem:[%s13 + $0x6e0] sm:$0xff]
  %v8772 = vld [vmem:[%s13 + $0x6e8] sm:$0xff]
  %v8773 = vld [vmem:[%s13 + $0x6f0] sm:$0xff]
  %v8774 = vld [vmem:[%s13 + $0x6f8] sm:$0xff]
  %v8775 = vld [vmem:[%s13 + $0x700] sm:$0xff]
  %v8776 = vld [vmem:[%s13 + $0x708] sm:$0xff]
  %v8777 = vld [vmem:[%s13 + $0x710] sm:$0xff]
  %v8778 = vld [vmem:[%s13 + $0x718] sm:$0xff]
  %v8779 = vld [vmem:[%s13 + $0x720] sm:$0xff]
  %v8780 = vld [vmem:[%s13 + $0x728] sm:$0xff]
  %v8781 = vld [vmem:[%s13 + $0x730] sm:$0xff]
  %v8782 = vld [vmem:[%s13 + $0x738] sm:$0xff]
  %v8783 = vld [vmem:[%s13 + $0x740] sm:$0xff]
  %v8784 = vld [vmem:[%s13 + $0x748] sm:$0xff]
  %v8785 = vld [vmem:[%s13 + $0x750] sm:$0xff]
  %v8786 = vld [vmem:[%s13 + $0x758] sm:$0xff]
  %v8787 = vld [vmem:[%s13 + $0x760] sm:$0xff]
  %v8788 = vld [vmem:[%s13 + $0x768] sm:$0xff]
  %v8789 = vld [vmem:[%s13 + $0x770] sm:$0xff]
  %v8790 = vld [vmem:[%s13 + $0x778] sm:$0xff]
  %v8791 = vld [vmem:[%s13 + $0x780] sm:$0xff]
  %v8792 = vld [vmem:[%s13 + $0x788] sm:$0xff]
  %v8793 = vld [vmem:[%s13 + $0x790] sm:$0xff]
  %v8794 = vld [vmem:[%s13 + $0x798] sm:$0xff]
  %v8795 = vld [vmem:[%s13 + $0x7a0] sm:$0xff]
  %v8796 = vld [vmem:[%s13 + $0x7a8] sm:$0xff]
  %v8797 = vld [vmem:[%s13 + $0x7b0] sm:$0xff]
  %v8798 = vld [vmem:[%s13 + $0x7b8] sm:$0xff]
  %v8799 = vld [vmem:[%s13 + $0x7c0] sm:$0xff]
  %v8800 = vld [vmem:[%s13 + $0x7c8] sm:$0xff]
  %v8801 = vld [vmem:[%s13 + $0x7d0] sm:$0xff]
  %v8802 = vld [vmem:[%s13 + $0x7d8] sm:$0xff]
  %v8803 = vld [vmem:[%s13 + $0x7e0] sm:$0xff]
  %v8804 = vld [vmem:[%s13 + $0x7e8] sm:$0xff]
  %v8805 = vld [vmem:[%s13 + $0x7f0] sm:$0xff]
  %v8806 = vld [vmem:[%s13 + $0x7f8] sm:$0xff]
  %v8807 = vld [vmem:[%s14] sm:$0xf]
  %v8809 = vperm.slane %v8807, 0
  %v8810 = vperm.slane %v8807, 1
  %v8811 = vperm.slane %v8807, 2
  %v8812 = vperm.slane %v8807, 3
  %8817 = vmatpush.msra.mxu0 %v8611
  %8818 = vmatpush.msra.mxu0 %v8607
  %8819 = vmatpush.msra.mxu0 %v8603
  %8820 = vmatpush.msra.mxu0 %v8599
  %8821 = vmatpush.msra.mxu0 %v8595
  %8822 = vmatpush.msra.mxu0 %v8591
  %8823 = vmatpush.msra.mxu0 %v8587
  %8824 = vmatpush.msra.mxu0 %v8583
  %8825 = vmatpush.msra.mxu0 %v8579
  %8826 = vmatpush.msra.mxu0 %v8575
  %8827 = vmatpush.msra.mxu0 %v8571
  %8828 = vmatpush.msra.mxu0 %v8567
  %8829 = vmatpush.msra.mxu0 %v8563
  %8830 = vmatpush.msra.mxu0 %v8559
  %8831 = vmatpush.msra.mxu0 %v8555
  %8832 = vmatpush.msra.mxu0 %v8551
  %8833 = vmatmul.f32.gmra.mxu0 %v8547
  %v8834 = vpop.f32.mrf.mxu0
  %v8835 = vadd.f32 %v8809, %v8834
  %8836 = vdwg.mxu0
  %8837 = vmatpush.msra.mxu0 %v8675
  %8838 = vmatpush.msra.mxu0 %v8671
  %8839 = vmatpush.msra.mxu0 %v8667
  %8840 = vmatpush.msra.mxu0 %v8663
  %8841 = vmatpush.msra.mxu0 %v8659
  %8842 = vmatpush.msra.mxu0 %v8655
  %8843 = vmatpush.msra.mxu0 %v8651
  %8844 = vmatpush.msra.mxu0 %v8647
  %8845 = vmatpush.msra.mxu0 %v8643
  %8846 = vmatpush.msra.mxu0 %v8639
  %8847 = vmatpush.msra.mxu0 %v8635
  %8848 = vmatpush.msra.mxu0 %v8631
  %8849 = vmatpush.msra.mxu0 %v8627
  %8850 = vmatpush.msra.mxu0 %v8623
  %8851 = vmatpush.msra.mxu0 %v8619
  %8852 = vmatpush.msra.mxu0 %v8615
  %8853 = vmatmul.f32.gmra.mxu0 %v8548
  %v8854 = vpop.f32.mrf.mxu0
  %v8855 = vadd.f32 %v8835, %v8854
  %8856 = vdwg.mxu0
  %8857 = vmatpush.msra.mxu0 %v8739
  %8858 = vmatpush.msra.mxu0 %v8735
  %8859 = vmatpush.msra.mxu0 %v8731
  %8860 = vmatpush.msra.mxu0 %v8727
  %8861 = vmatpush.msra.mxu0 %v8723
  %8862 = vmatpush.msra.mxu0 %v8719
  %8863 = vmatpush.msra.mxu0 %v8715
  %8864 = vmatpush.msra.mxu0 %v8711
  %8865 = vmatpush.msra.mxu0 %v8707
  %8866 = vmatpush.msra.mxu0 %v8703
  %8867 = vmatpush.msra.mxu0 %v8699
  %8868 = vmatpush.msra.mxu0 %v8695
  %8869 = vmatpush.msra.mxu0 %v8691
  %8870 = vmatpush.msra.mxu0 %v8687
  %8871 = vmatpush.msra.mxu0 %v8683
  %8872 = vmatpush.msra.mxu0 %v8679
  %8873 = vmatmul.f32.gmra.mxu0 %v8549
  %v8874 = vpop.f32.mrf.mxu0
  %v8875 = vadd.f32 %v8855, %v8874
  %8876 = vdwg.mxu0
  %8877 = vmatpush.msra.mxu0 %v8803
  %8878 = vmatpush.msra.mxu0 %v8799
  %8879 = vmatpush.msra.mxu0 %v8795
  %8880 = vmatpush.msra.mxu0 %v8791
  %8881 = vmatpush.msra.mxu0 %v8787
  %8882 = vmatpush.msra.mxu0 %v8783
  %8883 = vmatpush.msra.mxu0 %v8779
  %8884 = vmatpush.msra.mxu0 %v8775
  %8885 = vmatpush.msra.mxu0 %v8771
  %8886 = vmatpush.msra.mxu0 %v8767
  %8887 = vmatpush.msra.mxu0 %v8763
  %8888 = vmatpush.msra.mxu0 %v8759
  %8889 = vmatpush.msra.mxu0 %v8755
  %8890 = vmatpush.msra.mxu0 %v8751
  %8891 = vmatpush.msra.mxu0 %v8747
  %8892 = vmatpush.msra.mxu0 %v8743
  %8893 = vmatmul.f32.gmra.mxu0 %v8550
  %v8894 = vpop.f32.mrf.mxu0
  %v8895 = vadd.f32 %v8875, %v8894
  %8896 = vdwg.mxu0
  %8897 = vmatpush.msra.mxu0 %v8612
  %8898 = vmatpush.msra.mxu0 %v8608
  %8899 = vmatpush.msra.mxu0 %v8604
  %8900 = vmatpush.msra.mxu0 %v8600
  %8901 = vmatpush.msra.mxu0 %v8596
  %8902 = vmatpush.msra.mxu0 %v8592
  %8903 = vmatpush.msra.mxu0 %v8588
  %8904 = vmatpush.msra.mxu0 %v8584
  %8905 = vmatpush.msra.mxu0 %v8580
  %8906 = vmatpush.msra.mxu0 %v8576
  %8907 = vmatpush.msra.mxu0 %v8572
  %8908 = vmatpush.msra.mxu0 %v8568
  %8909 = vmatpush.msra.mxu0 %v8564
  %8910 = vmatpush.msra.mxu0 %v8560
  %8911 = vmatpush.msra.mxu0 %v8556
  %8912 = vmatpush.msra.mxu0 %v8552
  %8913 = vmatmul.f32.gmra.mxu0 %v8547
  %v8914 = vpop.f32.mrf.mxu0
  %v8915 = vadd.f32 %v8810, %v8914
  %8916 = vdwg.mxu0
  %8917 = vmatpush.msra.mxu0 %v8676
  %8918 = vmatpush.msra.mxu0 %v8672
  %8919 = vmatpush.msra.mxu0 %v8668
  %8920 = vmatpush.msra.mxu0 %v8664
  %8921 = vmatpush.msra.mxu0 %v8660
  %8922 = vmatpush.msra.mxu0 %v8656
  %8923 = vmatpush.msra.mxu0 %v8652
  %8924 = vmatpush.msra.mxu0 %v8648
  %8925 = vmatpush.msra.mxu0 %v8644
  %8926 = vmatpush.msra.mxu0 %v8640
  %8927 = vmatpush.msra.mxu0 %v8636
  %8928 = vmatpush.msra.mxu0 %v8632
  %8929 = vmatpush.msra.mxu0 %v8628
  %8930 = vmatpush.msra.mxu0 %v8624
  %8931 = vmatpush.msra.mxu0 %v8620
  %8932 = vmatpush.msra.mxu0 %v8616
  %8933 = vmatmul.f32.gmra.mxu0 %v8548
  %v8934 = vpop.f32.mrf.mxu0
  %v8935 = vadd.f32 %v8915, %v8934
  %8936 = vdwg.mxu0
  %8937 = vmatpush.msra.mxu0 %v8740
  %8938 = vmatpush.msra.mxu0 %v8736
  %8939 = vmatpush.msra.mxu0 %v8732
  %8940 = vmatpush.msra.mxu0 %v8728
  %8941 = vmatpush.msra.mxu0 %v8724
  %8942 = vmatpush.msra.mxu0 %v8720
  %8943 = vmatpush.msra.mxu0 %v8716
  %8944 = vmatpush.msra.mxu0 %v8712
  %8945 = vmatpush.msra.mxu0 %v8708
  %8946 = vmatpush.msra.mxu0 %v8704
  %8947 = vmatpush.msra.mxu0 %v8700
  %8948 = vmatpush.msra.mxu0 %v8696
  %8949 = vmatpush.msra.mxu0 %v8692
  %8950 = vmatpush.msra.mxu0 %v8688
  %8951 = vmatpush.msra.mxu0 %v8684
  %8952 = vmatpush.msra.mxu0 %v8680
  %8953 = vmatmul.f32.gmra.mxu0 %v8549
  %v8954 = vpop.f32.mrf.mxu0
  %v8955 = vadd.f32 %v8935, %v8954
  %8956 = vdwg.mxu0
  %8957 = vmatpush.msra.mxu0 %v8804
  %8958 = vmatpush.msra.mxu0 %v8800
  %8959 = vmatpush.msra.mxu0 %v8796
  %8960 = vmatpush.msra.mxu0 %v8792
  %8961 = vmatpush.msra.mxu0 %v8788
  %8962 = vmatpush.msra.mxu0 %v8784
  %8963 = vmatpush.msra.mxu0 %v8780
  %8964 = vmatpush.msra.mxu0 %v8776
  %8965 = vmatpush.msra.mxu0 %v8772
  %8966 = vmatpush.msra.mxu0 %v8768
  %8967 = vmatpush.msra.mxu0 %v8764
  %8968 = vmatpush.msra.mxu0 %v8760
  %8969 = vmatpush.msra.mxu0 %v8756
  %8970 = vmatpush.msra.mxu0 %v8752
  %8971 = vmatpush.msra.mxu0 %v8748
  %8972 = vmatpush.msra.mxu0 %v8744
  %8973 = vmatmul.f32.gmra.mxu0 %v8550
  %v8974 = vpop.f32.mrf.mxu0
  %v8975 = vadd.f32 %v8955, %v8974
  %8976 = vdwg.mxu0
  %8977 = vmatpush.msra.mxu0 %v8613
  %8978 = vmatpush.msra.mxu0 %v8609
  %8979 = vmatpush.msra.mxu0 %v8605
  %8980 = vmatpush.msra.mxu0 %v8601
  %8981 = vmatpush.msra.mxu0 %v8597
  %8982 = vmatpush.msra.mxu0 %v8593
  %8983 = vmatpush.msra.mxu0 %v8589
  %8984 = vmatpush.msra.mxu0 %v8585
  %8985 = vmatpush.msra.mxu0 %v8581
  %8986 = vmatpush.msra.mxu0 %v8577
  %8987 = vmatpush.msra.mxu0 %v8573
  %8988 = vmatpush.msra.mxu0 %v8569
  %8989 = vmatpush.msra.mxu0 %v8565
  %8990 = vmatpush.msra.mxu0 %v8561
  %8991 = vmatpush.msra.mxu0 %v8557
  %8992 = vmatpush.msra.mxu0 %v8553
  %8993 = vmatmul.f32.gmra.mxu0 %v8547
  %v8994 = vpop.f32.mrf.mxu0
  %v8995 = vadd.f32 %v8811, %v8994
  %8996 = vdwg.mxu0
  %8997 = vmatpush.msra.mxu0 %v8677
  %8998 = vmatpush.msra.mxu0 %v8673
  %8999 = vmatpush.msra.mxu0 %v8669
  %9000 = vmatpush.msra.mxu0 %v8665
  %9001 = vmatpush.msra.mxu0 %v8661
  %9002 = vmatpush.msra.mxu0 %v8657
  %9003 = vmatpush.msra.mxu0 %v8653
  %9004 = vmatpush.msra.mxu0 %v8649
  %9005 = vmatpush.msra.mxu0 %v8645
  %9006 = vmatpush.msra.mxu0 %v8641
  %9007 = vmatpush.msra.mxu0 %v8637
  %9008 = vmatpush.msra.mxu0 %v8633
  %9009 = vmatpush.msra.mxu0 %v8629
  %9010 = vmatpush.msra.mxu0 %v8625
  %9011 = vmatpush.msra.mxu0 %v8621
  %9012 = vmatpush.msra.mxu0 %v8617
  %9013 = vmatmul.f32.gmra.mxu0 %v8548
  %v9014 = vpop.f32.mrf.mxu0
  %v9015 = vadd.f32 %v8995, %v9014
  %9016 = vdwg.mxu0
  %9017 = vmatpush.msra.mxu0 %v8741
  %9018 = vmatpush.msra.mxu0 %v8737
  %9019 = vmatpush.msra.mxu0 %v8733
  %9020 = vmatpush.msra.mxu0 %v8729
  %9021 = vmatpush.msra.mxu0 %v8725
  %9022 = vmatpush.msra.mxu0 %v8721
  %9023 = vmatpush.msra.mxu0 %v8717
  %9024 = vmatpush.msra.mxu0 %v8713
  %9025 = vmatpush.msra.mxu0 %v8709
  %9026 = vmatpush.msra.mxu0 %v8705
  %9027 = vmatpush.msra.mxu0 %v8701
  %9028 = vmatpush.msra.mxu0 %v8697
  %9029 = vmatpush.msra.mxu0 %v8693
  %9030 = vmatpush.msra.mxu0 %v8689
  %9031 = vmatpush.msra.mxu0 %v8685
  %9032 = vmatpush.msra.mxu0 %v8681
  %9033 = vmatmul.f32.gmra.mxu0 %v8549
  %v9034 = vpop.f32.mrf.mxu0
  %v9035 = vadd.f32 %v9015, %v9034
  %9036 = vdwg.mxu0
  %9037 = vmatpush.msra.mxu0 %v8805
  %9038 = vmatpush.msra.mxu0 %v8801
  %9039 = vmatpush.msra.mxu0 %v8797
  %9040 = vmatpush.msra.mxu0 %v8793
  %9041 = vmatpush.msra.mxu0 %v8789
  %9042 = vmatpush.msra.mxu0 %v8785
  %9043 = vmatpush.msra.mxu0 %v8781
  %9044 = vmatpush.msra.mxu0 %v8777
  %9045 = vmatpush.msra.mxu0 %v8773
  %9046 = vmatpush.msra.mxu0 %v8769
  %9047 = vmatpush.msra.mxu0 %v8765
  %9048 = vmatpush.msra.mxu0 %v8761
  %9049 = vmatpush.msra.mxu0 %v8757
  %9050 = vmatpush.msra.mxu0 %v8753
  %9051 = vmatpush.msra.mxu0 %v8749
  %9052 = vmatpush.msra.mxu0 %v8745
  %9053 = vmatmul.f32.gmra.mxu0 %v8550
  %v9054 = vpop.f32.mrf.mxu0
  %v9055 = vadd.f32 %v9035, %v9054
  %9056 = vdwg.mxu0
  %9057 = vmatpush.msra.mxu0 %v8614
  %9058 = vmatpush.msra.mxu0 %v8610
  %9059 = vmatpush.msra.mxu0 %v8606
  %9060 = vmatpush.msra.mxu0 %v8602
  %9061 = vmatpush.msra.mxu0 %v8598
  %9062 = vmatpush.msra.mxu0 %v8594
  %9063 = vmatpush.msra.mxu0 %v8590
  %9064 = vmatpush.msra.mxu0 %v8586
  %9065 = vmatpush.msra.mxu0 %v8582
  %9066 = vmatpush.msra.mxu0 %v8578
  %9067 = vmatpush.msra.mxu0 %v8574
  %9068 = vmatpush.msra.mxu0 %v8570
  %9069 = vmatpush.msra.mxu0 %v8566
  %9070 = vmatpush.msra.mxu0 %v8562
  %9071 = vmatpush.msra.mxu0 %v8558
  %9072 = vmatpush.msra.mxu0 %v8554
  %9073 = vmatmul.f32.gmra.mxu0 %v8547
  %v9074 = vpop.f32.mrf.mxu0
  %v9075 = vadd.f32 %v8812, %v9074
  %9076 = vdwg.mxu0
  %9077 = vmatpush.msra.mxu0 %v8678
  %9078 = vmatpush.msra.mxu0 %v8674
  %9079 = vmatpush.msra.mxu0 %v8670
  %9080 = vmatpush.msra.mxu0 %v8666
  %9081 = vmatpush.msra.mxu0 %v8662
  %9082 = vmatpush.msra.mxu0 %v8658
  %9083 = vmatpush.msra.mxu0 %v8654
  %9084 = vmatpush.msra.mxu0 %v8650
  %9085 = vmatpush.msra.mxu0 %v8646
  %9086 = vmatpush.msra.mxu0 %v8642
  %9087 = vmatpush.msra.mxu0 %v8638
  %9088 = vmatpush.msra.mxu0 %v8634
  %9089 = vmatpush.msra.mxu0 %v8630
  %9090 = vmatpush.msra.mxu0 %v8626
  %9091 = vmatpush.msra.mxu0 %v8622
  %9092 = vmatpush.msra.mxu0 %v8618
  %9093 = vmatmul.f32.gmra.mxu0 %v8548
  %v9094 = vpop.f32.mrf.mxu0
  %v9095 = vadd.f32 %v9075, %v9094
  %9096 = vdwg.mxu0
  %9097 = vmatpush.msra.mxu0 %v8742
  %9098 = vmatpush.msra.mxu0 %v8738
  %9099 = vmatpush.msra.mxu0 %v8734
  %9100 = vmatpush.msra.mxu0 %v8730
  %9101 = vmatpush.msra.mxu0 %v8726
  %9102 = vmatpush.msra.mxu0 %v8722
  %9103 = vmatpush.msra.mxu0 %v8718
  %9104 = vmatpush.msra.mxu0 %v8714
  %9105 = vmatpush.msra.mxu0 %v8710
  %9106 = vmatpush.msra.mxu0 %v8706
  %9107 = vmatpush.msra.mxu0 %v8702
  %9108 = vmatpush.msra.mxu0 %v8698
  %9109 = vmatpush.msra.mxu0 %v8694
  %9110 = vmatpush.msra.mxu0 %v8690
  %9111 = vmatpush.msra.mxu0 %v8686
  %9112 = vmatpush.msra.mxu0 %v8682
  %9113 = vmatmul.f32.gmra.mxu0 %v8549
  %v9114 = vpop.f32.mrf.mxu0
  %v9115 = vadd.f32 %v9095, %v9114
  %9116 = vdwg.mxu0
  %9117 = vmatpush.msra.mxu0 %v8806
  %9118 = vmatpush.msra.mxu0 %v8802
  %9119 = vmatpush.msra.mxu0 %v8798
  %9120 = vmatpush.msra.mxu0 %v8794
  %9121 = vmatpush.msra.mxu0 %v8790
  %9122 = vmatpush.msra.mxu0 %v8786
  %9123 = vmatpush.msra.mxu0 %v8782
  %9124 = vmatpush.msra.mxu0 %v8778
  %9125 = vmatpush.msra.mxu0 %v8774
  %9126 = vmatpush.msra.mxu0 %v8770
  %9127 = vmatpush.msra.mxu0 %v8766
  %9128 = vmatpush.msra.mxu0 %v8762
  %9129 = vmatpush.msra.mxu0 %v8758
  %9130 = vmatpush.msra.mxu0 %v8754
  %9131 = vmatpush.msra.mxu0 %v8750
  %9132 = vmatpush.msra.mxu0 %v8746
  %9133 = vmatmul.f32.gmra.mxu0 %v8550
  %v9134 = vpop.f32.mrf.mxu0
  %v9135 = vadd.f32 %v9115, %v9134
  %9136 = vdwg.mxu0
  %v9137 = vmax.f32 %v8895, 0.0
  %v9138 = vmax.f32 %v8975, 0.0
  %v9139 = vmax.f32 %v9055, 0.0
  %v9140 = vmax.f32 %v9135, 0.0
  %v9141 = vld [vmem:[%s15] sm:$0xff]
  %v9142 = vld [vmem:[%s15 + $0x8] sm:$0xff]
  %v9143 = vld [vmem:[%s15 + $0x10] sm:$0xff]
  %v9144 = vld [vmem:[%s15 + $0x18] sm:$0xff]
  %v9145 = vld [vmem:[%s15 + $0x20] sm:$0xff]
  %v9146 = vld [vmem:[%s15 + $0x28] sm:$0xff]
  %v9147 = vld [vmem:[%s15 + $0x30] sm:$0xff]
  %v9148 = vld [vmem:[%s15 + $0x38] sm:$0xff]
  %v9149 = vld [vmem:[%s15 + $0x40] sm:$0xff]
  %v9150 = vld [vmem:[%s15 + $0x48] sm:$0xff]
  %v9151 = vld [vmem:[%s15 + $0x50] sm:$0xff]
  %v9152 = vld [vmem:[%s15 + $0x58] sm:$0xff]
  %v9153 = vld [vmem:[%s15 + $0x60] sm:$0xff]
  %v9154 = vld [vmem:[%s15 + $0x68] sm:$0xff]
  %v9155 = vld [vmem:[%s15 + $0x70] sm:$0xff]
  %v9156 = vld [vmem:[%s15 + $0x78] sm:$0xff]
  %v9157 = vld [vmem:[%s15 + $0x80] sm:$0xff]
  %v9158 = vld [vmem:[%s15 + $0x88] sm:$0xff]
  %v9159 = vld [vmem:[%s15 + $0x90] sm:$0xff]
  %v9160 = vld [vmem:[%s15 + $0x98] sm:$0xff]
  %v9161 = vld [vmem:[%s15 + $0xa0] sm:$0xff]
  %v9162 = vld [vmem:[%s15 + $0xa8] sm:$0xff]
  %v9163 = vld [vmem:[%s15 + $0xb0] sm:$0xff]
  %v9164 = vld [vmem:[%s15 + $0xb8] sm:$0xff]
  %v9165 = vld [vmem:[%s15 + $0xc0] sm:$0xff]
  %v9166 = vld [vmem:[%s15 + $0xc8] sm:$0xff]
  %v9167 = vld [vmem:[%s15 + $0xd0] sm:$0xff]
  %v9168 = vld [vmem:[%s15 + $0xd8] sm:$0xff]
  %v9169 = vld [vmem:[%s15 + $0xe0] sm:$0xff]
  %v9170 = vld [vmem:[%s15 + $0xe8] sm:$0xff]
  %v9171 = vld [vmem:[%s15 + $0xf0] sm:$0xff]
  %v9172 = vld [vmem:[%s15 + $0xf8] sm:$0xff]
  %v9173 = vld [vmem:[%s15 + $0x100] sm:$0xff]
  %v9174 = vld [vmem:[%s15 + $0x108] sm:$0xff]
  %v9175 = vld [vmem:[%s15 + $0x110] sm:$0xff]
  %v9176 = vld [vmem:[%s15 + $0x118] sm:$0xff]
  %v9177 = vld [vmem:[%s15 + $0x120] sm:$0xff]
  %v9178 = vld [vmem:[%s15 + $0x128] sm:$0xff]
  %v9179 = vld [vmem:[%s15 + $0x130] sm:$0xff]
  %v9180 = vld [vmem:[%s15 + $0x138] sm:$0xff]
  %v9181 = vld [vmem:[%s15 + $0x140] sm:$0xff]
  %v9182 = vld [vmem:[%s15 + $0x148] sm:$0xff]
  %v9183 = vld [vmem:[%s15 + $0x150] sm:$0xff]
  %v9184 = vld [vmem:[%s15 + $0x158] sm:$0xff]
  %v9185 = vld [vmem:[%s15 + $0x160] sm:$0xff]
  %v9186 = vld [vmem:[%s15 + $0x168] sm:$0xff]
  %v9187 = vld [vmem:[%s15 + $0x170] sm:$0xff]
  %v9188 = vld [vmem:[%s15 + $0x178] sm:$0xff]
  %v9189 = vld [vmem:[%s15 + $0x180] sm:$0xff]
  %v9190 = vld [vmem:[%s15 + $0x188] sm:$0xff]
  %v9191 = vld [vmem:[%s15 + $0x190] sm:$0xff]
  %v9192 = vld [vmem:[%s15 + $0x198] sm:$0xff]
  %v9193 = vld [vmem:[%s15 + $0x1a0] sm:$0xff]
  %v9194 = vld [vmem:[%s15 + $0x1a8] sm:$0xff]
  %v9195 = vld [vmem:[%s15 + $0x1b0] sm:$0xff]
  %v9196 = vld [vmem:[%s15 + $0x1b8] sm:$0xff]
  %v9197 = vld [vmem:[%s15 + $0x1c0] sm:$0xff]
  %v9198 = vld [vmem:[%s15 + $0x1c8] sm:$0xff]
  %v9199 = vld [vmem:[%s15 + $0x1d0] sm:$0xff]
  %v9200 = vld [vmem:[%s15 + $0x1d8] sm:$0xff]
  %v9201 = vld [vmem:[%s15 + $0x1e0] sm:$0xff]
  %v9202 = vld [vmem:[%s15 + $0x1e8] sm:$0xff]
  %v9203 = vld [vmem:[%s15 + $0x1f0] sm:$0xff]
  %v9204 = vld [vmem:[%s15 + $0x1f8] sm:$0xff]
  %v9205 = vld [vmem:[%s16] sm:$0x1]
  %v9207 = vperm.slane %v9205, 0
  %9209 = vmatpush.msra.mxu0 %v9156
  %9210 = vmatpush.msra.mxu0 %v9155
  %9211 = vmatpush.msra.mxu0 %v9154
  %9212 = vmatpush.msra.mxu0 %v9153
  %9213 = vmatpush.msra.mxu0 %v9152
  %9214 = vmatpush.msra.mxu0 %v9151
  %9215 = vmatpush.msra.mxu0 %v9150
  %9216 = vmatpush.msra.mxu0 %v9149
  %9217 = vmatpush.msra.mxu0 %v9148
  %9218 = vmatpush.msra.mxu0 %v9147
  %9219 = vmatpush.msra.mxu0 %v9146
  %9220 = vmatpush.msra.mxu0 %v9145
  %9221 = vmatpush.msra.mxu0 %v9144
  %9222 = vmatpush.msra.mxu0 %v9143
  %9223 = vmatpush.msra.mxu0 %v9142
  %9224 = vmatpush.msra.mxu0 %v9141
  %9225 = vmatmul.f32.gmra.mxu0 %v9137
  %v9226 = vpop.f32.mrf.mxu0
  %v9227 = vadd.f32 %v9207, %v9226
  %9228 = vdwg.mxu0
  %9229 = vmatpush.msra.mxu0 %v9172
  %9230 = vmatpush.msra.mxu0 %v9171
  %9231 = vmatpush.msra.mxu0 %v9170
  %9232 = vmatpush.msra.mxu0 %v9169
  %9233 = vmatpush.msra.mxu0 %v9168
  %9234 = vmatpush.msra.mxu0 %v9167
  %9235 = vmatpush.msra.mxu0 %v9166
  %9236 = vmatpush.msra.mxu0 %v9165
  %9237 = vmatpush.msra.mxu0 %v9164
  %9238 = vmatpush.msra.mxu0 %v9163
  %9239 = vmatpush.msra.mxu0 %v9162
  %9240 = vmatpush.msra.mxu0 %v9161
  %9241 = vmatpush.msra.mxu0 %v9160
  %9242 = vmatpush.msra.mxu0 %v9159
  %9243 = vmatpush.msra.mxu0 %v9158
  %9244 = vmatpush.msra.mxu0 %v9157
  %9245 = vmatmul.f32.gmra.mxu0 %v9138
  %v9246 = vpop.f32.mrf.mxu0
  %v9247 = vadd.f32 %v9227, %v9246
  %9248 = vdwg.mxu0
  %9249 = vmatpush.msra.mxu0 %v9188
  %9250 = vmatpush.msra.mxu0 %v9187
  %9251 = vmatpush.msra.mxu0 %v9186
  %9252 = vmatpush.msra.mxu0 %v9185
  %9253 = vmatpush.msra.mxu0 %v9184
  %9254 = vmatpush.msra.mxu0 %v9183
  %9255 = vmatpush.msra.mxu0 %v9182
  %9256 = vmatpush.msra.mxu0 %v9181
  %9257 = vmatpush.msra.mxu0 %v9180
  %9258 = vmatpush.msra.mxu0 %v9179
  %9259 = vmatpush.msra.mxu0 %v9178
  %9260 = vmatpush.msra.mxu0 %v9177
  %9261 = vmatpush.msra.mxu0 %v9176
  %9262 = vmatpush.msra.mxu0 %v9175
  %9263 = vmatpush.msra.mxu0 %v9174
  %9264 = vmatpush.msra.mxu0 %v9173
  %9265 = vmatmul.f32.gmra.mxu0 %v9139
  %v9266 = vpop.f32.mrf.mxu0
  %v9267 = vadd.f32 %v9247, %v9266
  %9268 = vdwg.mxu0
  %9269 = vmatpush.msra.mxu0 %v9204
  %9270 = vmatpush.msra.mxu0 %v9203
  %9271 = vmatpush.msra.mxu0 %v9202
  %9272 = vmatpush.msra.mxu0 %v9201
  %9273 = vmatpush.msra.mxu0 %v9200
  %9274 = vmatpush.msra.mxu0 %v9199
  %9275 = vmatpush.msra.mxu0 %v9198
  %9276 = vmatpush.msra.mxu0 %v9197
  %9277 = vmatpush.msra.mxu0 %v9196
  %9278 = vmatpush.msra.mxu0 %v9195
  %9279 = vmatpush.msra.mxu0 %v9194
  %9280 = vmatpush.msra.mxu0 %v9193
  %9281 = vmatpush.msra.mxu0 %v9192
  %9282 = vmatpush.msra.mxu0 %v9191
  %9283 = vmatpush.msra.mxu0 %v9190
  %9284 = vmatpush.msra.mxu0 %v9189
  %9285 = vmatmul.f32.gmra.mxu0 %v9140
  %v9286 = vpop.f32.mrf.mxu0
  %v9287 = vadd.f32 %v9267, %v9286
  %9288 = vdwg.mxu0
  %9289 = vst [vmem:[%s17] sm:$0xf] %v9287
  // Predicated region
  $region70: #{siamese_forward.1} parent=0 // pred_check
    _
  $region71: #{siamese_forward.1} parent=0 // pred_check_branch
    %9291 = sbr.rel (0) target = $region73
  $region72: #{siamese_forward.1} parent=0 // pred_region
    _
  $region73: #{siamese_forward.1} parent=0 // pred_fallthru
    _
  // Predicated region
  $region74: #{siamese_forward.1} parent=0 // pred_check
    _
  $region75: #{siamese_forward.1} parent=0 // pred_check_branch
    %9293 = sbr.rel (0) target = $region77
  $region76: #{siamese_forward.1} parent=0 // pred_region
    _
  $region77: #{siamese_forward.1} parent=0 // pred_fallthru
    _

</llo_original>
